<compile_context>
chip_gen: v7x
topology: tpu7x:2x2x1
jax: 0.10.0
libtpu: 0.0.40
codegen_flags: <defaults>
</compile_context>

<pallas_src>
import functools

import jax
import jax.numpy as jnp
from jax.experimental import pallas as pl
from jax.experimental.pallas import tpu as pltpu

EPS = 1e-5
EXPANSION = 4
LANE = 128


def _round_up(x, m):
    return (x + m - 1) // m * m


def _hw_budget():
    """(vmem_limit_bytes, default tile rows) chosen per TPU generation."""
    vmem = None
    try:
        vmem = getattr(pltpu.get_tpu_info(), "vmem_capacity_bytes", None)
    except Exception:
        vmem = None
    if vmem is None:
        vmem = 64 * 1024 * 1024
    if vmem >= 96 * 1024 * 1024:            # v5e / v6e: 128 MiB VMEM
        return 100 * 1024 * 1024, 1024
    return 48 * 1024 * 1024, 512            # v7x: 64 MiB VMEM


_VMEM_LIMIT, _TILE_ROWS = _hw_budget()


def _pick_tile_rows(m, target):
    """Largest multiple of 8 <= target that divides M (fallback: full M)."""
    # TODO(synk): for awkward M with no multiple-of-8 divisor near the
    # target, pad M with zero rows (harmless: stats use the true count)
    # instead of falling back to tm = M.
    t = min(target, m)
    t -= t % 8
    for cand in range(t, 7, -8):
        if m % cand == 0:
            return cand
    return m


# ----------------------------------------------------------------------------
# K1 / K1': [optional fused BN-apply+ReLU] -> 1x1-conv matmul -> BN-stats.
#   x_ref  (TM, K) bf16       s_ref/b_ref (1, K) f32 (only if pre_act)
#   w_ref  (K, C)  bf16
#   y_ref  (TM, C) bf16       stats_ref (8, C) f32  (per-core resident acc;
#                              row 0 = sum, row 1 = sum of squares)
# ----------------------------------------------------------------------------
def _mm_stats_kernel(pre_act, x_ref, *refs):
    if pre_act:
        s_ref, b_ref, w_ref, y_ref, stats_ref = refs
    else:
        w_ref, y_ref, stats_ref = refs

    @pl.when(pl.program_id(1) == 0)
    def _():
        stats_ref[...] = jnp.zeros_like(stats_ref)

    x = x_ref[...]
    if pre_act:
        # BN/ReLU epilogue math stays f32 (v5e has no bf16 VPU).
        x = jnp.maximum(x.astype(jnp.float32) * s_ref[...] + b_ref[...], 0.0)
        x = x.astype(jnp.bfloat16)
    y = jnp.dot(x, w_ref[...], preferred_element_type=jnp.float32)

    stats_ref[0:1, :] += jnp.sum(y, axis=0, keepdims=True)
    stats_ref[1:2, :] += jnp.sum(y * y, axis=0, keepdims=True)
    y_ref[...] = y.astype(y_ref.dtype)          # bf16 HBM store


def _matmul_stats(x2d, w_bf16, pre_scale=None, pre_bias=None, tile_rows=None):
    if tile_rows is None:
        tile_rows = _TILE_ROWS
    m, k = x2d.shape
    c = w_bf16.shape[1]
    tm = _pick_tile_rows(m, tile_rows)
    steps = m // tm
    ncore = 2 if (steps % 2 == 0 and steps >= 2) else 1
    spc = steps // ncore                        # arbitrary steps per core
    pre_act = pre_scale is not None

    def x_map(p, i):
        return (p * spc + i, 0)

    in_specs = [pl.BlockSpec((tm, k), x_map)]
    args = [x2d]
    if pre_act:
        in_specs += [pl.BlockSpec((1, k), lambda p, i: (0, 0)),
                     pl.BlockSpec((1, k), lambda p, i: (0, 0))]
        args += [pre_scale.reshape(1, k), pre_bias.reshape(1, k)]
    in_specs.append(pl.BlockSpec((k, c), lambda p, i: (0, 0)))
    args.append(w_bf16)

    y, stats = pl.pallas_call(
        functools.partial(_mm_stats_kernel, pre_act),
        out_shape=(jax.ShapeDtypeStruct((m, c), jnp.bfloat16),
                   jax.ShapeDtypeStruct((ncore * 8, c), jnp.float32)),
        grid=(ncore, spc),
        in_specs=in_specs,
        out_specs=(pl.BlockSpec((tm, c), x_map),
                   pl.BlockSpec((8, c), lambda p, i: (p, 0))),
        compiler_params=pltpu.CompilerParams(
            dimension_semantics=("parallel", "arbitrary"),
            vmem_limit_bytes=_VMEM_LIMIT),
        cost_estimate=pl.CostEstimate(
            flops=2 * m * k * c, transcendentals=0,
            bytes_accessed=2 * (m * k + m * c + k * c) + 4 * ncore * 8 * c),
    )(*args)
    return y, stats


# ----------------------------------------------------------------------------
# K2: fused BN1-apply+ReLU -> 3x3 conv (per-image zero-padded halo in a VMEM
# scratch, 9 accumulated shifted-view dots) -> BN2-stats accum.
#   x_ref (H*W, C) bf16, w_ref (9, C, C) bf16, y_ref (H*W, C) bf16
# ----------------------------------------------------------------------------
def _conv3x3_kernel(h, w, c, x_ref, s_ref, b_ref, w_ref, y_ref, stats_ref,
                    xp_ref):
    # Zero the stats accumulator and the halo scratch ONCE per core: the
    # (h, w) interior is fully overwritten each image and scratch persists
    # across grid steps, so only the 1-pixel border must stay zero.
    @pl.when(pl.program_id(1) == 0)
    def _():
        stats_ref[...] = jnp.zeros_like(stats_ref)
        xp_ref[...] = jnp.zeros_like(xp_ref)

    # bn1-apply + ReLU epilogue in f32; bf16 for the MXU input.
    act = jnp.maximum(
        x_ref[...].astype(jnp.float32) * s_ref[...] + b_ref[...], 0.0)
    xp_ref[1:h + 1, 1:w + 1, :] = act.astype(jnp.bfloat16).reshape(h, w, c)

    # 3x3 conv = 9 accumulated (h*w, c) @ (c, c) dots over shifted halo
    # views — no (h*w, 9c) im2col buffer is ever materialized.
    acc = jnp.zeros((h * w, c), jnp.float32)
    for ky in range(3):
        for kx in range(3):
            patch = xp_ref[ky:ky + h, kx:kx + w, :].reshape(h * w, c)
            acc += jnp.dot(patch, w_ref[3 * ky + kx],
                           preferred_element_type=jnp.float32)

    stats_ref[0:1, :] += jnp.sum(acc, axis=0, keepdims=True)
    stats_ref[1:2, :] += jnp.sum(acc * acc, axis=0, keepdims=True)
    y_ref[...] = acc.astype(y_ref.dtype)        # bf16, flat lane-dense store


def _conv3x3_stats(y1, pre_scale, pre_bias, w2_bf16, n, h, w, c):
    m = n * h * w
    ncore = 2 if (n % 2 == 0 and n >= 2) else 1
    npc = n // ncore

    def img_map(p, i):
        return (p * npc + i, 0)

    y2, stats = pl.pallas_call(
        functools.partial(_conv3x3_kernel, h, w, c),
        out_shape=(jax.ShapeDtypeStruct((m, c), jnp.bfloat16),
                   jax.ShapeDtypeStruct((ncore * 8, c), jnp.float32)),
        grid=(ncore, npc),
        in_specs=[pl.BlockSpec((h * w, c), img_map),
                  pl.BlockSpec((1, c), lambda p, i: (0, 0)),
                  pl.BlockSpec((1, c), lambda p, i: (0, 0)),
                  pl.BlockSpec((9, c, c), lambda p, i: (0, 0, 0))],
        out_specs=(pl.BlockSpec((h * w, c), img_map),
                   pl.BlockSpec((8, c), lambda p, i: (p, 0))),
        scratch_shapes=[pltpu.VMEM((h + 2, w + 2, c), jnp.bfloat16)],
        compiler_params=pltpu.CompilerParams(
            dimension_semantics=("parallel", "arbitrary"),
            vmem_limit_bytes=_VMEM_LIMIT),
        cost_estimate=pl.CostEstimate(
            flops=2 * m * 9 * c * c, transcendentals=0,
            bytes_accessed=4 * m * c + 2 * 9 * c * c),
    )(y1, pre_scale.reshape(1, c), pre_bias.reshape(1, c), w2_bf16)
    return y2, stats


# ----------------------------------------------------------------------------
# K3: final BN3-apply + identity residual + ReLU (elementwise, parallel).
# ----------------------------------------------------------------------------
def _apply_kernel(y_ref, s_ref, b_ref, r_ref, o_ref):
    o_ref[...] = jnp.maximum(
        y_ref[...].astype(jnp.float32) * s_ref[...] + b_ref[...]
        + r_ref[...].astype(jnp.float32), 0.0)


def _bn_apply_res_relu(y, scale, bias, res, tile_rows=None):
    if tile_rows is None:
        tile_rows = _TILE_ROWS
    m, c = y.shape
    tm = _pick_tile_rows(m, tile_rows)
    return pl.pallas_call(
        _apply_kernel,
        out_shape=jax.ShapeDtypeStruct((m, c), jnp.float32),
        grid=(m // tm,),
        in_specs=[pl.BlockSpec((tm, c), lambda i: (i, 0)),
                  pl.BlockSpec((1, c), lambda i: (0, 0)),
                  pl.BlockSpec((1, c), lambda i: (0, 0)),
                  pl.BlockSpec((tm, c), lambda i: (i, 0))],
        out_specs=pl.BlockSpec((tm, c), lambda i: (i, 0)),
        compiler_params=pltpu.CompilerParams(
            dimension_semantics=("parallel",),
            vmem_limit_bytes=_VMEM_LIMIT),
    )(y, scale.reshape(1, c), bias.reshape(1, c), res)


# ----------------------------------------------------------------------------
# Glue: merge per-core partial stats, fold into per-channel scale/bias.
# ----------------------------------------------------------------------------
def _bn_fold(stats, count, gamma, beta):
    s = stats.reshape(-1, 8, stats.shape[-1]).sum(axis=0)     # (8, C)
    mean = s[0] / count
    var = jnp.maximum(s[1] / count - mean * mean, 0.0)        # biased var
    scale = gamma * jax.lax.rsqrt(var + EPS)
    bias = beta - mean * scale
    return scale, bias


# ----------------------------------------------------------------------------
# Hoisted (call-once) weight reformatting: torch layouts -> lane-padded bf16
# matmul operands + zero-padded BN affine params.
# ----------------------------------------------------------------------------
def prepare_params(params):
    w1, w2, w3 = params["w1"], params["w2"], params["w3"]   # (out, in, kh, kw)
    planes, inplanes = w1.shape[0], w1.shape[1]
    cout = w3.shape[0]
    assert cout == inplanes, "downsample=None requires inplanes == planes*expansion"

    cin_p = _round_up(inplanes, LANE)
    cp = _round_up(planes, LANE)
    cout_p = _round_up(cout, LANE)

    w1_mat = jnp.pad(jnp.transpose(w1[:, :, 0, 0], (1, 0)),
                     ((0, cin_p - inplanes), (0, cp - planes))).astype(jnp.bfloat16)
    w2_hwio = jnp.pad(jnp.transpose(w2, (2, 3, 1, 0)),
                      ((0, 0), (0, 0), (0, cp - planes), (0, cp - planes)))
    w2_mat = w2_hwio.reshape(9, cp, cp).astype(jnp.bfloat16)
    w3_mat = jnp.pad(jnp.transpose(w3[:, :, 0, 0], (1, 0)),
                     ((0, cp - planes), (0, cout_p - cout))).astype(jnp.bfloat16)

    # NOTE: padded lanes stay exactly zero through every stage only because
    # gamma/beta are zero-padded here (scale=0, bias=0 on pad channels).
    pad_p = (0, cp - planes)
    pad_o = (0, cout_p - cout)
    return {
        "w1": w1_mat, "w2": w2_mat, "w3": w3_mat,
        "g1": jnp.pad(params["g1"], pad_p), "b1": jnp.pad(params["b1"], pad_p),
        "g2": jnp.pad(params["g2"], pad_p), "b2": jnp.pad(params["b2"], pad_p),
        "g3": jnp.pad(params["g3"], pad_o), "b3": jnp.pad(params["b3"], pad_o),
    }


# ----------------------------------------------------------------------------
# Bottleneck forward (stride=1, dilation=1, downsample=None)
# ----------------------------------------------------------------------------
def bottleneck_forward(x_nchw, pp, tile_rows=None):
    n, cin, h, w = x_nchw.shape
    cin_p, cp = pp["w1"].shape
    cout_p = pp["w3"].shape[1]
    cout = cin                                  # downsample=None invariant
    assert cout_p == cin_p
    m = n * h * w

    # NCHW -> NHWC, lane-pad channels, bf16 (residual + stage-1 MXU input).
    # TODO(synk): accept/produce NHWC end-to-end to drop these transposes.
    x = jnp.transpose(x_nchw, (0, 2, 3, 1)).astype(jnp.bfloat16)
    x2d = jnp.pad(x, ((0, 0), (0, 0), (0, 0), (0, cin_p - cin))
                  ).reshape(m, cin_p)

    # Stage 1: conv1x1 + bn1 batch stats.
    y1, st1 = _matmul_stats(x2d, pp["w1"], tile_rows=tile_rows)
    s1, o1 = _bn_fold(st1, m, pp["g1"], pp["b1"])

    # Stage 2: bn1-apply+relu fused into conv3x3 (halo + 9 dots) + bn2 stats.
    y2, st2 = _conv3x3_stats(y1, s1, o1, pp["w2"], n, h, w, cp)
    s2, o2 = _bn_fold(st2, m, pp["g2"], pp["b2"])

    # Stage 3: bn2-apply+relu fused into conv1x1 + bn3 stats.
    y3, st3 = _matmul_stats(y2, pp["w3"], pre_scale=s2, pre_bias=o2,
                            tile_rows=tile_rows)
    s3, o3 = _bn_fold(st3, m, pp["g3"], pp["b3"])

    # Final: bn3-apply + identity residual + relu (f32 output).
    out = _bn_apply_res_relu(y3, s3, o3, x2d, tile_rows=tile_rows)

    out = out[:, :cout].reshape(n, h, w, cout)
    return jnp.transpose(out, (0, 3, 1, 2))


# ----------------------------------------------------------------------------
# Pure-JAX reference (lax conv + training-mode BN) for the correctness check.
# ----------------------------------------------------------------------------
def _bn_train_ref(y_nhwc, gamma, beta):
    mean = jnp.mean(y_nhwc, axis=(0, 1, 2))
    var = jnp.mean(jnp.square(y_nhwc - mean), axis=(0, 1, 2))
    return (y_nhwc - mean) * jax.lax.rsqrt(var + EPS) * gamma + beta


def _conv_ref(x_nhwc, w_torch, padding):
    w_hwio = jnp.transpose(w_torch, (2, 3, 1, 0))
    return jax.lax.conv_general_dilated(
        x_nhwc, w_hwio, window_strides=(1, 1),
        padding=[(padding, padding), (padding, padding)],
        dimension_numbers=("NHWC", "HWIO", "NHWC"))


def bottleneck_reference(x_nchw, p):
    x = jnp.transpose(x_nchw, (0, 2, 3, 1)).astype(jnp.float32)
    out = jax.nn.relu(_bn_train_ref(_conv_ref(x, p["w1"], 0), p["g1"], p["b1"]))
    out = jax.nn.relu(_bn_train_ref(_conv_ref(out, p["w2"], 1), p["g2"], p["b2"]))
    out = _bn_train_ref(_conv_ref(out, p["w3"], 0), p["g3"], p["b3"])
    out = jax.nn.relu(out + x)
    return jnp.transpose(out, (0, 3, 1, 2))


# ----------------------------------------------------------------------------
if __name__ == "__main__":
    N, planes, H, W = 2, 8, 16, 16
    inplanes = planes * EXPANSION      # 32 (identity path well formed)
    cout = planes * EXPANSION          # 32

    key = jax.random.PRNGKey(0)
    ks = jax.random.split(key, 10)
    params = {
        # torch Conv2d weight layouts: (out, in, kh, kw)
        "w1": 0.2 * jax.random.normal(ks[0], (planes, inplanes, 1, 1), jnp.float32),
        "w2": 0.2 * jax.random.normal(ks[1], (planes, planes, 3, 3), jnp.float32),
        "w3": 0.2 * jax.random.normal(ks[2], (cout, planes, 1, 1), jnp.float32),
        "g1": 1.0 + 0.1 * jax.random.normal(ks[3], (planes,), jnp.float32),
        "b1": 0.1 * jax.random.normal(ks[4], (planes,), jnp.float32),
        "g2": 1.0 + 0.1 * jax.random.normal(ks[5], (planes,), jnp.float32),
        "b2": 0.1 * jax.random.normal(ks[6], (planes,), jnp.float32),
        "g3": 1.0 + 0.1 * jax.random.normal(ks[7], (cout,), jnp.float32),
        "b3": 0.1 * jax.random.normal(ks[8], (cout,), jnp.float32),
    }
    x = jax.random.normal(ks[9], (N, inplanes, H, W), jnp.float32)   # NCHW

    # Hoisted (one-time) weight reformatting outside the jitted forward.
    pp = prepare_params(params)

    # tile_rows=128 so, at this small test size (M = 512), the matmul stages
    # exercise both the 2-way parallel split AND multi-step stats accumulation
    # (grid = (2, 2)).
    fwd = jax.jit(functools.partial(bottleneck_forward, tile_rows=128))
    out = jax.block_until_ready(fwd(x, pp))
    ref = jax.block_until_ready(bottleneck_reference(x, params))

    assert out.shape == (N, cout, H, W), out.shape
    err = float(jnp.max(jnp.abs(out - ref)))
    # bf16 inter-stage storage + bf16 MXU inputs vs. the all-f32 reference.
    assert jnp.allclose(out, ref, atol=6e-2, rtol=6e-2), err

    print("KERNEL_OK")
</pallas_src>

<mosaic_0001>
module attributes {stable_mosaic.version = 11 : i64} {
  func.func @_mm_stats_kernel(%arg0: i32, %arg1: i32, %arg2: memref<128x128xbf16, #tpu.memory_space<vmem>>, %arg3: memref<128x128xbf16, #tpu.memory_space<vmem>>, %arg4: memref<128x128xbf16, #tpu.memory_space<vmem>>, %arg5: memref<8x128xf32, #tpu.memory_space<vmem>>) attributes {dimension_semantics = [#tpu.dimension_semantics<parallel>, #tpu.dimension_semantics<arbitrary>], iteration_bounds = array<i64: 2, 2>, scalar_prefetch = 0 : i64, scratch_operands = 0 : i64, tpu.core_type = #tpu.core_type<tc>, window_params = [{transform_indices = @transform_0, window_bounds = array<i64: 128, 128>}, {pipeline_mode = #tpu.pipeline_mode<synchronous>, transform_indices = @transform_1, window_bounds = array<i64: 128, 128>}, {transform_indices = @transform_2, window_bounds = array<i64: 128, 128>}, {transform_indices = @transform_3, window_bounds = array<i64: 8, 128>}]} {
    %c0_i32 = arith.constant 0 : i32
    %0 = arith.cmpi eq, %arg1, %c0_i32 : i32
    %1 = arith.extui %0 : i1 to i32
    %c0_i32_0 = arith.constant 0 : i32
    %2 = arith.cmpi ne, %1, %c0_i32_0 : i32
    scf.if %2 {
      %cst_15 = arith.constant 0.000000e+00 : f32
      %19 = vector.broadcast %cst_15 : f32 to vector<8x128xf32>
      %c0_16 = arith.constant 0 : index
      %c0_17 = arith.constant 0 : index
      %20 = vector.load %arg5[%c0_16, %c0_17] : memref<8x128xf32, #tpu.memory_space<vmem>>, vector<8x128xf32>
      tpu.vector_store %arg5[%c0_16, %c0_17], %19 {strides = array<i32>} : memref<8x128xf32, #tpu.memory_space<vmem>>, vector<8x128xf32>,
    } else {
    }
    %c0 = arith.constant 0 : index
    %c0_1 = arith.constant 0 : index
    %3 = vector.load %arg2[%c0, %c0_1] : memref<128x128xbf16, #tpu.memory_space<vmem>>, vector<128x128xbf16>
    %c0_2 = arith.constant 0 : index
    %c0_3 = arith.constant 0 : index
    %4 = vector.load %arg3[%c0_2, %c0_3] : memref<128x128xbf16, #tpu.memory_space<vmem>>, vector<128x128xbf16>
    %cst = arith.constant dense<0.000000e+00> : vector<128x128xf32>
    %5 = tpu.matmul %3, %4, %cst {dimension_numbers = #tpu.dot_dimension_numbers<[1], [0], [0], [1], [0, 0, 1, 1], [], []>} : vector<128x128xbf16>, vector<128x128xbf16>, vector<128x128xf32> -> vector<128x128xf32>
    %c0_4 = arith.constant 0 : index
    %c0_5 = arith.constant 0 : index
    %6 = vector.load %arg5[%c0_4, %c0_5] : memref<8x128xf32, #tpu.memory_space<vmem>>, vector<1x128xf32>
    %cst_6 = arith.constant dense<0.000000e+00> : vector<128xf32>
    %7 = vector.multi_reduction <add>, %5, %cst_6 [0] : vector<128x128xf32> to vector<128xf32>
    %8 = vector.shape_cast %7 : vector<128xf32> to vector<1x128xf32>
    %9 = arith.addf %6, %8 : vector<1x128xf32>
    %c0_7 = arith.constant 0 : index
    %c0_8 = arith.constant 0 : index
    %10 = vector.load %arg5[%c0_7, %c0_8] : memref<8x128xf32, #tpu.memory_space<vmem>>, vector<1x128xf32>
    tpu.vector_store %arg5[%c0_7, %c0_8], %9 {strides = array<i32>} : memref<8x128xf32, #tpu.memory_space<vmem>>, vector<1x128xf32>,
    %c1 = arith.constant 1 : index
    %c0_9 = arith.constant 0 : index
    %11 = vector.load %arg5[%c1, %c0_9] : memref<8x128xf32, #tpu.memory_space<vmem>>, vector<1x128xf32>
    %12 = arith.mulf %5, %5 : vector<128x128xf32>
    %cst_10 = arith.constant dense<0.000000e+00> : vector<128xf32>
    %13 = vector.multi_reduction <add>, %12, %cst_10 [0] : vector<128x128xf32> to vector<128xf32>
    %14 = vector.shape_cast %13 : vector<128xf32> to vector<1x128xf32>
    %15 = arith.addf %11, %14 : vector<1x128xf32>
    %c1_11 = arith.constant 1 : index
    %c0_12 = arith.constant 0 : index
    %16 = vector.load %arg5[%c1_11, %c0_12] : memref<8x128xf32, #tpu.memory_space<vmem>>, vector<1x128xf32>
    tpu.vector_store %arg5[%c1_11, %c0_12], %15 {strides = array<i32>} : memref<8x128xf32, #tpu.memory_space<vmem>>, vector<1x128xf32>,
    %17 = arith.truncf %5 : vector<128x128xf32> to vector<128x128xbf16>
    %c0_13 = arith.constant 0 : index
    %c0_14 = arith.constant 0 : index
    %18 = vector.load %arg4[%c0_13, %c0_14] : memref<128x128xbf16, #tpu.memory_space<vmem>>, vector<128x128xbf16>
    tpu.vector_store %arg4[%c0_13, %c0_14], %17 {strides = array<i32>} : memref<128x128xbf16, #tpu.memory_space<vmem>>, vector<128x128xbf16>,
    return
  }
  func.func @transform_0(%arg0: i32, %arg1: i32) -> (i32, i32) {
    %c2_i32 = arith.constant 2 : i32
    %0 = arith.muli %arg0, %c2_i32 : i32
    %1 = arith.addi %0, %arg1 : i32
    %c0_i32 = arith.constant 0 : i32
    %c0_i32_0 = arith.constant 0 : i32
    return %1, %c0_i32 : i32, i32
  }
  func.func @transform_1(%arg0: i32, %arg1: i32) -> (i32, i32) {
    %c0_i32 = arith.constant 0 : i32
    %c0_i32_0 = arith.constant 0 : i32
    %c0_i32_1 = arith.constant 0 : i32
    return %c0_i32, %c0_i32_0 : i32, i32
  }
  func.func @transform_2(%arg0: i32, %arg1: i32) -> (i32, i32) {
    %c2_i32 = arith.constant 2 : i32
    %0 = arith.muli %arg0, %c2_i32 : i32
    %1 = arith.addi %0, %arg1 : i32
    %c0_i32 = arith.constant 0 : i32
    %c0_i32_0 = arith.constant 0 : i32
    return %1, %c0_i32 : i32, i32
  }
  func.func @transform_3(%arg0: i32, %arg1: i32) -> (i32, i32) {
    %c0_i32 = arith.constant 0 : i32
    %c0_i32_0 = arith.constant 0 : i32
    return %arg0, %c0_i32 : i32, i32
  }
}

module attributes {stable_mosaic.version = 11 : i64} {
  func.func @_mm_stats_kernel(%arg0: i32, %arg1: i32, %arg2: memref<128x128xbf16, #tpu.memory_space<vmem>>, %arg3: memref<1x128xf32, #tpu.memory_space<vmem>>, %arg4: memref<1x128xf32, #tpu.memory_space<vmem>>, %arg5: memref<128x128xbf16, #tpu.memory_space<vmem>>, %arg6: memref<128x128xbf16, #tpu.memory_space<vmem>>, %arg7: memref<8x128xf32, #tpu.memory_space<vmem>>) attributes {dimension_semantics = [#tpu.dimension_semantics<parallel>, #tpu.dimension_semantics<arbitrary>], iteration_bounds = array<i64: 2, 2>, scalar_prefetch = 0 : i64, scratch_operands = 0 : i64, tpu.core_type = #tpu.core_type<tc>, window_params = [{transform_indices = @transform_0, window_bounds = array<i64: 128, 128>}, {pipeline_mode = #tpu.pipeline_mode<synchronous>, transform_indices = @transform_1, window_bounds = array<i64: 1, 128>}, {pipeline_mode = #tpu.pipeline_mode<synchronous>, transform_indices = @transform_2, window_bounds = array<i64: 1, 128>}, {pipeline_mode = #tpu.pipeline_mode<synchronous>, transform_indices = @transform_3, window_bounds = array<i64: 128, 128>}, {transform_indices = @transform_4, window_bounds = array<i64: 128, 128>}, {transform_indices = @transform_5, window_bounds = array<i64: 8, 128>}]} {
    %c0_i32 = arith.constant 0 : i32
    %0 = arith.cmpi eq, %arg1, %c0_i32 : i32
    %1 = arith.extui %0 : i1 to i32
    %c0_i32_0 = arith.constant 0 : i32
    %2 = arith.cmpi ne, %1, %c0_i32_0 : i32
    scf.if %2 {
      %cst_20 = arith.constant 0.000000e+00 : f32
      %29 = vector.broadcast %cst_20 : f32 to vector<8x128xf32>
      %c0_21 = arith.constant 0 : index
      %c0_22 = arith.constant 0 : index
      %30 = vector.load %arg7[%c0_21, %c0_22] : memref<8x128xf32, #tpu.memory_space<vmem>>, vector<8x128xf32>
      tpu.vector_store %arg7[%c0_21, %c0_22], %29 {strides = array<i32>} : memref<8x128xf32, #tpu.memory_space<vmem>>, vector<8x128xf32>,
    } else {
    }
    %c0 = arith.constant 0 : index
    %c0_1 = arith.constant 0 : index
    %3 = vector.load %arg2[%c0, %c0_1] : memref<128x128xbf16, #tpu.memory_space<vmem>>, vector<128x128xbf16>
    %4 = arith.extf %3 : vector<128x128xbf16> to vector<128x128xf32>
    %c0_2 = arith.constant 0 : index
    %c0_3 = arith.constant 0 : index
    %5 = vector.load %arg3[%c0_2, %c0_3] : memref<1x128xf32, #tpu.memory_space<vmem>>, vector<1x128xf32>
    %6 = vector.broadcast %5 : vector<1x128xf32> to vector<128x128xf32>
    %7 = arith.mulf %4, %6 : vector<128x128xf32>
    %c0_4 = arith.constant 0 : index
    %c0_5 = arith.constant 0 : index
    %8 = vector.load %arg4[%c0_4, %c0_5] : memref<1x128xf32, #tpu.memory_space<vmem>>, vector<1x128xf32>
    %9 = vector.broadcast %8 : vector<1x128xf32> to vector<128x128xf32>
    %10 = arith.addf %7, %9 : vector<128x128xf32>
    %cst = arith.constant 0.000000e+00 : f32
    %11 = vector.broadcast %cst : f32 to vector<128x128xf32>
    %12 = arith.maximumf %10, %11 : vector<128x128xf32>
    %13 = arith.truncf %12 : vector<128x128xf32> to vector<128x128xbf16>
    %c0_6 = arith.constant 0 : index
    %c0_7 = arith.constant 0 : index
    %14 = vector.load %arg5[%c0_6, %c0_7] : memref<128x128xbf16, #tpu.memory_space<vmem>>, vector<128x128xbf16>
    %cst_8 = arith.constant dense<0.000000e+00> : vector<128x128xf32>
    %15 = tpu.matmul %13, %14, %cst_8 {dimension_numbers = #tpu.dot_dimension_numbers<[1], [0], [0], [1], [0, 0, 1, 1], [], []>} : vector<128x128xbf16>, vector<128x128xbf16>, vector<128x128xf32> -> vector<128x128xf32>
    %c0_9 = arith.constant 0 : index
    %c0_10 = arith.constant 0 : index
    %16 = vector.load %arg7[%c0_9, %c0_10] : memref<8x128xf32, #tpu.memory_space<vmem>>, vector<1x128xf32>
    %cst_11 = arith.constant dense<0.000000e+00> : vector<128xf32>
    %17 = vector.multi_reduction <add>, %15, %cst_11 [0] : vector<128x128xf32> to vector<128xf32>
    %18 = vector.shape_cast %17 : vector<128xf32> to vector<1x128xf32>
    %19 = arith.addf %16, %18 : vector<1x128xf32>
    %c0_12 = arith.constant 0 : index
    %c0_13 = arith.constant 0 : index
    %20 = vector.load %arg7[%c0_12, %c0_13] : memref<8x128xf32, #tpu.memory_space<vmem>>, vector<1x128xf32>
    tpu.vector_store %arg7[%c0_12, %c0_13], %19 {strides = array<i32>} : memref<8x128xf32, #tpu.memory_space<vmem>>, vector<1x128xf32>,
    %c1 = arith.constant 1 : index
    %c0_14 = arith.constant 0 : index
    %21 = vector.load %arg7[%c1, %c0_14] : memref<8x128xf32, #tpu.memory_space<vmem>>, vector<1x128xf32>
    %22 = arith.mulf %15, %15 : vector<128x128xf32>
    %cst_15 = arith.constant dense<0.000000e+00> : vector<128xf32>
    %23 = vector.multi_reduction <add>, %22, %cst_15 [0] : vector<128x128xf32> to vector<128xf32>
    %24 = vector.shape_cast %23 : vector<128xf32> to vector<1x128xf32>
    %25 = arith.addf %21, %24 : vector<1x128xf32>
    %c1_16 = arith.constant 1 : index
    %c0_17 = arith.constant 0 : index
    %26 = vector.load %arg7[%c1_16, %c0_17] : memref<8x128xf32, #tpu.memory_space<vmem>>, vector<1x128xf32>
    tpu.vector_store %arg7[%c1_16, %c0_17], %25 {strides = array<i32>} : memref<8x128xf32, #tpu.memory_space<vmem>>, vector<1x128xf32>,
    %27 = arith.truncf %15 : vector<128x128xf32> to vector<128x128xbf16>
    %c0_18 = arith.constant 0 : index
    %c0_19 = arith.constant 0 : index
    %28 = vector.load %arg6[%c0_18, %c0_19] : memref<128x128xbf16, #tpu.memory_space<vmem>>, vector<128x128xbf16>
    tpu.vector_store %arg6[%c0_18, %c0_19], %27 {strides = array<i32>} : memref<128x128xbf16, #tpu.memory_space<vmem>>, vector<128x128xbf16>,
    return
  }
  func.func @transform_0(%arg0: i32, %arg1: i32) -> (i32, i32) {
    %c2_i32 = arith.constant 2 : i32
    %0 = arith.muli %arg0, %c2_i32 : i32
    %1 = arith.addi %0, %arg1 : i32
    %c0_i32 = arith.constant 0 : i32
    %c0_i32_0 = arith.constant 0 : i32
    return %1, %c0_i32 : i32, i32
  }
  func.func @transform_1(%arg0: i32, %arg1: i32) -> (i32, i32) {
    %c0_i32 = arith.constant 0 : i32
    %c0_i32_0 = arith.constant 0 : i32
    %c0_i32_1 = arith.constant 0 : i32
    return %c0_i32, %c0_i32_0 : i32, i32
  }
  func.func @transform_2(%arg0: i32, %arg1: i32) -> (i32, i32) {
    %c0_i32 = arith.constant 0 : i32
    %c0_i32_0 = arith.constant 0 : i32
    %c0_i32_1 = arith.constant 0 : i32
    return %c0_i32, %c0_i32_0 : i32, i32
  }
  func.func @transform_3(%arg0: i32, %arg1: i32) -> (i32, i32) {
    %c0_i32 = arith.constant 0 : i32
    %c0_i32_0 = arith.constant 0 : i32
    %c0_i32_1 = arith.constant 0 : i32
    return %c0_i32, %c0_i32_0 : i32, i32
  }
  func.func @transform_4(%arg0: i32, %arg1: i32) -> (i32, i32) {
    %c2_i32 = arith.constant 2 : i32
    %0 = arith.muli %arg0, %c2_i32 : i32
    %1 = arith.addi %0, %arg1 : i32
    %c0_i32 = arith.constant 0 : i32
    %c0_i32_0 = arith.constant 0 : i32
    return %1, %c0_i32 : i32, i32
  }
  func.func @transform_5(%arg0: i32, %arg1: i32) -> (i32, i32) {
    %c0_i32 = arith.constant 0 : i32
    %c0_i32_0 = arith.constant 0 : i32
    return %arg0, %c0_i32 : i32, i32
  }
}

module attributes {stable_mosaic.version = 11 : i64} {
  func.func @_conv3x3_kernel(%arg0: i32, %arg1: i32, %arg2: memref<256x128xbf16, #tpu.memory_space<vmem>>, %arg3: memref<1x128xf32, #tpu.memory_space<vmem>>, %arg4: memref<1x128xf32, #tpu.memory_space<vmem>>, %arg5: memref<9x128x128xbf16, #tpu.memory_space<vmem>>, %arg6: memref<256x128xbf16, #tpu.memory_space<vmem>>, %arg7: memref<8x128xf32, #tpu.memory_space<vmem>>, %arg8: memref<18x18x128xbf16, #tpu.memory_space<vmem>>) attributes {dimension_semantics = [#tpu.dimension_semantics<parallel>, #tpu.dimension_semantics<arbitrary>], iteration_bounds = array<i64: 2, 1>, scalar_prefetch = 0 : i64, scratch_operands = 1 : i64, tpu.core_type = #tpu.core_type<tc>, window_params = [{transform_indices = @transform_0, window_bounds = array<i64: 256, 128>}, {pipeline_mode = #tpu.pipeline_mode<synchronous>, transform_indices = @transform_1, window_bounds = array<i64: 1, 128>}, {pipeline_mode = #tpu.pipeline_mode<synchronous>, transform_indices = @transform_2, window_bounds = array<i64: 1, 128>}, {pipeline_mode = #tpu.pipeline_mode<synchronous>, transform_indices = @transform_3, window_bounds = array<i64: 9, 128, 128>}, {transform_indices = @transform_4, window_bounds = array<i64: 256, 128>}, {transform_indices = @transform_5, window_bounds = array<i64: 8, 128>}]} {
    %c0_i32 = arith.constant 0 : i32
    %0 = arith.cmpi eq, %arg1, %c0_i32 : i32
    %1 = arith.extui %0 : i1 to i32
    %c0_i32_0 = arith.constant 0 : i32
    %2 = arith.cmpi ne, %1, %c0_i32_0 : i32
    scf.if %2 {
      %cst_77 = arith.constant 0.000000e+00 : f32
      %84 = vector.broadcast %cst_77 : f32 to vector<8x128xf32>
      %c0_78 = arith.constant 0 : index
      %c0_79 = arith.constant 0 : index
      %85 = vector.load %arg7[%c0_78, %c0_79] : memref<8x128xf32, #tpu.memory_space<vmem>>, vector<8x128xf32>
      tpu.vector_store %arg7[%c0_78, %c0_79], %84 {strides = array<i32>} : memref<8x128xf32, #tpu.memory_space<vmem>>, vector<8x128xf32>,
      %cst_80 = arith.constant 0.000000e+00 : bf16
      %86 = vector.broadcast %cst_80 : bf16 to vector<18x18x128xbf16>
      %c0_81 = arith.constant 0 : index
      %c0_82 = arith.constant 0 : index
      %c0_83 = arith.constant 0 : index
      %87 = vector.load %arg8[%c0_81, %c0_82, %c0_83] : memref<18x18x128xbf16, #tpu.memory_space<vmem>>, vector<18x18x128xbf16>
      tpu.vector_store %arg8[%c0_81, %c0_82, %c0_83], %86 {strides = array<i32>} : memref<18x18x128xbf16, #tpu.memory_space<vmem>>, vector<18x18x128xbf16>,
    } else {
    }
    %c0 = arith.constant 0 : index
    %c0_1 = arith.constant 0 : index
    %3 = vector.load %arg2[%c0, %c0_1] : memref<256x128xbf16, #tpu.memory_space<vmem>>, vector<256x128xbf16>
    %4 = arith.extf %3 : vector<256x128xbf16> to vector<256x128xf32>
    %c0_2 = arith.constant 0 : index
    %c0_3 = arith.constant 0 : index
    %5 = vector.load %arg3[%c0_2, %c0_3] : memref<1x128xf32, #tpu.memory_space<vmem>>, vector<1x128xf32>
    %6 = vector.broadcast %5 : vector<1x128xf32> to vector<256x128xf32>
    %7 = arith.mulf %4, %6 : vector<256x128xf32>
    %c0_4 = arith.constant 0 : index
    %c0_5 = arith.constant 0 : index
    %8 = vector.load %arg4[%c0_4, %c0_5] : memref<1x128xf32, #tpu.memory_space<vmem>>, vector<1x128xf32>
    %9 = vector.broadcast %8 : vector<1x128xf32> to vector<256x128xf32>
    %10 = arith.addf %7, %9 : vector<256x128xf32>
    %cst = arith.constant 0.000000e+00 : f32
    %11 = vector.broadcast %cst : f32 to vector<256x128xf32>
    %12 = arith.maximumf %10, %11 : vector<256x128xf32>
    %13 = arith.truncf %12 : vector<256x128xf32> to vector<256x128xbf16>
    %14 = vector.shape_cast %13 : vector<256x128xbf16> to vector<16x16x128xbf16>
    %c1 = arith.constant 1 : index
    %c1_6 = arith.constant 1 : index
    %c0_7 = arith.constant 0 : index
    %15 = vector.load %arg8[%c1, %c1_6, %c0_7] : memref<18x18x128xbf16, #tpu.memory_space<vmem>>, vector<16x16x128xbf16>
    tpu.vector_store %arg8[%c1, %c1_6, %c0_7], %14 {strides = array<i32>} : memref<18x18x128xbf16, #tpu.memory_space<vmem>>, vector<16x16x128xbf16>,
    %cst_8 = arith.constant 0.000000e+00 : f32
    %16 = vector.broadcast %cst_8 : f32 to vector<256x128xf32>
    %c0_9 = arith.constant 0 : index
    %c0_10 = arith.constant 0 : index
    %c0_11 = arith.constant 0 : index
    %17 = vector.load %arg8[%c0_9, %c0_10, %c0_11] : memref<18x18x128xbf16, #tpu.memory_space<vmem>>, vector<16x16x128xbf16>
    %18 = vector.shape_cast %17 : vector<16x16x128xbf16> to vector<256x128xbf16>
    %c0_12 = arith.constant 0 : index
    %c0_13 = arith.constant 0 : index
    %c0_14 = arith.constant 0 : index
    %19 = vector.load %arg5[%c0_12, %c0_13, %c0_14] : memref<9x128x128xbf16, #tpu.memory_space<vmem>>, vector<1x128x128xbf16>
    %20 = vector.shape_cast %19 : vector<1x128x128xbf16> to vector<128x128xbf16>
    %cst_15 = arith.constant dense<0.000000e+00> : vector<256x128xf32>
    %21 = tpu.matmul %18, %20, %cst_15 {dimension_numbers = #tpu.dot_dimension_numbers<[1], [0], [0], [1], [0, 0, 1, 1], [], []>} : vector<256x128xbf16>, vector<128x128xbf16>, vector<256x128xf32> -> vector<256x128xf32>
    %22 = arith.addf %16, %21 : vector<256x128xf32>
    %c0_16 = arith.constant 0 : index
    %c1_17 = arith.constant 1 : index
    %c0_18 = arith.constant 0 : index
    %23 = vector.load %arg8[%c0_16, %c1_17, %c0_18] : memref<18x18x128xbf16, #tpu.memory_space<vmem>>, vector<16x16x128xbf16>
    %24 = vector.shape_cast %23 : vector<16x16x128xbf16> to vector<256x128xbf16>
    %c1_19 = arith.constant 1 : index
    %c0_20 = arith.constant 0 : index
    %c0_21 = arith.constant 0 : index
    %25 = vector.load %arg5[%c1_19, %c0_20, %c0_21] : memref<9x128x128xbf16, #tpu.memory_space<vmem>>, vector<1x128x128xbf16>
    %26 = vector.shape_cast %25 : vector<1x128x128xbf16> to vector<128x128xbf16>
    %cst_22 = arith.constant dense<0.000000e+00> : vector<256x128xf32>
    %27 = tpu.matmul %24, %26, %cst_22 {dimension_numbers = #tpu.dot_dimension_numbers<[1], [0], [0], [1], [0, 0, 1, 1], [], []>} : vector<256x128xbf16>, vector<128x128xbf16>, vector<256x128xf32> -> vector<256x128xf32>
    %28 = arith.addf %22, %27 : vector<256x128xf32>
    %c0_23 = arith.constant 0 : index
    %c2 = arith.constant 2 : index
    %c0_24 = arith.constant 0 : index
    %29 = vector.load %arg8[%c0_23, %c2, %c0_24] : memref<18x18x128xbf16, #tpu.memory_space<vmem>>, vector<16x16x128xbf16>
    %30 = vector.shape_cast %29 : vector<16x16x128xbf16> to vector<256x128xbf16>
    %c2_25 = arith.constant 2 : index
    %c0_26 = arith.constant 0 : index
    %c0_27 = arith.constant 0 : index
    %31 = vector.load %arg5[%c2_25, %c0_26, %c0_27] : memref<9x128x128xbf16, #tpu.memory_space<vmem>>, vector<1x128x128xbf16>
    %32 = vector.shape_cast %31 : vector<1x128x128xbf16> to vector<128x128xbf16>
    %cst_28 = arith.constant dense<0.000000e+00> : vector<256x128xf32>
    %33 = tpu.matmul %30, %32, %cst_28 {dimension_numbers = #tpu.dot_dimension_numbers<[1], [0], [0], [1], [0, 0, 1, 1], [], []>} : vector<256x128xbf16>, vector<128x128xbf16>, vector<256x128xf32> -> vector<256x128xf32>
    %34 = arith.addf %28, %33 : vector<256x128xf32>
    %c1_29 = arith.constant 1 : index
    %c0_30 = arith.constant 0 : index
    %c0_31 = arith.constant 0 : index
    %35 = vector.load %arg8[%c1_29, %c0_30, %c0_31] : memref<18x18x128xbf16, #tpu.memory_space<vmem>>, vector<16x16x128xbf16>
    %36 = vector.shape_cast %35 : vector<16x16x128xbf16> to vector<256x128xbf16>
    %c3 = arith.constant 3 : index
    %c0_32 = arith.constant 0 : index
    %c0_33 = arith.constant 0 : index
    %37 = vector.load %arg5[%c3, %c0_32, %c0_33] : memref<9x128x128xbf16, #tpu.memory_space<vmem>>, vector<1x128x128xbf16>
    %38 = vector.shape_cast %37 : vector<1x128x128xbf16> to vector<128x128xbf16>
    %cst_34 = arith.constant dense<0.000000e+00> : vector<256x128xf32>
    %39 = tpu.matmul %36, %38, %cst_34 {dimension_numbers = #tpu.dot_dimension_numbers<[1], [0], [0], [1], [0, 0, 1, 1], [], []>} : vector<256x128xbf16>, vector<128x128xbf16>, vector<256x128xf32> -> vector<256x128xf32>
    %40 = arith.addf %34, %39 : vector<256x128xf32>
    %c1_35 = arith.constant 1 : index
    %c1_36 = arith.constant 1 : index
    %c0_37 = arith.constant 0 : index
    %41 = vector.load %arg8[%c1_35, %c1_36, %c0_37] : memref<18x18x128xbf16, #tpu.memory_space<vmem>>, vector<16x16x128xbf16>
    %42 = vector.shape_cast %41 : vector<16x16x128xbf16> to vector<256x128xbf16>
    %c4 = arith.constant 4 : index
    %c0_38 = arith.constant 0 : index
    %c0_39 = arith.constant 0 : index
    %43 = vector.load %arg5[%c4, %c0_38, %c0_39] : memref<9x128x128xbf16, #tpu.memory_space<vmem>>, vector<1x128x128xbf16>
    %44 = vector.shape_cast %43 : vector<1x128x128xbf16> to vector<128x128xbf16>
    %cst_40 = arith.constant dense<0.000000e+00> : vector<256x128xf32>
    %45 = tpu.matmul %42, %44, %cst_40 {dimension_numbers = #tpu.dot_dimension_numbers<[1], [0], [0], [1], [0, 0, 1, 1], [], []>} : vector<256x128xbf16>, vector<128x128xbf16>, vector<256x128xf32> -> vector<256x128xf32>
    %46 = arith.addf %40, %45 : vector<256x128xf32>
    %c1_41 = arith.constant 1 : index
    %c2_42 = arith.constant 2 : index
    %c0_43 = arith.constant 0 : index
    %47 = vector.load %arg8[%c1_41, %c2_42, %c0_43] : memref<18x18x128xbf16, #tpu.memory_space<vmem>>, vector<16x16x128xbf16>
    %48 = vector.shape_cast %47 : vector<16x16x128xbf16> to vector<256x128xbf16>
    %c5 = arith.constant 5 : index
    %c0_44 = arith.constant 0 : index
    %c0_45 = arith.constant 0 : index
    %49 = vector.load %arg5[%c5, %c0_44, %c0_45] : memref<9x128x128xbf16, #tpu.memory_space<vmem>>, vector<1x128x128xbf16>
    %50 = vector.shape_cast %49 : vector<1x128x128xbf16> to vector<128x128xbf16>
    %cst_46 = arith.constant dense<0.000000e+00> : vector<256x128xf32>
    %51 = tpu.matmul %48, %50, %cst_46 {dimension_numbers = #tpu.dot_dimension_numbers<[1], [0], [0], [1], [0, 0, 1, 1], [], []>} : vector<256x128xbf16>, vector<128x128xbf16>, vector<256x128xf32> -> vector<256x128xf32>
    %52 = arith.addf %46, %51 : vector<256x128xf32>
    %c2_47 = arith.constant 2 : index
    %c0_48 = arith.constant 0 : index
    %c0_49 = arith.constant 0 : index
    %53 = vector.load %arg8[%c2_47, %c0_48, %c0_49] : memref<18x18x128xbf16, #tpu.memory_space<vmem>>, vector<16x16x128xbf16>
    %54 = vector.shape_cast %53 : vector<16x16x128xbf16> to vector<256x128xbf16>
    %c6 = arith.constant 6 : index
    %c0_50 = arith.constant 0 : index
    %c0_51 = arith.constant 0 : index
    %55 = vector.load %arg5[%c6, %c0_50, %c0_51] : memref<9x128x128xbf16, #tpu.memory_space<vmem>>, vector<1x128x128xbf16>
    %56 = vector.shape_cast %55 : vector<1x128x128xbf16> to vector<128x128xbf16>
    %cst_52 = arith.constant dense<0.000000e+00> : vector<256x128xf32>
    %57 = tpu.matmul %54, %56, %cst_52 {dimension_numbers = #tpu.dot_dimension_numbers<[1], [0], [0], [1], [0, 0, 1, 1], [], []>} : vector<256x128xbf16>, vector<128x128xbf16>, vector<256x128xf32> -> vector<256x128xf32>
    %58 = arith.addf %52, %57 : vector<256x128xf32>
    %c2_53 = arith.constant 2 : index
    %c1_54 = arith.constant 1 : index
    %c0_55 = arith.constant 0 : index
    %59 = vector.load %arg8[%c2_53, %c1_54, %c0_55] : memref<18x18x128xbf16, #tpu.memory_space<vmem>>, vector<16x16x128xbf16>
    %60 = vector.shape_cast %59 : vector<16x16x128xbf16> to vector<256x128xbf16>
    %c7 = arith.constant 7 : index
    %c0_56 = arith.constant 0 : index
    %c0_57 = arith.constant 0 : index
    %61 = vector.load %arg5[%c7, %c0_56, %c0_57] : memref<9x128x128xbf16, #tpu.memory_space<vmem>>, vector<1x128x128xbf16>
    %62 = vector.shape_cast %61 : vector<1x128x128xbf16> to vector<128x128xbf16>
    %cst_58 = arith.constant dense<0.000000e+00> : vector<256x128xf32>
    %63 = tpu.matmul %60, %62, %cst_58 {dimension_numbers = #tpu.dot_dimension_numbers<[1], [0], [0], [1], [0, 0, 1, 1], [], []>} : vector<256x128xbf16>, vector<128x128xbf16>, vector<256x128xf32> -> vector<256x128xf32>
    %64 = arith.addf %58, %63 : vector<256x128xf32>
    %c2_59 = arith.constant 2 : index
    %c2_60 = arith.constant 2 : index
    %c0_61 = arith.constant 0 : index
    %65 = vector.load %arg8[%c2_59, %c2_60, %c0_61] : memref<18x18x128xbf16, #tpu.memory_space<vmem>>, vector<16x16x128xbf16>
    %66 = vector.shape_cast %65 : vector<16x16x128xbf16> to vector<256x128xbf16>
    %c8 = arith.constant 8 : index
    %c0_62 = arith.constant 0 : index
    %c0_63 = arith.constant 0 : index
    %67 = vector.load %arg5[%c8, %c0_62, %c0_63] : memref<9x128x128xbf16, #tpu.memory_space<vmem>>, vector<1x128x128xbf16>
    %68 = vector.shape_cast %67 : vector<1x128x128xbf16> to vector<128x128xbf16>
    %cst_64 = arith.constant dense<0.000000e+00> : vector<256x128xf32>
    %69 = tpu.matmul %66, %68, %cst_64 {dimension_numbers = #tpu.dot_dimension_numbers<[1], [0], [0], [1], [0, 0, 1, 1], [], []>} : vector<256x128xbf16>, vector<128x128xbf16>, vector<256x128xf32> -> vector<256x128xf32>
    %70 = arith.addf %64, %69 : vector<256x128xf32>
    %c0_65 = arith.constant 0 : index
    %c0_66 = arith.constant 0 : index
    %71 = vector.load %arg7[%c0_65, %c0_66] : memref<8x128xf32, #tpu.memory_space<vmem>>, vector<1x128xf32>
    %cst_67 = arith.constant dense<0.000000e+00> : vector<128xf32>
    %72 = vector.multi_reduction <add>, %70, %cst_67 [0] : vector<256x128xf32> to vector<128xf32>
    %73 = vector.shape_cast %72 : vector<128xf32> to vector<1x128xf32>
    %74 = arith.addf %71, %73 : vector<1x128xf32>
    %c0_68 = arith.constant 0 : index
    %c0_69 = arith.constant 0 : index
    %75 = vector.load %arg7[%c0_68, %c0_69] : memref<8x128xf32, #tpu.memory_space<vmem>>, vector<1x128xf32>
    tpu.vector_store %arg7[%c0_68, %c0_69], %74 {strides = array<i32>} : memref<8x128xf32, #tpu.memory_space<vmem>>, vector<1x128xf32>,
    %c1_70 = arith.constant 1 : index
    %c0_71 = arith.constant 0 : index
    %76 = vector.load %arg7[%c1_70, %c0_71] : memref<8x128xf32, #tpu.memory_space<vmem>>, vector<1x128xf32>
    %77 = arith.mulf %70, %70 : vector<256x128xf32>
    %cst_72 = arith.constant dense<0.000000e+00> : vector<128xf32>
    %78 = vector.multi_reduction <add>, %77, %cst_72 [0] : vector<256x128xf32> to vector<128xf32>
    %79 = vector.shape_cast %78 : vector<128xf32> to vector<1x128xf32>
    %80 = arith.addf %76, %79 : vector<1x128xf32>
    %c1_73 = arith.constant 1 : index
    %c0_74 = arith.constant 0 : index
    %81 = vector.load %arg7[%c1_73, %c0_74] : memref<8x128xf32, #tpu.memory_space<vmem>>, vector<1x128xf32>
    tpu.vector_store %arg7[%c1_73, %c0_74], %80 {strides = array<i32>} : memref<8x128xf32, #tpu.memory_space<vmem>>, vector<1x128xf32>,
    %82 = arith.truncf %70 : vector<256x128xf32> to vector<256x128xbf16>
    %c0_75 = arith.constant 0 : index
    %c0_76 = arith.constant 0 : index
    %83 = vector.load %arg6[%c0_75, %c0_76] : memref<256x128xbf16, #tpu.memory_space<vmem>>, vector<256x128xbf16>
    tpu.vector_store %arg6[%c0_75, %c0_76], %82 {strides = array<i32>} : memref<256x128xbf16, #tpu.memory_space<vmem>>, vector<256x128xbf16>,
    return
  }
  func.func @transform_0(%arg0: i32, %arg1: i32) -> (i32, i32) {
    %c1_i32 = arith.constant 1 : i32
    %0 = arith.muli %arg0, %c1_i32 : i32
    %1 = arith.addi %0, %arg1 : i32
    %c0_i32 = arith.constant 0 : i32
    %c0_i32_0 = arith.constant 0 : i32
    return %1, %c0_i32 : i32, i32
  }
  func.func @transform_1(%arg0: i32, %arg1: i32) -> (i32, i32) {
    %c0_i32 = arith.constant 0 : i32
    %c0_i32_0 = arith.constant 0 : i32
    %c0_i32_1 = arith.constant 0 : i32
    return %c0_i32, %c0_i32_0 : i32, i32
  }
  func.func @transform_2(%arg0: i32, %arg1: i32) -> (i32, i32) {
    %c0_i32 = arith.constant 0 : i32
    %c0_i32_0 = arith.constant 0 : i32
    %c0_i32_1 = arith.constant 0 : i32
    return %c0_i32, %c0_i32_0 : i32, i32
  }
  func.func @transform_3(%arg0: i32, %arg1: i32) -> (i32, i32, i32) {
    %c0_i32 = arith.constant 0 : i32
    %c0_i32_0 = arith.constant 0 : i32
    %c0_i32_1 = arith.constant 0 : i32
    %c0_i32_2 = arith.constant 0 : i32
    return %c0_i32, %c0_i32_0, %c0_i32_1 : i32, i32, i32
  }
  func.func @transform_4(%arg0: i32, %arg1: i32) -> (i32, i32) {
    %c1_i32 = arith.constant 1 : i32
    %0 = arith.muli %arg0, %c1_i32 : i32
    %1 = arith.addi %0, %arg1 : i32
    %c0_i32 = arith.constant 0 : i32
    %c0_i32_0 = arith.constant 0 : i32
    return %1, %c0_i32 : i32, i32
  }
  func.func @transform_5(%arg0: i32, %arg1: i32) -> (i32, i32) {
    %c0_i32 = arith.constant 0 : i32
    %c0_i32_0 = arith.constant 0 : i32
    return %arg0, %c0_i32 : i32, i32
  }
}

module attributes {stable_mosaic.version = 11 : i64} {
  func.func @_apply_kernel(%arg0: i32, %arg1: memref<128x128xbf16, #tpu.memory_space<vmem>>, %arg2: memref<1x128xf32, #tpu.memory_space<vmem>>, %arg3: memref<1x128xf32, #tpu.memory_space<vmem>>, %arg4: memref<128x128xbf16, #tpu.memory_space<vmem>>, %arg5: memref<128x128xf32, #tpu.memory_space<vmem>>) attributes {dimension_semantics = [#tpu.dimension_semantics<parallel>], iteration_bounds = array<i64: 4>, scalar_prefetch = 0 : i64, scratch_operands = 0 : i64, tpu.core_type = #tpu.core_type<tc>, window_params = [{transform_indices = @transform_0, window_bounds = array<i64: 128, 128>}, {pipeline_mode = #tpu.pipeline_mode<synchronous>, transform_indices = @transform_1, window_bounds = array<i64: 1, 128>}, {pipeline_mode = #tpu.pipeline_mode<synchronous>, transform_indices = @transform_2, window_bounds = array<i64: 1, 128>}, {transform_indices = @transform_3, window_bounds = array<i64: 128, 128>}, {transform_indices = @transform_4, window_bounds = array<i64: 128, 128>}]} {
    %c0 = arith.constant 0 : index
    %c0_0 = arith.constant 0 : index
    %0 = vector.load %arg1[%c0, %c0_0] : memref<128x128xbf16, #tpu.memory_space<vmem>>, vector<128x128xbf16>
    %1 = arith.extf %0 : vector<128x128xbf16> to vector<128x128xf32>
    %c0_1 = arith.constant 0 : index
    %c0_2 = arith.constant 0 : index
    %2 = vector.load %arg2[%c0_1, %c0_2] : memref<1x128xf32, #tpu.memory_space<vmem>>, vector<1x128xf32>
    %3 = vector.broadcast %2 : vector<1x128xf32> to vector<128x128xf32>
    %4 = arith.mulf %1, %3 : vector<128x128xf32>
    %c0_3 = arith.constant 0 : index
    %c0_4 = arith.constant 0 : index
    %5 = vector.load %arg3[%c0_3, %c0_4] : memref<1x128xf32, #tpu.memory_space<vmem>>, vector<1x128xf32>
    %6 = vector.broadcast %5 : vector<1x128xf32> to vector<128x128xf32>
    %7 = arith.addf %4, %6 : vector<128x128xf32>
    %c0_5 = arith.constant 0 : index
    %c0_6 = arith.constant 0 : index
    %8 = vector.load %arg4[%c0_5, %c0_6] : memref<128x128xbf16, #tpu.memory_space<vmem>>, vector<128x128xbf16>
    %9 = arith.extf %8 : vector<128x128xbf16> to vector<128x128xf32>
    %10 = arith.addf %7, %9 : vector<128x128xf32>
    %cst = arith.constant 0.000000e+00 : f32
    %11 = vector.broadcast %cst : f32 to vector<128x128xf32>
    %12 = arith.maximumf %10, %11 : vector<128x128xf32>
    %c0_7 = arith.constant 0 : index
    %c0_8 = arith.constant 0 : index
    %13 = vector.load %arg5[%c0_7, %c0_8] : memref<128x128xf32, #tpu.memory_space<vmem>>, vector<128x128xf32>
    tpu.vector_store %arg5[%c0_7, %c0_8], %12 {strides = array<i32>} : memref<128x128xf32, #tpu.memory_space<vmem>>, vector<128x128xf32>,
    return
  }
  func.func @transform_0(%arg0: i32) -> (i32, i32) {
    %c0_i32 = arith.constant 0 : i32
    %c0_i32_0 = arith.constant 0 : i32
    return %arg0, %c0_i32 : i32, i32
  }
  func.func @transform_1(%arg0: i32) -> (i32, i32) {
    %c0_i32 = arith.constant 0 : i32
    %c0_i32_0 = arith.constant 0 : i32
    %c0_i32_1 = arith.constant 0 : i32
    return %c0_i32, %c0_i32_0 : i32, i32
  }
  func.func @transform_2(%arg0: i32) -> (i32, i32) {
    %c0_i32 = arith.constant 0 : i32
    %c0_i32_0 = arith.constant 0 : i32
    %c0_i32_1 = arith.constant 0 : i32
    return %c0_i32, %c0_i32_0 : i32, i32
  }
  func.func @transform_3(%arg0: i32) -> (i32, i32) {
    %c0_i32 = arith.constant 0 : i32
    %c0_i32_0 = arith.constant 0 : i32
    return %arg0, %c0_i32 : i32, i32
  }
  func.func @transform_4(%arg0: i32) -> (i32, i32) {
    %c0_i32 = arith.constant 0 : i32
    %c0_i32_0 = arith.constant 0 : i32
    return %arg0, %c0_i32 : i32, i32
  }
}

</mosaic_0001>

<llo_original>
// kernel: bottleneck_forward.7
$region0: #{bottleneck_forward.7}
  #allocation0 [shape = 'u32[]', space=smem, size = 0x4, offset = 0x4, fixed_abs, tag = 'smem constant byte address 0x4 - core index']
  #allocation1 [shape = 'u32[144,128]{1,0:T(1,128)}', space=vmem, size = 0x12000, scoped, tag = 'internal scratch']
  %s0 = inlined_call_operand.vmem [shape: bf16[512,128], index: 0, kind: input, shape index: {}]
  %s1 = inlined_call_operand.vmem [shape: f32[1,128], index: 1, kind: input, shape index: {}]
  %s2 = inlined_call_operand.vmem [shape: f32[1,128], index: 2, kind: input, shape index: {}]
  %s3 = inlined_call_operand.vmem [shape: bf16[512,128], index: 3, kind: input, shape index: {}]
  %s4 = inlined_call_operand.hbm [shape: f32[512,128], index: 4, kind: output, shape index: {}]
  %s5 = sld [smem:[#allocation0]]
  $region49: #{bottleneck_forward.7} parent=0
    _
  %s7 = ssub.s32 1, %s5
  %s8 = scalar_select 0, %s7, %s5
  $region1: #{bottleneck_forward.7} parent=0
    #allocation2 [shape = 'u8[131072]{0}', space=vmem, size = 0x20000, scoped, tag = 'output window, operand 0']
    #allocation3 [shape = 's32[2]{0}', space=sflag, size = 0x8, scoped, tag = 'scoped memory for bottleneck_forward.7']
    %9 = vsyncpa [#allocation3], 0
    %s10 = scalar_lea.sflag [#allocation3], 1
    %11 = vsyncpa %s10, 0
    loop: start=0, step=1, limit=6
    $region2: #{bottleneck_forward.7} parent=1 // loop_pre_header
      _
    $region3: #{bottleneck_forward.7} parent=1 // loop_header
      %s13 = sphi 0, %s17
      %p14 = scmp.ge.s32.totalorder %s13, 6
      %s23 = sphi 0, %s25
      %s26 = sphi 0, %s23
      %s27 = sphi 0, %s26
      %s43 = sphi 0, %s27
      %s47 = sphi 0, %s47
      %s49 = sphi 0, %s47
      %s50 = sphi 0, %s49
      %s64 = sphi 0, %s50
      %s68 = sphi 0, %s68
      %s70 = sphi 0, %s68
      %s71 = sphi 0, %s70
      %s85 = sphi 0, %s71
      %s91 = sphi 0, %s93
      %s94 = sphi 0, %s91
      %s95 = sphi 0, %s94
      %s111 = sphi 0, %s95
      %s117 = sphi 0, %s119
      %s120 = sphi 0, %s117
      %s121 = sphi 0, %s120
      %s137 = sphi 0, %s121
    $region4: #{bottleneck_forward.7} parent=1 // loop_header_branch
      %16 = sbr.rel (%p14) target = $region8
    $region5: #{bottleneck_forward.7} parent=1 // loop_body
      %s18 = ssub.s32 %s13, 1
      %s19 = ssub.s32 %s13, 2
      %s20 = sadd.s32 %s13, 1
      %s21 = ssub.s32 %s13, %s20
      %p22 = scmp.eq.s32.totalorder %s21, 0
      %s24 = sadd.s32 %s23, 1
      %s25 = scalar_select %p22, %s23, %s24
      %p28 = pneg %p22
      %p29 = scmp.eq.s32.totalorder %s13, 3
      %p30 = por %p28, %p29
      %p31 = scmp.ne.s32.totalorder %s23, %s26
      %p32 = scmp.eq.s32.totalorder %s13, 0
      %p33 = por %p31, %p32
      %p34 = scmp.ne.s32.totalorder %s23, %s26
      %p35 = scmp.eq.s32.totalorder %s18, 3
      %p36 = por %p34, %p35
      %p37 = scmp.ne.s32.totalorder %s26, %s27
      %p38 = scmp.eq.s32.totalorder %s18, 0
      %p39 = por %p37, %p38
      %p40 = scmp.ne.s32.totalorder %s26, %s27
      %p41 = scmp.eq.s32.totalorder %s19, 3
      %p42 = por %p40, %p41
      %p44 = scmp.ne.s32.totalorder %s27, %s43
      %p45 = scmp.eq.s32.totalorder %s19, 0
      %p46 = por %p44, %p45
      %s48 = sadd.s32 %s47, 1
      %p51 = scmp.eq.s32.totalorder %s13, 3
      %p52 = scmp.ne.s32.totalorder %s47, %s49
      %p53 = scmp.eq.s32.totalorder %s13, 0
      %p54 = por %p52, %p53
      %p55 = scmp.ne.s32.totalorder %s47, %s49
      %p56 = scmp.eq.s32.totalorder %s18, 3
      %p57 = por %p55, %p56
      %p58 = scmp.ne.s32.totalorder %s49, %s50
      %p59 = scmp.eq.s32.totalorder %s18, 0
      %p60 = por %p58, %p59
      %p61 = scmp.ne.s32.totalorder %s49, %s50
      %p62 = scmp.eq.s32.totalorder %s19, 3
      %p63 = por %p61, %p62
      %p65 = scmp.ne.s32.totalorder %s50, %s64
      %p66 = scmp.eq.s32.totalorder %s19, 0
      %p67 = por %p65, %p66
      %s69 = sadd.s32 %s68, 1
      %p72 = scmp.eq.s32.totalorder %s13, 3
      %p73 = scmp.ne.s32.totalorder %s68, %s70
      %p74 = scmp.eq.s32.totalorder %s13, 0
      %p75 = por %p73, %p74
      %p76 = scmp.ne.s32.totalorder %s68, %s70
      %p77 = scmp.eq.s32.totalorder %s18, 3
      %p78 = por %p76, %p77
      %p79 = scmp.ne.s32.totalorder %s70, %s71
      %p80 = scmp.eq.s32.totalorder %s18, 0
      %p81 = por %p79, %p80
      %p82 = scmp.ne.s32.totalorder %s70, %s71
      %p83 = scmp.eq.s32.totalorder %s19, 3
      %p84 = por %p82, %p83
      %p86 = scmp.ne.s32.totalorder %s71, %s85
      %p87 = scmp.eq.s32.totalorder %s19, 0
      %p88 = por %p86, %p87
      %s89 = ssub.s32 %s13, %s20
      %p90 = scmp.eq.s32.totalorder %s89, 0
      %s92 = sadd.s32 %s91, 1
      %s93 = scalar_select %p90, %s91, %s92
      %p96 = pneg %p90
      %p97 = scmp.eq.s32.totalorder %s13, 3
      %p98 = por %p96, %p97
      %p99 = scmp.ne.s32.totalorder %s91, %s94
      %p100 = scmp.eq.s32.totalorder %s13, 0
      %p101 = por %p99, %p100
      %p102 = scmp.ne.s32.totalorder %s91, %s94
      %p103 = scmp.eq.s32.totalorder %s18, 3
      %p104 = por %p102, %p103
      %p105 = scmp.ne.s32.totalorder %s94, %s95
      %p106 = scmp.eq.s32.totalorder %s18, 0
      %p107 = por %p105, %p106
      %p108 = scmp.ne.s32.totalorder %s94, %s95
      %p109 = scmp.eq.s32.totalorder %s19, 3
      %p110 = por %p108, %p109
      %p112 = scmp.ne.s32.totalorder %s95, %s111
      %p113 = scmp.eq.s32.totalorder %s19, 0
      %p114 = por %p112, %p113
      %s115 = ssub.s32 %s13, %s20
      %p116 = scmp.eq.s32.totalorder %s115, 0
      %s118 = sadd.s32 %s117, 1
      %s119 = scalar_select %p116, %s117, %s118
      %p122 = pneg %p116
      %p123 = scmp.eq.s32.totalorder %s13, 3
      %p124 = por %p122, %p123
      %p125 = scmp.ne.s32.totalorder %s117, %s120
      %p126 = scmp.eq.s32.totalorder %s13, 0
      %p127 = por %p125, %p126
      %p128 = scmp.ne.s32.totalorder %s117, %s120
      %p129 = scmp.eq.s32.totalorder %s18, 3
      %p130 = por %p128, %p129
      %p131 = scmp.ne.s32.totalorder %s120, %s121
      %p132 = scmp.eq.s32.totalorder %s18, 0
      %p133 = por %p131, %p132
      %p134 = scmp.ne.s32.totalorder %s120, %s121
      %p135 = scmp.eq.s32.totalorder %s19, 3
      %p136 = por %p134, %p135
      %p138 = scmp.ne.s32.totalorder %s121, %s137
      %p139 = scmp.eq.s32.totalorder %s19, 0
      %p140 = por %p138, %p139
      %p141 = scmp.le.s32.totalorder 1, %s13
      %p142 = scmp.lt.s32.totalorder %s13, 5
      %p143 = pnand %p141, %p142
      %p144 = pneg %p143
      // Predicated region
      $region9: #{bottleneck_forward.7} parent=5 // pred_check
        _
      $region10: #{bottleneck_forward.7} parent=5 // pred_check_branch
        %146 = sbr.rel (%p143) target = $region12
      $region11: #{bottleneck_forward.7} parent=5 // pred_region
        %s147 = ssub.s32 %s13, 1
        // Predicated region
        $region13: #{bottleneck_forward.7} parent=11 // pred_check
          %p148 = pneg %p60
        $region14: #{bottleneck_forward.7} parent=11 // pred_check_branch
          %150 = sbr.rel (%p148) target = $region16
        $region15: #{bottleneck_forward.7} parent=11 // pred_region
          _
        $region16: #{bottleneck_forward.7} parent=11 // pred_fallthru
          _
        // Predicated region
        $region17: #{bottleneck_forward.7} parent=11 // pred_check
          %p151 = pneg %p81
        $region18: #{bottleneck_forward.7} parent=11 // pred_check_branch
          %153 = sbr.rel (%p151) target = $region20
        $region19: #{bottleneck_forward.7} parent=11 // pred_region
          _
        $region20: #{bottleneck_forward.7} parent=11 // pred_fallthru
          _
      $region12: #{bottleneck_forward.7} parent=5 // pred_fallthru
        _
      %p154 = scmp.lt.s32.totalorder %s13, 4
      // Predicated region
      $region21: #{bottleneck_forward.7} parent=5 // pred_check
        %p155 = pneg %p154
      $region22: #{bottleneck_forward.7} parent=5 // pred_check_branch
        %157 = sbr.rel (%p155) target = $region24
      $region23: #{bottleneck_forward.7} parent=5 // pred_region
        // Predicated region
        $region25: #{bottleneck_forward.7} parent=23 // pred_check
          %p158 = pneg %p33
        $region26: #{bottleneck_forward.7} parent=23 // pred_check_branch
          %160 = sbr.rel (%p158) target = $region28
        $region27: #{bottleneck_forward.7} parent=23 // pred_region
          %s161 = smul.u32 16, %s13
          %p162 = scmp.lt.s32.totalorder %s161, 63
          %s163 = scalar_select %p162, %s161, 63
          %s164 = smul.addr %s163, 4
          %s165 = scalar_lea.vmem %s0, %s164
          %s166 = smul.u32 16, %s13
        $region28: #{bottleneck_forward.7} parent=23 // pred_fallthru
          _
        // Predicated region
        $region29: #{bottleneck_forward.7} parent=23 // pred_check
          %p167 = pneg %p101
        $region30: #{bottleneck_forward.7} parent=23 // pred_check_branch
          %169 = sbr.rel (%p167) target = $region32
        $region31: #{bottleneck_forward.7} parent=23 // pred_region
          %s170 = smul.u32 16, %s13
          %p171 = scmp.lt.s32.totalorder %s170, 63
          %s172 = scalar_select %p171, %s170, 63
          %s173 = smul.addr %s172, 4
          %s174 = scalar_lea.vmem %s3, %s173
          %s175 = smul.u32 16, %s13
        $region32: #{bottleneck_forward.7} parent=23 // pred_fallthru
          _
      $region24: #{bottleneck_forward.7} parent=5 // pred_fallthru
        _
      %p176 = scmp.le.s32.totalorder 1, %s13
      %p177 = scmp.lt.s32.totalorder %s13, 5
      %p178 = pnand %p176, %p177
      %p179 = pneg %p178
      // Predicated region
      $region33: #{bottleneck_forward.7} parent=5 // pred_check
        _
      $region34: #{bottleneck_forward.7} parent=5 // pred_check_branch
        %181 = sbr.rel (%p178) target = $region36
      $region35: #{bottleneck_forward.7} parent=5 // pred_region
        %s182 = ssub.s32 %s13, 1
        %s183 = smul.u32 16, %s18
        %p184 = scmp.lt.s32.totalorder %s183, 63
        %s185 = scalar_select %p184, %s183, 63
        %s186 = smul.addr %s185, 4
        %s187 = scalar_lea.vmem %s0, %s186
        %p188 = pneg %p39
        %p189 = pneg %p36
        %p190 = pneg %p60
        %p191 = pneg %p57
        %p192 = pneg %p81
        %p193 = pneg %p78
        %s194 = smul.u32 16, %s18
        %p195 = scmp.lt.s32.totalorder %s194, 63
        %s196 = scalar_select %p195, %s194, 63
        %s197 = smul.addr %s196, 4
        %s198 = scalar_lea.vmem %s3, %s197
        %p199 = pneg %p107
        %p200 = pneg %p104
        %p201 = pneg %p133
        %p202 = pneg %p130
        %s203 = sand.u32 %s120, 1
        %s204 = scalar_lea.sflag [#allocation3], %s203
        %s205 = sand.u32 %s120, 1
        %s206 = smul.addr %s205, 128
        %s207 = scalar_lea.vmem [#allocation2], %s206
        %s208 = smul.u32 16, %s18
        %p209 = scmp.lt.s32.totalorder %s208, 63
        %s210 = scalar_select %p209, %s208, 63
        %s211 = smul.addr %s210, 4
        %s212 = scalar_lea.vmem %s0, %s211
        %s213 = smul.u32 16, %s18
        %s214 = smul.u32 16, %s18
        %p215 = scmp.lt.s32.totalorder %s214, 63
        %s216 = scalar_select %p215, %s214, 63
        %s217 = smul.addr %s216, 4
        %s218 = scalar_lea.vmem %s3, %s217
        %s219 = smul.u32 16, %s18
        %s220 = smul.u32 16, %s18
        %v221 = vld [vmem:[%s212] sm:$0xf]
        %v222 = vld [vmem:[%s212 + $0x4] sm:$0xf]
        %v223 = vld [vmem:[%s212 + $0x8] sm:$0xf]
        %v224 = vld [vmem:[%s212 + $0xc] sm:$0xf]
        %v225 = vld [vmem:[%s212 + $0x10] sm:$0xf]
        %v226 = vld [vmem:[%s212 + $0x14] sm:$0xf]
        %v227 = vld [vmem:[%s212 + $0x18] sm:$0xf]
        %v228 = vld [vmem:[%s212 + $0x1c] sm:$0xf]
        %v229 = vld [vmem:[%s212 + $0x20] sm:$0xf]
        %v230 = vld [vmem:[%s212 + $0x24] sm:$0xf]
        %v231 = vld [vmem:[%s212 + $0x28] sm:$0xf]
        %v232 = vld [vmem:[%s212 + $0x2c] sm:$0xf]
        %v233 = vld [vmem:[%s212 + $0x30] sm:$0xf]
        %v234 = vld [vmem:[%s212 + $0x34] sm:$0xf]
        %v235 = vld [vmem:[%s212 + $0x38] sm:$0xf]
        %v236 = vld [vmem:[%s212 + $0x3c] sm:$0xf]
        %v237 = vunpack.c.l.bf16 %v221
        %v238 = vunpack.c.l.bf16 %v222
        %v239 = vunpack.c.l.bf16 %v223
        %v240 = vunpack.c.l.bf16 %v224
        %v241 = vunpack.c.l.bf16 %v225
        %v242 = vunpack.c.l.bf16 %v226
        %v243 = vunpack.c.l.bf16 %v227
        %v244 = vunpack.c.l.bf16 %v228
        %v245 = vunpack.c.l.bf16 %v229
        %v246 = vunpack.c.l.bf16 %v230
        %v247 = vunpack.c.l.bf16 %v231
        %v248 = vunpack.c.l.bf16 %v232
        %v249 = vunpack.c.l.bf16 %v233
        %v250 = vunpack.c.l.bf16 %v234
        %v251 = vunpack.c.l.bf16 %v235
        %v252 = vunpack.c.l.bf16 %v236
        %v253 = vld [vmem:[%s1] sm:$0x1]
        %v255 = vlaneseq
        %v256 = vshrl.u32 %v255, 7
        %v257 = vsub.s32 0, %v256
        %v258 = vrot.slane %v253, %v257
        %v260 = vmul.f32 %v237, %v258
        %v261 = vmul.f32 %v238, %v258
        %v262 = vmul.f32 %v239, %v258
        %v263 = vmul.f32 %v240, %v258
        %v264 = vmul.f32 %v241, %v258
        %v265 = vmul.f32 %v242, %v258
        %v266 = vmul.f32 %v243, %v258
        %v267 = vmul.f32 %v244, %v258
        %v268 = vmul.f32 %v245, %v258
        %v269 = vmul.f32 %v246, %v258
        %v270 = vmul.f32 %v247, %v258
        %v271 = vmul.f32 %v248, %v258
        %v272 = vmul.f32 %v249, %v258
        %v273 = vmul.f32 %v250, %v258
        %v274 = vmul.f32 %v251, %v258
        %v275 = vmul.f32 %v252, %v258
        %v276 = vld [vmem:[%s2] sm:$0x1]
        %v278 = vlaneseq
        %v279 = vshrl.u32 %v278, 7
        %v280 = vsub.s32 0, %v279
        %v281 = vrot.slane %v276, %v280
        %v283 = vadd.f32 %v260, %v281
        %v284 = vadd.f32 %v261, %v281
        %v285 = vadd.f32 %v262, %v281
        %v286 = vadd.f32 %v263, %v281
        %v287 = vadd.f32 %v264, %v281
        %v288 = vadd.f32 %v265, %v281
        %v289 = vadd.f32 %v266, %v281
        %v290 = vadd.f32 %v267, %v281
        %v291 = vadd.f32 %v268, %v281
        %v292 = vadd.f32 %v269, %v281
        %v293 = vadd.f32 %v270, %v281
        %v294 = vadd.f32 %v271, %v281
        %v295 = vadd.f32 %v272, %v281
        %v296 = vadd.f32 %v273, %v281
        %v297 = vadd.f32 %v274, %v281
        %v298 = vadd.f32 %v275, %v281
        %v299 = vld [vmem:[%s218] sm:$0xf]
        %v300 = vld [vmem:[%s218 + $0x4] sm:$0xf]
        %v301 = vld [vmem:[%s218 + $0x8] sm:$0xf]
        %v302 = vld [vmem:[%s218 + $0xc] sm:$0xf]
        %v303 = vld [vmem:[%s218 + $0x10] sm:$0xf]
        %v304 = vld [vmem:[%s218 + $0x14] sm:$0xf]
        %v305 = vld [vmem:[%s218 + $0x18] sm:$0xf]
        %v306 = vld [vmem:[%s218 + $0x1c] sm:$0xf]
        %v307 = vld [vmem:[%s218 + $0x20] sm:$0xf]
        %v308 = vld [vmem:[%s218 + $0x24] sm:$0xf]
        %v309 = vld [vmem:[%s218 + $0x28] sm:$0xf]
        %v310 = vld [vmem:[%s218 + $0x2c] sm:$0xf]
        %v311 = vld [vmem:[%s218 + $0x30] sm:$0xf]
        %v312 = vld [vmem:[%s218 + $0x34] sm:$0xf]
        %v313 = vld [vmem:[%s218 + $0x38] sm:$0xf]
        %v314 = vld [vmem:[%s218 + $0x3c] sm:$0xf]
        %v315 = vunpack.c.l.bf16 %v299
        %v316 = vunpack.c.l.bf16 %v300
        %v317 = vunpack.c.l.bf16 %v301
        %v318 = vunpack.c.l.bf16 %v302
        %v319 = vunpack.c.l.bf16 %v303
        %v320 = vunpack.c.l.bf16 %v304
        %v321 = vunpack.c.l.bf16 %v305
        %v322 = vunpack.c.l.bf16 %v306
        %v323 = vunpack.c.l.bf16 %v307
        %v324 = vunpack.c.l.bf16 %v308
        %v325 = vunpack.c.l.bf16 %v309
        %v326 = vunpack.c.l.bf16 %v310
        %v327 = vunpack.c.l.bf16 %v311
        %v328 = vunpack.c.l.bf16 %v312
        %v329 = vunpack.c.l.bf16 %v313
        %v330 = vunpack.c.l.bf16 %v314
        %v331 = vadd.f32 %v283, %v315
        %v332 = vadd.f32 %v284, %v316
        %v333 = vadd.f32 %v285, %v317
        %v334 = vadd.f32 %v286, %v318
        %v335 = vadd.f32 %v287, %v319
        %v336 = vadd.f32 %v288, %v320
        %v337 = vadd.f32 %v289, %v321
        %v338 = vadd.f32 %v290, %v322
        %v339 = vadd.f32 %v291, %v323
        %v340 = vadd.f32 %v292, %v324
        %v341 = vadd.f32 %v293, %v325
        %v342 = vadd.f32 %v294, %v326
        %v343 = vadd.f32 %v295, %v327
        %v344 = vadd.f32 %v296, %v328
        %v345 = vadd.f32 %v297, %v329
        %v346 = vadd.f32 %v298, %v330
        %v347 = vmax.f32 %v331, 0.0
        %v348 = vmax.f32 %v332, 0.0
        %v349 = vmax.f32 %v333, 0.0
        %v350 = vmax.f32 %v334, 0.0
        %v351 = vmax.f32 %v335, 0.0
        %v352 = vmax.f32 %v336, 0.0
        %v353 = vmax.f32 %v337, 0.0
        %v354 = vmax.f32 %v338, 0.0
        %v355 = vmax.f32 %v339, 0.0
        %v356 = vmax.f32 %v340, 0.0
        %v357 = vmax.f32 %v341, 0.0
        %v358 = vmax.f32 %v342, 0.0
        %v359 = vmax.f32 %v343, 0.0
        %v360 = vmax.f32 %v344, 0.0
        %v361 = vmax.f32 %v345, 0.0
        %v362 = vmax.f32 %v346, 0.0
        %363 = vst [vmem:[%s207] sm:$0xff] %v347
        %364 = vst [vmem:[%s207 + $0x8] sm:$0xff] %v348
        %365 = vst [vmem:[%s207 + $0x10] sm:$0xff] %v349
        %366 = vst [vmem:[%s207 + $0x18] sm:$0xff] %v350
        %367 = vst [vmem:[%s207 + $0x20] sm:$0xff] %v351
        %368 = vst [vmem:[%s207 + $0x28] sm:$0xff] %v352
        %369 = vst [vmem:[%s207 + $0x30] sm:$0xff] %v353
        %370 = vst [vmem:[%s207 + $0x38] sm:$0xff] %v354
        %371 = vst [vmem:[%s207 + $0x40] sm:$0xff] %v355
        %372 = vst [vmem:[%s207 + $0x48] sm:$0xff] %v356
        %373 = vst [vmem:[%s207 + $0x50] sm:$0xff] %v357
        %374 = vst [vmem:[%s207 + $0x58] sm:$0xff] %v358
        %375 = vst [vmem:[%s207 + $0x60] sm:$0xff] %v359
        %376 = vst [vmem:[%s207 + $0x68] sm:$0xff] %v360
        %377 = vst [vmem:[%s207 + $0x70] sm:$0xff] %v361
        %378 = vst [vmem:[%s207 + $0x78] sm:$0xff] %v362
        %s379 = sand.u32 %s120, 1
        %s380 = scalar_lea.sflag [#allocation3], %s379
        %s381 = sand.u32 %s120, 1
        %s382 = smul.addr %s381, 128
        %s383 = scalar_lea.vmem [#allocation2], %s382
        // Predicated region
        $region37: #{bottleneck_forward.7} parent=35 // pred_check
          %p384 = pneg %p130
        $region38: #{bottleneck_forward.7} parent=35 // pred_check_branch
          %386 = sbr.rel (%p384) target = $region40
        $region39: #{bottleneck_forward.7} parent=35 // pred_region
          %s387 = smul.u32 16, %s18
          %s389 = ssub.s32 2048, 2048
          %390 = vsyncadd %s380, %s389
          %s391 = smul.addr %s387, 128
          %s392 = scalar_lea.hbm %s4, %s391
          %s393 = sshll.u32 %s383, 4
          %s394 = int_to_ptr.vmem [resolvable:$true] %s393
          %399 = dma.vmem_to_hbm [thread:$0]  %s394, 2048, %s392, %s380, 128, 128, 8
        $region40: #{bottleneck_forward.7} parent=35 // pred_fallthru
          _
      $region36: #{bottleneck_forward.7} parent=5 // pred_fallthru
        _
      %p400 = scmp.le.s32.totalorder 2, %s13
      // Predicated region
      $region41: #{bottleneck_forward.7} parent=5 // pred_check
        %p401 = pneg %p400
      $region42: #{bottleneck_forward.7} parent=5 // pred_check_branch
        %403 = sbr.rel (%p401) target = $region44
      $region43: #{bottleneck_forward.7} parent=5 // pred_region
        %s404 = ssub.s32 %s13, 2
        // Predicated region
        $region45: #{bottleneck_forward.7} parent=43 // pred_check
          %p405 = pneg %p136
        $region46: #{bottleneck_forward.7} parent=43 // pred_check_branch
          %407 = sbr.rel (%p405) target = $region48
        $region47: #{bottleneck_forward.7} parent=43 // pred_region
          %s408 = sand.u32 %s121, 1
          %s409 = scalar_lea.sflag [#allocation3], %s408
          %s410 = sand.u32 %s121, 1
          %s411 = smul.addr %s410, 128
          %s412 = scalar_lea.vmem [#allocation2], %s411
          %413 = dma.done %s409, 2048
        $region48: #{bottleneck_forward.7} parent=43 // pred_fallthru
          _
      $region44: #{bottleneck_forward.7} parent=5 // pred_fallthru
        _
    $region6: #{bottleneck_forward.7} parent=1 // loop_footer
      %s17 = sadd.s32 1, %s13
    $region7: #{bottleneck_forward.7} parent=1 // loop_footer_branch
      %12 = sbr.rel target = $region3
    $region8: #{bottleneck_forward.7} parent=1 // loop_exit
      _
    %414 = vsyncpa [#allocation3], 1
    %s415 = scalar_lea.sflag [#allocation3], 1
    %416 = vsyncpa %s415, 1

// kernel: bottleneck_forward.6
$region0: #{bottleneck_forward.6}
  #allocation0 [shape = 'u32[]', space=smem, size = 0x4, offset = 0x4, fixed_abs, tag = 'smem constant byte address 0x4 - core index']
  #allocation1 [shape = 'u32[144,128]{1,0:T(1,128)}', space=vmem, size = 0x12000, scoped, tag = 'internal scratch']
  %s0 = inlined_call_operand.vmem [shape: bf16[512,128], index: 0, kind: input, shape index: {}]
  %s1 = inlined_call_operand.vmem [shape: f32[1,128], index: 1, kind: input, shape index: {}]
  %s2 = inlined_call_operand.vmem [shape: f32[1,128], index: 2, kind: input, shape index: {}]
  %s3 = inlined_call_operand.vmem [shape: bf16[128,128], index: 3, kind: input, shape index: {}]
  %s4 = inlined_call_operand.vmem [shape: bf16[512,128], index: 4, kind: output, shape index: {0}]
  %s5 = inlined_call_operand.vmem [shape: f32[16,128], index: 5, kind: output, shape index: {1}]
  %6 = xla_tuple %s4, %s5
  %s7 = sld [smem:[#allocation0]]
  $region61: #{bottleneck_forward.6} parent=0
    _
  %s9 = ssub.s32 1, %s7
  %s10 = scalar_select 0, %s9, %s7
  loop: start=0, step=1, limit=6
  $region2: #{bottleneck_forward.6} parent=0 // loop_pre_header
    _
  $region3: #{bottleneck_forward.6} parent=0 // loop_header
    %s12 = sphi 0, %s16
    %p13 = scmp.ge.s32.totalorder %s12, 6
    %s19 = sphi 0, %s31
    %s20 = sphi 0, %s27
    %s21 = sphi 0, %s19
    %s22 = sphi 0, %s20
    %s23 = sphi 0, %s21
    %s24 = sphi 0, %s22
    %s38 = sphi 0, %s40
    %s41 = sphi 0, %s38
    %s42 = sphi 0, %s41
    %s58 = sphi 0, %s42
    %s62 = sphi 0, %s62
    %s64 = sphi 0, %s62
    %s65 = sphi 0, %s64
    %s79 = sphi 0, %s65
    %s83 = sphi 0, %s83
    %s85 = sphi 0, %s83
    %s86 = sphi 0, %s85
    %s100 = sphi 0, %s86
    %s104 = sphi 0, %s104
    %s106 = sphi 0, %s104
    %s107 = sphi 0, %s106
    %s121 = sphi 0, %s107
    %s131 = sphi 0, %s133
    %s134 = sphi 0, %s131
    %s135 = sphi 0, %s134
    %s151 = sphi 0, %s135
    %s157 = sphi 0, %s159
    %s160 = sphi 0, %s157
    %s161 = sphi 0, %s160
    %s177 = sphi 0, %s161
  $region4: #{bottleneck_forward.6} parent=0 // loop_header_branch
    %15 = sbr.rel (%p13) target = $region8
  $region5: #{bottleneck_forward.6} parent=0 // loop_body
    %s17 = ssub.s32 %s12, 1
    %s18 = ssub.s32 %s12, 2
    %s25 = sadd.s32 1, %s20
    %p26 = scmp.ge.s32.totalorder %s25, 2
    %s27 = scalar_select %p26, 0, %s25
    %s28 = sadd.s32 1, %s19
    %s29 = scalar_select %p26, %s28, %s19
    %p30 = scmp.ge.s32.totalorder %s29, 2
    %s31 = scalar_select %p30, 0, %s29
    %s32 = smul.u32 %s19, 2
    %s33 = sadd.s32 %s32, %s20
    %s34 = smul.u32 %s31, 2
    %s35 = sadd.s32 %s34, %s27
    %s36 = ssub.s32 %s33, %s35
    %p37 = scmp.eq.s32.totalorder %s36, 0
    %s39 = sadd.s32 %s38, 1
    %s40 = scalar_select %p37, %s38, %s39
    %p43 = pneg %p37
    %p44 = scmp.eq.s32.totalorder %s12, 3
    %p45 = por %p43, %p44
    %p46 = scmp.ne.s32.totalorder %s38, %s41
    %p47 = scmp.eq.s32.totalorder %s12, 0
    %p48 = por %p46, %p47
    %p49 = scmp.ne.s32.totalorder %s38, %s41
    %p50 = scmp.eq.s32.totalorder %s17, 3
    %p51 = por %p49, %p50
    %p52 = scmp.ne.s32.totalorder %s41, %s42
    %p53 = scmp.eq.s32.totalorder %s17, 0
    %p54 = por %p52, %p53
    %p55 = scmp.ne.s32.totalorder %s41, %s42
    %p56 = scmp.eq.s32.totalorder %s18, 3
    %p57 = por %p55, %p56
    %p59 = scmp.ne.s32.totalorder %s42, %s58
    %p60 = scmp.eq.s32.totalorder %s18, 0
    %p61 = por %p59, %p60
    %s63 = sadd.s32 %s62, 1
    %p66 = scmp.eq.s32.totalorder %s12, 3
    %p67 = scmp.ne.s32.totalorder %s62, %s64
    %p68 = scmp.eq.s32.totalorder %s12, 0
    %p69 = por %p67, %p68
    %p70 = scmp.ne.s32.totalorder %s62, %s64
    %p71 = scmp.eq.s32.totalorder %s17, 3
    %p72 = por %p70, %p71
    %p73 = scmp.ne.s32.totalorder %s64, %s65
    %p74 = scmp.eq.s32.totalorder %s17, 0
    %p75 = por %p73, %p74
    %p76 = scmp.ne.s32.totalorder %s64, %s65
    %p77 = scmp.eq.s32.totalorder %s18, 3
    %p78 = por %p76, %p77
    %p80 = scmp.ne.s32.totalorder %s65, %s79
    %p81 = scmp.eq.s32.totalorder %s18, 0
    %p82 = por %p80, %p81
    %s84 = sadd.s32 %s83, 1
    %p87 = scmp.eq.s32.totalorder %s12, 3
    %p88 = scmp.ne.s32.totalorder %s83, %s85
    %p89 = scmp.eq.s32.totalorder %s12, 0
    %p90 = por %p88, %p89
    %p91 = scmp.ne.s32.totalorder %s83, %s85
    %p92 = scmp.eq.s32.totalorder %s17, 3
    %p93 = por %p91, %p92
    %p94 = scmp.ne.s32.totalorder %s85, %s86
    %p95 = scmp.eq.s32.totalorder %s17, 0
    %p96 = por %p94, %p95
    %p97 = scmp.ne.s32.totalorder %s85, %s86
    %p98 = scmp.eq.s32.totalorder %s18, 3
    %p99 = por %p97, %p98
    %p101 = scmp.ne.s32.totalorder %s86, %s100
    %p102 = scmp.eq.s32.totalorder %s18, 0
    %p103 = por %p101, %p102
    %s105 = sadd.s32 %s104, 1
    %p108 = scmp.eq.s32.totalorder %s12, 3
    %p109 = scmp.ne.s32.totalorder %s104, %s106
    %p110 = scmp.eq.s32.totalorder %s12, 0
    %p111 = por %p109, %p110
    %p112 = scmp.ne.s32.totalorder %s104, %s106
    %p113 = scmp.eq.s32.totalorder %s17, 3
    %p114 = por %p112, %p113
    %p115 = scmp.ne.s32.totalorder %s106, %s107
    %p116 = scmp.eq.s32.totalorder %s17, 0
    %p117 = por %p115, %p116
    %p118 = scmp.ne.s32.totalorder %s106, %s107
    %p119 = scmp.eq.s32.totalorder %s18, 3
    %p120 = por %p118, %p119
    %p122 = scmp.ne.s32.totalorder %s107, %s121
    %p123 = scmp.eq.s32.totalorder %s18, 0
    %p124 = por %p122, %p123
    %s125 = smul.u32 %s19, 2
    %s126 = sadd.s32 %s125, %s20
    %s127 = smul.u32 %s31, 2
    %s128 = sadd.s32 %s127, %s27
    %s129 = ssub.s32 %s126, %s128
    %p130 = scmp.eq.s32.totalorder %s129, 0
    %s132 = sadd.s32 %s131, 1
    %s133 = scalar_select %p130, %s131, %s132
    %p136 = pneg %p130
    %p137 = scmp.eq.s32.totalorder %s12, 3
    %p138 = por %p136, %p137
    %p139 = scmp.ne.s32.totalorder %s131, %s134
    %p140 = scmp.eq.s32.totalorder %s12, 0
    %p141 = por %p139, %p140
    %p142 = scmp.ne.s32.totalorder %s131, %s134
    %p143 = scmp.eq.s32.totalorder %s17, 3
    %p144 = por %p142, %p143
    %p145 = scmp.ne.s32.totalorder %s134, %s135
    %p146 = scmp.eq.s32.totalorder %s17, 0
    %p147 = por %p145, %p146
    %p148 = scmp.ne.s32.totalorder %s134, %s135
    %p149 = scmp.eq.s32.totalorder %s18, 3
    %p150 = por %p148, %p149
    %p152 = scmp.ne.s32.totalorder %s135, %s151
    %p153 = scmp.eq.s32.totalorder %s18, 0
    %p154 = por %p152, %p153
    %s155 = ssub.s32 %s19, %s31
    %p156 = scmp.eq.s32.totalorder %s155, 0
    %s158 = sadd.s32 %s157, 1
    %s159 = scalar_select %p156, %s157, %s158
    %p162 = pneg %p156
    %p163 = scmp.eq.s32.totalorder %s12, 3
    %p164 = por %p162, %p163
    %p165 = scmp.ne.s32.totalorder %s157, %s160
    %p166 = scmp.eq.s32.totalorder %s12, 0
    %p167 = por %p165, %p166
    %p168 = scmp.ne.s32.totalorder %s157, %s160
    %p169 = scmp.eq.s32.totalorder %s17, 3
    %p170 = por %p168, %p169
    %p171 = scmp.ne.s32.totalorder %s160, %s161
    %p172 = scmp.eq.s32.totalorder %s17, 0
    %p173 = por %p171, %p172
    %p174 = scmp.ne.s32.totalorder %s160, %s161
    %p175 = scmp.eq.s32.totalorder %s18, 3
    %p176 = por %p174, %p175
    %p178 = scmp.ne.s32.totalorder %s161, %s177
    %p179 = scmp.eq.s32.totalorder %s18, 0
    %p180 = por %p178, %p179
    %p181 = scmp.le.s32.totalorder 1, %s12
    %p182 = scmp.lt.s32.totalorder %s12, 5
    %p183 = pnand %p181, %p182
    %p184 = pneg %p183
    // Predicated region
    $region9: #{bottleneck_forward.6} parent=5 // pred_check
      _
    $region10: #{bottleneck_forward.6} parent=5 // pred_check_branch
      %186 = sbr.rel (%p183) target = $region12
    $region11: #{bottleneck_forward.6} parent=5 // pred_region
      %s187 = ssub.s32 %s12, 1
      // Predicated region
      $region13: #{bottleneck_forward.6} parent=11 // pred_check
        %p188 = pneg %p75
      $region14: #{bottleneck_forward.6} parent=11 // pred_check_branch
        %190 = sbr.rel (%p188) target = $region16
      $region15: #{bottleneck_forward.6} parent=11 // pred_region
        _
      $region16: #{bottleneck_forward.6} parent=11 // pred_fallthru
        _
      // Predicated region
      $region17: #{bottleneck_forward.6} parent=11 // pred_check
        %p191 = pneg %p96
      $region18: #{bottleneck_forward.6} parent=11 // pred_check_branch
        %193 = sbr.rel (%p191) target = $region20
      $region19: #{bottleneck_forward.6} parent=11 // pred_region
        _
      $region20: #{bottleneck_forward.6} parent=11 // pred_fallthru
        _
      // Predicated region
      $region21: #{bottleneck_forward.6} parent=11 // pred_check
        %p194 = pneg %p117
      $region22: #{bottleneck_forward.6} parent=11 // pred_check_branch
        %196 = sbr.rel (%p194) target = $region24
      $region23: #{bottleneck_forward.6} parent=11 // pred_region
        _
      $region24: #{bottleneck_forward.6} parent=11 // pred_fallthru
        _
    $region12: #{bottleneck_forward.6} parent=5 // pred_fallthru
      _
    %p197 = scmp.lt.s32.totalorder %s12, 4
    // Predicated region
    $region25: #{bottleneck_forward.6} parent=5 // pred_check
      %p198 = pneg %p197
    $region26: #{bottleneck_forward.6} parent=5 // pred_check_branch
      %200 = sbr.rel (%p198) target = $region28
    $region27: #{bottleneck_forward.6} parent=5 // pred_region
      // Predicated region
      $region29: #{bottleneck_forward.6} parent=27 // pred_check
        %p201 = pneg %p48
      $region30: #{bottleneck_forward.6} parent=27 // pred_check_branch
        %203 = sbr.rel (%p201) target = $region32
      $region31: #{bottleneck_forward.6} parent=27 // pred_region
        %s204 = smul.u32 %s19, 2
        %s205 = sadd.s32 %s204, %s20
        %s206 = smul.u32 16, %s205
        %p207 = scmp.lt.s32.totalorder %s206, 63
        %s208 = scalar_select %p207, %s206, 63
        %s209 = smul.addr %s208, 4
        %s210 = scalar_lea.vmem %s0, %s209
        %s211 = smul.u32 %s19, 2
        %s212 = sadd.s32 %s211, %s20
        %s213 = smul.u32 16, %s212
      $region32: #{bottleneck_forward.6} parent=27 // pred_fallthru
        _
    $region28: #{bottleneck_forward.6} parent=5 // pred_fallthru
      _
    %p214 = scmp.le.s32.totalorder 1, %s12
    %p215 = scmp.lt.s32.totalorder %s12, 5
    %p216 = pnand %p214, %p215
    %p217 = pneg %p216
    // Predicated region
    $region33: #{bottleneck_forward.6} parent=5 // pred_check
      _
    $region34: #{bottleneck_forward.6} parent=5 // pred_check_branch
      %219 = sbr.rel (%p216) target = $region36
    $region35: #{bottleneck_forward.6} parent=5 // pred_region
      %s220 = ssub.s32 %s12, 1
      %s221 = smul.u32 %s21, 2
      %s222 = sadd.s32 %s221, %s22
      %s223 = smul.u32 16, %s222
      %p224 = scmp.lt.s32.totalorder %s223, 63
      %s225 = scalar_select %p224, %s223, 63
      %s226 = smul.addr %s225, 4
      %s227 = scalar_lea.vmem %s0, %s226
      %p228 = pneg %p54
      %p229 = pneg %p51
      %p230 = pneg %p75
      %p231 = pneg %p72
      %p232 = pneg %p96
      %p233 = pneg %p93
      %p234 = pneg %p117
      %p235 = pneg %p114
      %p236 = pneg %p147
      %p237 = pneg %p144
      %s238 = smul.u32 %s21, 2
      %s239 = sadd.s32 %s238, %s22
      %s240 = smul.u32 16, %s239
      %p241 = scmp.lt.s32.totalorder %s240, 63
      %s242 = scalar_select %p241, %s240, 63
      %s243 = smul.addr %s242, 4
      %s244 = scalar_lea.vmem %s4, %s243
      %p245 = pneg %p173
      %p246 = pneg %p170
      %p247 = scmp.lt.s32.totalorder %s21, 1
      %s248 = scalar_select %p247, %s21, 1
      %s249 = smul.addr %s248, 8
      %s250 = scalar_lea.vmem %s5, %s249
      %s251 = smul.u32 %s21, 2
      %s252 = sadd.s32 %s251, %s22
      %s253 = smul.u32 16, %s252
      %p254 = scmp.lt.s32.totalorder %s253, 63
      %s255 = scalar_select %p254, %s253, 63
      %s256 = smul.addr %s255, 4
      %s257 = scalar_lea.vmem %s0, %s256
      %s258 = smul.u32 %s21, 2
      %s259 = sadd.s32 %s258, %s22
      %s260 = smul.u32 16, %s259
      %s261 = smul.u32 %s21, 2
      %s262 = sadd.s32 %s261, %s22
      %s263 = smul.u32 16, %s262
      %p264 = scmp.lt.s32.totalorder %s263, 63
      %s265 = scalar_select %p264, %s263, 63
      %s266 = smul.addr %s265, 4
      %s267 = scalar_lea.vmem %s4, %s266
      %s268 = smul.u32 %s21, 2
      %s269 = sadd.s32 %s268, %s22
      %s270 = smul.u32 16, %s269
      %p271 = scmp.lt.s32.totalorder %s21, 1
      %s272 = scalar_select %p271, %s21, 1
      %s273 = smul.addr %s272, 8
      %s274 = scalar_lea.vmem %s5, %s273
      %p276 = scmp.eq.s32.totalorder %s22, 0
      // Predicated region
      $region37: #{bottleneck_forward.6} parent=35 // pred_check
        %p277 = pneg %p276
      $region38: #{bottleneck_forward.6} parent=35 // pred_check_branch
        %279 = sbr.rel (%p277) target = $region40
      $region39: #{bottleneck_forward.6} parent=35 // pred_region
        %280 = vst [vmem:[%s274] sm:$0xff] 0.0
      $region40: #{bottleneck_forward.6} parent=35 // pred_fallthru
        _
      %v281 = vld [vmem:[%s257] sm:$0xf]
      %v282 = vld [vmem:[%s257 + $0x4] sm:$0xf]
      %v283 = vld [vmem:[%s257 + $0x8] sm:$0xf]
      %v284 = vld [vmem:[%s257 + $0xc] sm:$0xf]
      %v285 = vld [vmem:[%s257 + $0x10] sm:$0xf]
      %v286 = vld [vmem:[%s257 + $0x14] sm:$0xf]
      %v287 = vld [vmem:[%s257 + $0x18] sm:$0xf]
      %v288 = vld [vmem:[%s257 + $0x1c] sm:$0xf]
      %v289 = vld [vmem:[%s257 + $0x20] sm:$0xf]
      %v290 = vld [vmem:[%s257 + $0x24] sm:$0xf]
      %v291 = vld [vmem:[%s257 + $0x28] sm:$0xf]
      %v292 = vld [vmem:[%s257 + $0x2c] sm:$0xf]
      %v293 = vld [vmem:[%s257 + $0x30] sm:$0xf]
      %v294 = vld [vmem:[%s257 + $0x34] sm:$0xf]
      %v295 = vld [vmem:[%s257 + $0x38] sm:$0xf]
      %v296 = vld [vmem:[%s257 + $0x3c] sm:$0xf]
      %v297 = vunpack.c.l.bf16 %v281
      %v298 = vunpack.c.l.bf16 %v282
      %v299 = vunpack.c.l.bf16 %v283
      %v300 = vunpack.c.l.bf16 %v284
      %v301 = vunpack.c.l.bf16 %v285
      %v302 = vunpack.c.l.bf16 %v286
      %v303 = vunpack.c.l.bf16 %v287
      %v304 = vunpack.c.l.bf16 %v288
      %v305 = vunpack.c.l.bf16 %v289
      %v306 = vunpack.c.l.bf16 %v290
      %v307 = vunpack.c.l.bf16 %v291
      %v308 = vunpack.c.l.bf16 %v292
      %v309 = vunpack.c.l.bf16 %v293
      %v310 = vunpack.c.l.bf16 %v294
      %v311 = vunpack.c.l.bf16 %v295
      %v312 = vunpack.c.l.bf16 %v296
      %v313 = vld [vmem:[%s1] sm:$0x1]
      %v315 = vlaneseq
      %v316 = vshrl.u32 %v315, 7
      %v317 = vsub.s32 0, %v316
      %v318 = vrot.slane %v313, %v317
      %v320 = vmul.f32 %v297, %v318
      %v321 = vmul.f32 %v298, %v318
      %v322 = vmul.f32 %v299, %v318
      %v323 = vmul.f32 %v300, %v318
      %v324 = vmul.f32 %v301, %v318
      %v325 = vmul.f32 %v302, %v318
      %v326 = vmul.f32 %v303, %v318
      %v327 = vmul.f32 %v304, %v318
      %v328 = vmul.f32 %v305, %v318
      %v329 = vmul.f32 %v306, %v318
      %v330 = vmul.f32 %v307, %v318
      %v331 = vmul.f32 %v308, %v318
      %v332 = vmul.f32 %v309, %v318
      %v333 = vmul.f32 %v310, %v318
      %v334 = vmul.f32 %v311, %v318
      %v335 = vmul.f32 %v312, %v318
      %v336 = vld [vmem:[%s2] sm:$0x1]
      %v338 = vlaneseq
      %v339 = vshrl.u32 %v338, 7
      %v340 = vsub.s32 0, %v339
      %v341 = vrot.slane %v336, %v340
      %v343 = vadd.f32 %v320, %v341
      %v344 = vadd.f32 %v321, %v341
      %v345 = vadd.f32 %v322, %v341
      %v346 = vadd.f32 %v323, %v341
      %v347 = vadd.f32 %v324, %v341
      %v348 = vadd.f32 %v325, %v341
      %v349 = vadd.f32 %v326, %v341
      %v350 = vadd.f32 %v327, %v341
      %v351 = vadd.f32 %v328, %v341
      %v352 = vadd.f32 %v329, %v341
      %v353 = vadd.f32 %v330, %v341
      %v354 = vadd.f32 %v331, %v341
      %v355 = vadd.f32 %v332, %v341
      %v356 = vadd.f32 %v333, %v341
      %v357 = vadd.f32 %v334, %v341
      %v358 = vadd.f32 %v335, %v341
      %v359 = vmax.f32 %v343, 0.0
      %v360 = vmax.f32 %v344, 0.0
      %v361 = vmax.f32 %v345, 0.0
      %v362 = vmax.f32 %v346, 0.0
      %v363 = vmax.f32 %v347, 0.0
      %v364 = vmax.f32 %v348, 0.0
      %v365 = vmax.f32 %v349, 0.0
      %v366 = vmax.f32 %v350, 0.0
      %v367 = vmax.f32 %v351, 0.0
      %v368 = vmax.f32 %v352, 0.0
      %v369 = vmax.f32 %v353, 0.0
      %v370 = vmax.f32 %v354, 0.0
      %v371 = vmax.f32 %v355, 0.0
      %v372 = vmax.f32 %v356, 0.0
      %v373 = vmax.f32 %v357, 0.0
      %v374 = vmax.f32 %v358, 0.0
      %v375 = vpack.c.bf16 %v360, %v359
      %v376 = vpack.c.bf16 %v362, %v361
      %v377 = vpack.c.bf16 %v364, %v363
      %v378 = vpack.c.bf16 %v366, %v365
      %v379 = vpack.c.bf16 %v368, %v367
      %v380 = vpack.c.bf16 %v370, %v369
      %v381 = vpack.c.bf16 %v372, %v371
      %v382 = vpack.c.bf16 %v374, %v373
      %v383 = vld [vmem:[%s3] sm:$0xf]
      %v384 = vld [vmem:[%s3 + $0x4] sm:$0xf]
      %v385 = vld [vmem:[%s3 + $0x8] sm:$0xf]
      %v386 = vld [vmem:[%s3 + $0xc] sm:$0xf]
      %v387 = vld [vmem:[%s3 + $0x10] sm:$0xf]
      %v388 = vld [vmem:[%s3 + $0x14] sm:$0xf]
      %v389 = vld [vmem:[%s3 + $0x18] sm:$0xf]
      %v390 = vld [vmem:[%s3 + $0x1c] sm:$0xf]
      %v391 = vld [vmem:[%s3 + $0x20] sm:$0xf]
      %v392 = vld [vmem:[%s3 + $0x24] sm:$0xf]
      %v393 = vld [vmem:[%s3 + $0x28] sm:$0xf]
      %v394 = vld [vmem:[%s3 + $0x2c] sm:$0xf]
      %v395 = vld [vmem:[%s3 + $0x30] sm:$0xf]
      %v396 = vld [vmem:[%s3 + $0x34] sm:$0xf]
      %v397 = vld [vmem:[%s3 + $0x38] sm:$0xf]
      %v398 = vld [vmem:[%s3 + $0x3c] sm:$0xf]
      %v415 = vunpack.c.l.b16 %v383
      %v416 = vunpack.c.l.b16 %v384
      %v417 = vunpack.c.l.b16 %v385
      %v418 = vunpack.c.l.b16 %v386
      %v419 = vunpack.c.l.b16 %v387
      %v420 = vunpack.c.l.b16 %v388
      %v421 = vunpack.c.l.b16 %v389
      %v422 = vunpack.c.l.b16 %v390
      %v423 = vunpack.c.l.b16 %v391
      %v424 = vunpack.c.l.b16 %v392
      %v425 = vunpack.c.l.b16 %v393
      %v426 = vunpack.c.l.b16 %v394
      %v427 = vunpack.c.l.b16 %v395
      %v428 = vunpack.c.l.b16 %v396
      %v429 = vunpack.c.l.b16 %v397
      %v430 = vunpack.c.l.b16 %v398
      %v431 = vpack.c.b16 %v416, %v415
      %v432 = vpack.c.b16 %v418, %v417
      %v433 = vpack.c.b16 %v420, %v419
      %v434 = vpack.c.b16 %v422, %v421
      %v435 = vpack.c.b16 %v424, %v423
      %v436 = vpack.c.b16 %v426, %v425
      %v437 = vpack.c.b16 %v428, %v427
      %v438 = vpack.c.b16 %v430, %v429
      %447 = vmatprep.subr.bf16.mxu0 0
      %448 = vmatpush1.bf16.msra.mxu0 %v431
      %449 = vmatprep.subr.bf16.mxu0 0
      %450 = vmatpush1.bf16.msra.mxu0 %v432
      %451 = vmatprep.subr.bf16.mxu0 0
      %452 = vmatpush1.bf16.msra.mxu0 %v433
      %453 = vmatprep.subr.bf16.mxu0 0
      %454 = vmatpush1.bf16.msra.mxu0 %v434
      %455 = vmatprep.subr.bf16.mxu0 0
      %456 = vmatpush1.bf16.msra.mxu0 %v435
      %457 = vmatprep.subr.bf16.mxu0 0
      %458 = vmatpush1.bf16.msra.mxu0 %v436
      %459 = vmatprep.subr.bf16.mxu0 0
      %460 = vmatpush1.bf16.msra.mxu0 %v437
      %461 = vmatprep.subr.bf16.mxu0 0
      %462 = vmatpush1.bf16.msra.mxu0 %v438
      %463 = vmatprep.subr.bf16.mxu0 0
      %464 = vmatpush1.bf16.msra.mxu0 0
      %465 = vmatprep.subr.bf16.mxu0 0
      %466 = vmatpush1.bf16.msra.mxu0 0
      %467 = vmatprep.subr.bf16.mxu0 0
      %468 = vmatpush1.bf16.msra.mxu0 0
      %469 = vmatprep.subr.bf16.mxu0 0
      %470 = vmatpush1.bf16.msra.mxu0 0
      %471 = vmatprep.subr.bf16.mxu0 0
      %472 = vmatpush1.bf16.msra.mxu0 0
      %473 = vmatprep.subr.bf16.mxu0 0
      %474 = vmatpush1.bf16.msra.mxu0 0
      %475 = vmatprep.subr.bf16.mxu0 0
      %476 = vmatpush1.bf16.msra.mxu0 0
      %477 = vmatprep.subr.bf16.mxu0 0
      %478 = vmatpush1.bf16.msra.mxu0 0
      %479 = vmatprep.mubr.bf16.mxu0 0
      %480 = vmatmul.mubr.bf16.gmra.mrb[0].mxu0 %v375
      %v481 = vpop.f32.mrb[0].mxu0
      %v482 = vadd.f32 0.0, %v481
      %v483 = vpop.f32.mrb[0].mxu0
      %v484 = vpop.f32.mrb[0].mxu0
      %v485 = vadd.f32 0.0, %v484
      %v486 = vpop.f32.mrb[0].mxu0
      %487 = vmatprep.mubr.bf16.mxu0 0
      %488 = vmatmul.mubr.bf16.gmra.mrb[0].mxu0 %v376
      %v489 = vpop.f32.mrb[0].mxu0
      %v490 = vadd.f32 0.0, %v489
      %v491 = vpop.f32.mrb[0].mxu0
      %v492 = vpop.f32.mrb[0].mxu0
      %v493 = vadd.f32 0.0, %v492
      %v494 = vpop.f32.mrb[0].mxu0
      %495 = vmatprep.mubr.bf16.mxu0 0
      %496 = vmatmul.mubr.bf16.gmra.mrb[0].mxu0 %v377
      %v497 = vpop.f32.mrb[0].mxu0
      %v498 = vadd.f32 0.0, %v497
      %v499 = vpop.f32.mrb[0].mxu0
      %v500 = vpop.f32.mrb[0].mxu0
      %v501 = vadd.f32 0.0, %v500
      %v502 = vpop.f32.mrb[0].mxu0
      %503 = vmatprep.mubr.bf16.mxu0 0
      %504 = vmatmul.mubr.bf16.gmra.mrb[0].mxu0 %v378
      %v505 = vpop.f32.mrb[0].mxu0
      %v506 = vadd.f32 0.0, %v505
      %v507 = vpop.f32.mrb[0].mxu0
      %v508 = vpop.f32.mrb[0].mxu0
      %v509 = vadd.f32 0.0, %v508
      %v510 = vpop.f32.mrb[0].mxu0
      %511 = vmatprep.mubr.bf16.mxu0 0
      %512 = vmatmul.mubr.bf16.gmra.mrb[0].mxu0 %v379
      %v513 = vpop.f32.mrb[0].mxu0
      %v514 = vadd.f32 0.0, %v513
      %v515 = vpop.f32.mrb[0].mxu0
      %v516 = vpop.f32.mrb[0].mxu0
      %v517 = vadd.f32 0.0, %v516
      %v518 = vpop.f32.mrb[0].mxu0
      %519 = vmatprep.mubr.bf16.mxu0 0
      %520 = vmatmul.mubr.bf16.gmra.mrb[0].mxu0 %v380
      %v521 = vpop.f32.mrb[0].mxu0
      %v522 = vadd.f32 0.0, %v521
      %v523 = vpop.f32.mrb[0].mxu0
      %v524 = vpop.f32.mrb[0].mxu0
      %v525 = vadd.f32 0.0, %v524
      %v526 = vpop.f32.mrb[0].mxu0
      %527 = vmatprep.mubr.bf16.mxu0 0
      %528 = vmatmul.mubr.bf16.gmra.mrb[0].mxu0 %v381
      %v529 = vpop.f32.mrb[0].mxu0
      %v530 = vadd.f32 0.0, %v529
      %v531 = vpop.f32.mrb[0].mxu0
      %v532 = vpop.f32.mrb[0].mxu0
      %v533 = vadd.f32 0.0, %v532
      %v534 = vpop.f32.mrb[0].mxu0
      %535 = vmatprep.mubr.bf16.mxu0 0
      %536 = vmatmul.mubr.bf16.gmra.mrb[0].mxu0 %v382
      %v537 = vpop.f32.mrb[0].mxu0
      %v538 = vadd.f32 0.0, %v537
      %v539 = vpop.f32.mrb[0].mxu0
      %v540 = vpop.f32.mrb[0].mxu0
      %v541 = vadd.f32 0.0, %v540
      %v542 = vpop.f32.mrb[0].mxu0
      %543 = vdwg.mxu0
      %v544 = vld [vmem:[%s274] sm:$0x1]
      %v545 = vadd.f32 %v482, %v485
      %v546 = vadd.f32 %v545, %v490
      %v547 = vadd.f32 %v546, %v493
      %v548 = vadd.f32 %v547, %v498
      %v549 = vadd.f32 %v548, %v501
      %v550 = vadd.f32 %v549, %v506
      %v551 = vadd.f32 %v550, %v509
      %v552 = vadd.f32 %v551, %v514
      %v553 = vadd.f32 %v552, %v517
      %v554 = vadd.f32 %v553, %v522
      %v555 = vadd.f32 %v554, %v525
      %v556 = vadd.f32 %v555, %v530
      %v557 = vadd.f32 %v556, %v533
      %v558 = vadd.f32 %v557, %v538
      %v559 = vadd.f32 %v558, %v541
      %v560 = vrot.slane %v559, 4
      %v561 = vadd.f32 %v559, %v560
      %v562 = vrot.slane %v561, 2
      %v563 = vadd.f32 %v561, %v562
      %v564 = vrot.slane %v563, 1
      %v565 = vadd.f32 %v563, %v564
      %v566 = vadd.f32 %v544, %v565
      %567 = vst [vmem:[%s274] sm:$0x1] %v566
      %v568 = vld [vmem:[%s274 + $0x1] sm:$0x1]
      %v569 = vmul.f32 %v482, %v482
      %v570 = vmul.f32 %v485, %v485
      %v571 = vmul.f32 %v490, %v490
      %v572 = vmul.f32 %v493, %v493
      %v573 = vmul.f32 %v498, %v498
      %v574 = vmul.f32 %v501, %v501
      %v575 = vmul.f32 %v506, %v506
      %v576 = vmul.f32 %v509, %v509
      %v577 = vmul.f32 %v514, %v514
      %v578 = vmul.f32 %v517, %v517
      %v579 = vmul.f32 %v522, %v522
      %v580 = vmul.f32 %v525, %v525
      %v581 = vmul.f32 %v530, %v530
      %v582 = vmul.f32 %v533, %v533
      %v583 = vmul.f32 %v538, %v538
      %v584 = vmul.f32 %v541, %v541
      %v585 = vadd.f32 %v569, %v570
      %v586 = vadd.f32 %v585, %v571
      %v587 = vadd.f32 %v586, %v572
      %v588 = vadd.f32 %v587, %v573
      %v589 = vadd.f32 %v588, %v574
      %v590 = vadd.f32 %v589, %v575
      %v591 = vadd.f32 %v590, %v576
      %v592 = vadd.f32 %v591, %v577
      %v593 = vadd.f32 %v592, %v578
      %v594 = vadd.f32 %v593, %v579
      %v595 = vadd.f32 %v594, %v580
      %v596 = vadd.f32 %v595, %v581
      %v597 = vadd.f32 %v596, %v582
      %v598 = vadd.f32 %v597, %v583
      %v599 = vadd.f32 %v598, %v584
      %v600 = vrot.slane %v599, 4
      %v601 = vadd.f32 %v599, %v600
      %v602 = vrot.slane %v601, 2
      %v603 = vadd.f32 %v601, %v602
      %v604 = vrot.slane %v603, 1
      %v605 = vadd.f32 %v603, %v604
      %v606 = vadd.f32 %v568, %v605
      %607 = vst [vmem:[%s274 + $0x1] sm:$0x1] %v606
      %v608 = vpack.c.bf16 %v485, %v482
      %v609 = vpack.c.bf16 %v493, %v490
      %v610 = vpack.c.bf16 %v501, %v498
      %v611 = vpack.c.bf16 %v509, %v506
      %v612 = vpack.c.bf16 %v517, %v514
      %v613 = vpack.c.bf16 %v525, %v522
      %v614 = vpack.c.bf16 %v533, %v530
      %v615 = vpack.c.bf16 %v541, %v538
      %v624 = vunpack.c.l.b16 %v608
      %v625 = vunpack.c.h.b16 %v608
      %v626 = vunpack.c.l.b16 %v609
      %v627 = vunpack.c.h.b16 %v609
      %v628 = vunpack.c.l.b16 %v610
      %v629 = vunpack.c.h.b16 %v610
      %v630 = vunpack.c.l.b16 %v611
      %v631 = vunpack.c.h.b16 %v611
      %v632 = vunpack.c.l.b16 %v612
      %v633 = vunpack.c.h.b16 %v612
      %v634 = vunpack.c.l.b16 %v613
      %v635 = vunpack.c.h.b16 %v613
      %v636 = vunpack.c.l.b16 %v614
      %v637 = vunpack.c.h.b16 %v614
      %v638 = vunpack.c.l.b16 %v615
      %v639 = vunpack.c.h.b16 %v615
      %v640 = vpack.c.b16 %v624, %v624
      %v641 = vpack.c.b16 %v625, %v625
      %v642 = vpack.c.b16 %v626, %v626
      %v643 = vpack.c.b16 %v627, %v627
      %v644 = vpack.c.b16 %v628, %v628
      %v645 = vpack.c.b16 %v629, %v629
      %v646 = vpack.c.b16 %v630, %v630
      %v647 = vpack.c.b16 %v631, %v631
      %v648 = vpack.c.b16 %v632, %v632
      %v649 = vpack.c.b16 %v633, %v633
      %v650 = vpack.c.b16 %v634, %v634
      %v651 = vpack.c.b16 %v635, %v635
      %v652 = vpack.c.b16 %v636, %v636
      %v653 = vpack.c.b16 %v637, %v637
      %v654 = vpack.c.b16 %v638, %v638
      %v655 = vpack.c.b16 %v639, %v639
      %672 = vst [vmem:[%s267] sm:$0xf] %v640
      %673 = vst [vmem:[%s267 + $0x4] sm:$0xf] %v641
      %674 = vst [vmem:[%s267 + $0x8] sm:$0xf] %v642
      %675 = vst [vmem:[%s267 + $0xc] sm:$0xf] %v643
      %676 = vst [vmem:[%s267 + $0x10] sm:$0xf] %v644
      %677 = vst [vmem:[%s267 + $0x14] sm:$0xf] %v645
      %678 = vst [vmem:[%s267 + $0x18] sm:$0xf] %v646
      %679 = vst [vmem:[%s267 + $0x1c] sm:$0xf] %v647
      %680 = vst [vmem:[%s267 + $0x20] sm:$0xf] %v648
      %681 = vst [vmem:[%s267 + $0x24] sm:$0xf] %v649
      %682 = vst [vmem:[%s267 + $0x28] sm:$0xf] %v650
      %683 = vst [vmem:[%s267 + $0x2c] sm:$0xf] %v651
      %684 = vst [vmem:[%s267 + $0x30] sm:$0xf] %v652
      %685 = vst [vmem:[%s267 + $0x34] sm:$0xf] %v653
      %686 = vst [vmem:[%s267 + $0x38] sm:$0xf] %v654
      %687 = vst [vmem:[%s267 + $0x3c] sm:$0xf] %v655
      %s688 = smul.u32 %s21, 2
      %s689 = sadd.s32 %s688, %s22
      %s690 = smul.u32 16, %s689
      %p691 = scmp.lt.s32.totalorder %s690, 63
      %s692 = scalar_select %p691, %s690, 63
      %s693 = smul.addr %s692, 4
      %s694 = scalar_lea.vmem %s4, %s693
      %p695 = scmp.lt.s32.totalorder %s21, 1
      %s696 = scalar_select %p695, %s21, 1
      %s697 = smul.addr %s696, 8
      %s698 = scalar_lea.vmem %s5, %s697
      // Predicated region
      $region41: #{bottleneck_forward.6} parent=35 // pred_check
        %p699 = pneg %p144
      $region42: #{bottleneck_forward.6} parent=35 // pred_check_branch
        %701 = sbr.rel (%p699) target = $region44
      $region43: #{bottleneck_forward.6} parent=35 // pred_region
        %s702 = smul.u32 %s21, 2
        %s703 = sadd.s32 %s702, %s22
        %s704 = smul.u32 16, %s703
      $region44: #{bottleneck_forward.6} parent=35 // pred_fallthru
        _
      // Predicated region
      $region45: #{bottleneck_forward.6} parent=35 // pred_check
        %p705 = pneg %p170
      $region46: #{bottleneck_forward.6} parent=35 // pred_check_branch
        %707 = sbr.rel (%p705) target = $region48
      $region47: #{bottleneck_forward.6} parent=35 // pred_region
        _
      $region48: #{bottleneck_forward.6} parent=35 // pred_fallthru
        _
    $region36: #{bottleneck_forward.6} parent=5 // pred_fallthru
      _
    %p708 = scmp.le.s32.totalorder 2, %s12
    // Predicated region
    $region49: #{bottleneck_forward.6} parent=5 // pred_check
      %p709 = pneg %p708
    $region50: #{bottleneck_forward.6} parent=5 // pred_check_branch
      %711 = sbr.rel (%p709) target = $region52
    $region51: #{bottleneck_forward.6} parent=5 // pred_region
      %s712 = ssub.s32 %s12, 2
      // Predicated region
      $region53: #{bottleneck_forward.6} parent=51 // pred_check
        %p713 = pneg %p150
      $region54: #{bottleneck_forward.6} parent=51 // pred_check_branch
        %715 = sbr.rel (%p713) target = $region56
      $region55: #{bottleneck_forward.6} parent=51 // pred_region
        %s716 = smul.u32 %s23, 2
        %s717 = sadd.s32 %s716, %s24
        %s718 = smul.u32 16, %s717
        %p719 = scmp.lt.s32.totalorder %s718, 63
        %s720 = scalar_select %p719, %s718, 63
        %s721 = smul.addr %s720, 4
        %s722 = scalar_lea.vmem %s4, %s721
      $region56: #{bottleneck_forward.6} parent=51 // pred_fallthru
        _
      // Predicated region
      $region57: #{bottleneck_forward.6} parent=51 // pred_check
        %p723 = pneg %p176
      $region58: #{bottleneck_forward.6} parent=51 // pred_check_branch
        %725 = sbr.rel (%p723) target = $region60
      $region59: #{bottleneck_forward.6} parent=51 // pred_region
        %p726 = scmp.lt.s32.totalorder %s23, 1
        %s727 = scalar_select %p726, %s23, 1
        %s728 = smul.addr %s727, 8
        %s729 = scalar_lea.vmem %s5, %s728
      $region60: #{bottleneck_forward.6} parent=51 // pred_fallthru
        _
    $region52: #{bottleneck_forward.6} parent=5 // pred_fallthru
      _
  $region6: #{bottleneck_forward.6} parent=0 // loop_footer
    %s16 = sadd.s32 1, %s12
  $region7: #{bottleneck_forward.6} parent=0 // loop_footer_branch
    %11 = sbr.rel target = $region3
  $region8: #{bottleneck_forward.6} parent=0 // loop_exit
    _

// kernel: bottleneck_forward.4
$region0: #{bottleneck_forward.4}
  #allocation0 [shape = 'u32[]', space=smem, size = 0x4, offset = 0x4, fixed_abs, tag = 'smem constant byte address 0x4 - core index']
  #allocation1 [shape = 'u32[144,128]{1,0:T(1,128)}', space=vmem, size = 0x12000, scoped, tag = 'internal scratch']
  %s0 = inlined_call_operand.vmem [shape: bf16[512,128], index: 0, kind: input, shape index: {}]
  %s1 = inlined_call_operand.vmem [shape: bf16[128,128], index: 1, kind: input, shape index: {}]
  %s2 = inlined_call_operand.vmem [shape: bf16[512,128], index: 2, kind: output, shape index: {0}]
  %s3 = inlined_call_operand.vmem [shape: f32[16,128], index: 3, kind: output, shape index: {1}]
  %4 = xla_tuple %s2, %s3
  %s5 = sld [smem:[#allocation0]]
  $region53: #{bottleneck_forward.4} parent=0
    _
  %s7 = ssub.s32 1, %s5
  %s8 = scalar_select 0, %s7, %s5
  loop: start=0, step=1, limit=6
  $region2: #{bottleneck_forward.4} parent=0 // loop_pre_header
    _
  $region3: #{bottleneck_forward.4} parent=0 // loop_header
    %s10 = sphi 0, %s14
    %p11 = scmp.ge.s32.totalorder %s10, 6
    %s17 = sphi 0, %s29
    %s18 = sphi 0, %s25
    %s19 = sphi 0, %s17
    %s20 = sphi 0, %s18
    %s21 = sphi 0, %s19
    %s22 = sphi 0, %s20
    %s36 = sphi 0, %s38
    %s39 = sphi 0, %s36
    %s40 = sphi 0, %s39
    %s56 = sphi 0, %s40
    %s60 = sphi 0, %s60
    %s62 = sphi 0, %s60
    %s63 = sphi 0, %s62
    %s77 = sphi 0, %s63
    %s87 = sphi 0, %s89
    %s90 = sphi 0, %s87
    %s91 = sphi 0, %s90
    %s107 = sphi 0, %s91
    %s113 = sphi 0, %s115
    %s116 = sphi 0, %s113
    %s117 = sphi 0, %s116
    %s133 = sphi 0, %s117
  $region4: #{bottleneck_forward.4} parent=0 // loop_header_branch
    %13 = sbr.rel (%p11) target = $region8
  $region5: #{bottleneck_forward.4} parent=0 // loop_body
    %s15 = ssub.s32 %s10, 1
    %s16 = ssub.s32 %s10, 2
    %s23 = sadd.s32 1, %s18
    %p24 = scmp.ge.s32.totalorder %s23, 2
    %s25 = scalar_select %p24, 0, %s23
    %s26 = sadd.s32 1, %s17
    %s27 = scalar_select %p24, %s26, %s17
    %p28 = scmp.ge.s32.totalorder %s27, 2
    %s29 = scalar_select %p28, 0, %s27
    %s30 = smul.u32 %s17, 2
    %s31 = sadd.s32 %s30, %s18
    %s32 = smul.u32 %s29, 2
    %s33 = sadd.s32 %s32, %s25
    %s34 = ssub.s32 %s31, %s33
    %p35 = scmp.eq.s32.totalorder %s34, 0
    %s37 = sadd.s32 %s36, 1
    %s38 = scalar_select %p35, %s36, %s37
    %p41 = pneg %p35
    %p42 = scmp.eq.s32.totalorder %s10, 3
    %p43 = por %p41, %p42
    %p44 = scmp.ne.s32.totalorder %s36, %s39
    %p45 = scmp.eq.s32.totalorder %s10, 0
    %p46 = por %p44, %p45
    %p47 = scmp.ne.s32.totalorder %s36, %s39
    %p48 = scmp.eq.s32.totalorder %s15, 3
    %p49 = por %p47, %p48
    %p50 = scmp.ne.s32.totalorder %s39, %s40
    %p51 = scmp.eq.s32.totalorder %s15, 0
    %p52 = por %p50, %p51
    %p53 = scmp.ne.s32.totalorder %s39, %s40
    %p54 = scmp.eq.s32.totalorder %s16, 3
    %p55 = por %p53, %p54
    %p57 = scmp.ne.s32.totalorder %s40, %s56
    %p58 = scmp.eq.s32.totalorder %s16, 0
    %p59 = por %p57, %p58
    %s61 = sadd.s32 %s60, 1
    %p64 = scmp.eq.s32.totalorder %s10, 3
    %p65 = scmp.ne.s32.totalorder %s60, %s62
    %p66 = scmp.eq.s32.totalorder %s10, 0
    %p67 = por %p65, %p66
    %p68 = scmp.ne.s32.totalorder %s60, %s62
    %p69 = scmp.eq.s32.totalorder %s15, 3
    %p70 = por %p68, %p69
    %p71 = scmp.ne.s32.totalorder %s62, %s63
    %p72 = scmp.eq.s32.totalorder %s15, 0
    %p73 = por %p71, %p72
    %p74 = scmp.ne.s32.totalorder %s62, %s63
    %p75 = scmp.eq.s32.totalorder %s16, 3
    %p76 = por %p74, %p75
    %p78 = scmp.ne.s32.totalorder %s63, %s77
    %p79 = scmp.eq.s32.totalorder %s16, 0
    %p80 = por %p78, %p79
    %s81 = smul.u32 %s17, 2
    %s82 = sadd.s32 %s81, %s18
    %s83 = smul.u32 %s29, 2
    %s84 = sadd.s32 %s83, %s25
    %s85 = ssub.s32 %s82, %s84
    %p86 = scmp.eq.s32.totalorder %s85, 0
    %s88 = sadd.s32 %s87, 1
    %s89 = scalar_select %p86, %s87, %s88
    %p92 = pneg %p86
    %p93 = scmp.eq.s32.totalorder %s10, 3
    %p94 = por %p92, %p93
    %p95 = scmp.ne.s32.totalorder %s87, %s90
    %p96 = scmp.eq.s32.totalorder %s10, 0
    %p97 = por %p95, %p96
    %p98 = scmp.ne.s32.totalorder %s87, %s90
    %p99 = scmp.eq.s32.totalorder %s15, 3
    %p100 = por %p98, %p99
    %p101 = scmp.ne.s32.totalorder %s90, %s91
    %p102 = scmp.eq.s32.totalorder %s15, 0
    %p103 = por %p101, %p102
    %p104 = scmp.ne.s32.totalorder %s90, %s91
    %p105 = scmp.eq.s32.totalorder %s16, 3
    %p106 = por %p104, %p105
    %p108 = scmp.ne.s32.totalorder %s91, %s107
    %p109 = scmp.eq.s32.totalorder %s16, 0
    %p110 = por %p108, %p109
    %s111 = ssub.s32 %s17, %s29
    %p112 = scmp.eq.s32.totalorder %s111, 0
    %s114 = sadd.s32 %s113, 1
    %s115 = scalar_select %p112, %s113, %s114
    %p118 = pneg %p112
    %p119 = scmp.eq.s32.totalorder %s10, 3
    %p120 = por %p118, %p119
    %p121 = scmp.ne.s32.totalorder %s113, %s116
    %p122 = scmp.eq.s32.totalorder %s10, 0
    %p123 = por %p121, %p122
    %p124 = scmp.ne.s32.totalorder %s113, %s116
    %p125 = scmp.eq.s32.totalorder %s15, 3
    %p126 = por %p124, %p125
    %p127 = scmp.ne.s32.totalorder %s116, %s117
    %p128 = scmp.eq.s32.totalorder %s15, 0
    %p129 = por %p127, %p128
    %p130 = scmp.ne.s32.totalorder %s116, %s117
    %p131 = scmp.eq.s32.totalorder %s16, 3
    %p132 = por %p130, %p131
    %p134 = scmp.ne.s32.totalorder %s117, %s133
    %p135 = scmp.eq.s32.totalorder %s16, 0
    %p136 = por %p134, %p135
    %p137 = scmp.le.s32.totalorder 1, %s10
    %p138 = scmp.lt.s32.totalorder %s10, 5
    %p139 = pnand %p137, %p138
    %p140 = pneg %p139
    // Predicated region
    $region9: #{bottleneck_forward.4} parent=5 // pred_check
      _
    $region10: #{bottleneck_forward.4} parent=5 // pred_check_branch
      %142 = sbr.rel (%p139) target = $region12
    $region11: #{bottleneck_forward.4} parent=5 // pred_region
      %s143 = ssub.s32 %s10, 1
      // Predicated region
      $region13: #{bottleneck_forward.4} parent=11 // pred_check
        %p144 = pneg %p73
      $region14: #{bottleneck_forward.4} parent=11 // pred_check_branch
        %146 = sbr.rel (%p144) target = $region16
      $region15: #{bottleneck_forward.4} parent=11 // pred_region
        _
      $region16: #{bottleneck_forward.4} parent=11 // pred_fallthru
        _
    $region12: #{bottleneck_forward.4} parent=5 // pred_fallthru
      _
    %p147 = scmp.lt.s32.totalorder %s10, 4
    // Predicated region
    $region17: #{bottleneck_forward.4} parent=5 // pred_check
      %p148 = pneg %p147
    $region18: #{bottleneck_forward.4} parent=5 // pred_check_branch
      %150 = sbr.rel (%p148) target = $region20
    $region19: #{bottleneck_forward.4} parent=5 // pred_region
      // Predicated region
      $region21: #{bottleneck_forward.4} parent=19 // pred_check
        %p151 = pneg %p46
      $region22: #{bottleneck_forward.4} parent=19 // pred_check_branch
        %153 = sbr.rel (%p151) target = $region24
      $region23: #{bottleneck_forward.4} parent=19 // pred_region
        %s154 = smul.u32 %s17, 2
        %s155 = sadd.s32 %s154, %s18
        %s156 = smul.u32 16, %s155
        %p157 = scmp.lt.s32.totalorder %s156, 63
        %s158 = scalar_select %p157, %s156, 63
        %s159 = smul.addr %s158, 4
        %s160 = scalar_lea.vmem %s0, %s159
        %s161 = smul.u32 %s17, 2
        %s162 = sadd.s32 %s161, %s18
        %s163 = smul.u32 16, %s162
      $region24: #{bottleneck_forward.4} parent=19 // pred_fallthru
        _
    $region20: #{bottleneck_forward.4} parent=5 // pred_fallthru
      _
    %p164 = scmp.le.s32.totalorder 1, %s10
    %p165 = scmp.lt.s32.totalorder %s10, 5
    %p166 = pnand %p164, %p165
    %p167 = pneg %p166
    // Predicated region
    $region25: #{bottleneck_forward.4} parent=5 // pred_check
      _
    $region26: #{bottleneck_forward.4} parent=5 // pred_check_branch
      %169 = sbr.rel (%p166) target = $region28
    $region27: #{bottleneck_forward.4} parent=5 // pred_region
      %s170 = ssub.s32 %s10, 1
      %s171 = smul.u32 %s19, 2
      %s172 = sadd.s32 %s171, %s20
      %s173 = smul.u32 16, %s172
      %p174 = scmp.lt.s32.totalorder %s173, 63
      %s175 = scalar_select %p174, %s173, 63
      %s176 = smul.addr %s175, 4
      %s177 = scalar_lea.vmem %s0, %s176
      %p178 = pneg %p52
      %p179 = pneg %p49
      %p180 = pneg %p73
      %p181 = pneg %p70
      %p182 = pneg %p103
      %p183 = pneg %p100
      %s184 = smul.u32 %s19, 2
      %s185 = sadd.s32 %s184, %s20
      %s186 = smul.u32 16, %s185
      %p187 = scmp.lt.s32.totalorder %s186, 63
      %s188 = scalar_select %p187, %s186, 63
      %s189 = smul.addr %s188, 4
      %s190 = scalar_lea.vmem %s2, %s189
      %p191 = pneg %p129
      %p192 = pneg %p126
      %p193 = scmp.lt.s32.totalorder %s19, 1
      %s194 = scalar_select %p193, %s19, 1
      %s195 = smul.addr %s194, 8
      %s196 = scalar_lea.vmem %s3, %s195
      %s197 = smul.u32 %s19, 2
      %s198 = sadd.s32 %s197, %s20
      %s199 = smul.u32 16, %s198
      %p200 = scmp.lt.s32.totalorder %s199, 63
      %s201 = scalar_select %p200, %s199, 63
      %s202 = smul.addr %s201, 4
      %s203 = scalar_lea.vmem %s0, %s202
      %s204 = smul.u32 %s19, 2
      %s205 = sadd.s32 %s204, %s20
      %s206 = smul.u32 16, %s205
      %s207 = smul.u32 %s19, 2
      %s208 = sadd.s32 %s207, %s20
      %s209 = smul.u32 16, %s208
      %p210 = scmp.lt.s32.totalorder %s209, 63
      %s211 = scalar_select %p210, %s209, 63
      %s212 = smul.addr %s211, 4
      %s213 = scalar_lea.vmem %s2, %s212
      %s214 = smul.u32 %s19, 2
      %s215 = sadd.s32 %s214, %s20
      %s216 = smul.u32 16, %s215
      %p217 = scmp.lt.s32.totalorder %s19, 1
      %s218 = scalar_select %p217, %s19, 1
      %s219 = smul.addr %s218, 8
      %s220 = scalar_lea.vmem %s3, %s219
      %p222 = scmp.eq.s32.totalorder %s20, 0
      // Predicated region
      $region29: #{bottleneck_forward.4} parent=27 // pred_check
        %p223 = pneg %p222
      $region30: #{bottleneck_forward.4} parent=27 // pred_check_branch
        %225 = sbr.rel (%p223) target = $region32
      $region31: #{bottleneck_forward.4} parent=27 // pred_region
        %226 = vst [vmem:[%s220] sm:$0xff] 0.0
      $region32: #{bottleneck_forward.4} parent=27 // pred_fallthru
        _
      %v227 = vld [vmem:[%s203] sm:$0xf]
      %v228 = vld [vmem:[%s203 + $0x4] sm:$0xf]
      %v229 = vld [vmem:[%s203 + $0x8] sm:$0xf]
      %v230 = vld [vmem:[%s203 + $0xc] sm:$0xf]
      %v231 = vld [vmem:[%s203 + $0x10] sm:$0xf]
      %v232 = vld [vmem:[%s203 + $0x14] sm:$0xf]
      %v233 = vld [vmem:[%s203 + $0x18] sm:$0xf]
      %v234 = vld [vmem:[%s203 + $0x1c] sm:$0xf]
      %v235 = vld [vmem:[%s203 + $0x20] sm:$0xf]
      %v236 = vld [vmem:[%s203 + $0x24] sm:$0xf]
      %v237 = vld [vmem:[%s203 + $0x28] sm:$0xf]
      %v238 = vld [vmem:[%s203 + $0x2c] sm:$0xf]
      %v239 = vld [vmem:[%s203 + $0x30] sm:$0xf]
      %v240 = vld [vmem:[%s203 + $0x34] sm:$0xf]
      %v241 = vld [vmem:[%s203 + $0x38] sm:$0xf]
      %v242 = vld [vmem:[%s203 + $0x3c] sm:$0xf]
      %v243 = vld [vmem:[%s1] sm:$0xf]
      %v244 = vld [vmem:[%s1 + $0x4] sm:$0xf]
      %v245 = vld [vmem:[%s1 + $0x8] sm:$0xf]
      %v246 = vld [vmem:[%s1 + $0xc] sm:$0xf]
      %v247 = vld [vmem:[%s1 + $0x10] sm:$0xf]
      %v248 = vld [vmem:[%s1 + $0x14] sm:$0xf]
      %v249 = vld [vmem:[%s1 + $0x18] sm:$0xf]
      %v250 = vld [vmem:[%s1 + $0x1c] sm:$0xf]
      %v251 = vld [vmem:[%s1 + $0x20] sm:$0xf]
      %v252 = vld [vmem:[%s1 + $0x24] sm:$0xf]
      %v253 = vld [vmem:[%s1 + $0x28] sm:$0xf]
      %v254 = vld [vmem:[%s1 + $0x2c] sm:$0xf]
      %v255 = vld [vmem:[%s1 + $0x30] sm:$0xf]
      %v256 = vld [vmem:[%s1 + $0x34] sm:$0xf]
      %v257 = vld [vmem:[%s1 + $0x38] sm:$0xf]
      %v258 = vld [vmem:[%s1 + $0x3c] sm:$0xf]
      %v275 = vunpack.c.l.b16 %v227
      %v276 = vunpack.c.l.b16 %v228
      %v277 = vunpack.c.l.b16 %v229
      %v278 = vunpack.c.l.b16 %v230
      %v279 = vunpack.c.l.b16 %v231
      %v280 = vunpack.c.l.b16 %v232
      %v281 = vunpack.c.l.b16 %v233
      %v282 = vunpack.c.l.b16 %v234
      %v283 = vunpack.c.l.b16 %v235
      %v284 = vunpack.c.l.b16 %v236
      %v285 = vunpack.c.l.b16 %v237
      %v286 = vunpack.c.l.b16 %v238
      %v287 = vunpack.c.l.b16 %v239
      %v288 = vunpack.c.l.b16 %v240
      %v289 = vunpack.c.l.b16 %v241
      %v290 = vunpack.c.l.b16 %v242
      %v291 = vpack.c.b16 %v276, %v275
      %v292 = vpack.c.b16 %v278, %v277
      %v293 = vpack.c.b16 %v280, %v279
      %v294 = vpack.c.b16 %v282, %v281
      %v295 = vpack.c.b16 %v284, %v283
      %v296 = vpack.c.b16 %v286, %v285
      %v297 = vpack.c.b16 %v288, %v287
      %v298 = vpack.c.b16 %v290, %v289
      %v323 = vunpack.c.l.b16 %v243
      %v324 = vunpack.c.l.b16 %v244
      %v325 = vunpack.c.l.b16 %v245
      %v326 = vunpack.c.l.b16 %v246
      %v327 = vunpack.c.l.b16 %v247
      %v328 = vunpack.c.l.b16 %v248
      %v329 = vunpack.c.l.b16 %v249
      %v330 = vunpack.c.l.b16 %v250
      %v331 = vunpack.c.l.b16 %v251
      %v332 = vunpack.c.l.b16 %v252
      %v333 = vunpack.c.l.b16 %v253
      %v334 = vunpack.c.l.b16 %v254
      %v335 = vunpack.c.l.b16 %v255
      %v336 = vunpack.c.l.b16 %v256
      %v337 = vunpack.c.l.b16 %v257
      %v338 = vunpack.c.l.b16 %v258
      %v339 = vpack.c.b16 %v324, %v323
      %v340 = vpack.c.b16 %v326, %v325
      %v341 = vpack.c.b16 %v328, %v327
      %v342 = vpack.c.b16 %v330, %v329
      %v343 = vpack.c.b16 %v332, %v331
      %v344 = vpack.c.b16 %v334, %v333
      %v345 = vpack.c.b16 %v336, %v335
      %v346 = vpack.c.b16 %v338, %v337
      %355 = vmatprep.subr.bf16.mxu0 0
      %356 = vmatpush1.bf16.msra.mxu0 %v339
      %357 = vmatprep.subr.bf16.mxu0 0
      %358 = vmatpush1.bf16.msra.mxu0 %v340
      %359 = vmatprep.subr.bf16.mxu0 0
      %360 = vmatpush1.bf16.msra.mxu0 %v341
      %361 = vmatprep.subr.bf16.mxu0 0
      %362 = vmatpush1.bf16.msra.mxu0 %v342
      %363 = vmatprep.subr.bf16.mxu0 0
      %364 = vmatpush1.bf16.msra.mxu0 %v343
      %365 = vmatprep.subr.bf16.mxu0 0
      %366 = vmatpush1.bf16.msra.mxu0 %v344
      %367 = vmatprep.subr.bf16.mxu0 0
      %368 = vmatpush1.bf16.msra.mxu0 %v345
      %369 = vmatprep.subr.bf16.mxu0 0
      %370 = vmatpush1.bf16.msra.mxu0 %v346
      %371 = vmatprep.subr.bf16.mxu0 0
      %372 = vmatpush1.bf16.msra.mxu0 0
      %373 = vmatprep.subr.bf16.mxu0 0
      %374 = vmatpush1.bf16.msra.mxu0 0
      %375 = vmatprep.subr.bf16.mxu0 0
      %376 = vmatpush1.bf16.msra.mxu0 0
      %377 = vmatprep.subr.bf16.mxu0 0
      %378 = vmatpush1.bf16.msra.mxu0 0
      %379 = vmatprep.subr.bf16.mxu0 0
      %380 = vmatpush1.bf16.msra.mxu0 0
      %381 = vmatprep.subr.bf16.mxu0 0
      %382 = vmatpush1.bf16.msra.mxu0 0
      %383 = vmatprep.subr.bf16.mxu0 0
      %384 = vmatpush1.bf16.msra.mxu0 0
      %385 = vmatprep.subr.bf16.mxu0 0
      %386 = vmatpush1.bf16.msra.mxu0 0
      %387 = vmatprep.mubr.bf16.mxu0 0
      %388 = vmatmul.mubr.bf16.gmra.mrb[0].mxu0 %v291
      %v389 = vpop.f32.mrb[0].mxu0
      %v390 = vadd.f32 0.0, %v389
      %v391 = vpop.f32.mrb[0].mxu0
      %v392 = vpop.f32.mrb[0].mxu0
      %v393 = vadd.f32 0.0, %v392
      %v394 = vpop.f32.mrb[0].mxu0
      %395 = vmatprep.mubr.bf16.mxu0 0
      %396 = vmatmul.mubr.bf16.gmra.mrb[0].mxu0 %v292
      %v397 = vpop.f32.mrb[0].mxu0
      %v398 = vadd.f32 0.0, %v397
      %v399 = vpop.f32.mrb[0].mxu0
      %v400 = vpop.f32.mrb[0].mxu0
      %v401 = vadd.f32 0.0, %v400
      %v402 = vpop.f32.mrb[0].mxu0
      %403 = vmatprep.mubr.bf16.mxu0 0
      %404 = vmatmul.mubr.bf16.gmra.mrb[0].mxu0 %v293
      %v405 = vpop.f32.mrb[0].mxu0
      %v406 = vadd.f32 0.0, %v405
      %v407 = vpop.f32.mrb[0].mxu0
      %v408 = vpop.f32.mrb[0].mxu0
      %v409 = vadd.f32 0.0, %v408
      %v410 = vpop.f32.mrb[0].mxu0
      %411 = vmatprep.mubr.bf16.mxu0 0
      %412 = vmatmul.mubr.bf16.gmra.mrb[0].mxu0 %v294
      %v413 = vpop.f32.mrb[0].mxu0
      %v414 = vadd.f32 0.0, %v413
      %v415 = vpop.f32.mrb[0].mxu0
      %v416 = vpop.f32.mrb[0].mxu0
      %v417 = vadd.f32 0.0, %v416
      %v418 = vpop.f32.mrb[0].mxu0
      %419 = vmatprep.mubr.bf16.mxu0 0
      %420 = vmatmul.mubr.bf16.gmra.mrb[0].mxu0 %v295
      %v421 = vpop.f32.mrb[0].mxu0
      %v422 = vadd.f32 0.0, %v421
      %v423 = vpop.f32.mrb[0].mxu0
      %v424 = vpop.f32.mrb[0].mxu0
      %v425 = vadd.f32 0.0, %v424
      %v426 = vpop.f32.mrb[0].mxu0
      %427 = vmatprep.mubr.bf16.mxu0 0
      %428 = vmatmul.mubr.bf16.gmra.mrb[0].mxu0 %v296
      %v429 = vpop.f32.mrb[0].mxu0
      %v430 = vadd.f32 0.0, %v429
      %v431 = vpop.f32.mrb[0].mxu0
      %v432 = vpop.f32.mrb[0].mxu0
      %v433 = vadd.f32 0.0, %v432
      %v434 = vpop.f32.mrb[0].mxu0
      %435 = vmatprep.mubr.bf16.mxu0 0
      %436 = vmatmul.mubr.bf16.gmra.mrb[0].mxu0 %v297
      %v437 = vpop.f32.mrb[0].mxu0
      %v438 = vadd.f32 0.0, %v437
      %v439 = vpop.f32.mrb[0].mxu0
      %v440 = vpop.f32.mrb[0].mxu0
      %v441 = vadd.f32 0.0, %v440
      %v442 = vpop.f32.mrb[0].mxu0
      %443 = vmatprep.mubr.bf16.mxu0 0
      %444 = vmatmul.mubr.bf16.gmra.mrb[0].mxu0 %v298
      %v445 = vpop.f32.mrb[0].mxu0
      %v446 = vadd.f32 0.0, %v445
      %v447 = vpop.f32.mrb[0].mxu0
      %v448 = vpop.f32.mrb[0].mxu0
      %v449 = vadd.f32 0.0, %v448
      %v450 = vpop.f32.mrb[0].mxu0
      %451 = vdwg.mxu0
      %v452 = vld [vmem:[%s220] sm:$0x1]
      %v453 = vadd.f32 %v390, %v393
      %v454 = vadd.f32 %v453, %v398
      %v455 = vadd.f32 %v454, %v401
      %v456 = vadd.f32 %v455, %v406
      %v457 = vadd.f32 %v456, %v409
      %v458 = vadd.f32 %v457, %v414
      %v459 = vadd.f32 %v458, %v417
      %v460 = vadd.f32 %v459, %v422
      %v461 = vadd.f32 %v460, %v425
      %v462 = vadd.f32 %v461, %v430
      %v463 = vadd.f32 %v462, %v433
      %v464 = vadd.f32 %v463, %v438
      %v465 = vadd.f32 %v464, %v441
      %v466 = vadd.f32 %v465, %v446
      %v467 = vadd.f32 %v466, %v449
      %v468 = vrot.slane %v467, 4
      %v469 = vadd.f32 %v467, %v468
      %v470 = vrot.slane %v469, 2
      %v471 = vadd.f32 %v469, %v470
      %v472 = vrot.slane %v471, 1
      %v473 = vadd.f32 %v471, %v472
      %v474 = vadd.f32 %v452, %v473
      %475 = vst [vmem:[%s220] sm:$0x1] %v474
      %v476 = vld [vmem:[%s220 + $0x1] sm:$0x1]
      %v477 = vmul.f32 %v390, %v390
      %v478 = vmul.f32 %v393, %v393
      %v479 = vmul.f32 %v398, %v398
      %v480 = vmul.f32 %v401, %v401
      %v481 = vmul.f32 %v406, %v406
      %v482 = vmul.f32 %v409, %v409
      %v483 = vmul.f32 %v414, %v414
      %v484 = vmul.f32 %v417, %v417
      %v485 = vmul.f32 %v422, %v422
      %v486 = vmul.f32 %v425, %v425
      %v487 = vmul.f32 %v430, %v430
      %v488 = vmul.f32 %v433, %v433
      %v489 = vmul.f32 %v438, %v438
      %v490 = vmul.f32 %v441, %v441
      %v491 = vmul.f32 %v446, %v446
      %v492 = vmul.f32 %v449, %v449
      %v493 = vadd.f32 %v477, %v478
      %v494 = vadd.f32 %v493, %v479
      %v495 = vadd.f32 %v494, %v480
      %v496 = vadd.f32 %v495, %v481
      %v497 = vadd.f32 %v496, %v482
      %v498 = vadd.f32 %v497, %v483
      %v499 = vadd.f32 %v498, %v484
      %v500 = vadd.f32 %v499, %v485
      %v501 = vadd.f32 %v500, %v486
      %v502 = vadd.f32 %v501, %v487
      %v503 = vadd.f32 %v502, %v488
      %v504 = vadd.f32 %v503, %v489
      %v505 = vadd.f32 %v504, %v490
      %v506 = vadd.f32 %v505, %v491
      %v507 = vadd.f32 %v506, %v492
      %v508 = vrot.slane %v507, 4
      %v509 = vadd.f32 %v507, %v508
      %v510 = vrot.slane %v509, 2
      %v511 = vadd.f32 %v509, %v510
      %v512 = vrot.slane %v511, 1
      %v513 = vadd.f32 %v511, %v512
      %v514 = vadd.f32 %v476, %v513
      %515 = vst [vmem:[%s220 + $0x1] sm:$0x1] %v514
      %v516 = vpack.c.bf16 %v393, %v390
      %v517 = vpack.c.bf16 %v401, %v398
      %v518 = vpack.c.bf16 %v409, %v406
      %v519 = vpack.c.bf16 %v417, %v414
      %v520 = vpack.c.bf16 %v425, %v422
      %v521 = vpack.c.bf16 %v433, %v430
      %v522 = vpack.c.bf16 %v441, %v438
      %v523 = vpack.c.bf16 %v449, %v446
      %v532 = vunpack.c.l.b16 %v516
      %v533 = vunpack.c.h.b16 %v516
      %v534 = vunpack.c.l.b16 %v517
      %v535 = vunpack.c.h.b16 %v517
      %v536 = vunpack.c.l.b16 %v518
      %v537 = vunpack.c.h.b16 %v518
      %v538 = vunpack.c.l.b16 %v519
      %v539 = vunpack.c.h.b16 %v519
      %v540 = vunpack.c.l.b16 %v520
      %v541 = vunpack.c.h.b16 %v520
      %v542 = vunpack.c.l.b16 %v521
      %v543 = vunpack.c.h.b16 %v521
      %v544 = vunpack.c.l.b16 %v522
      %v545 = vunpack.c.h.b16 %v522
      %v546 = vunpack.c.l.b16 %v523
      %v547 = vunpack.c.h.b16 %v523
      %v548 = vpack.c.b16 %v532, %v532
      %v549 = vpack.c.b16 %v533, %v533
      %v550 = vpack.c.b16 %v534, %v534
      %v551 = vpack.c.b16 %v535, %v535
      %v552 = vpack.c.b16 %v536, %v536
      %v553 = vpack.c.b16 %v537, %v537
      %v554 = vpack.c.b16 %v538, %v538
      %v555 = vpack.c.b16 %v539, %v539
      %v556 = vpack.c.b16 %v540, %v540
      %v557 = vpack.c.b16 %v541, %v541
      %v558 = vpack.c.b16 %v542, %v542
      %v559 = vpack.c.b16 %v543, %v543
      %v560 = vpack.c.b16 %v544, %v544
      %v561 = vpack.c.b16 %v545, %v545
      %v562 = vpack.c.b16 %v546, %v546
      %v563 = vpack.c.b16 %v547, %v547
      %580 = vst [vmem:[%s213] sm:$0xf] %v548
      %581 = vst [vmem:[%s213 + $0x4] sm:$0xf] %v549
      %582 = vst [vmem:[%s213 + $0x8] sm:$0xf] %v550
      %583 = vst [vmem:[%s213 + $0xc] sm:$0xf] %v551
      %584 = vst [vmem:[%s213 + $0x10] sm:$0xf] %v552
      %585 = vst [vmem:[%s213 + $0x14] sm:$0xf] %v553
      %586 = vst [vmem:[%s213 + $0x18] sm:$0xf] %v554
      %587 = vst [vmem:[%s213 + $0x1c] sm:$0xf] %v555
      %588 = vst [vmem:[%s213 + $0x20] sm:$0xf] %v556
      %589 = vst [vmem:[%s213 + $0x24] sm:$0xf] %v557
      %590 = vst [vmem:[%s213 + $0x28] sm:$0xf] %v558
      %591 = vst [vmem:[%s213 + $0x2c] sm:$0xf] %v559
      %592 = vst [vmem:[%s213 + $0x30] sm:$0xf] %v560
      %593 = vst [vmem:[%s213 + $0x34] sm:$0xf] %v561
      %594 = vst [vmem:[%s213 + $0x38] sm:$0xf] %v562
      %595 = vst [vmem:[%s213 + $0x3c] sm:$0xf] %v563
      %s596 = smul.u32 %s19, 2
      %s597 = sadd.s32 %s596, %s20
      %s598 = smul.u32 16, %s597
      %p599 = scmp.lt.s32.totalorder %s598, 63
      %s600 = scalar_select %p599, %s598, 63
      %s601 = smul.addr %s600, 4
      %s602 = scalar_lea.vmem %s2, %s601
      %p603 = scmp.lt.s32.totalorder %s19, 1
      %s604 = scalar_select %p603, %s19, 1
      %s605 = smul.addr %s604, 8
      %s606 = scalar_lea.vmem %s3, %s605
      // Predicated region
      $region33: #{bottleneck_forward.4} parent=27 // pred_check
        %p607 = pneg %p100
      $region34: #{bottleneck_forward.4} parent=27 // pred_check_branch
        %609 = sbr.rel (%p607) target = $region36
      $region35: #{bottleneck_forward.4} parent=27 // pred_region
        %s610 = smul.u32 %s19, 2
        %s611 = sadd.s32 %s610, %s20
        %s612 = smul.u32 16, %s611
      $region36: #{bottleneck_forward.4} parent=27 // pred_fallthru
        _
      // Predicated region
      $region37: #{bottleneck_forward.4} parent=27 // pred_check
        %p613 = pneg %p126
      $region38: #{bottleneck_forward.4} parent=27 // pred_check_branch
        %615 = sbr.rel (%p613) target = $region40
      $region39: #{bottleneck_forward.4} parent=27 // pred_region
        _
      $region40: #{bottleneck_forward.4} parent=27 // pred_fallthru
        _
    $region28: #{bottleneck_forward.4} parent=5 // pred_fallthru
      _
    %p616 = scmp.le.s32.totalorder 2, %s10
    // Predicated region
    $region41: #{bottleneck_forward.4} parent=5 // pred_check
      %p617 = pneg %p616
    $region42: #{bottleneck_forward.4} parent=5 // pred_check_branch
      %619 = sbr.rel (%p617) target = $region44
    $region43: #{bottleneck_forward.4} parent=5 // pred_region
      %s620 = ssub.s32 %s10, 2
      // Predicated region
      $region45: #{bottleneck_forward.4} parent=43 // pred_check
        %p621 = pneg %p106
      $region46: #{bottleneck_forward.4} parent=43 // pred_check_branch
        %623 = sbr.rel (%p621) target = $region48
      $region47: #{bottleneck_forward.4} parent=43 // pred_region
        %s624 = smul.u32 %s21, 2
        %s625 = sadd.s32 %s624, %s22
        %s626 = smul.u32 16, %s625
        %p627 = scmp.lt.s32.totalorder %s626, 63
        %s628 = scalar_select %p627, %s626, 63
        %s629 = smul.addr %s628, 4
        %s630 = scalar_lea.vmem %s2, %s629
      $region48: #{bottleneck_forward.4} parent=43 // pred_fallthru
        _
      // Predicated region
      $region49: #{bottleneck_forward.4} parent=43 // pred_check
        %p631 = pneg %p132
      $region50: #{bottleneck_forward.4} parent=43 // pred_check_branch
        %633 = sbr.rel (%p631) target = $region52
      $region51: #{bottleneck_forward.4} parent=43 // pred_region
        %p634 = scmp.lt.s32.totalorder %s21, 1
        %s635 = scalar_select %p634, %s21, 1
        %s636 = smul.addr %s635, 8
        %s637 = scalar_lea.vmem %s3, %s636
      $region52: #{bottleneck_forward.4} parent=43 // pred_fallthru
        _
    $region44: #{bottleneck_forward.4} parent=5 // pred_fallthru
      _
  $region6: #{bottleneck_forward.4} parent=0 // loop_footer
    %s14 = sadd.s32 1, %s10
  $region7: #{bottleneck_forward.4} parent=0 // loop_footer_branch
    %9 = sbr.rel target = $region3
  $region8: #{bottleneck_forward.4} parent=0 // loop_exit
    _

// kernel: bottleneck_forward.5
$region0: #{bottleneck_forward.5}
  #allocation0 [shape = 'u32[]', space=smem, size = 0x4, offset = 0x4, fixed_abs, tag = 'smem constant byte address 0x4 - core index']
  #allocation1 [shape = 'u32[144,128]{1,0:T(1,128)}', space=vmem, size = 0x12000, scoped, tag = 'internal scratch']
  #allocation2 [shape = 'bf16[18,18,128]{2,1,0:T(8,128)(2,1)}', space=vmem, size = 0x1b000, scoped, tag = 'scratch operand']
  %s0 = inlined_call_operand.vmem [shape: bf16[512,128], index: 0, kind: input, shape index: {}]
  %s1 = inlined_call_operand.vmem [shape: f32[1,128], index: 1, kind: input, shape index: {}]
  %s2 = inlined_call_operand.vmem [shape: f32[1,128], index: 2, kind: input, shape index: {}]
  %s3 = inlined_call_operand.vmem [shape: bf16[9,128,128], index: 3, kind: input, shape index: {}]
  %s4 = inlined_call_operand.vmem [shape: bf16[512,128], index: 4, kind: output, shape index: {0}]
  %s5 = inlined_call_operand.vmem [shape: f32[16,128], index: 5, kind: output, shape index: {1}]
  %6 = xla_tuple %s4, %s5
  %s7 = sld [smem:[#allocation0]]
  $region61: #{bottleneck_forward.5} parent=0
    _
  %s9 = ssub.s32 1, %s7
  %s10 = scalar_select 0, %s9, %s7
  loop: start=0, step=1, limit=4
  $region2: #{bottleneck_forward.5} parent=0 // loop_pre_header
    _
  $region3: #{bottleneck_forward.5} parent=0 // loop_header
    %s12 = sphi 0, %s16
    %p13 = scmp.ge.s32.totalorder %s12, 4
    %s19 = sphi 0, %s31
    %s20 = sphi 0, %s27
    %s21 = sphi 0, %s19
    %s22 = sphi 0, %s20
    %s23 = sphi 0, %s21
    %s24 = sphi 0, %s22
    %s36 = sphi 0, %s38
    %s39 = sphi 0, %s36
    %s40 = sphi 0, %s39
    %s56 = sphi 0, %s40
    %s60 = sphi 0, %s60
    %s62 = sphi 0, %s60
    %s63 = sphi 0, %s62
    %s77 = sphi 0, %s63
    %s81 = sphi 0, %s81
    %s83 = sphi 0, %s81
    %s84 = sphi 0, %s83
    %s98 = sphi 0, %s84
    %s102 = sphi 0, %s102
    %s104 = sphi 0, %s102
    %s105 = sphi 0, %s104
    %s119 = sphi 0, %s105
    %s127 = sphi 0, %s129
    %s130 = sphi 0, %s127
    %s131 = sphi 0, %s130
    %s147 = sphi 0, %s131
    %s153 = sphi 0, %s155
    %s156 = sphi 0, %s153
    %s157 = sphi 0, %s156
    %s173 = sphi 0, %s157
  $region4: #{bottleneck_forward.5} parent=0 // loop_header_branch
    %15 = sbr.rel (%p13) target = $region8
  $region5: #{bottleneck_forward.5} parent=0 // loop_body
    %s17 = ssub.s32 %s12, 1
    %s18 = ssub.s32 %s12, 2
    %s25 = sadd.s32 1, %s20
    %p26 = scmp.ge.s32.totalorder %s25, 1
    %s27 = scalar_select %p26, 0, %s25
    %s28 = sadd.s32 1, %s19
    %s29 = scalar_select %p26, %s28, %s19
    %p30 = scmp.ge.s32.totalorder %s29, 2
    %s31 = scalar_select %p30, 0, %s29
    %s32 = sadd.s32 %s19, %s20
    %s33 = sadd.s32 %s31, %s27
    %s34 = ssub.s32 %s32, %s33
    %p35 = scmp.eq.s32.totalorder %s34, 0
    %s37 = sadd.s32 %s36, 1
    %s38 = scalar_select %p35, %s36, %s37
    %p41 = pneg %p35
    %p42 = scmp.eq.s32.totalorder %s12, 1
    %p43 = por %p41, %p42
    %p44 = scmp.ne.s32.totalorder %s36, %s39
    %p45 = scmp.eq.s32.totalorder %s12, 0
    %p46 = por %p44, %p45
    %p47 = scmp.ne.s32.totalorder %s36, %s39
    %p48 = scmp.eq.s32.totalorder %s17, 1
    %p49 = por %p47, %p48
    %p50 = scmp.ne.s32.totalorder %s39, %s40
    %p51 = scmp.eq.s32.totalorder %s17, 0
    %p52 = por %p50, %p51
    %p53 = scmp.ne.s32.totalorder %s39, %s40
    %p54 = scmp.eq.s32.totalorder %s18, 1
    %p55 = por %p53, %p54
    %p57 = scmp.ne.s32.totalorder %s40, %s56
    %p58 = scmp.eq.s32.totalorder %s18, 0
    %p59 = por %p57, %p58
    %s61 = sadd.s32 %s60, 1
    %p64 = scmp.eq.s32.totalorder %s12, 1
    %p65 = scmp.ne.s32.totalorder %s60, %s62
    %p66 = scmp.eq.s32.totalorder %s12, 0
    %p67 = por %p65, %p66
    %p68 = scmp.ne.s32.totalorder %s60, %s62
    %p69 = scmp.eq.s32.totalorder %s17, 1
    %p70 = por %p68, %p69
    %p71 = scmp.ne.s32.totalorder %s62, %s63
    %p72 = scmp.eq.s32.totalorder %s17, 0
    %p73 = por %p71, %p72
    %p74 = scmp.ne.s32.totalorder %s62, %s63
    %p75 = scmp.eq.s32.totalorder %s18, 1
    %p76 = por %p74, %p75
    %p78 = scmp.ne.s32.totalorder %s63, %s77
    %p79 = scmp.eq.s32.totalorder %s18, 0
    %p80 = por %p78, %p79
    %s82 = sadd.s32 %s81, 1
    %p85 = scmp.eq.s32.totalorder %s12, 1
    %p86 = scmp.ne.s32.totalorder %s81, %s83
    %p87 = scmp.eq.s32.totalorder %s12, 0
    %p88 = por %p86, %p87
    %p89 = scmp.ne.s32.totalorder %s81, %s83
    %p90 = scmp.eq.s32.totalorder %s17, 1
    %p91 = por %p89, %p90
    %p92 = scmp.ne.s32.totalorder %s83, %s84
    %p93 = scmp.eq.s32.totalorder %s17, 0
    %p94 = por %p92, %p93
    %p95 = scmp.ne.s32.totalorder %s83, %s84
    %p96 = scmp.eq.s32.totalorder %s18, 1
    %p97 = por %p95, %p96
    %p99 = scmp.ne.s32.totalorder %s84, %s98
    %p100 = scmp.eq.s32.totalorder %s18, 0
    %p101 = por %p99, %p100
    %s103 = sadd.s32 %s102, 1
    %p106 = scmp.eq.s32.totalorder %s12, 1
    %p107 = scmp.ne.s32.totalorder %s102, %s104
    %p108 = scmp.eq.s32.totalorder %s12, 0
    %p109 = por %p107, %p108
    %p110 = scmp.ne.s32.totalorder %s102, %s104
    %p111 = scmp.eq.s32.totalorder %s17, 1
    %p112 = por %p110, %p111
    %p113 = scmp.ne.s32.totalorder %s104, %s105
    %p114 = scmp.eq.s32.totalorder %s17, 0
    %p115 = por %p113, %p114
    %p116 = scmp.ne.s32.totalorder %s104, %s105
    %p117 = scmp.eq.s32.totalorder %s18, 1
    %p118 = por %p116, %p117
    %p120 = scmp.ne.s32.totalorder %s105, %s119
    %p121 = scmp.eq.s32.totalorder %s18, 0
    %p122 = por %p120, %p121
    %s123 = sadd.s32 %s19, %s20
    %s124 = sadd.s32 %s31, %s27
    %s125 = ssub.s32 %s123, %s124
    %p126 = scmp.eq.s32.totalorder %s125, 0
    %s128 = sadd.s32 %s127, 1
    %s129 = scalar_select %p126, %s127, %s128
    %p132 = pneg %p126
    %p133 = scmp.eq.s32.totalorder %s12, 1
    %p134 = por %p132, %p133
    %p135 = scmp.ne.s32.totalorder %s127, %s130
    %p136 = scmp.eq.s32.totalorder %s12, 0
    %p137 = por %p135, %p136
    %p138 = scmp.ne.s32.totalorder %s127, %s130
    %p139 = scmp.eq.s32.totalorder %s17, 1
    %p140 = por %p138, %p139
    %p141 = scmp.ne.s32.totalorder %s130, %s131
    %p142 = scmp.eq.s32.totalorder %s17, 0
    %p143 = por %p141, %p142
    %p144 = scmp.ne.s32.totalorder %s130, %s131
    %p145 = scmp.eq.s32.totalorder %s18, 1
    %p146 = por %p144, %p145
    %p148 = scmp.ne.s32.totalorder %s131, %s147
    %p149 = scmp.eq.s32.totalorder %s18, 0
    %p150 = por %p148, %p149
    %s151 = ssub.s32 %s19, %s31
    %p152 = scmp.eq.s32.totalorder %s151, 0
    %s154 = sadd.s32 %s153, 1
    %s155 = scalar_select %p152, %s153, %s154
    %p158 = pneg %p152
    %p159 = scmp.eq.s32.totalorder %s12, 1
    %p160 = por %p158, %p159
    %p161 = scmp.ne.s32.totalorder %s153, %s156
    %p162 = scmp.eq.s32.totalorder %s12, 0
    %p163 = por %p161, %p162
    %p164 = scmp.ne.s32.totalorder %s153, %s156
    %p165 = scmp.eq.s32.totalorder %s17, 1
    %p166 = por %p164, %p165
    %p167 = scmp.ne.s32.totalorder %s156, %s157
    %p168 = scmp.eq.s32.totalorder %s17, 0
    %p169 = por %p167, %p168
    %p170 = scmp.ne.s32.totalorder %s156, %s157
    %p171 = scmp.eq.s32.totalorder %s18, 1
    %p172 = por %p170, %p171
    %p174 = scmp.ne.s32.totalorder %s157, %s173
    %p175 = scmp.eq.s32.totalorder %s18, 0
    %p176 = por %p174, %p175
    %p177 = scmp.le.s32.totalorder 1, %s12
    %p178 = scmp.lt.s32.totalorder %s12, 3
    %p179 = pnand %p177, %p178
    %p180 = pneg %p179
    // Predicated region
    $region9: #{bottleneck_forward.5} parent=5 // pred_check
      _
    $region10: #{bottleneck_forward.5} parent=5 // pred_check_branch
      %182 = sbr.rel (%p179) target = $region12
    $region11: #{bottleneck_forward.5} parent=5 // pred_region
      %s183 = ssub.s32 %s12, 1
      // Predicated region
      $region13: #{bottleneck_forward.5} parent=11 // pred_check
        %p184 = pneg %p73
      $region14: #{bottleneck_forward.5} parent=11 // pred_check_branch
        %186 = sbr.rel (%p184) target = $region16
      $region15: #{bottleneck_forward.5} parent=11 // pred_region
        _
      $region16: #{bottleneck_forward.5} parent=11 // pred_fallthru
        _
      // Predicated region
      $region17: #{bottleneck_forward.5} parent=11 // pred_check
        %p187 = pneg %p94
      $region18: #{bottleneck_forward.5} parent=11 // pred_check_branch
        %189 = sbr.rel (%p187) target = $region20
      $region19: #{bottleneck_forward.5} parent=11 // pred_region
        _
      $region20: #{bottleneck_forward.5} parent=11 // pred_fallthru
        _
      // Predicated region
      $region21: #{bottleneck_forward.5} parent=11 // pred_check
        %p190 = pneg %p115
      $region22: #{bottleneck_forward.5} parent=11 // pred_check_branch
        %192 = sbr.rel (%p190) target = $region24
      $region23: #{bottleneck_forward.5} parent=11 // pred_region
        _
      $region24: #{bottleneck_forward.5} parent=11 // pred_fallthru
        _
    $region12: #{bottleneck_forward.5} parent=5 // pred_fallthru
      _
    %p193 = scmp.lt.s32.totalorder %s12, 2
    // Predicated region
    $region25: #{bottleneck_forward.5} parent=5 // pred_check
      %p194 = pneg %p193
    $region26: #{bottleneck_forward.5} parent=5 // pred_check_branch
      %196 = sbr.rel (%p194) target = $region28
    $region27: #{bottleneck_forward.5} parent=5 // pred_region
      // Predicated region
      $region29: #{bottleneck_forward.5} parent=27 // pred_check
        %p197 = pneg %p46
      $region30: #{bottleneck_forward.5} parent=27 // pred_check_branch
        %199 = sbr.rel (%p197) target = $region32
      $region31: #{bottleneck_forward.5} parent=27 // pred_region
        %s200 = sadd.s32 %s19, %s20
        %s201 = smul.u32 32, %s200
        %p202 = scmp.lt.s32.totalorder %s201, 63
        %s203 = scalar_select %p202, %s201, 63
        %s204 = smul.addr %s203, 4
        %s205 = scalar_lea.vmem %s0, %s204
        %s206 = sadd.s32 %s19, %s20
        %s207 = smul.u32 32, %s206
      $region32: #{bottleneck_forward.5} parent=27 // pred_fallthru
        _
    $region28: #{bottleneck_forward.5} parent=5 // pred_fallthru
      _
    %p208 = scmp.le.s32.totalorder 1, %s12
    %p209 = scmp.lt.s32.totalorder %s12, 3
    %p210 = pnand %p208, %p209
    %p211 = pneg %p210
    // Predicated region
    $region33: #{bottleneck_forward.5} parent=5 // pred_check
      _
    $region34: #{bottleneck_forward.5} parent=5 // pred_check_branch
      %213 = sbr.rel (%p210) target = $region36
    $region35: #{bottleneck_forward.5} parent=5 // pred_region
      %s214 = ssub.s32 %s12, 1
      %s215 = sadd.s32 %s21, %s22
      %s216 = smul.u32 32, %s215
      %p217 = scmp.lt.s32.totalorder %s216, 63
      %s218 = scalar_select %p217, %s216, 63
      %s219 = smul.addr %s218, 4
      %s220 = scalar_lea.vmem %s0, %s219
      %p221 = pneg %p52
      %p222 = pneg %p49
      %p223 = pneg %p73
      %p224 = pneg %p70
      %p225 = pneg %p94
      %p226 = pneg %p91
      %p227 = pneg %p115
      %p228 = pneg %p112
      %p229 = pneg %p143
      %p230 = pneg %p140
      %s231 = sadd.s32 %s21, %s22
      %s232 = smul.u32 32, %s231
      %p233 = scmp.lt.s32.totalorder %s232, 63
      %s234 = scalar_select %p233, %s232, 63
      %s235 = smul.addr %s234, 4
      %s236 = scalar_lea.vmem %s4, %s235
      %p237 = pneg %p169
      %p238 = pneg %p166
      %p239 = scmp.lt.s32.totalorder %s21, 1
      %s240 = scalar_select %p239, %s21, 1
      %s241 = smul.addr %s240, 8
      %s242 = scalar_lea.vmem %s5, %s241
      %s243 = sadd.s32 %s21, %s22
      %s244 = smul.u32 32, %s243
      %p245 = scmp.lt.s32.totalorder %s244, 63
      %s246 = scalar_select %p245, %s244, 63
      %s247 = smul.addr %s246, 4
      %s248 = scalar_lea.vmem %s0, %s247
      %s249 = sadd.s32 %s21, %s22
      %s250 = smul.u32 32, %s249
      %s251 = sadd.s32 %s21, %s22
      %s252 = smul.u32 32, %s251
      %p253 = scmp.lt.s32.totalorder %s252, 63
      %s254 = scalar_select %p253, %s252, 63
      %s255 = smul.addr %s254, 4
      %s256 = scalar_lea.vmem %s4, %s255
      %s257 = sadd.s32 %s21, %s22
      %s258 = smul.u32 32, %s257
      %p259 = scmp.lt.s32.totalorder %s21, 1
      %s260 = scalar_select %p259, %s21, 1
      %s261 = smul.addr %s260, 8
      %s262 = scalar_lea.vmem %s5, %s261
      %p264 = scmp.eq.s32.totalorder %s22, 0
      // Predicated region
      $region37: #{bottleneck_forward.5} parent=35 // pred_check
        %p265 = pneg %p264
      $region38: #{bottleneck_forward.5} parent=35 // pred_check_branch
        %267 = sbr.rel (%p265) target = $region40
      $region39: #{bottleneck_forward.5} parent=35 // pred_region
        %268 = vst [vmem:[%s262] sm:$0xff] 0.0
        %269 = vst [vmem:[#allocation2] sm:$0xf] 0
        %270 = vst [vmem:[#allocation2 + $0x4] sm:$0xf] 0
        %271 = vst [vmem:[#allocation2 + $0x8] sm:$0x1] 0
        %272 = vst [vmem:[#allocation2 + $0xc] sm:$0xf] 0
        %273 = vst [vmem:[#allocation2 + $0x10] sm:$0xf] 0
        %274 = vst [vmem:[#allocation2 + $0x14] sm:$0x1] 0
        %275 = vst [vmem:[#allocation2 + $0x18] sm:$0xf] 0
        %276 = vst [vmem:[#allocation2 + $0x1c] sm:$0xf] 0
        %277 = vst [vmem:[#allocation2 + $0x20] sm:$0x1] 0
        %278 = vst [vmem:[#allocation2 + $0x24] sm:$0xf] 0
        %279 = vst [vmem:[#allocation2 + $0x28] sm:$0xf] 0
        %280 = vst [vmem:[#allocation2 + $0x2c] sm:$0x1] 0
        %281 = vst [vmem:[#allocation2 + $0x30] sm:$0xf] 0
        %282 = vst [vmem:[#allocation2 + $0x34] sm:$0xf] 0
        %283 = vst [vmem:[#allocation2 + $0x38] sm:$0x1] 0
        %284 = vst [vmem:[#allocation2 + $0x3c] sm:$0xf] 0
        %285 = vst [vmem:[#allocation2 + $0x40] sm:$0xf] 0
        %286 = vst [vmem:[#allocation2 + $0x44] sm:$0x1] 0
        %287 = vst [vmem:[#allocation2 + $0x48] sm:$0xf] 0
        %288 = vst [vmem:[#allocation2 + $0x4c] sm:$0xf] 0
        %289 = vst [vmem:[#allocation2 + $0x50] sm:$0x1] 0
        %290 = vst [vmem:[#allocation2 + $0x54] sm:$0xf] 0
        %291 = vst [vmem:[#allocation2 + $0x58] sm:$0xf] 0
        %292 = vst [vmem:[#allocation2 + $0x5c] sm:$0x1] 0
        %293 = vst [vmem:[#allocation2 + $0x60] sm:$0xf] 0
        %294 = vst [vmem:[#allocation2 + $0x64] sm:$0xf] 0
        %295 = vst [vmem:[#allocation2 + $0x68] sm:$0x1] 0
        %296 = vst [vmem:[#allocation2 + $0x6c] sm:$0xf] 0
        %297 = vst [vmem:[#allocation2 + $0x70] sm:$0xf] 0
        %298 = vst [vmem:[#allocation2 + $0x74] sm:$0x1] 0
        %299 = vst [vmem:[#allocation2 + $0x78] sm:$0xf] 0
        %300 = vst [vmem:[#allocation2 + $0x7c] sm:$0xf] 0
        %301 = vst [vmem:[#allocation2 + $0x80] sm:$0x1] 0
        %302 = vst [vmem:[#allocation2 + $0x84] sm:$0xf] 0
        %303 = vst [vmem:[#allocation2 + $0x88] sm:$0xf] 0
        %304 = vst [vmem:[#allocation2 + $0x8c] sm:$0x1] 0
        %305 = vst [vmem:[#allocation2 + $0x90] sm:$0xf] 0
        %306 = vst [vmem:[#allocation2 + $0x94] sm:$0xf] 0
        %307 = vst [vmem:[#allocation2 + $0x98] sm:$0x1] 0
        %308 = vst [vmem:[#allocation2 + $0x9c] sm:$0xf] 0
        %309 = vst [vmem:[#allocation2 + $0xa0] sm:$0xf] 0
        %310 = vst [vmem:[#allocation2 + $0xa4] sm:$0x1] 0
        %311 = vst [vmem:[#allocation2 + $0xa8] sm:$0xf] 0
        %312 = vst [vmem:[#allocation2 + $0xac] sm:$0xf] 0
        %313 = vst [vmem:[#allocation2 + $0xb0] sm:$0x1] 0
        %314 = vst [vmem:[#allocation2 + $0xb4] sm:$0xf] 0
        %315 = vst [vmem:[#allocation2 + $0xb8] sm:$0xf] 0
        %316 = vst [vmem:[#allocation2 + $0xbc] sm:$0x1] 0
        %317 = vst [vmem:[#allocation2 + $0xc0] sm:$0xf] 0
        %318 = vst [vmem:[#allocation2 + $0xc4] sm:$0xf] 0
        %319 = vst [vmem:[#allocation2 + $0xc8] sm:$0x1] 0
        %320 = vst [vmem:[#allocation2 + $0xcc] sm:$0xf] 0
        %321 = vst [vmem:[#allocation2 + $0xd0] sm:$0xf] 0
        %322 = vst [vmem:[#allocation2 + $0xd4] sm:$0x1] 0
      $region40: #{bottleneck_forward.5} parent=35 // pred_fallthru
        _
      %v323 = vld [vmem:[%s248] sm:$0xf]
      %v324 = vld [vmem:[%s248 + $0x4] sm:$0xf]
      %v325 = vld [vmem:[%s248 + $0x8] sm:$0xf]
      %v326 = vld [vmem:[%s248 + $0xc] sm:$0xf]
      %v327 = vld [vmem:[%s248 + $0x10] sm:$0xf]
      %v328 = vld [vmem:[%s248 + $0x14] sm:$0xf]
      %v329 = vld [vmem:[%s248 + $0x18] sm:$0xf]
      %v330 = vld [vmem:[%s248 + $0x1c] sm:$0xf]
      %v331 = vld [vmem:[%s248 + $0x20] sm:$0xf]
      %v332 = vld [vmem:[%s248 + $0x24] sm:$0xf]
      %v333 = vld [vmem:[%s248 + $0x28] sm:$0xf]
      %v334 = vld [vmem:[%s248 + $0x2c] sm:$0xf]
      %v335 = vld [vmem:[%s248 + $0x30] sm:$0xf]
      %v336 = vld [vmem:[%s248 + $0x34] sm:$0xf]
      %v337 = vld [vmem:[%s248 + $0x38] sm:$0xf]
      %v338 = vld [vmem:[%s248 + $0x3c] sm:$0xf]
      %v339 = vld [vmem:[%s248 + $0x40] sm:$0xf]
      %v340 = vld [vmem:[%s248 + $0x44] sm:$0xf]
      %v341 = vld [vmem:[%s248 + $0x48] sm:$0xf]
      %v342 = vld [vmem:[%s248 + $0x4c] sm:$0xf]
      %v343 = vld [vmem:[%s248 + $0x50] sm:$0xf]
      %v344 = vld [vmem:[%s248 + $0x54] sm:$0xf]
      %v345 = vld [vmem:[%s248 + $0x58] sm:$0xf]
      %v346 = vld [vmem:[%s248 + $0x5c] sm:$0xf]
      %v347 = vld [vmem:[%s248 + $0x60] sm:$0xf]
      %v348 = vld [vmem:[%s248 + $0x64] sm:$0xf]
      %v349 = vld [vmem:[%s248 + $0x68] sm:$0xf]
      %v350 = vld [vmem:[%s248 + $0x6c] sm:$0xf]
      %v351 = vld [vmem:[%s248 + $0x70] sm:$0xf]
      %v352 = vld [vmem:[%s248 + $0x74] sm:$0xf]
      %v353 = vld [vmem:[%s248 + $0x78] sm:$0xf]
      %v354 = vld [vmem:[%s248 + $0x7c] sm:$0xf]
      %v355 = vunpack.c.l.bf16 %v323
      %v356 = vunpack.c.l.bf16 %v324
      %v357 = vunpack.c.l.bf16 %v325
      %v358 = vunpack.c.l.bf16 %v326
      %v359 = vunpack.c.l.bf16 %v327
      %v360 = vunpack.c.l.bf16 %v328
      %v361 = vunpack.c.l.bf16 %v329
      %v362 = vunpack.c.l.bf16 %v330
      %v363 = vunpack.c.l.bf16 %v331
      %v364 = vunpack.c.l.bf16 %v332
      %v365 = vunpack.c.l.bf16 %v333
      %v366 = vunpack.c.l.bf16 %v334
      %v367 = vunpack.c.l.bf16 %v335
      %v368 = vunpack.c.l.bf16 %v336
      %v369 = vunpack.c.l.bf16 %v337
      %v370 = vunpack.c.l.bf16 %v338
      %v371 = vunpack.c.l.bf16 %v339
      %v372 = vunpack.c.l.bf16 %v340
      %v373 = vunpack.c.l.bf16 %v341
      %v374 = vunpack.c.l.bf16 %v342
      %v375 = vunpack.c.l.bf16 %v343
      %v376 = vunpack.c.l.bf16 %v344
      %v377 = vunpack.c.l.bf16 %v345
      %v378 = vunpack.c.l.bf16 %v346
      %v379 = vunpack.c.l.bf16 %v347
      %v380 = vunpack.c.l.bf16 %v348
      %v381 = vunpack.c.l.bf16 %v349
      %v382 = vunpack.c.l.bf16 %v350
      %v383 = vunpack.c.l.bf16 %v351
      %v384 = vunpack.c.l.bf16 %v352
      %v385 = vunpack.c.l.bf16 %v353
      %v386 = vunpack.c.l.bf16 %v354
      %v387 = vld [vmem:[%s1] sm:$0x1]
      %v389 = vlaneseq
      %v390 = vshrl.u32 %v389, 7
      %v391 = vsub.s32 0, %v390
      %v392 = vrot.slane %v387, %v391
      %v394 = vmul.f32 %v355, %v392
      %v395 = vmul.f32 %v356, %v392
      %v396 = vmul.f32 %v357, %v392
      %v397 = vmul.f32 %v358, %v392
      %v398 = vmul.f32 %v359, %v392
      %v399 = vmul.f32 %v360, %v392
      %v400 = vmul.f32 %v361, %v392
      %v401 = vmul.f32 %v362, %v392
      %v402 = vmul.f32 %v363, %v392
      %v403 = vmul.f32 %v364, %v392
      %v404 = vmul.f32 %v365, %v392
      %v405 = vmul.f32 %v366, %v392
      %v406 = vmul.f32 %v367, %v392
      %v407 = vmul.f32 %v368, %v392
      %v408 = vmul.f32 %v369, %v392
      %v409 = vmul.f32 %v370, %v392
      %v410 = vmul.f32 %v371, %v392
      %v411 = vmul.f32 %v372, %v392
      %v412 = vmul.f32 %v373, %v392
      %v413 = vmul.f32 %v374, %v392
      %v414 = vmul.f32 %v375, %v392
      %v415 = vmul.f32 %v376, %v392
      %v416 = vmul.f32 %v377, %v392
      %v417 = vmul.f32 %v378, %v392
      %v418 = vmul.f32 %v379, %v392
      %v419 = vmul.f32 %v380, %v392
      %v420 = vmul.f32 %v381, %v392
      %v421 = vmul.f32 %v382, %v392
      %v422 = vmul.f32 %v383, %v392
      %v423 = vmul.f32 %v384, %v392
      %v424 = vmul.f32 %v385, %v392
      %v425 = vmul.f32 %v386, %v392
      %v426 = vld [vmem:[%s2] sm:$0x1]
      %v428 = vlaneseq
      %v429 = vshrl.u32 %v428, 7
      %v430 = vsub.s32 0, %v429
      %v431 = vrot.slane %v426, %v430
      %v433 = vadd.f32 %v394, %v431
      %v434 = vadd.f32 %v395, %v431
      %v435 = vadd.f32 %v396, %v431
      %v436 = vadd.f32 %v397, %v431
      %v437 = vadd.f32 %v398, %v431
      %v438 = vadd.f32 %v399, %v431
      %v439 = vadd.f32 %v400, %v431
      %v440 = vadd.f32 %v401, %v431
      %v441 = vadd.f32 %v402, %v431
      %v442 = vadd.f32 %v403, %v431
      %v443 = vadd.f32 %v404, %v431
      %v444 = vadd.f32 %v405, %v431
      %v445 = vadd.f32 %v406, %v431
      %v446 = vadd.f32 %v407, %v431
      %v447 = vadd.f32 %v408, %v431
      %v448 = vadd.f32 %v409, %v431
      %v449 = vadd.f32 %v410, %v431
      %v450 = vadd.f32 %v411, %v431
      %v451 = vadd.f32 %v412, %v431
      %v452 = vadd.f32 %v413, %v431
      %v453 = vadd.f32 %v414, %v431
      %v454 = vadd.f32 %v415, %v431
      %v455 = vadd.f32 %v416, %v431
      %v456 = vadd.f32 %v417, %v431
      %v457 = vadd.f32 %v418, %v431
      %v458 = vadd.f32 %v419, %v431
      %v459 = vadd.f32 %v420, %v431
      %v460 = vadd.f32 %v421, %v431
      %v461 = vadd.f32 %v422, %v431
      %v462 = vadd.f32 %v423, %v431
      %v463 = vadd.f32 %v424, %v431
      %v464 = vadd.f32 %v425, %v431
      %v465 = vmax.f32 %v433, 0.0
      %v466 = vmax.f32 %v434, 0.0
      %v467 = vmax.f32 %v435, 0.0
      %v468 = vmax.f32 %v436, 0.0
      %v469 = vmax.f32 %v437, 0.0
      %v470 = vmax.f32 %v438, 0.0
      %v471 = vmax.f32 %v439, 0.0
      %v472 = vmax.f32 %v440, 0.0
      %v473 = vmax.f32 %v441, 0.0
      %v474 = vmax.f32 %v442, 0.0
      %v475 = vmax.f32 %v443, 0.0
      %v476 = vmax.f32 %v444, 0.0
      %v477 = vmax.f32 %v445, 0.0
      %v478 = vmax.f32 %v446, 0.0
      %v479 = vmax.f32 %v447, 0.0
      %v480 = vmax.f32 %v448, 0.0
      %v481 = vmax.f32 %v449, 0.0
      %v482 = vmax.f32 %v450, 0.0
      %v483 = vmax.f32 %v451, 0.0
      %v484 = vmax.f32 %v452, 0.0
      %v485 = vmax.f32 %v453, 0.0
      %v486 = vmax.f32 %v454, 0.0
      %v487 = vmax.f32 %v455, 0.0
      %v488 = vmax.f32 %v456, 0.0
      %v489 = vmax.f32 %v457, 0.0
      %v490 = vmax.f32 %v458, 0.0
      %v491 = vmax.f32 %v459, 0.0
      %v492 = vmax.f32 %v460, 0.0
      %v493 = vmax.f32 %v461, 0.0
      %v494 = vmax.f32 %v462, 0.0
      %v495 = vmax.f32 %v463, 0.0
      %v496 = vmax.f32 %v464, 0.0
      %v497 = vpack.c.bf16 %v466, %v465
      %v498 = vpack.c.bf16 %v468, %v467
      %v499 = vpack.c.bf16 %v470, %v469
      %v500 = vpack.c.bf16 %v472, %v471
      %v501 = vpack.c.bf16 %v474, %v473
      %v502 = vpack.c.bf16 %v476, %v475
      %v503 = vpack.c.bf16 %v478, %v477
      %v504 = vpack.c.bf16 %v480, %v479
      %v505 = vpack.c.bf16 %v482, %v481
      %v506 = vpack.c.bf16 %v484, %v483
      %v507 = vpack.c.bf16 %v486, %v485
      %v508 = vpack.c.bf16 %v488, %v487
      %v509 = vpack.c.bf16 %v490, %v489
      %v510 = vpack.c.bf16 %v492, %v491
      %v511 = vpack.c.bf16 %v494, %v493
      %v512 = vpack.c.bf16 %v496, %v495
      %v529 = vunpack.c.l.b16 %v497
      %v530 = vunpack.c.h.b16 %v497
      %v531 = vunpack.c.l.b16 %v498
      %v532 = vunpack.c.h.b16 %v498
      %v533 = vunpack.c.l.b16 %v499
      %v534 = vunpack.c.h.b16 %v499
      %v535 = vunpack.c.l.b16 %v500
      %v536 = vunpack.c.h.b16 %v500
      %v537 = vunpack.c.l.b16 %v501
      %v538 = vunpack.c.h.b16 %v501
      %v539 = vunpack.c.l.b16 %v502
      %v540 = vunpack.c.h.b16 %v502
      %v541 = vunpack.c.l.b16 %v503
      %v542 = vunpack.c.h.b16 %v503
      %v543 = vunpack.c.l.b16 %v504
      %v544 = vunpack.c.h.b16 %v504
      %v545 = vunpack.c.l.b16 %v505
      %v546 = vunpack.c.h.b16 %v505
      %v547 = vunpack.c.l.b16 %v506
      %v548 = vunpack.c.h.b16 %v506
      %v549 = vunpack.c.l.b16 %v507
      %v550 = vunpack.c.h.b16 %v507
      %v551 = vunpack.c.l.b16 %v508
      %v552 = vunpack.c.h.b16 %v508
      %v553 = vunpack.c.l.b16 %v509
      %v554 = vunpack.c.h.b16 %v509
      %v555 = vunpack.c.l.b16 %v510
      %v556 = vunpack.c.h.b16 %v510
      %v557 = vunpack.c.l.b16 %v511
      %v558 = vunpack.c.h.b16 %v511
      %v559 = vunpack.c.l.b16 %v512
      %v560 = vunpack.c.h.b16 %v512
      %v561 = vpack.c.b16 %v529, %v529
      %v562 = vpack.c.b16 %v530, %v530
      %v563 = vpack.c.b16 %v531, %v531
      %v564 = vpack.c.b16 %v532, %v532
      %v565 = vpack.c.b16 %v533, %v533
      %v566 = vpack.c.b16 %v534, %v534
      %v567 = vpack.c.b16 %v535, %v535
      %v568 = vpack.c.b16 %v536, %v536
      %v569 = vpack.c.b16 %v537, %v537
      %v570 = vpack.c.b16 %v538, %v538
      %v571 = vpack.c.b16 %v539, %v539
      %v572 = vpack.c.b16 %v540, %v540
      %v573 = vpack.c.b16 %v541, %v541
      %v574 = vpack.c.b16 %v542, %v542
      %v575 = vpack.c.b16 %v543, %v543
      %v576 = vpack.c.b16 %v544, %v544
      %v577 = vpack.c.b16 %v545, %v545
      %v578 = vpack.c.b16 %v546, %v546
      %v579 = vpack.c.b16 %v547, %v547
      %v580 = vpack.c.b16 %v548, %v548
      %v581 = vpack.c.b16 %v549, %v549
      %v582 = vpack.c.b16 %v550, %v550
      %v583 = vpack.c.b16 %v551, %v551
      %v584 = vpack.c.b16 %v552, %v552
      %v585 = vpack.c.b16 %v553, %v553
      %v586 = vpack.c.b16 %v554, %v554
      %v587 = vpack.c.b16 %v555, %v555
      %v588 = vpack.c.b16 %v556, %v556
      %v589 = vpack.c.b16 %v557, %v557
      %v590 = vpack.c.b16 %v558, %v558
      %v591 = vpack.c.b16 %v559, %v559
      %v592 = vpack.c.b16 %v560, %v560
      %vm593 = vsmask.f32 256
      %vm594 = vsmask.f32 4368
      %vm595 = vmor %vm593, %vm594
      %v597 = vshrl.u32 %v561, 16
      %v599 = vrot.slane %v597, 7
      %v600 = vshll.u32 %v561, 16
      %v602 = vor.u32 %v599, %v600
      %v603 = vrot.slane %v599, 4
      %v605 = vshrl.u32 %v562, 16
      %v607 = vrot.slane %v605, 7
      %v608 = vshll.u32 %v562, 16
      %v610 = vor.u32 %v607, %v608
      %v611 = vsel %vm595, %v603, %v610
      %v612 = vrot.slane %v607, 4
      %v614 = vshrl.u32 %v563, 16
      %v616 = vrot.slane %v614, 7
      %v617 = vshll.u32 %v563, 16
      %v619 = vor.u32 %v616, %v617
      %v620 = vrot.slane %v616, 4
      %v622 = vshrl.u32 %v564, 16
      %v624 = vrot.slane %v622, 7
      %v625 = vshll.u32 %v564, 16
      %v627 = vor.u32 %v624, %v625
      %v628 = vsel %vm595, %v620, %v627
      %v629 = vrot.slane %v624, 4
      %v631 = vshrl.u32 %v565, 16
      %v633 = vrot.slane %v631, 7
      %v634 = vshll.u32 %v565, 16
      %v636 = vor.u32 %v633, %v634
      %v637 = vrot.slane %v633, 4
      %v639 = vshrl.u32 %v566, 16
      %v641 = vrot.slane %v639, 7
      %v642 = vshll.u32 %v566, 16
      %v644 = vor.u32 %v641, %v642
      %v645 = vsel %vm595, %v637, %v644
      %v646 = vrot.slane %v641, 4
      %v648 = vshrl.u32 %v567, 16
      %v650 = vrot.slane %v648, 7
      %v651 = vshll.u32 %v567, 16
      %v653 = vor.u32 %v650, %v651
      %v654 = vrot.slane %v650, 4
      %v656 = vshrl.u32 %v568, 16
      %v658 = vrot.slane %v656, 7
      %v659 = vshll.u32 %v568, 16
      %v661 = vor.u32 %v658, %v659
      %v662 = vsel %vm595, %v654, %v661
      %v663 = vrot.slane %v658, 4
      %v665 = vshrl.u32 %v569, 16
      %v667 = vrot.slane %v665, 7
      %v668 = vshll.u32 %v569, 16
      %v670 = vor.u32 %v667, %v668
      %v671 = vrot.slane %v667, 4
      %v673 = vshrl.u32 %v570, 16
      %v675 = vrot.slane %v673, 7
      %v676 = vshll.u32 %v570, 16
      %v678 = vor.u32 %v675, %v676
      %v679 = vsel %vm595, %v671, %v678
      %v680 = vrot.slane %v675, 4
      %v682 = vshrl.u32 %v571, 16
      %v684 = vrot.slane %v682, 7
      %v685 = vshll.u32 %v571, 16
      %v687 = vor.u32 %v684, %v685
      %v688 = vrot.slane %v684, 4
      %v690 = vshrl.u32 %v572, 16
      %v692 = vrot.slane %v690, 7
      %v693 = vshll.u32 %v572, 16
      %v695 = vor.u32 %v692, %v693
      %v696 = vsel %vm595, %v688, %v695
      %v697 = vrot.slane %v692, 4
      %v699 = vshrl.u32 %v573, 16
      %v701 = vrot.slane %v699, 7
      %v702 = vshll.u32 %v573, 16
      %v704 = vor.u32 %v701, %v702
      %v705 = vrot.slane %v701, 4
      %v707 = vshrl.u32 %v574, 16
      %v709 = vrot.slane %v707, 7
      %v710 = vshll.u32 %v574, 16
      %v712 = vor.u32 %v709, %v710
      %v713 = vsel %vm595, %v705, %v712
      %v714 = vrot.slane %v709, 4
      %v716 = vshrl.u32 %v575, 16
      %v718 = vrot.slane %v716, 7
      %v719 = vshll.u32 %v575, 16
      %v721 = vor.u32 %v718, %v719
      %v722 = vrot.slane %v718, 4
      %v724 = vshrl.u32 %v576, 16
      %v726 = vrot.slane %v724, 7
      %v727 = vshll.u32 %v576, 16
      %v729 = vor.u32 %v726, %v727
      %v730 = vsel %vm595, %v722, %v729
      %v731 = vrot.slane %v726, 4
      %v733 = vshrl.u32 %v577, 16
      %v735 = vrot.slane %v733, 7
      %v736 = vshll.u32 %v577, 16
      %v738 = vor.u32 %v735, %v736
      %v739 = vrot.slane %v735, 4
      %v741 = vshrl.u32 %v578, 16
      %v743 = vrot.slane %v741, 7
      %v744 = vshll.u32 %v578, 16
      %v746 = vor.u32 %v743, %v744
      %v747 = vsel %vm595, %v739, %v746
      %v748 = vrot.slane %v743, 4
      %v750 = vshrl.u32 %v579, 16
      %v752 = vrot.slane %v750, 7
      %v753 = vshll.u32 %v579, 16
      %v755 = vor.u32 %v752, %v753
      %v756 = vrot.slane %v752, 4
      %v758 = vshrl.u32 %v580, 16
      %v760 = vrot.slane %v758, 7
      %v761 = vshll.u32 %v580, 16
      %v763 = vor.u32 %v760, %v761
      %v764 = vsel %vm595, %v756, %v763
      %v765 = vrot.slane %v760, 4
      %v767 = vshrl.u32 %v581, 16
      %v769 = vrot.slane %v767, 7
      %v770 = vshll.u32 %v581, 16
      %v772 = vor.u32 %v769, %v770
      %v773 = vrot.slane %v769, 4
      %v775 = vshrl.u32 %v582, 16
      %v777 = vrot.slane %v775, 7
      %v778 = vshll.u32 %v582, 16
      %v780 = vor.u32 %v777, %v778
      %v781 = vsel %vm595, %v773, %v780
      %v782 = vrot.slane %v777, 4
      %v784 = vshrl.u32 %v583, 16
      %v786 = vrot.slane %v784, 7
      %v787 = vshll.u32 %v583, 16
      %v789 = vor.u32 %v786, %v787
      %v790 = vrot.slane %v786, 4
      %v792 = vshrl.u32 %v584, 16
      %v794 = vrot.slane %v792, 7
      %v795 = vshll.u32 %v584, 16
      %v797 = vor.u32 %v794, %v795
      %v798 = vsel %vm595, %v790, %v797
      %v799 = vrot.slane %v794, 4
      %v801 = vshrl.u32 %v585, 16
      %v803 = vrot.slane %v801, 7
      %v804 = vshll.u32 %v585, 16
      %v806 = vor.u32 %v803, %v804
      %v807 = vrot.slane %v803, 4
      %v809 = vshrl.u32 %v586, 16
      %v811 = vrot.slane %v809, 7
      %v812 = vshll.u32 %v586, 16
      %v814 = vor.u32 %v811, %v812
      %v815 = vsel %vm595, %v807, %v814
      %v816 = vrot.slane %v811, 4
      %v818 = vshrl.u32 %v587, 16
      %v820 = vrot.slane %v818, 7
      %v821 = vshll.u32 %v587, 16
      %v823 = vor.u32 %v820, %v821
      %v824 = vrot.slane %v820, 4
      %v826 = vshrl.u32 %v588, 16
      %v828 = vrot.slane %v826, 7
      %v829 = vshll.u32 %v588, 16
      %v831 = vor.u32 %v828, %v829
      %v832 = vsel %vm595, %v824, %v831
      %v833 = vrot.slane %v828, 4
      %v835 = vshrl.u32 %v589, 16
      %v837 = vrot.slane %v835, 7
      %v838 = vshll.u32 %v589, 16
      %v840 = vor.u32 %v837, %v838
      %v841 = vrot.slane %v837, 4
      %v843 = vshrl.u32 %v590, 16
      %v845 = vrot.slane %v843, 7
      %v846 = vshll.u32 %v590, 16
      %v848 = vor.u32 %v845, %v846
      %v849 = vsel %vm595, %v841, %v848
      %v850 = vrot.slane %v845, 4
      %v852 = vshrl.u32 %v591, 16
      %v854 = vrot.slane %v852, 7
      %v855 = vshll.u32 %v591, 16
      %v857 = vor.u32 %v854, %v855
      %v858 = vrot.slane %v854, 4
      %v860 = vshrl.u32 %v592, 16
      %v862 = vrot.slane %v860, 7
      %v863 = vshll.u32 %v592, 16
      %v865 = vor.u32 %v862, %v863
      %v866 = vsel %vm595, %v858, %v865
      %v867 = vrot.slane %v862, 4
      %s916 = scalar_lea.vmem [#allocation2], 12
      %vm917 = vcmask 1043456
      %vm918 = vsmask.f32 7938
      %vm919 = vmand %vm917, %vm918
      %v920 = vld [vmem:[%s916] sm:$0xf]
      %v921 = vsel %vm919, %v602, %v920
      %922 = vst [vmem:[%s916] sm:$0xf] %v921
      %923 = vst [vmem:[%s916 + $0x4] sm:$0xf] %v611
      %vm924 = vcmask 1040384
      %vm925 = vmand %vm924, %vm593
      %v926 = vld [vmem:[%s916 + $0x8] sm:$0x1]
      %v927 = vsel %vm925, %v612, %v926
      %928 = vst [vmem:[%s916 + $0x8] sm:$0x1] %v927
      %v929 = vld [vmem:[%s916 + $0xc] sm:$0xf]
      %v930 = vsel %vm919, %v619, %v929
      %931 = vst [vmem:[%s916 + $0xc] sm:$0xf] %v930
      %932 = vst [vmem:[%s916 + $0x10] sm:$0xf] %v628
      %v933 = vld [vmem:[%s916 + $0x14] sm:$0x1]
      %v934 = vsel %vm925, %v629, %v933
      %935 = vst [vmem:[%s916 + $0x14] sm:$0x1] %v934
      %v936 = vld [vmem:[%s916 + $0x18] sm:$0xf]
      %v937 = vsel %vm919, %v636, %v936
      %938 = vst [vmem:[%s916 + $0x18] sm:$0xf] %v937
      %939 = vst [vmem:[%s916 + $0x1c] sm:$0xf] %v645
      %v940 = vld [vmem:[%s916 + $0x20] sm:$0x1]
      %v941 = vsel %vm925, %v646, %v940
      %942 = vst [vmem:[%s916 + $0x20] sm:$0x1] %v941
      %v943 = vld [vmem:[%s916 + $0x24] sm:$0xf]
      %v944 = vsel %vm919, %v653, %v943
      %945 = vst [vmem:[%s916 + $0x24] sm:$0xf] %v944
      %946 = vst [vmem:[%s916 + $0x28] sm:$0xf] %v662
      %v947 = vld [vmem:[%s916 + $0x2c] sm:$0x1]
      %v948 = vsel %vm925, %v663, %v947
      %949 = vst [vmem:[%s916 + $0x2c] sm:$0x1] %v948
      %v950 = vld [vmem:[%s916 + $0x30] sm:$0xf]
      %v951 = vsel %vm919, %v670, %v950
      %952 = vst [vmem:[%s916 + $0x30] sm:$0xf] %v951
      %953 = vst [vmem:[%s916 + $0x34] sm:$0xf] %v679
      %v954 = vld [vmem:[%s916 + $0x38] sm:$0x1]
      %v955 = vsel %vm925, %v680, %v954
      %956 = vst [vmem:[%s916 + $0x38] sm:$0x1] %v955
      %v957 = vld [vmem:[%s916 + $0x3c] sm:$0xf]
      %v958 = vsel %vm919, %v687, %v957
      %959 = vst [vmem:[%s916 + $0x3c] sm:$0xf] %v958
      %960 = vst [vmem:[%s916 + $0x40] sm:$0xf] %v696
      %v961 = vld [vmem:[%s916 + $0x44] sm:$0x1]
      %v962 = vsel %vm925, %v697, %v961
      %963 = vst [vmem:[%s916 + $0x44] sm:$0x1] %v962
      %v964 = vld [vmem:[%s916 + $0x48] sm:$0xf]
      %v965 = vsel %vm919, %v704, %v964
      %966 = vst [vmem:[%s916 + $0x48] sm:$0xf] %v965
      %967 = vst [vmem:[%s916 + $0x4c] sm:$0xf] %v713
      %v968 = vld [vmem:[%s916 + $0x50] sm:$0x1]
      %v969 = vsel %vm925, %v714, %v968
      %970 = vst [vmem:[%s916 + $0x50] sm:$0x1] %v969
      %v971 = vld [vmem:[%s916 + $0x54] sm:$0xf]
      %v972 = vsel %vm919, %v721, %v971
      %973 = vst [vmem:[%s916 + $0x54] sm:$0xf] %v972
      %974 = vst [vmem:[%s916 + $0x58] sm:$0xf] %v730
      %v975 = vld [vmem:[%s916 + $0x5c] sm:$0x1]
      %v976 = vsel %vm925, %v731, %v975
      %977 = vst [vmem:[%s916 + $0x5c] sm:$0x1] %v976
      %v978 = vld [vmem:[%s916 + $0x60] sm:$0xf]
      %v979 = vsel %vm919, %v738, %v978
      %980 = vst [vmem:[%s916 + $0x60] sm:$0xf] %v979
      %981 = vst [vmem:[%s916 + $0x64] sm:$0xf] %v747
      %v982 = vld [vmem:[%s916 + $0x68] sm:$0x1]
      %v983 = vsel %vm925, %v748, %v982
      %984 = vst [vmem:[%s916 + $0x68] sm:$0x1] %v983
      %v985 = vld [vmem:[%s916 + $0x6c] sm:$0xf]
      %v986 = vsel %vm919, %v755, %v985
      %987 = vst [vmem:[%s916 + $0x6c] sm:$0xf] %v986
      %988 = vst [vmem:[%s916 + $0x70] sm:$0xf] %v764
      %v989 = vld [vmem:[%s916 + $0x74] sm:$0x1]
      %v990 = vsel %vm925, %v765, %v989
      %991 = vst [vmem:[%s916 + $0x74] sm:$0x1] %v990
      %v992 = vld [vmem:[%s916 + $0x78] sm:$0xf]
      %v993 = vsel %vm919, %v772, %v992
      %994 = vst [vmem:[%s916 + $0x78] sm:$0xf] %v993
      %995 = vst [vmem:[%s916 + $0x7c] sm:$0xf] %v781
      %v996 = vld [vmem:[%s916 + $0x80] sm:$0x1]
      %v997 = vsel %vm925, %v782, %v996
      %998 = vst [vmem:[%s916 + $0x80] sm:$0x1] %v997
      %v999 = vld [vmem:[%s916 + $0x84] sm:$0xf]
      %v1000 = vsel %vm919, %v789, %v999
      %1001 = vst [vmem:[%s916 + $0x84] sm:$0xf] %v1000
      %1002 = vst [vmem:[%s916 + $0x88] sm:$0xf] %v798
      %v1003 = vld [vmem:[%s916 + $0x8c] sm:$0x1]
      %v1004 = vsel %vm925, %v799, %v1003
      %1005 = vst [vmem:[%s916 + $0x8c] sm:$0x1] %v1004
      %v1006 = vld [vmem:[%s916 + $0x90] sm:$0xf]
      %v1007 = vsel %vm919, %v806, %v1006
      %1008 = vst [vmem:[%s916 + $0x90] sm:$0xf] %v1007
      %1009 = vst [vmem:[%s916 + $0x94] sm:$0xf] %v815
      %v1010 = vld [vmem:[%s916 + $0x98] sm:$0x1]
      %v1011 = vsel %vm925, %v816, %v1010
      %1012 = vst [vmem:[%s916 + $0x98] sm:$0x1] %v1011
      %v1013 = vld [vmem:[%s916 + $0x9c] sm:$0xf]
      %v1014 = vsel %vm919, %v823, %v1013
      %1015 = vst [vmem:[%s916 + $0x9c] sm:$0xf] %v1014
      %1016 = vst [vmem:[%s916 + $0xa0] sm:$0xf] %v832
      %v1017 = vld [vmem:[%s916 + $0xa4] sm:$0x1]
      %v1018 = vsel %vm925, %v833, %v1017
      %1019 = vst [vmem:[%s916 + $0xa4] sm:$0x1] %v1018
      %v1020 = vld [vmem:[%s916 + $0xa8] sm:$0xf]
      %v1021 = vsel %vm919, %v840, %v1020
      %1022 = vst [vmem:[%s916 + $0xa8] sm:$0xf] %v1021
      %1023 = vst [vmem:[%s916 + $0xac] sm:$0xf] %v849
      %v1024 = vld [vmem:[%s916 + $0xb0] sm:$0x1]
      %v1025 = vsel %vm925, %v850, %v1024
      %1026 = vst [vmem:[%s916 + $0xb0] sm:$0x1] %v1025
      %v1027 = vld [vmem:[%s916 + $0xb4] sm:$0xf]
      %v1028 = vsel %vm919, %v857, %v1027
      %1029 = vst [vmem:[%s916 + $0xb4] sm:$0xf] %v1028
      %1030 = vst [vmem:[%s916 + $0xb8] sm:$0xf] %v866
      %v1031 = vld [vmem:[%s916 + $0xbc] sm:$0x1]
      %v1032 = vsel %vm925, %v867, %v1031
      %1033 = vst [vmem:[%s916 + $0xbc] sm:$0x1] %v1032
      %v1034 = vld [vmem:[#allocation2] sm:$0xf]
      %v1035 = vld [vmem:[#allocation2 + $0x4] sm:$0xf]
      %v1036 = vld [vmem:[#allocation2 + $0xc] sm:$0xf]
      %v1037 = vld [vmem:[#allocation2 + $0x10] sm:$0xf]
      %v1038 = vld [vmem:[#allocation2 + $0x18] sm:$0xf]
      %v1039 = vld [vmem:[#allocation2 + $0x1c] sm:$0xf]
      %v1040 = vld [vmem:[#allocation2 + $0x24] sm:$0xf]
      %v1041 = vld [vmem:[#allocation2 + $0x28] sm:$0xf]
      %v1042 = vld [vmem:[#allocation2 + $0x30] sm:$0xf]
      %v1043 = vld [vmem:[#allocation2 + $0x34] sm:$0xf]
      %v1044 = vld [vmem:[#allocation2 + $0x3c] sm:$0xf]
      %v1045 = vld [vmem:[#allocation2 + $0x40] sm:$0xf]
      %v1046 = vld [vmem:[#allocation2 + $0x48] sm:$0xf]
      %v1047 = vld [vmem:[#allocation2 + $0x4c] sm:$0xf]
      %v1048 = vld [vmem:[#allocation2 + $0x54] sm:$0xf]
      %v1049 = vld [vmem:[#allocation2 + $0x58] sm:$0xf]
      %v1050 = vld [vmem:[#allocation2 + $0x60] sm:$0xf]
      %v1051 = vld [vmem:[#allocation2 + $0x64] sm:$0xf]
      %v1052 = vld [vmem:[#allocation2 + $0x6c] sm:$0xf]
      %v1053 = vld [vmem:[#allocation2 + $0x70] sm:$0xf]
      %v1054 = vld [vmem:[#allocation2 + $0x78] sm:$0xf]
      %v1055 = vld [vmem:[#allocation2 + $0x7c] sm:$0xf]
      %v1056 = vld [vmem:[#allocation2 + $0x84] sm:$0xf]
      %v1057 = vld [vmem:[#allocation2 + $0x88] sm:$0xf]
      %v1058 = vld [vmem:[#allocation2 + $0x90] sm:$0xf]
      %v1059 = vld [vmem:[#allocation2 + $0x94] sm:$0xf]
      %v1060 = vld [vmem:[#allocation2 + $0x9c] sm:$0xf]
      %v1061 = vld [vmem:[#allocation2 + $0xa0] sm:$0xf]
      %v1062 = vld [vmem:[#allocation2 + $0xa8] sm:$0xf]
      %v1063 = vld [vmem:[#allocation2 + $0xac] sm:$0xf]
      %v1064 = vld [vmem:[#allocation2 + $0xb4] sm:$0xf]
      %v1065 = vld [vmem:[#allocation2 + $0xb8] sm:$0xf]
      %v1066 = vld [vmem:[%s3] sm:$0xf]
      %v1067 = vld [vmem:[%s3 + $0x4] sm:$0xf]
      %v1068 = vld [vmem:[%s3 + $0x8] sm:$0xf]
      %v1069 = vld [vmem:[%s3 + $0xc] sm:$0xf]
      %v1070 = vld [vmem:[%s3 + $0x10] sm:$0xf]
      %v1071 = vld [vmem:[%s3 + $0x14] sm:$0xf]
      %v1072 = vld [vmem:[%s3 + $0x18] sm:$0xf]
      %v1073 = vld [vmem:[%s3 + $0x1c] sm:$0xf]
      %v1074 = vld [vmem:[%s3 + $0x20] sm:$0xf]
      %v1075 = vld [vmem:[%s3 + $0x24] sm:$0xf]
      %v1076 = vld [vmem:[%s3 + $0x28] sm:$0xf]
      %v1077 = vld [vmem:[%s3 + $0x2c] sm:$0xf]
      %v1078 = vld [vmem:[%s3 + $0x30] sm:$0xf]
      %v1079 = vld [vmem:[%s3 + $0x34] sm:$0xf]
      %v1080 = vld [vmem:[%s3 + $0x38] sm:$0xf]
      %v1081 = vld [vmem:[%s3 + $0x3c] sm:$0xf]
      %v1082 = vld [vmem:[#allocation2 + $0x8] sm:$0x1]
      %v1083 = vld [vmem:[#allocation2 + $0x14] sm:$0x1]
      %v1084 = vld [vmem:[#allocation2 + $0x20] sm:$0x1]
      %v1085 = vld [vmem:[#allocation2 + $0x2c] sm:$0x1]
      %v1086 = vld [vmem:[#allocation2 + $0x38] sm:$0x1]
      %v1087 = vld [vmem:[#allocation2 + $0x44] sm:$0x1]
      %v1088 = vld [vmem:[#allocation2 + $0x50] sm:$0x1]
      %v1089 = vld [vmem:[#allocation2 + $0x5c] sm:$0x1]
      %v1090 = vld [vmem:[#allocation2 + $0x68] sm:$0x1]
      %v1091 = vld [vmem:[#allocation2 + $0x74] sm:$0x1]
      %v1092 = vld [vmem:[#allocation2 + $0x80] sm:$0x1]
      %v1093 = vld [vmem:[#allocation2 + $0x8c] sm:$0x1]
      %v1094 = vld [vmem:[#allocation2 + $0x98] sm:$0x1]
      %v1095 = vld [vmem:[#allocation2 + $0xa4] sm:$0x1]
      %v1096 = vld [vmem:[#allocation2 + $0xb0] sm:$0x1]
      %v1097 = vld [vmem:[#allocation2 + $0xbc] sm:$0x1]
      %vm1098 = vsmask.f32 3328
      %vm1099 = vsmask.f32 7440
      %vm1100 = vmor %vm1098, %vm1099
      %v1102 = vshrl.u32 %v1034, 16
      %v1104 = vrot.slane %v1102, 4
      %v1105 = vshll.u32 %v1034, 16
      %v1107 = vrot.slane %v1105, 5
      %v1108 = vor.u32 %v1104, %v1107
      %v1109 = vrot.slane %v1108, 4
      %v1111 = vshll.u32 %v1035, 16
      %v1113 = vrot.slane %v1111, 5
      %v1114 = vsel %vm1100, %v1109, %v1113
      %v1115 = vshrl.u32 %v1035, 16
      %v1117 = vrot.slane %v1115, 4
      %v1118 = vor.u32 %v1117, %v1113
      %v1119 = vrot.slane %v1118, 4
      %v1121 = vshll.u32 %v1082, 16
      %v1123 = vrot.slane %v1121, 5
      %v1124 = vsel %vm1100, %v1119, %v1123
      %v1126 = vshrl.u32 %v1036, 16
      %v1128 = vrot.slane %v1126, 4
      %v1129 = vshll.u32 %v1036, 16
      %v1131 = vrot.slane %v1129, 5
      %v1132 = vor.u32 %v1128, %v1131
      %v1133 = vrot.slane %v1132, 4
      %v1135 = vshll.u32 %v1037, 16
      %v1137 = vrot.slane %v1135, 5
      %v1138 = vsel %vm1100, %v1133, %v1137
      %v1139 = vshrl.u32 %v1037, 16
      %v1141 = vrot.slane %v1139, 4
      %v1142 = vor.u32 %v1141, %v1137
      %v1143 = vrot.slane %v1142, 4
      %v1145 = vshll.u32 %v1083, 16
      %v1147 = vrot.slane %v1145, 5
      %v1148 = vsel %vm1100, %v1143, %v1147
      %v1150 = vshrl.u32 %v1038, 16
      %v1152 = vrot.slane %v1150, 4
      %v1153 = vshll.u32 %v1038, 16
      %v1155 = vrot.slane %v1153, 5
      %v1156 = vor.u32 %v1152, %v1155
      %v1157 = vrot.slane %v1156, 4
      %v1159 = vshll.u32 %v1039, 16
      %v1161 = vrot.slane %v1159, 5
      %v1162 = vsel %vm1100, %v1157, %v1161
      %v1163 = vshrl.u32 %v1039, 16
      %v1165 = vrot.slane %v1163, 4
      %v1166 = vor.u32 %v1165, %v1161
      %v1167 = vrot.slane %v1166, 4
      %v1169 = vshll.u32 %v1084, 16
      %v1171 = vrot.slane %v1169, 5
      %v1172 = vsel %vm1100, %v1167, %v1171
      %v1174 = vshrl.u32 %v1040, 16
      %v1176 = vrot.slane %v1174, 4
      %v1177 = vshll.u32 %v1040, 16
      %v1179 = vrot.slane %v1177, 5
      %v1180 = vor.u32 %v1176, %v1179
      %v1181 = vrot.slane %v1180, 4
      %v1183 = vshll.u32 %v1041, 16
      %v1185 = vrot.slane %v1183, 5
      %v1186 = vsel %vm1100, %v1181, %v1185
      %v1187 = vshrl.u32 %v1041, 16
      %v1189 = vrot.slane %v1187, 4
      %v1190 = vor.u32 %v1189, %v1185
      %v1191 = vrot.slane %v1190, 4
      %v1193 = vshll.u32 %v1085, 16
      %v1195 = vrot.slane %v1193, 5
      %v1196 = vsel %vm1100, %v1191, %v1195
      %v1198 = vshrl.u32 %v1042, 16
      %v1200 = vrot.slane %v1198, 4
      %v1201 = vshll.u32 %v1042, 16
      %v1203 = vrot.slane %v1201, 5
      %v1204 = vor.u32 %v1200, %v1203
      %v1205 = vrot.slane %v1204, 4
      %v1207 = vshll.u32 %v1043, 16
      %v1209 = vrot.slane %v1207, 5
      %v1210 = vsel %vm1100, %v1205, %v1209
      %v1211 = vshrl.u32 %v1043, 16
      %v1213 = vrot.slane %v1211, 4
      %v1214 = vor.u32 %v1213, %v1209
      %v1215 = vrot.slane %v1214, 4
      %v1217 = vshll.u32 %v1086, 16
      %v1219 = vrot.slane %v1217, 5
      %v1220 = vsel %vm1100, %v1215, %v1219
      %v1222 = vshrl.u32 %v1044, 16
      %v1224 = vrot.slane %v1222, 4
      %v1225 = vshll.u32 %v1044, 16
      %v1227 = vrot.slane %v1225, 5
      %v1228 = vor.u32 %v1224, %v1227
      %v1229 = vrot.slane %v1228, 4
      %v1231 = vshll.u32 %v1045, 16
      %v1233 = vrot.slane %v1231, 5
      %v1234 = vsel %vm1100, %v1229, %v1233
      %v1235 = vshrl.u32 %v1045, 16
      %v1237 = vrot.slane %v1235, 4
      %v1238 = vor.u32 %v1237, %v1233
      %v1239 = vrot.slane %v1238, 4
      %v1241 = vshll.u32 %v1087, 16
      %v1243 = vrot.slane %v1241, 5
      %v1244 = vsel %vm1100, %v1239, %v1243
      %v1246 = vshrl.u32 %v1046, 16
      %v1248 = vrot.slane %v1246, 4
      %v1249 = vshll.u32 %v1046, 16
      %v1251 = vrot.slane %v1249, 5
      %v1252 = vor.u32 %v1248, %v1251
      %v1253 = vrot.slane %v1252, 4
      %v1255 = vshll.u32 %v1047, 16
      %v1257 = vrot.slane %v1255, 5
      %v1258 = vsel %vm1100, %v1253, %v1257
      %v1259 = vshrl.u32 %v1047, 16
      %v1261 = vrot.slane %v1259, 4
      %v1262 = vor.u32 %v1261, %v1257
      %v1263 = vrot.slane %v1262, 4
      %v1265 = vshll.u32 %v1088, 16
      %v1267 = vrot.slane %v1265, 5
      %v1268 = vsel %vm1100, %v1263, %v1267
      %v1270 = vshrl.u32 %v1048, 16
      %v1272 = vrot.slane %v1270, 4
      %v1273 = vshll.u32 %v1048, 16
      %v1275 = vrot.slane %v1273, 5
      %v1276 = vor.u32 %v1272, %v1275
      %v1277 = vrot.slane %v1276, 4
      %v1279 = vshll.u32 %v1049, 16
      %v1281 = vrot.slane %v1279, 5
      %v1282 = vsel %vm1100, %v1277, %v1281
      %v1283 = vshrl.u32 %v1049, 16
      %v1285 = vrot.slane %v1283, 4
      %v1286 = vor.u32 %v1285, %v1281
      %v1287 = vrot.slane %v1286, 4
      %v1289 = vshll.u32 %v1089, 16
      %v1291 = vrot.slane %v1289, 5
      %v1292 = vsel %vm1100, %v1287, %v1291
      %v1294 = vshrl.u32 %v1050, 16
      %v1296 = vrot.slane %v1294, 4
      %v1297 = vshll.u32 %v1050, 16
      %v1299 = vrot.slane %v1297, 5
      %v1300 = vor.u32 %v1296, %v1299
      %v1301 = vrot.slane %v1300, 4
      %v1303 = vshll.u32 %v1051, 16
      %v1305 = vrot.slane %v1303, 5
      %v1306 = vsel %vm1100, %v1301, %v1305
      %v1307 = vshrl.u32 %v1051, 16
      %v1309 = vrot.slane %v1307, 4
      %v1310 = vor.u32 %v1309, %v1305
      %v1311 = vrot.slane %v1310, 4
      %v1313 = vshll.u32 %v1090, 16
      %v1315 = vrot.slane %v1313, 5
      %v1316 = vsel %vm1100, %v1311, %v1315
      %v1318 = vshrl.u32 %v1052, 16
      %v1320 = vrot.slane %v1318, 4
      %v1321 = vshll.u32 %v1052, 16
      %v1323 = vrot.slane %v1321, 5
      %v1324 = vor.u32 %v1320, %v1323
      %v1325 = vrot.slane %v1324, 4
      %v1327 = vshll.u32 %v1053, 16
      %v1329 = vrot.slane %v1327, 5
      %v1330 = vsel %vm1100, %v1325, %v1329
      %v1331 = vshrl.u32 %v1053, 16
      %v1333 = vrot.slane %v1331, 4
      %v1334 = vor.u32 %v1333, %v1329
      %v1335 = vrot.slane %v1334, 4
      %v1337 = vshll.u32 %v1091, 16
      %v1339 = vrot.slane %v1337, 5
      %v1340 = vsel %vm1100, %v1335, %v1339
      %v1342 = vshrl.u32 %v1054, 16
      %v1344 = vrot.slane %v1342, 4
      %v1345 = vshll.u32 %v1054, 16
      %v1347 = vrot.slane %v1345, 5
      %v1348 = vor.u32 %v1344, %v1347
      %v1349 = vrot.slane %v1348, 4
      %v1351 = vshll.u32 %v1055, 16
      %v1353 = vrot.slane %v1351, 5
      %v1354 = vsel %vm1100, %v1349, %v1353
      %v1355 = vshrl.u32 %v1055, 16
      %v1357 = vrot.slane %v1355, 4
      %v1358 = vor.u32 %v1357, %v1353
      %v1359 = vrot.slane %v1358, 4
      %v1361 = vshll.u32 %v1092, 16
      %v1363 = vrot.slane %v1361, 5
      %v1364 = vsel %vm1100, %v1359, %v1363
      %v1366 = vshrl.u32 %v1056, 16
      %v1368 = vrot.slane %v1366, 4
      %v1369 = vshll.u32 %v1056, 16
      %v1371 = vrot.slane %v1369, 5
      %v1372 = vor.u32 %v1368, %v1371
      %v1373 = vrot.slane %v1372, 4
      %v1375 = vshll.u32 %v1057, 16
      %v1377 = vrot.slane %v1375, 5
      %v1378 = vsel %vm1100, %v1373, %v1377
      %v1379 = vshrl.u32 %v1057, 16
      %v1381 = vrot.slane %v1379, 4
      %v1382 = vor.u32 %v1381, %v1377
      %v1383 = vrot.slane %v1382, 4
      %v1385 = vshll.u32 %v1093, 16
      %v1387 = vrot.slane %v1385, 5
      %v1388 = vsel %vm1100, %v1383, %v1387
      %v1390 = vshrl.u32 %v1058, 16
      %v1392 = vrot.slane %v1390, 4
      %v1393 = vshll.u32 %v1058, 16
      %v1395 = vrot.slane %v1393, 5
      %v1396 = vor.u32 %v1392, %v1395
      %v1397 = vrot.slane %v1396, 4
      %v1399 = vshll.u32 %v1059, 16
      %v1401 = vrot.slane %v1399, 5
      %v1402 = vsel %vm1100, %v1397, %v1401
      %v1403 = vshrl.u32 %v1059, 16
      %v1405 = vrot.slane %v1403, 4
      %v1406 = vor.u32 %v1405, %v1401
      %v1407 = vrot.slane %v1406, 4
      %v1409 = vshll.u32 %v1094, 16
      %v1411 = vrot.slane %v1409, 5
      %v1412 = vsel %vm1100, %v1407, %v1411
      %v1414 = vshrl.u32 %v1060, 16
      %v1416 = vrot.slane %v1414, 4
      %v1417 = vshll.u32 %v1060, 16
      %v1419 = vrot.slane %v1417, 5
      %v1420 = vor.u32 %v1416, %v1419
      %v1421 = vrot.slane %v1420, 4
      %v1423 = vshll.u32 %v1061, 16
      %v1425 = vrot.slane %v1423, 5
      %v1426 = vsel %vm1100, %v1421, %v1425
      %v1427 = vshrl.u32 %v1061, 16
      %v1429 = vrot.slane %v1427, 4
      %v1430 = vor.u32 %v1429, %v1425
      %v1431 = vrot.slane %v1430, 4
      %v1433 = vshll.u32 %v1095, 16
      %v1435 = vrot.slane %v1433, 5
      %v1436 = vsel %vm1100, %v1431, %v1435
      %v1438 = vshrl.u32 %v1062, 16
      %v1440 = vrot.slane %v1438, 4
      %v1441 = vshll.u32 %v1062, 16
      %v1443 = vrot.slane %v1441, 5
      %v1444 = vor.u32 %v1440, %v1443
      %v1445 = vrot.slane %v1444, 4
      %v1447 = vshll.u32 %v1063, 16
      %v1449 = vrot.slane %v1447, 5
      %v1450 = vsel %vm1100, %v1445, %v1449
      %v1451 = vshrl.u32 %v1063, 16
      %v1453 = vrot.slane %v1451, 4
      %v1454 = vor.u32 %v1453, %v1449
      %v1455 = vrot.slane %v1454, 4
      %v1457 = vshll.u32 %v1096, 16
      %v1459 = vrot.slane %v1457, 5
      %v1460 = vsel %vm1100, %v1455, %v1459
      %v1462 = vshrl.u32 %v1064, 16
      %v1464 = vrot.slane %v1462, 4
      %v1465 = vshll.u32 %v1064, 16
      %v1467 = vrot.slane %v1465, 5
      %v1468 = vor.u32 %v1464, %v1467
      %v1469 = vrot.slane %v1468, 4
      %v1471 = vshll.u32 %v1065, 16
      %v1473 = vrot.slane %v1471, 5
      %v1474 = vsel %vm1100, %v1469, %v1473
      %v1475 = vshrl.u32 %v1065, 16
      %v1477 = vrot.slane %v1475, 4
      %v1478 = vor.u32 %v1477, %v1473
      %v1479 = vrot.slane %v1478, 4
      %v1481 = vshll.u32 %v1097, 16
      %v1483 = vrot.slane %v1481, 5
      %v1484 = vsel %vm1100, %v1479, %v1483
      %s1485 = scalar_lea.vmem %s3, 64
      %v1486 = vld [vmem:[%s1485] sm:$0xf]
      %v1487 = vld [vmem:[%s1485 + $0x4] sm:$0xf]
      %v1488 = vld [vmem:[%s1485 + $0x8] sm:$0xf]
      %v1489 = vld [vmem:[%s1485 + $0xc] sm:$0xf]
      %v1490 = vld [vmem:[%s1485 + $0x10] sm:$0xf]
      %v1491 = vld [vmem:[%s1485 + $0x14] sm:$0xf]
      %v1492 = vld [vmem:[%s1485 + $0x18] sm:$0xf]
      %v1493 = vld [vmem:[%s1485 + $0x1c] sm:$0xf]
      %v1494 = vld [vmem:[%s1485 + $0x20] sm:$0xf]
      %v1495 = vld [vmem:[%s1485 + $0x24] sm:$0xf]
      %v1496 = vld [vmem:[%s1485 + $0x28] sm:$0xf]
      %v1497 = vld [vmem:[%s1485 + $0x2c] sm:$0xf]
      %v1498 = vld [vmem:[%s1485 + $0x30] sm:$0xf]
      %v1499 = vld [vmem:[%s1485 + $0x34] sm:$0xf]
      %v1500 = vld [vmem:[%s1485 + $0x38] sm:$0xf]
      %v1501 = vld [vmem:[%s1485 + $0x3c] sm:$0xf]
      %v1502 = vunpack.c.l.b16 %v1114
      %v1503 = vunpack.c.l.b16 %v1124
      %v1504 = vunpack.c.l.b16 %v1138
      %v1505 = vunpack.c.l.b16 %v1148
      %v1506 = vunpack.c.l.b16 %v1162
      %v1507 = vunpack.c.l.b16 %v1172
      %v1508 = vunpack.c.l.b16 %v1186
      %v1509 = vunpack.c.l.b16 %v1196
      %v1510 = vunpack.c.l.b16 %v1210
      %v1511 = vunpack.c.l.b16 %v1220
      %v1512 = vunpack.c.l.b16 %v1234
      %v1513 = vunpack.c.l.b16 %v1244
      %v1514 = vunpack.c.l.b16 %v1258
      %v1515 = vunpack.c.l.b16 %v1268
      %v1516 = vunpack.c.l.b16 %v1282
      %v1517 = vunpack.c.l.b16 %v1292
      %v1518 = vunpack.c.l.b16 %v1306
      %v1519 = vunpack.c.l.b16 %v1316
      %v1520 = vunpack.c.l.b16 %v1330
      %v1521 = vunpack.c.l.b16 %v1340
      %v1522 = vunpack.c.l.b16 %v1354
      %v1523 = vunpack.c.l.b16 %v1364
      %v1524 = vunpack.c.l.b16 %v1378
      %v1525 = vunpack.c.l.b16 %v1388
      %v1526 = vunpack.c.l.b16 %v1402
      %v1527 = vunpack.c.l.b16 %v1412
      %v1528 = vunpack.c.l.b16 %v1426
      %v1529 = vunpack.c.l.b16 %v1436
      %v1530 = vunpack.c.l.b16 %v1450
      %v1531 = vunpack.c.l.b16 %v1460
      %v1532 = vunpack.c.l.b16 %v1474
      %v1533 = vunpack.c.l.b16 %v1484
      %v1534 = vpack.c.b16 %v1503, %v1502
      %v1535 = vpack.c.b16 %v1505, %v1504
      %v1536 = vpack.c.b16 %v1507, %v1506
      %v1537 = vpack.c.b16 %v1509, %v1508
      %v1538 = vpack.c.b16 %v1511, %v1510
      %v1539 = vpack.c.b16 %v1513, %v1512
      %v1540 = vpack.c.b16 %v1515, %v1514
      %v1541 = vpack.c.b16 %v1517, %v1516
      %v1542 = vpack.c.b16 %v1519, %v1518
      %v1543 = vpack.c.b16 %v1521, %v1520
      %v1544 = vpack.c.b16 %v1523, %v1522
      %v1545 = vpack.c.b16 %v1525, %v1524
      %v1546 = vpack.c.b16 %v1527, %v1526
      %v1547 = vpack.c.b16 %v1529, %v1528
      %v1548 = vpack.c.b16 %v1531, %v1530
      %v1549 = vpack.c.b16 %v1533, %v1532
      %v1582 = vunpack.c.l.b16 %v1486
      %v1583 = vunpack.c.l.b16 %v1487
      %v1584 = vunpack.c.l.b16 %v1488
      %v1585 = vunpack.c.l.b16 %v1489
      %v1586 = vunpack.c.l.b16 %v1490
      %v1587 = vunpack.c.l.b16 %v1491
      %v1588 = vunpack.c.l.b16 %v1492
      %v1589 = vunpack.c.l.b16 %v1493
      %v1590 = vunpack.c.l.b16 %v1494
      %v1591 = vunpack.c.l.b16 %v1495
      %v1592 = vunpack.c.l.b16 %v1496
      %v1593 = vunpack.c.l.b16 %v1497
      %v1594 = vunpack.c.l.b16 %v1498
      %v1595 = vunpack.c.l.b16 %v1499
      %v1596 = vunpack.c.l.b16 %v1500
      %v1597 = vunpack.c.l.b16 %v1501
      %v1598 = vpack.c.b16 %v1583, %v1582
      %v1599 = vpack.c.b16 %v1585, %v1584
      %v1600 = vpack.c.b16 %v1587, %v1586
      %v1601 = vpack.c.b16 %v1589, %v1588
      %v1602 = vpack.c.b16 %v1591, %v1590
      %v1603 = vpack.c.b16 %v1593, %v1592
      %v1604 = vpack.c.b16 %v1595, %v1594
      %v1605 = vpack.c.b16 %v1597, %v1596
      %1614 = vmatprep.subr.bf16.mxu0 0
      %1615 = vmatpush1.bf16.msra.mxu0 %v1598
      %1616 = vmatprep.subr.bf16.mxu0 0
      %1617 = vmatpush1.bf16.msra.mxu0 %v1599
      %1618 = vmatprep.subr.bf16.mxu0 0
      %1619 = vmatpush1.bf16.msra.mxu0 %v1600
      %1620 = vmatprep.subr.bf16.mxu0 0
      %1621 = vmatpush1.bf16.msra.mxu0 %v1601
      %1622 = vmatprep.subr.bf16.mxu0 0
      %1623 = vmatpush1.bf16.msra.mxu0 %v1602
      %1624 = vmatprep.subr.bf16.mxu0 0
      %1625 = vmatpush1.bf16.msra.mxu0 %v1603
      %1626 = vmatprep.subr.bf16.mxu0 0
      %1627 = vmatpush1.bf16.msra.mxu0 %v1604
      %1628 = vmatprep.subr.bf16.mxu0 0
      %1629 = vmatpush1.bf16.msra.mxu0 %v1605
      %1630 = vmatprep.subr.bf16.mxu0 0
      %1631 = vmatpush1.bf16.msra.mxu0 0
      %1632 = vmatprep.subr.bf16.mxu0 0
      %1633 = vmatpush1.bf16.msra.mxu0 0
      %1634 = vmatprep.subr.bf16.mxu0 0
      %1635 = vmatpush1.bf16.msra.mxu0 0
      %1636 = vmatprep.subr.bf16.mxu0 0
      %1637 = vmatpush1.bf16.msra.mxu0 0
      %1638 = vmatprep.subr.bf16.mxu0 0
      %1639 = vmatpush1.bf16.msra.mxu0 0
      %1640 = vmatprep.subr.bf16.mxu0 0
      %1641 = vmatpush1.bf16.msra.mxu0 0
      %1642 = vmatprep.subr.bf16.mxu0 0
      %1643 = vmatpush1.bf16.msra.mxu0 0
      %1644 = vmatprep.subr.bf16.mxu0 0
      %1645 = vmatpush1.bf16.msra.mxu0 0
      %1646 = vmatprep.mubr.bf16.mxu0 0
      %1647 = vmatmul.mubr.bf16.gmra.mrb[0].mxu0 %v1534
      %v1648 = vpop.f32.mrb[0].mxu0
      %v1649 = vadd.f32 0.0, %v1648
      %v1650 = vpop.f32.mrb[0].mxu0
      %v1651 = vpop.f32.mrb[0].mxu0
      %v1652 = vadd.f32 0.0, %v1651
      %v1653 = vpop.f32.mrb[0].mxu0
      %1654 = vmatprep.mubr.bf16.mxu0 0
      %1655 = vmatmul.mubr.bf16.gmra.mrb[0].mxu0 %v1535
      %v1656 = vpop.f32.mrb[0].mxu0
      %v1657 = vadd.f32 0.0, %v1656
      %v1658 = vpop.f32.mrb[0].mxu0
      %v1659 = vpop.f32.mrb[0].mxu0
      %v1660 = vadd.f32 0.0, %v1659
      %v1661 = vpop.f32.mrb[0].mxu0
      %1662 = vmatprep.mubr.bf16.mxu0 0
      %1663 = vmatmul.mubr.bf16.gmra.mrb[0].mxu0 %v1536
      %v1664 = vpop.f32.mrb[0].mxu0
      %v1665 = vadd.f32 0.0, %v1664
      %v1666 = vpop.f32.mrb[0].mxu0
      %v1667 = vpop.f32.mrb[0].mxu0
      %v1668 = vadd.f32 0.0, %v1667
      %v1669 = vpop.f32.mrb[0].mxu0
      %1670 = vmatprep.mubr.bf16.mxu0 0
      %1671 = vmatmul.mubr.bf16.gmra.mrb[0].mxu0 %v1537
      %v1672 = vpop.f32.mrb[0].mxu0
      %v1673 = vadd.f32 0.0, %v1672
      %v1674 = vpop.f32.mrb[0].mxu0
      %v1675 = vpop.f32.mrb[0].mxu0
      %v1676 = vadd.f32 0.0, %v1675
      %v1677 = vpop.f32.mrb[0].mxu0
      %1678 = vmatprep.mubr.bf16.mxu0 0
      %1679 = vmatmul.mubr.bf16.gmra.mrb[0].mxu0 %v1538
      %v1680 = vpop.f32.mrb[0].mxu0
      %v1681 = vadd.f32 0.0, %v1680
      %v1682 = vpop.f32.mrb[0].mxu0
      %v1683 = vpop.f32.mrb[0].mxu0
      %v1684 = vadd.f32 0.0, %v1683
      %v1685 = vpop.f32.mrb[0].mxu0
      %1686 = vmatprep.mubr.bf16.mxu0 0
      %1687 = vmatmul.mubr.bf16.gmra.mrb[0].mxu0 %v1539
      %v1688 = vpop.f32.mrb[0].mxu0
      %v1689 = vadd.f32 0.0, %v1688
      %v1690 = vpop.f32.mrb[0].mxu0
      %v1691 = vpop.f32.mrb[0].mxu0
      %v1692 = vadd.f32 0.0, %v1691
      %v1693 = vpop.f32.mrb[0].mxu0
      %1694 = vmatprep.mubr.bf16.mxu0 0
      %1695 = vmatmul.mubr.bf16.gmra.mrb[0].mxu0 %v1540
      %v1696 = vpop.f32.mrb[0].mxu0
      %v1697 = vadd.f32 0.0, %v1696
      %v1698 = vpop.f32.mrb[0].mxu0
      %v1699 = vpop.f32.mrb[0].mxu0
      %v1700 = vadd.f32 0.0, %v1699
      %v1701 = vpop.f32.mrb[0].mxu0
      %1702 = vmatprep.mubr.bf16.mxu0 0
      %1703 = vmatmul.mubr.bf16.gmra.mrb[0].mxu0 %v1541
      %v1704 = vpop.f32.mrb[0].mxu0
      %v1705 = vadd.f32 0.0, %v1704
      %v1706 = vpop.f32.mrb[0].mxu0
      %v1707 = vpop.f32.mrb[0].mxu0
      %v1708 = vadd.f32 0.0, %v1707
      %v1709 = vpop.f32.mrb[0].mxu0
      %1710 = vmatprep.mubr.bf16.mxu0 0
      %1711 = vmatmul.mubr.bf16.gmra.mrb[0].mxu0 %v1542
      %v1712 = vpop.f32.mrb[0].mxu0
      %v1713 = vadd.f32 0.0, %v1712
      %v1714 = vpop.f32.mrb[0].mxu0
      %v1715 = vpop.f32.mrb[0].mxu0
      %v1716 = vadd.f32 0.0, %v1715
      %v1717 = vpop.f32.mrb[0].mxu0
      %1718 = vmatprep.mubr.bf16.mxu0 0
      %1719 = vmatmul.mubr.bf16.gmra.mrb[0].mxu0 %v1543
      %v1720 = vpop.f32.mrb[0].mxu0
      %v1721 = vadd.f32 0.0, %v1720
      %v1722 = vpop.f32.mrb[0].mxu0
      %v1723 = vpop.f32.mrb[0].mxu0
      %v1724 = vadd.f32 0.0, %v1723
      %v1725 = vpop.f32.mrb[0].mxu0
      %1726 = vmatprep.mubr.bf16.mxu0 0
      %1727 = vmatmul.mubr.bf16.gmra.mrb[0].mxu0 %v1544
      %v1728 = vpop.f32.mrb[0].mxu0
      %v1729 = vadd.f32 0.0, %v1728
      %v1730 = vpop.f32.mrb[0].mxu0
      %v1731 = vpop.f32.mrb[0].mxu0
      %v1732 = vadd.f32 0.0, %v1731
      %v1733 = vpop.f32.mrb[0].mxu0
      %1734 = vmatprep.mubr.bf16.mxu0 0
      %1735 = vmatmul.mubr.bf16.gmra.mrb[0].mxu0 %v1545
      %v1736 = vpop.f32.mrb[0].mxu0
      %v1737 = vadd.f32 0.0, %v1736
      %v1738 = vpop.f32.mrb[0].mxu0
      %v1739 = vpop.f32.mrb[0].mxu0
      %v1740 = vadd.f32 0.0, %v1739
      %v1741 = vpop.f32.mrb[0].mxu0
      %1742 = vmatprep.mubr.bf16.mxu0 0
      %1743 = vmatmul.mubr.bf16.gmra.mrb[0].mxu0 %v1546
      %v1744 = vpop.f32.mrb[0].mxu0
      %v1745 = vadd.f32 0.0, %v1744
      %v1746 = vpop.f32.mrb[0].mxu0
      %v1747 = vpop.f32.mrb[0].mxu0
      %v1748 = vadd.f32 0.0, %v1747
      %v1749 = vpop.f32.mrb[0].mxu0
      %1750 = vmatprep.mubr.bf16.mxu0 0
      %1751 = vmatmul.mubr.bf16.gmra.mrb[0].mxu0 %v1547
      %v1752 = vpop.f32.mrb[0].mxu0
      %v1753 = vadd.f32 0.0, %v1752
      %v1754 = vpop.f32.mrb[0].mxu0
      %v1755 = vpop.f32.mrb[0].mxu0
      %v1756 = vadd.f32 0.0, %v1755
      %v1757 = vpop.f32.mrb[0].mxu0
      %1758 = vmatprep.mubr.bf16.mxu0 0
      %1759 = vmatmul.mubr.bf16.gmra.mrb[0].mxu0 %v1548
      %v1760 = vpop.f32.mrb[0].mxu0
      %v1761 = vadd.f32 0.0, %v1760
      %v1762 = vpop.f32.mrb[0].mxu0
      %v1763 = vpop.f32.mrb[0].mxu0
      %v1764 = vadd.f32 0.0, %v1763
      %v1765 = vpop.f32.mrb[0].mxu0
      %1766 = vmatprep.mubr.bf16.mxu0 0
      %1767 = vmatmul.mubr.bf16.gmra.mrb[0].mxu0 %v1549
      %v1768 = vpop.f32.mrb[0].mxu0
      %v1769 = vadd.f32 0.0, %v1768
      %v1770 = vpop.f32.mrb[0].mxu0
      %v1771 = vpop.f32.mrb[0].mxu0
      %v1772 = vadd.f32 0.0, %v1771
      %v1773 = vpop.f32.mrb[0].mxu0
      %1774 = vdwg.mxu0
      %v1807 = vunpack.c.l.b16 %v1034
      %v1808 = vunpack.c.l.b16 %v1035
      %v1809 = vunpack.c.l.b16 %v1036
      %v1810 = vunpack.c.l.b16 %v1037
      %v1811 = vunpack.c.l.b16 %v1038
      %v1812 = vunpack.c.l.b16 %v1039
      %v1813 = vunpack.c.l.b16 %v1040
      %v1814 = vunpack.c.l.b16 %v1041
      %v1815 = vunpack.c.l.b16 %v1042
      %v1816 = vunpack.c.l.b16 %v1043
      %v1817 = vunpack.c.l.b16 %v1044
      %v1818 = vunpack.c.l.b16 %v1045
      %v1819 = vunpack.c.l.b16 %v1046
      %v1820 = vunpack.c.l.b16 %v1047
      %v1821 = vunpack.c.l.b16 %v1048
      %v1822 = vunpack.c.l.b16 %v1049
      %v1823 = vunpack.c.l.b16 %v1050
      %v1824 = vunpack.c.l.b16 %v1051
      %v1825 = vunpack.c.l.b16 %v1052
      %v1826 = vunpack.c.l.b16 %v1053
      %v1827 = vunpack.c.l.b16 %v1054
      %v1828 = vunpack.c.l.b16 %v1055
      %v1829 = vunpack.c.l.b16 %v1056
      %v1830 = vunpack.c.l.b16 %v1057
      %v1831 = vunpack.c.l.b16 %v1058
      %v1832 = vunpack.c.l.b16 %v1059
      %v1833 = vunpack.c.l.b16 %v1060
      %v1834 = vunpack.c.l.b16 %v1061
      %v1835 = vunpack.c.l.b16 %v1062
      %v1836 = vunpack.c.l.b16 %v1063
      %v1837 = vunpack.c.l.b16 %v1064
      %v1838 = vunpack.c.l.b16 %v1065
      %v1839 = vpack.c.b16 %v1808, %v1807
      %v1840 = vpack.c.b16 %v1810, %v1809
      %v1841 = vpack.c.b16 %v1812, %v1811
      %v1842 = vpack.c.b16 %v1814, %v1813
      %v1843 = vpack.c.b16 %v1816, %v1815
      %v1844 = vpack.c.b16 %v1818, %v1817
      %v1845 = vpack.c.b16 %v1820, %v1819
      %v1846 = vpack.c.b16 %v1822, %v1821
      %v1847 = vpack.c.b16 %v1824, %v1823
      %v1848 = vpack.c.b16 %v1826, %v1825
      %v1849 = vpack.c.b16 %v1828, %v1827
      %v1850 = vpack.c.b16 %v1830, %v1829
      %v1851 = vpack.c.b16 %v1832, %v1831
      %v1852 = vpack.c.b16 %v1834, %v1833
      %v1853 = vpack.c.b16 %v1836, %v1835
      %v1854 = vpack.c.b16 %v1838, %v1837
      %v1887 = vunpack.c.l.b16 %v1066
      %v1888 = vunpack.c.l.b16 %v1067
      %v1889 = vunpack.c.l.b16 %v1068
      %v1890 = vunpack.c.l.b16 %v1069
      %v1891 = vunpack.c.l.b16 %v1070
      %v1892 = vunpack.c.l.b16 %v1071
      %v1893 = vunpack.c.l.b16 %v1072
      %v1894 = vunpack.c.l.b16 %v1073
      %v1895 = vunpack.c.l.b16 %v1074
      %v1896 = vunpack.c.l.b16 %v1075
      %v1897 = vunpack.c.l.b16 %v1076
      %v1898 = vunpack.c.l.b16 %v1077
      %v1899 = vunpack.c.l.b16 %v1078
      %v1900 = vunpack.c.l.b16 %v1079
      %v1901 = vunpack.c.l.b16 %v1080
      %v1902 = vunpack.c.l.b16 %v1081
      %v1903 = vpack.c.b16 %v1888, %v1887
      %v1904 = vpack.c.b16 %v1890, %v1889
      %v1905 = vpack.c.b16 %v1892, %v1891
      %v1906 = vpack.c.b16 %v1894, %v1893
      %v1907 = vpack.c.b16 %v1896, %v1895
      %v1908 = vpack.c.b16 %v1898, %v1897
      %v1909 = vpack.c.b16 %v1900, %v1899
      %v1910 = vpack.c.b16 %v1902, %v1901
      %1919 = vmatprep.subr.bf16.mxu0 0
      %1920 = vmatpush1.bf16.msra.mxu0 %v1903
      %1921 = vmatprep.subr.bf16.mxu0 0
      %1922 = vmatpush1.bf16.msra.mxu0 %v1904
      %1923 = vmatprep.subr.bf16.mxu0 0
      %1924 = vmatpush1.bf16.msra.mxu0 %v1905
      %1925 = vmatprep.subr.bf16.mxu0 0
      %1926 = vmatpush1.bf16.msra.mxu0 %v1906
      %1927 = vmatprep.subr.bf16.mxu0 0
      %1928 = vmatpush1.bf16.msra.mxu0 %v1907
      %1929 = vmatprep.subr.bf16.mxu0 0
      %1930 = vmatpush1.bf16.msra.mxu0 %v1908
      %1931 = vmatprep.subr.bf16.mxu0 0
      %1932 = vmatpush1.bf16.msra.mxu0 %v1909
      %1933 = vmatprep.subr.bf16.mxu0 0
      %1934 = vmatpush1.bf16.msra.mxu0 %v1910
      %1935 = vmatprep.subr.bf16.mxu0 0
      %1936 = vmatpush1.bf16.msra.mxu0 0
      %1937 = vmatprep.subr.bf16.mxu0 0
      %1938 = vmatpush1.bf16.msra.mxu0 0
      %1939 = vmatprep.subr.bf16.mxu0 0
      %1940 = vmatpush1.bf16.msra.mxu0 0
      %1941 = vmatprep.subr.bf16.mxu0 0
      %1942 = vmatpush1.bf16.msra.mxu0 0
      %1943 = vmatprep.subr.bf16.mxu0 0
      %1944 = vmatpush1.bf16.msra.mxu0 0
      %1945 = vmatprep.subr.bf16.mxu0 0
      %1946 = vmatpush1.bf16.msra.mxu0 0
      %1947 = vmatprep.subr.bf16.mxu0 0
      %1948 = vmatpush1.bf16.msra.mxu0 0
      %1949 = vmatprep.subr.bf16.mxu0 0
      %1950 = vmatpush1.bf16.msra.mxu0 0
      %1951 = vmatprep.mubr.bf16.mxu0 0
      %1952 = vmatmul.mubr.bf16.gmra.mrb[0].mxu0 %v1839
      %v1953 = vpop.f32.mrb[0].mxu0
      %v1954 = vadd.f32 %v1649, %v1953
      %v1955 = vpop.f32.mrb[0].mxu0
      %v1956 = vpop.f32.mrb[0].mxu0
      %v1957 = vadd.f32 %v1652, %v1956
      %v1958 = vpop.f32.mrb[0].mxu0
      %1959 = vmatprep.mubr.bf16.mxu0 0
      %1960 = vmatmul.mubr.bf16.gmra.mrb[0].mxu0 %v1840
      %v1961 = vpop.f32.mrb[0].mxu0
      %v1962 = vadd.f32 %v1657, %v1961
      %v1963 = vpop.f32.mrb[0].mxu0
      %v1964 = vpop.f32.mrb[0].mxu0
      %v1965 = vadd.f32 %v1660, %v1964
      %v1966 = vpop.f32.mrb[0].mxu0
      %1967 = vmatprep.mubr.bf16.mxu0 0
      %1968 = vmatmul.mubr.bf16.gmra.mrb[0].mxu0 %v1841
      %v1969 = vpop.f32.mrb[0].mxu0
      %v1970 = vadd.f32 %v1665, %v1969
      %v1971 = vpop.f32.mrb[0].mxu0
      %v1972 = vpop.f32.mrb[0].mxu0
      %v1973 = vadd.f32 %v1668, %v1972
      %v1974 = vpop.f32.mrb[0].mxu0
      %1975 = vmatprep.mubr.bf16.mxu0 0
      %1976 = vmatmul.mubr.bf16.gmra.mrb[0].mxu0 %v1842
      %v1977 = vpop.f32.mrb[0].mxu0
      %v1978 = vadd.f32 %v1673, %v1977
      %v1979 = vpop.f32.mrb[0].mxu0
      %v1980 = vpop.f32.mrb[0].mxu0
      %v1981 = vadd.f32 %v1676, %v1980
      %v1982 = vpop.f32.mrb[0].mxu0
      %1983 = vmatprep.mubr.bf16.mxu0 0
      %1984 = vmatmul.mubr.bf16.gmra.mrb[0].mxu0 %v1843
      %v1985 = vpop.f32.mrb[0].mxu0
      %v1986 = vadd.f32 %v1681, %v1985
      %v1987 = vpop.f32.mrb[0].mxu0
      %v1988 = vpop.f32.mrb[0].mxu0
      %v1989 = vadd.f32 %v1684, %v1988
      %v1990 = vpop.f32.mrb[0].mxu0
      %1991 = vmatprep.mubr.bf16.mxu0 0
      %1992 = vmatmul.mubr.bf16.gmra.mrb[0].mxu0 %v1844
      %v1993 = vpop.f32.mrb[0].mxu0
      %v1994 = vadd.f32 %v1689, %v1993
      %v1995 = vpop.f32.mrb[0].mxu0
      %v1996 = vpop.f32.mrb[0].mxu0
      %v1997 = vadd.f32 %v1692, %v1996
      %v1998 = vpop.f32.mrb[0].mxu0
      %1999 = vmatprep.mubr.bf16.mxu0 0
      %2000 = vmatmul.mubr.bf16.gmra.mrb[0].mxu0 %v1845
      %v2001 = vpop.f32.mrb[0].mxu0
      %v2002 = vadd.f32 %v1697, %v2001
      %v2003 = vpop.f32.mrb[0].mxu0
      %v2004 = vpop.f32.mrb[0].mxu0
      %v2005 = vadd.f32 %v1700, %v2004
      %v2006 = vpop.f32.mrb[0].mxu0
      %2007 = vmatprep.mubr.bf16.mxu0 0
      %2008 = vmatmul.mubr.bf16.gmra.mrb[0].mxu0 %v1846
      %v2009 = vpop.f32.mrb[0].mxu0
      %v2010 = vadd.f32 %v1705, %v2009
      %v2011 = vpop.f32.mrb[0].mxu0
      %v2012 = vpop.f32.mrb[0].mxu0
      %v2013 = vadd.f32 %v1708, %v2012
      %v2014 = vpop.f32.mrb[0].mxu0
      %2015 = vmatprep.mubr.bf16.mxu0 0
      %2016 = vmatmul.mubr.bf16.gmra.mrb[0].mxu0 %v1847
      %v2017 = vpop.f32.mrb[0].mxu0
      %v2018 = vadd.f32 %v1713, %v2017
      %v2019 = vpop.f32.mrb[0].mxu0
      %v2020 = vpop.f32.mrb[0].mxu0
      %v2021 = vadd.f32 %v1716, %v2020
      %v2022 = vpop.f32.mrb[0].mxu0
      %2023 = vmatprep.mubr.bf16.mxu0 0
      %2024 = vmatmul.mubr.bf16.gmra.mrb[0].mxu0 %v1848
      %v2025 = vpop.f32.mrb[0].mxu0
      %v2026 = vadd.f32 %v1721, %v2025
      %v2027 = vpop.f32.mrb[0].mxu0
      %v2028 = vpop.f32.mrb[0].mxu0
      %v2029 = vadd.f32 %v1724, %v2028
      %v2030 = vpop.f32.mrb[0].mxu0
      %2031 = vmatprep.mubr.bf16.mxu0 0
      %2032 = vmatmul.mubr.bf16.gmra.mrb[0].mxu0 %v1849
      %v2033 = vpop.f32.mrb[0].mxu0
      %v2034 = vadd.f32 %v1729, %v2033
      %v2035 = vpop.f32.mrb[0].mxu0
      %v2036 = vpop.f32.mrb[0].mxu0
      %v2037 = vadd.f32 %v1732, %v2036
      %v2038 = vpop.f32.mrb[0].mxu0
      %2039 = vmatprep.mubr.bf16.mxu0 0
      %2040 = vmatmul.mubr.bf16.gmra.mrb[0].mxu0 %v1850
      %v2041 = vpop.f32.mrb[0].mxu0
      %v2042 = vadd.f32 %v1737, %v2041
      %v2043 = vpop.f32.mrb[0].mxu0
      %v2044 = vpop.f32.mrb[0].mxu0
      %v2045 = vadd.f32 %v1740, %v2044
      %v2046 = vpop.f32.mrb[0].mxu0
      %2047 = vmatprep.mubr.bf16.mxu0 0
      %2048 = vmatmul.mubr.bf16.gmra.mrb[0].mxu0 %v1851
      %v2049 = vpop.f32.mrb[0].mxu0
      %v2050 = vadd.f32 %v1745, %v2049
      %v2051 = vpop.f32.mrb[0].mxu0
      %v2052 = vpop.f32.mrb[0].mxu0
      %v2053 = vadd.f32 %v1748, %v2052
      %v2054 = vpop.f32.mrb[0].mxu0
      %2055 = vmatprep.mubr.bf16.mxu0 0
      %2056 = vmatmul.mubr.bf16.gmra.mrb[0].mxu0 %v1852
      %v2057 = vpop.f32.mrb[0].mxu0
      %v2058 = vadd.f32 %v1753, %v2057
      %v2059 = vpop.f32.mrb[0].mxu0
      %v2060 = vpop.f32.mrb[0].mxu0
      %v2061 = vadd.f32 %v1756, %v2060
      %v2062 = vpop.f32.mrb[0].mxu0
      %2063 = vmatprep.mubr.bf16.mxu0 0
      %2064 = vmatmul.mubr.bf16.gmra.mrb[0].mxu0 %v1853
      %v2065 = vpop.f32.mrb[0].mxu0
      %v2066 = vadd.f32 %v1761, %v2065
      %v2067 = vpop.f32.mrb[0].mxu0
      %v2068 = vpop.f32.mrb[0].mxu0
      %v2069 = vadd.f32 %v1764, %v2068
      %v2070 = vpop.f32.mrb[0].mxu0
      %2071 = vmatprep.mubr.bf16.mxu0 0
      %2072 = vmatmul.mubr.bf16.gmra.mrb[0].mxu0 %v1854
      %v2073 = vpop.f32.mrb[0].mxu0
      %v2074 = vadd.f32 %v1769, %v2073
      %v2075 = vpop.f32.mrb[0].mxu0
      %v2076 = vpop.f32.mrb[0].mxu0
      %v2077 = vadd.f32 %v1772, %v2076
      %v2078 = vpop.f32.mrb[0].mxu0
      %2079 = vdwg.mxu0
      %v2080 = vld [vmem:[#allocation2] sm:$0xe]
      %v2081 = vld [vmem:[#allocation2 + $0xc] sm:$0xe]
      %v2082 = vld [vmem:[#allocation2 + $0x18] sm:$0xe]
      %v2083 = vld [vmem:[#allocation2 + $0x24] sm:$0xe]
      %v2084 = vld [vmem:[#allocation2 + $0x30] sm:$0xe]
      %v2085 = vld [vmem:[#allocation2 + $0x3c] sm:$0xe]
      %v2086 = vld [vmem:[#allocation2 + $0x48] sm:$0xe]
      %v2087 = vld [vmem:[#allocation2 + $0x54] sm:$0xe]
      %v2088 = vld [vmem:[#allocation2 + $0x60] sm:$0xe]
      %v2089 = vld [vmem:[#allocation2 + $0x6c] sm:$0xe]
      %v2090 = vld [vmem:[#allocation2 + $0x78] sm:$0xe]
      %v2091 = vld [vmem:[#allocation2 + $0x84] sm:$0xe]
      %v2092 = vld [vmem:[#allocation2 + $0x90] sm:$0xe]
      %v2093 = vld [vmem:[#allocation2 + $0x9c] sm:$0xe]
      %v2094 = vld [vmem:[#allocation2 + $0xa8] sm:$0xe]
      %v2095 = vld [vmem:[#allocation2 + $0xb4] sm:$0xe]
      %vm2128 = vcmask 1042432
      %vm2129 = vcmask 1046532
      %vm2130 = vmor %vm2128, %vm2129
      %v2131 = vrot.slane %v2080, 5
      %v2132 = vrot.slane %v2131, 4
      %v2133 = vrot.slane %v1035, 5
      %v2134 = vsel %vm2130, %v2132, %v2133
      %v2135 = vrot.slane %v2133, 4
      %v2136 = vrot.slane %v1082, 5
      %v2137 = vsel %vm2130, %v2135, %v2136
      %v2138 = vrot.slane %v2081, 5
      %v2139 = vrot.slane %v2138, 4
      %v2140 = vrot.slane %v1037, 5
      %v2141 = vsel %vm2130, %v2139, %v2140
      %v2142 = vrot.slane %v2140, 4
      %v2143 = vrot.slane %v1083, 5
      %v2144 = vsel %vm2130, %v2142, %v2143
      %v2145 = vrot.slane %v2082, 5
      %v2146 = vrot.slane %v2145, 4
      %v2147 = vrot.slane %v1039, 5
      %v2148 = vsel %vm2130, %v2146, %v2147
      %v2149 = vrot.slane %v2147, 4
      %v2150 = vrot.slane %v1084, 5
      %v2151 = vsel %vm2130, %v2149, %v2150
      %v2152 = vrot.slane %v2083, 5
      %v2153 = vrot.slane %v2152, 4
      %v2154 = vrot.slane %v1041, 5
      %v2155 = vsel %vm2130, %v2153, %v2154
      %v2156 = vrot.slane %v2154, 4
      %v2157 = vrot.slane %v1085, 5
      %v2158 = vsel %vm2130, %v2156, %v2157
      %v2159 = vrot.slane %v2084, 5
      %v2160 = vrot.slane %v2159, 4
      %v2161 = vrot.slane %v1043, 5
      %v2162 = vsel %vm2130, %v2160, %v2161
      %v2163 = vrot.slane %v2161, 4
      %v2164 = vrot.slane %v1086, 5
      %v2165 = vsel %vm2130, %v2163, %v2164
      %v2166 = vrot.slane %v2085, 5
      %v2167 = vrot.slane %v2166, 4
      %v2168 = vrot.slane %v1045, 5
      %v2169 = vsel %vm2130, %v2167, %v2168
      %v2170 = vrot.slane %v2168, 4
      %v2171 = vrot.slane %v1087, 5
      %v2172 = vsel %vm2130, %v2170, %v2171
      %v2173 = vrot.slane %v2086, 5
      %v2174 = vrot.slane %v2173, 4
      %v2175 = vrot.slane %v1047, 5
      %v2176 = vsel %vm2130, %v2174, %v2175
      %v2177 = vrot.slane %v2175, 4
      %v2178 = vrot.slane %v1088, 5
      %v2179 = vsel %vm2130, %v2177, %v2178
      %v2180 = vrot.slane %v2087, 5
      %v2181 = vrot.slane %v2180, 4
      %v2182 = vrot.slane %v1049, 5
      %v2183 = vsel %vm2130, %v2181, %v2182
      %v2184 = vrot.slane %v2182, 4
      %v2185 = vrot.slane %v1089, 5
      %v2186 = vsel %vm2130, %v2184, %v2185
      %v2187 = vrot.slane %v2088, 5
      %v2188 = vrot.slane %v2187, 4
      %v2189 = vrot.slane %v1051, 5
      %v2190 = vsel %vm2130, %v2188, %v2189
      %v2191 = vrot.slane %v2189, 4
      %v2192 = vrot.slane %v1090, 5
      %v2193 = vsel %vm2130, %v2191, %v2192
      %v2194 = vrot.slane %v2089, 5
      %v2195 = vrot.slane %v2194, 4
      %v2196 = vrot.slane %v1053, 5
      %v2197 = vsel %vm2130, %v2195, %v2196
      %v2198 = vrot.slane %v2196, 4
      %v2199 = vrot.slane %v1091, 5
      %v2200 = vsel %vm2130, %v2198, %v2199
      %v2201 = vrot.slane %v2090, 5
      %v2202 = vrot.slane %v2201, 4
      %v2203 = vrot.slane %v1055, 5
      %v2204 = vsel %vm2130, %v2202, %v2203
      %v2205 = vrot.slane %v2203, 4
      %v2206 = vrot.slane %v1092, 5
      %v2207 = vsel %vm2130, %v2205, %v2206
      %v2208 = vrot.slane %v2091, 5
      %v2209 = vrot.slane %v2208, 4
      %v2210 = vrot.slane %v1057, 5
      %v2211 = vsel %vm2130, %v2209, %v2210
      %v2212 = vrot.slane %v2210, 4
      %v2213 = vrot.slane %v1093, 5
      %v2214 = vsel %vm2130, %v2212, %v2213
      %v2215 = vrot.slane %v2092, 5
      %v2216 = vrot.slane %v2215, 4
      %v2217 = vrot.slane %v1059, 5
      %v2218 = vsel %vm2130, %v2216, %v2217
      %v2219 = vrot.slane %v2217, 4
      %v2220 = vrot.slane %v1094, 5
      %v2221 = vsel %vm2130, %v2219, %v2220
      %v2222 = vrot.slane %v2093, 5
      %v2223 = vrot.slane %v2222, 4
      %v2224 = vrot.slane %v1061, 5
      %v2225 = vsel %vm2130, %v2223, %v2224
      %v2226 = vrot.slane %v2224, 4
      %v2227 = vrot.slane %v1095, 5
      %v2228 = vsel %vm2130, %v2226, %v2227
      %v2229 = vrot.slane %v2094, 5
      %v2230 = vrot.slane %v2229, 4
      %v2231 = vrot.slane %v1063, 5
      %v2232 = vsel %vm2130, %v2230, %v2231
      %v2233 = vrot.slane %v2231, 4
      %v2234 = vrot.slane %v1096, 5
      %v2235 = vsel %vm2130, %v2233, %v2234
      %v2236 = vrot.slane %v2095, 5
      %v2237 = vrot.slane %v2236, 4
      %v2238 = vrot.slane %v1065, 5
      %v2239 = vsel %vm2130, %v2237, %v2238
      %v2240 = vrot.slane %v2238, 4
      %v2241 = vrot.slane %v1097, 5
      %v2242 = vsel %vm2130, %v2240, %v2241
      %s2243 = scalar_lea.vmem %s3, 128
      %v2244 = vld [vmem:[%s2243] sm:$0xf]
      %v2245 = vld [vmem:[%s2243 + $0x4] sm:$0xf]
      %v2246 = vld [vmem:[%s2243 + $0x8] sm:$0xf]
      %v2247 = vld [vmem:[%s2243 + $0xc] sm:$0xf]
      %v2248 = vld [vmem:[%s2243 + $0x10] sm:$0xf]
      %v2249 = vld [vmem:[%s2243 + $0x14] sm:$0xf]
      %v2250 = vld [vmem:[%s2243 + $0x18] sm:$0xf]
      %v2251 = vld [vmem:[%s2243 + $0x1c] sm:$0xf]
      %v2252 = vld [vmem:[%s2243 + $0x20] sm:$0xf]
      %v2253 = vld [vmem:[%s2243 + $0x24] sm:$0xf]
      %v2254 = vld [vmem:[%s2243 + $0x28] sm:$0xf]
      %v2255 = vld [vmem:[%s2243 + $0x2c] sm:$0xf]
      %v2256 = vld [vmem:[%s2243 + $0x30] sm:$0xf]
      %v2257 = vld [vmem:[%s2243 + $0x34] sm:$0xf]
      %v2258 = vld [vmem:[%s2243 + $0x38] sm:$0xf]
      %v2259 = vld [vmem:[%s2243 + $0x3c] sm:$0xf]
      %v2260 = vunpack.c.l.b16 %v2134
      %v2261 = vunpack.c.l.b16 %v2137
      %v2262 = vunpack.c.l.b16 %v2141
      %v2263 = vunpack.c.l.b16 %v2144
      %v2264 = vunpack.c.l.b16 %v2148
      %v2265 = vunpack.c.l.b16 %v2151
      %v2266 = vunpack.c.l.b16 %v2155
      %v2267 = vunpack.c.l.b16 %v2158
      %v2268 = vunpack.c.l.b16 %v2162
      %v2269 = vunpack.c.l.b16 %v2165
      %v2270 = vunpack.c.l.b16 %v2169
      %v2271 = vunpack.c.l.b16 %v2172
      %v2272 = vunpack.c.l.b16 %v2176
      %v2273 = vunpack.c.l.b16 %v2179
      %v2274 = vunpack.c.l.b16 %v2183
      %v2275 = vunpack.c.l.b16 %v2186
      %v2276 = vunpack.c.l.b16 %v2190
      %v2277 = vunpack.c.l.b16 %v2193
      %v2278 = vunpack.c.l.b16 %v2197
      %v2279 = vunpack.c.l.b16 %v2200
      %v2280 = vunpack.c.l.b16 %v2204
      %v2281 = vunpack.c.l.b16 %v2207
      %v2282 = vunpack.c.l.b16 %v2211
      %v2283 = vunpack.c.l.b16 %v2214
      %v2284 = vunpack.c.l.b16 %v2218
      %v2285 = vunpack.c.l.b16 %v2221
      %v2286 = vunpack.c.l.b16 %v2225
      %v2287 = vunpack.c.l.b16 %v2228
      %v2288 = vunpack.c.l.b16 %v2232
      %v2289 = vunpack.c.l.b16 %v2235
      %v2290 = vunpack.c.l.b16 %v2239
      %v2291 = vunpack.c.l.b16 %v2242
      %v2292 = vpack.c.b16 %v2261, %v2260
      %v2293 = vpack.c.b16 %v2263, %v2262
      %v2294 = vpack.c.b16 %v2265, %v2264
      %v2295 = vpack.c.b16 %v2267, %v2266
      %v2296 = vpack.c.b16 %v2269, %v2268
      %v2297 = vpack.c.b16 %v2271, %v2270
      %v2298 = vpack.c.b16 %v2273, %v2272
      %v2299 = vpack.c.b16 %v2275, %v2274
      %v2300 = vpack.c.b16 %v2277, %v2276
      %v2301 = vpack.c.b16 %v2279, %v2278
      %v2302 = vpack.c.b16 %v2281, %v2280
      %v2303 = vpack.c.b16 %v2283, %v2282
      %v2304 = vpack.c.b16 %v2285, %v2284
      %v2305 = vpack.c.b16 %v2287, %v2286
      %v2306 = vpack.c.b16 %v2289, %v2288
      %v2307 = vpack.c.b16 %v2291, %v2290
      %v2340 = vunpack.c.l.b16 %v2244
      %v2341 = vunpack.c.l.b16 %v2245
      %v2342 = vunpack.c.l.b16 %v2246
      %v2343 = vunpack.c.l.b16 %v2247
      %v2344 = vunpack.c.l.b16 %v2248
      %v2345 = vunpack.c.l.b16 %v2249
      %v2346 = vunpack.c.l.b16 %v2250
      %v2347 = vunpack.c.l.b16 %v2251
      %v2348 = vunpack.c.l.b16 %v2252
      %v2349 = vunpack.c.l.b16 %v2253
      %v2350 = vunpack.c.l.b16 %v2254
      %v2351 = vunpack.c.l.b16 %v2255
      %v2352 = vunpack.c.l.b16 %v2256
      %v2353 = vunpack.c.l.b16 %v2257
      %v2354 = vunpack.c.l.b16 %v2258
      %v2355 = vunpack.c.l.b16 %v2259
      %v2356 = vpack.c.b16 %v2341, %v2340
      %v2357 = vpack.c.b16 %v2343, %v2342
      %v2358 = vpack.c.b16 %v2345, %v2344
      %v2359 = vpack.c.b16 %v2347, %v2346
      %v2360 = vpack.c.b16 %v2349, %v2348
      %v2361 = vpack.c.b16 %v2351, %v2350
      %v2362 = vpack.c.b16 %v2353, %v2352
      %v2363 = vpack.c.b16 %v2355, %v2354
      %2372 = vmatprep.subr.bf16.mxu0 0
      %2373 = vmatpush1.bf16.msra.mxu0 %v2356
      %2374 = vmatprep.subr.bf16.mxu0 0
      %2375 = vmatpush1.bf16.msra.mxu0 %v2357
      %2376 = vmatprep.subr.bf16.mxu0 0
      %2377 = vmatpush1.bf16.msra.mxu0 %v2358
      %2378 = vmatprep.subr.bf16.mxu0 0
      %2379 = vmatpush1.bf16.msra.mxu0 %v2359
      %2380 = vmatprep.subr.bf16.mxu0 0
      %2381 = vmatpush1.bf16.msra.mxu0 %v2360
      %2382 = vmatprep.subr.bf16.mxu0 0
      %2383 = vmatpush1.bf16.msra.mxu0 %v2361
      %2384 = vmatprep.subr.bf16.mxu0 0
      %2385 = vmatpush1.bf16.msra.mxu0 %v2362
      %2386 = vmatprep.subr.bf16.mxu0 0
      %2387 = vmatpush1.bf16.msra.mxu0 %v2363
      %2388 = vmatprep.subr.bf16.mxu0 0
      %2389 = vmatpush1.bf16.msra.mxu0 0
      %2390 = vmatprep.subr.bf16.mxu0 0
      %2391 = vmatpush1.bf16.msra.mxu0 0
      %2392 = vmatprep.subr.bf16.mxu0 0
      %2393 = vmatpush1.bf16.msra.mxu0 0
      %2394 = vmatprep.subr.bf16.mxu0 0
      %2395 = vmatpush1.bf16.msra.mxu0 0
      %2396 = vmatprep.subr.bf16.mxu0 0
      %2397 = vmatpush1.bf16.msra.mxu0 0
      %2398 = vmatprep.subr.bf16.mxu0 0
      %2399 = vmatpush1.bf16.msra.mxu0 0
      %2400 = vmatprep.subr.bf16.mxu0 0
      %2401 = vmatpush1.bf16.msra.mxu0 0
      %2402 = vmatprep.subr.bf16.mxu0 0
      %2403 = vmatpush1.bf16.msra.mxu0 0
      %2404 = vmatprep.mubr.bf16.mxu0 0
      %2405 = vmatmul.mubr.bf16.gmra.mrb[0].mxu0 %v2292
      %v2406 = vpop.f32.mrb[0].mxu0
      %v2407 = vadd.f32 0.0, %v2406
      %v2408 = vpop.f32.mrb[0].mxu0
      %v2409 = vpop.f32.mrb[0].mxu0
      %v2410 = vadd.f32 0.0, %v2409
      %v2411 = vpop.f32.mrb[0].mxu0
      %2412 = vmatprep.mubr.bf16.mxu0 0
      %2413 = vmatmul.mubr.bf16.gmra.mrb[0].mxu0 %v2293
      %v2414 = vpop.f32.mrb[0].mxu0
      %v2415 = vadd.f32 0.0, %v2414
      %v2416 = vpop.f32.mrb[0].mxu0
      %v2417 = vpop.f32.mrb[0].mxu0
      %v2418 = vadd.f32 0.0, %v2417
      %v2419 = vpop.f32.mrb[0].mxu0
      %2420 = vmatprep.mubr.bf16.mxu0 0
      %2421 = vmatmul.mubr.bf16.gmra.mrb[0].mxu0 %v2294
      %v2422 = vpop.f32.mrb[0].mxu0
      %v2423 = vadd.f32 0.0, %v2422
      %v2424 = vpop.f32.mrb[0].mxu0
      %v2425 = vpop.f32.mrb[0].mxu0
      %v2426 = vadd.f32 0.0, %v2425
      %v2427 = vpop.f32.mrb[0].mxu0
      %2428 = vmatprep.mubr.bf16.mxu0 0
      %2429 = vmatmul.mubr.bf16.gmra.mrb[0].mxu0 %v2295
      %v2430 = vpop.f32.mrb[0].mxu0
      %v2431 = vadd.f32 0.0, %v2430
      %v2432 = vpop.f32.mrb[0].mxu0
      %v2433 = vpop.f32.mrb[0].mxu0
      %v2434 = vadd.f32 0.0, %v2433
      %v2435 = vpop.f32.mrb[0].mxu0
      %2436 = vmatprep.mubr.bf16.mxu0 0
      %2437 = vmatmul.mubr.bf16.gmra.mrb[0].mxu0 %v2296
      %v2438 = vpop.f32.mrb[0].mxu0
      %v2439 = vadd.f32 0.0, %v2438
      %v2440 = vpop.f32.mrb[0].mxu0
      %v2441 = vpop.f32.mrb[0].mxu0
      %v2442 = vadd.f32 0.0, %v2441
      %v2443 = vpop.f32.mrb[0].mxu0
      %2444 = vmatprep.mubr.bf16.mxu0 0
      %2445 = vmatmul.mubr.bf16.gmra.mrb[0].mxu0 %v2297
      %v2446 = vpop.f32.mrb[0].mxu0
      %v2447 = vadd.f32 0.0, %v2446
      %v2448 = vpop.f32.mrb[0].mxu0
      %v2449 = vpop.f32.mrb[0].mxu0
      %v2450 = vadd.f32 0.0, %v2449
      %v2451 = vpop.f32.mrb[0].mxu0
      %2452 = vmatprep.mubr.bf16.mxu0 0
      %2453 = vmatmul.mubr.bf16.gmra.mrb[0].mxu0 %v2298
      %v2454 = vpop.f32.mrb[0].mxu0
      %v2455 = vadd.f32 0.0, %v2454
      %v2456 = vpop.f32.mrb[0].mxu0
      %v2457 = vpop.f32.mrb[0].mxu0
      %v2458 = vadd.f32 0.0, %v2457
      %v2459 = vpop.f32.mrb[0].mxu0
      %2460 = vmatprep.mubr.bf16.mxu0 0
      %2461 = vmatmul.mubr.bf16.gmra.mrb[0].mxu0 %v2299
      %v2462 = vpop.f32.mrb[0].mxu0
      %v2463 = vadd.f32 0.0, %v2462
      %v2464 = vpop.f32.mrb[0].mxu0
      %v2465 = vpop.f32.mrb[0].mxu0
      %v2466 = vadd.f32 0.0, %v2465
      %v2467 = vpop.f32.mrb[0].mxu0
      %2468 = vmatprep.mubr.bf16.mxu0 0
      %2469 = vmatmul.mubr.bf16.gmra.mrb[0].mxu0 %v2300
      %v2470 = vpop.f32.mrb[0].mxu0
      %v2471 = vadd.f32 0.0, %v2470
      %v2472 = vpop.f32.mrb[0].mxu0
      %v2473 = vpop.f32.mrb[0].mxu0
      %v2474 = vadd.f32 0.0, %v2473
      %v2475 = vpop.f32.mrb[0].mxu0
      %2476 = vmatprep.mubr.bf16.mxu0 0
      %2477 = vmatmul.mubr.bf16.gmra.mrb[0].mxu0 %v2301
      %v2478 = vpop.f32.mrb[0].mxu0
      %v2479 = vadd.f32 0.0, %v2478
      %v2480 = vpop.f32.mrb[0].mxu0
      %v2481 = vpop.f32.mrb[0].mxu0
      %v2482 = vadd.f32 0.0, %v2481
      %v2483 = vpop.f32.mrb[0].mxu0
      %2484 = vmatprep.mubr.bf16.mxu0 0
      %2485 = vmatmul.mubr.bf16.gmra.mrb[0].mxu0 %v2302
      %v2486 = vpop.f32.mrb[0].mxu0
      %v2487 = vadd.f32 0.0, %v2486
      %v2488 = vpop.f32.mrb[0].mxu0
      %v2489 = vpop.f32.mrb[0].mxu0
      %v2490 = vadd.f32 0.0, %v2489
      %v2491 = vpop.f32.mrb[0].mxu0
      %2492 = vmatprep.mubr.bf16.mxu0 0
      %2493 = vmatmul.mubr.bf16.gmra.mrb[0].mxu0 %v2303
      %v2494 = vpop.f32.mrb[0].mxu0
      %v2495 = vadd.f32 0.0, %v2494
      %v2496 = vpop.f32.mrb[0].mxu0
      %v2497 = vpop.f32.mrb[0].mxu0
      %v2498 = vadd.f32 0.0, %v2497
      %v2499 = vpop.f32.mrb[0].mxu0
      %2500 = vmatprep.mubr.bf16.mxu0 0
      %2501 = vmatmul.mubr.bf16.gmra.mrb[0].mxu0 %v2304
      %v2502 = vpop.f32.mrb[0].mxu0
      %v2503 = vadd.f32 0.0, %v2502
      %v2504 = vpop.f32.mrb[0].mxu0
      %v2505 = vpop.f32.mrb[0].mxu0
      %v2506 = vadd.f32 0.0, %v2505
      %v2507 = vpop.f32.mrb[0].mxu0
      %2508 = vmatprep.mubr.bf16.mxu0 0
      %2509 = vmatmul.mubr.bf16.gmra.mrb[0].mxu0 %v2305
      %v2510 = vpop.f32.mrb[0].mxu0
      %v2511 = vadd.f32 0.0, %v2510
      %v2512 = vpop.f32.mrb[0].mxu0
      %v2513 = vpop.f32.mrb[0].mxu0
      %v2514 = vadd.f32 0.0, %v2513
      %v2515 = vpop.f32.mrb[0].mxu0
      %2516 = vmatprep.mubr.bf16.mxu0 0
      %2517 = vmatmul.mubr.bf16.gmra.mrb[0].mxu0 %v2306
      %v2518 = vpop.f32.mrb[0].mxu0
      %v2519 = vadd.f32 0.0, %v2518
      %v2520 = vpop.f32.mrb[0].mxu0
      %v2521 = vpop.f32.mrb[0].mxu0
      %v2522 = vadd.f32 0.0, %v2521
      %v2523 = vpop.f32.mrb[0].mxu0
      %2524 = vmatprep.mubr.bf16.mxu0 0
      %2525 = vmatmul.mubr.bf16.gmra.mrb[0].mxu0 %v2307
      %v2526 = vpop.f32.mrb[0].mxu0
      %v2527 = vadd.f32 0.0, %v2526
      %v2528 = vpop.f32.mrb[0].mxu0
      %v2529 = vpop.f32.mrb[0].mxu0
      %v2530 = vadd.f32 0.0, %v2529
      %v2531 = vpop.f32.mrb[0].mxu0
      %2532 = vdwg.mxu0
      %v2533 = vadd.f32 %v1954, %v2407
      %v2534 = vadd.f32 %v1957, %v2410
      %v2535 = vadd.f32 %v1962, %v2415
      %v2536 = vadd.f32 %v1965, %v2418
      %v2537 = vadd.f32 %v1970, %v2423
      %v2538 = vadd.f32 %v1973, %v2426
      %v2539 = vadd.f32 %v1978, %v2431
      %v2540 = vadd.f32 %v1981, %v2434
      %v2541 = vadd.f32 %v1986, %v2439
      %v2542 = vadd.f32 %v1989, %v2442
      %v2543 = vadd.f32 %v1994, %v2447
      %v2544 = vadd.f32 %v1997, %v2450
      %v2545 = vadd.f32 %v2002, %v2455
      %v2546 = vadd.f32 %v2005, %v2458
      %v2547 = vadd.f32 %v2010, %v2463
      %v2548 = vadd.f32 %v2013, %v2466
      %v2549 = vadd.f32 %v2018, %v2471
      %v2550 = vadd.f32 %v2021, %v2474
      %v2551 = vadd.f32 %v2026, %v2479
      %v2552 = vadd.f32 %v2029, %v2482
      %v2553 = vadd.f32 %v2034, %v2487
      %v2554 = vadd.f32 %v2037, %v2490
      %v2555 = vadd.f32 %v2042, %v2495
      %v2556 = vadd.f32 %v2045, %v2498
      %v2557 = vadd.f32 %v2050, %v2503
      %v2558 = vadd.f32 %v2053, %v2506
      %v2559 = vadd.f32 %v2058, %v2511
      %v2560 = vadd.f32 %v2061, %v2514
      %v2561 = vadd.f32 %v2066, %v2519
      %v2562 = vadd.f32 %v2069, %v2522
      %v2563 = vadd.f32 %v2074, %v2527
      %v2564 = vadd.f32 %v2077, %v2530
      %v2565 = vld [vmem:[%s916] sm:$0xf]
      %v2566 = vld [vmem:[%s916 + $0x4] sm:$0xf]
      %v2567 = vld [vmem:[%s916 + $0xc] sm:$0xf]
      %v2568 = vld [vmem:[%s916 + $0x10] sm:$0xf]
      %v2569 = vld [vmem:[%s916 + $0x18] sm:$0xf]
      %v2570 = vld [vmem:[%s916 + $0x1c] sm:$0xf]
      %v2571 = vld [vmem:[%s916 + $0x24] sm:$0xf]
      %v2572 = vld [vmem:[%s916 + $0x28] sm:$0xf]
      %v2573 = vld [vmem:[%s916 + $0x30] sm:$0xf]
      %v2574 = vld [vmem:[%s916 + $0x34] sm:$0xf]
      %v2575 = vld [vmem:[%s916 + $0x3c] sm:$0xf]
      %v2576 = vld [vmem:[%s916 + $0x40] sm:$0xf]
      %v2577 = vld [vmem:[%s916 + $0x48] sm:$0xf]
      %v2578 = vld [vmem:[%s916 + $0x4c] sm:$0xf]
      %v2579 = vld [vmem:[%s916 + $0x54] sm:$0xf]
      %v2580 = vld [vmem:[%s916 + $0x58] sm:$0xf]
      %v2581 = vld [vmem:[%s916 + $0x60] sm:$0xf]
      %v2582 = vld [vmem:[%s916 + $0x64] sm:$0xf]
      %v2583 = vld [vmem:[%s916 + $0x6c] sm:$0xf]
      %v2584 = vld [vmem:[%s916 + $0x70] sm:$0xf]
      %v2585 = vld [vmem:[%s916 + $0x78] sm:$0xf]
      %v2586 = vld [vmem:[%s916 + $0x7c] sm:$0xf]
      %v2587 = vld [vmem:[%s916 + $0x84] sm:$0xf]
      %v2588 = vld [vmem:[%s916 + $0x88] sm:$0xf]
      %v2589 = vld [vmem:[%s916 + $0x90] sm:$0xf]
      %v2590 = vld [vmem:[%s916 + $0x94] sm:$0xf]
      %v2591 = vld [vmem:[%s916 + $0x9c] sm:$0xf]
      %v2592 = vld [vmem:[%s916 + $0xa0] sm:$0xf]
      %v2593 = vld [vmem:[%s916 + $0xa8] sm:$0xf]
      %v2594 = vld [vmem:[%s916 + $0xac] sm:$0xf]
      %v2595 = vld [vmem:[%s916 + $0xb4] sm:$0xf]
      %v2596 = vld [vmem:[%s916 + $0xb8] sm:$0xf]
      %s2597 = scalar_lea.vmem %s3, 192
      %v2598 = vld [vmem:[%s2597] sm:$0xf]
      %v2599 = vld [vmem:[%s2597 + $0x4] sm:$0xf]
      %v2600 = vld [vmem:[%s2597 + $0x8] sm:$0xf]
      %v2601 = vld [vmem:[%s2597 + $0xc] sm:$0xf]
      %v2602 = vld [vmem:[%s2597 + $0x10] sm:$0xf]
      %v2603 = vld [vmem:[%s2597 + $0x14] sm:$0xf]
      %v2604 = vld [vmem:[%s2597 + $0x18] sm:$0xf]
      %v2605 = vld [vmem:[%s2597 + $0x1c] sm:$0xf]
      %v2606 = vld [vmem:[%s2597 + $0x20] sm:$0xf]
      %v2607 = vld [vmem:[%s2597 + $0x24] sm:$0xf]
      %v2608 = vld [vmem:[%s2597 + $0x28] sm:$0xf]
      %v2609 = vld [vmem:[%s2597 + $0x2c] sm:$0xf]
      %v2610 = vld [vmem:[%s2597 + $0x30] sm:$0xf]
      %v2611 = vld [vmem:[%s2597 + $0x34] sm:$0xf]
      %v2612 = vld [vmem:[%s2597 + $0x38] sm:$0xf]
      %v2613 = vld [vmem:[%s2597 + $0x3c] sm:$0xf]
      %v2646 = vunpack.c.l.b16 %v2565
      %v2647 = vunpack.c.l.b16 %v2566
      %v2648 = vunpack.c.l.b16 %v2567
      %v2649 = vunpack.c.l.b16 %v2568
      %v2650 = vunpack.c.l.b16 %v2569
      %v2651 = vunpack.c.l.b16 %v2570
      %v2652 = vunpack.c.l.b16 %v2571
      %v2653 = vunpack.c.l.b16 %v2572
      %v2654 = vunpack.c.l.b16 %v2573
      %v2655 = vunpack.c.l.b16 %v2574
      %v2656 = vunpack.c.l.b16 %v2575
      %v2657 = vunpack.c.l.b16 %v2576
      %v2658 = vunpack.c.l.b16 %v2577
      %v2659 = vunpack.c.l.b16 %v2578
      %v2660 = vunpack.c.l.b16 %v2579
      %v2661 = vunpack.c.l.b16 %v2580
      %v2662 = vunpack.c.l.b16 %v2581
      %v2663 = vunpack.c.l.b16 %v2582
      %v2664 = vunpack.c.l.b16 %v2583
      %v2665 = vunpack.c.l.b16 %v2584
      %v2666 = vunpack.c.l.b16 %v2585
      %v2667 = vunpack.c.l.b16 %v2586
      %v2668 = vunpack.c.l.b16 %v2587
      %v2669 = vunpack.c.l.b16 %v2588
      %v2670 = vunpack.c.l.b16 %v2589
      %v2671 = vunpack.c.l.b16 %v2590
      %v2672 = vunpack.c.l.b16 %v2591
      %v2673 = vunpack.c.l.b16 %v2592
      %v2674 = vunpack.c.l.b16 %v2593
      %v2675 = vunpack.c.l.b16 %v2594
      %v2676 = vunpack.c.l.b16 %v2595
      %v2677 = vunpack.c.l.b16 %v2596
      %v2678 = vpack.c.b16 %v2647, %v2646
      %v2679 = vpack.c.b16 %v2649, %v2648
      %v2680 = vpack.c.b16 %v2651, %v2650
      %v2681 = vpack.c.b16 %v2653, %v2652
      %v2682 = vpack.c.b16 %v2655, %v2654
      %v2683 = vpack.c.b16 %v2657, %v2656
      %v2684 = vpack.c.b16 %v2659, %v2658
      %v2685 = vpack.c.b16 %v2661, %v2660
      %v2686 = vpack.c.b16 %v2663, %v2662
      %v2687 = vpack.c.b16 %v2665, %v2664
      %v2688 = vpack.c.b16 %v2667, %v2666
      %v2689 = vpack.c.b16 %v2669, %v2668
      %v2690 = vpack.c.b16 %v2671, %v2670
      %v2691 = vpack.c.b16 %v2673, %v2672
      %v2692 = vpack.c.b16 %v2675, %v2674
      %v2693 = vpack.c.b16 %v2677, %v2676
      %v2726 = vunpack.c.l.b16 %v2598
      %v2727 = vunpack.c.l.b16 %v2599
      %v2728 = vunpack.c.l.b16 %v2600
      %v2729 = vunpack.c.l.b16 %v2601
      %v2730 = vunpack.c.l.b16 %v2602
      %v2731 = vunpack.c.l.b16 %v2603
      %v2732 = vunpack.c.l.b16 %v2604
      %v2733 = vunpack.c.l.b16 %v2605
      %v2734 = vunpack.c.l.b16 %v2606
      %v2735 = vunpack.c.l.b16 %v2607
      %v2736 = vunpack.c.l.b16 %v2608
      %v2737 = vunpack.c.l.b16 %v2609
      %v2738 = vunpack.c.l.b16 %v2610
      %v2739 = vunpack.c.l.b16 %v2611
      %v2740 = vunpack.c.l.b16 %v2612
      %v2741 = vunpack.c.l.b16 %v2613
      %v2742 = vpack.c.b16 %v2727, %v2726
      %v2743 = vpack.c.b16 %v2729, %v2728
      %v2744 = vpack.c.b16 %v2731, %v2730
      %v2745 = vpack.c.b16 %v2733, %v2732
      %v2746 = vpack.c.b16 %v2735, %v2734
      %v2747 = vpack.c.b16 %v2737, %v2736
      %v2748 = vpack.c.b16 %v2739, %v2738
      %v2749 = vpack.c.b16 %v2741, %v2740
      %2758 = vmatprep.subr.bf16.mxu0 0
      %2759 = vmatpush1.bf16.msra.mxu0 %v2742
      %2760 = vmatprep.subr.bf16.mxu0 0
      %2761 = vmatpush1.bf16.msra.mxu0 %v2743
      %2762 = vmatprep.subr.bf16.mxu0 0
      %2763 = vmatpush1.bf16.msra.mxu0 %v2744
      %2764 = vmatprep.subr.bf16.mxu0 0
      %2765 = vmatpush1.bf16.msra.mxu0 %v2745
      %2766 = vmatprep.subr.bf16.mxu0 0
      %2767 = vmatpush1.bf16.msra.mxu0 %v2746
      %2768 = vmatprep.subr.bf16.mxu0 0
      %2769 = vmatpush1.bf16.msra.mxu0 %v2747
      %2770 = vmatprep.subr.bf16.mxu0 0
      %2771 = vmatpush1.bf16.msra.mxu0 %v2748
      %2772 = vmatprep.subr.bf16.mxu0 0
      %2773 = vmatpush1.bf16.msra.mxu0 %v2749
      %2774 = vmatprep.subr.bf16.mxu0 0
      %2775 = vmatpush1.bf16.msra.mxu0 0
      %2776 = vmatprep.subr.bf16.mxu0 0
      %2777 = vmatpush1.bf16.msra.mxu0 0
      %2778 = vmatprep.subr.bf16.mxu0 0
      %2779 = vmatpush1.bf16.msra.mxu0 0
      %2780 = vmatprep.subr.bf16.mxu0 0
      %2781 = vmatpush1.bf16.msra.mxu0 0
      %2782 = vmatprep.subr.bf16.mxu0 0
      %2783 = vmatpush1.bf16.msra.mxu0 0
      %2784 = vmatprep.subr.bf16.mxu0 0
      %2785 = vmatpush1.bf16.msra.mxu0 0
      %2786 = vmatprep.subr.bf16.mxu0 0
      %2787 = vmatpush1.bf16.msra.mxu0 0
      %2788 = vmatprep.subr.bf16.mxu0 0
      %2789 = vmatpush1.bf16.msra.mxu0 0
      %2790 = vmatprep.mubr.bf16.mxu0 0
      %2791 = vmatmul.mubr.bf16.gmra.mrb[0].mxu0 %v2678
      %v2792 = vpop.f32.mrb[0].mxu0
      %v2793 = vadd.f32 0.0, %v2792
      %v2794 = vpop.f32.mrb[0].mxu0
      %v2795 = vpop.f32.mrb[0].mxu0
      %v2796 = vadd.f32 0.0, %v2795
      %v2797 = vpop.f32.mrb[0].mxu0
      %2798 = vmatprep.mubr.bf16.mxu0 0
      %2799 = vmatmul.mubr.bf16.gmra.mrb[0].mxu0 %v2679
      %v2800 = vpop.f32.mrb[0].mxu0
      %v2801 = vadd.f32 0.0, %v2800
      %v2802 = vpop.f32.mrb[0].mxu0
      %v2803 = vpop.f32.mrb[0].mxu0
      %v2804 = vadd.f32 0.0, %v2803
      %v2805 = vpop.f32.mrb[0].mxu0
      %2806 = vmatprep.mubr.bf16.mxu0 0
      %2807 = vmatmul.mubr.bf16.gmra.mrb[0].mxu0 %v2680
      %v2808 = vpop.f32.mrb[0].mxu0
      %v2809 = vadd.f32 0.0, %v2808
      %v2810 = vpop.f32.mrb[0].mxu0
      %v2811 = vpop.f32.mrb[0].mxu0
      %v2812 = vadd.f32 0.0, %v2811
      %v2813 = vpop.f32.mrb[0].mxu0
      %2814 = vmatprep.mubr.bf16.mxu0 0
      %2815 = vmatmul.mubr.bf16.gmra.mrb[0].mxu0 %v2681
      %v2816 = vpop.f32.mrb[0].mxu0
      %v2817 = vadd.f32 0.0, %v2816
      %v2818 = vpop.f32.mrb[0].mxu0
      %v2819 = vpop.f32.mrb[0].mxu0
      %v2820 = vadd.f32 0.0, %v2819
      %v2821 = vpop.f32.mrb[0].mxu0
      %2822 = vmatprep.mubr.bf16.mxu0 0
      %2823 = vmatmul.mubr.bf16.gmra.mrb[0].mxu0 %v2682
      %v2824 = vpop.f32.mrb[0].mxu0
      %v2825 = vadd.f32 0.0, %v2824
      %v2826 = vpop.f32.mrb[0].mxu0
      %v2827 = vpop.f32.mrb[0].mxu0
      %v2828 = vadd.f32 0.0, %v2827
      %v2829 = vpop.f32.mrb[0].mxu0
      %2830 = vmatprep.mubr.bf16.mxu0 0
      %2831 = vmatmul.mubr.bf16.gmra.mrb[0].mxu0 %v2683
      %v2832 = vpop.f32.mrb[0].mxu0
      %v2833 = vadd.f32 0.0, %v2832
      %v2834 = vpop.f32.mrb[0].mxu0
      %v2835 = vpop.f32.mrb[0].mxu0
      %v2836 = vadd.f32 0.0, %v2835
      %v2837 = vpop.f32.mrb[0].mxu0
      %2838 = vmatprep.mubr.bf16.mxu0 0
      %2839 = vmatmul.mubr.bf16.gmra.mrb[0].mxu0 %v2684
      %v2840 = vpop.f32.mrb[0].mxu0
      %v2841 = vadd.f32 0.0, %v2840
      %v2842 = vpop.f32.mrb[0].mxu0
      %v2843 = vpop.f32.mrb[0].mxu0
      %v2844 = vadd.f32 0.0, %v2843
      %v2845 = vpop.f32.mrb[0].mxu0
      %2846 = vmatprep.mubr.bf16.mxu0 0
      %2847 = vmatmul.mubr.bf16.gmra.mrb[0].mxu0 %v2685
      %v2848 = vpop.f32.mrb[0].mxu0
      %v2849 = vadd.f32 0.0, %v2848
      %v2850 = vpop.f32.mrb[0].mxu0
      %v2851 = vpop.f32.mrb[0].mxu0
      %v2852 = vadd.f32 0.0, %v2851
      %v2853 = vpop.f32.mrb[0].mxu0
      %2854 = vmatprep.mubr.bf16.mxu0 0
      %2855 = vmatmul.mubr.bf16.gmra.mrb[0].mxu0 %v2686
      %v2856 = vpop.f32.mrb[0].mxu0
      %v2857 = vadd.f32 0.0, %v2856
      %v2858 = vpop.f32.mrb[0].mxu0
      %v2859 = vpop.f32.mrb[0].mxu0
      %v2860 = vadd.f32 0.0, %v2859
      %v2861 = vpop.f32.mrb[0].mxu0
      %2862 = vmatprep.mubr.bf16.mxu0 0
      %2863 = vmatmul.mubr.bf16.gmra.mrb[0].mxu0 %v2687
      %v2864 = vpop.f32.mrb[0].mxu0
      %v2865 = vadd.f32 0.0, %v2864
      %v2866 = vpop.f32.mrb[0].mxu0
      %v2867 = vpop.f32.mrb[0].mxu0
      %v2868 = vadd.f32 0.0, %v2867
      %v2869 = vpop.f32.mrb[0].mxu0
      %2870 = vmatprep.mubr.bf16.mxu0 0
      %2871 = vmatmul.mubr.bf16.gmra.mrb[0].mxu0 %v2688
      %v2872 = vpop.f32.mrb[0].mxu0
      %v2873 = vadd.f32 0.0, %v2872
      %v2874 = vpop.f32.mrb[0].mxu0
      %v2875 = vpop.f32.mrb[0].mxu0
      %v2876 = vadd.f32 0.0, %v2875
      %v2877 = vpop.f32.mrb[0].mxu0
      %2878 = vmatprep.mubr.bf16.mxu0 0
      %2879 = vmatmul.mubr.bf16.gmra.mrb[0].mxu0 %v2689
      %v2880 = vpop.f32.mrb[0].mxu0
      %v2881 = vadd.f32 0.0, %v2880
      %v2882 = vpop.f32.mrb[0].mxu0
      %v2883 = vpop.f32.mrb[0].mxu0
      %v2884 = vadd.f32 0.0, %v2883
      %v2885 = vpop.f32.mrb[0].mxu0
      %2886 = vmatprep.mubr.bf16.mxu0 0
      %2887 = vmatmul.mubr.bf16.gmra.mrb[0].mxu0 %v2690
      %v2888 = vpop.f32.mrb[0].mxu0
      %v2889 = vadd.f32 0.0, %v2888
      %v2890 = vpop.f32.mrb[0].mxu0
      %v2891 = vpop.f32.mrb[0].mxu0
      %v2892 = vadd.f32 0.0, %v2891
      %v2893 = vpop.f32.mrb[0].mxu0
      %2894 = vmatprep.mubr.bf16.mxu0 0
      %2895 = vmatmul.mubr.bf16.gmra.mrb[0].mxu0 %v2691
      %v2896 = vpop.f32.mrb[0].mxu0
      %v2897 = vadd.f32 0.0, %v2896
      %v2898 = vpop.f32.mrb[0].mxu0
      %v2899 = vpop.f32.mrb[0].mxu0
      %v2900 = vadd.f32 0.0, %v2899
      %v2901 = vpop.f32.mrb[0].mxu0
      %2902 = vmatprep.mubr.bf16.mxu0 0
      %2903 = vmatmul.mubr.bf16.gmra.mrb[0].mxu0 %v2692
      %v2904 = vpop.f32.mrb[0].mxu0
      %v2905 = vadd.f32 0.0, %v2904
      %v2906 = vpop.f32.mrb[0].mxu0
      %v2907 = vpop.f32.mrb[0].mxu0
      %v2908 = vadd.f32 0.0, %v2907
      %v2909 = vpop.f32.mrb[0].mxu0
      %2910 = vmatprep.mubr.bf16.mxu0 0
      %2911 = vmatmul.mubr.bf16.gmra.mrb[0].mxu0 %v2693
      %v2912 = vpop.f32.mrb[0].mxu0
      %v2913 = vadd.f32 0.0, %v2912
      %v2914 = vpop.f32.mrb[0].mxu0
      %v2915 = vpop.f32.mrb[0].mxu0
      %v2916 = vadd.f32 0.0, %v2915
      %v2917 = vpop.f32.mrb[0].mxu0
      %2918 = vdwg.mxu0
      %v2919 = vadd.f32 %v2533, %v2793
      %v2920 = vadd.f32 %v2534, %v2796
      %v2921 = vadd.f32 %v2535, %v2801
      %v2922 = vadd.f32 %v2536, %v2804
      %v2923 = vadd.f32 %v2537, %v2809
      %v2924 = vadd.f32 %v2538, %v2812
      %v2925 = vadd.f32 %v2539, %v2817
      %v2926 = vadd.f32 %v2540, %v2820
      %v2927 = vadd.f32 %v2541, %v2825
      %v2928 = vadd.f32 %v2542, %v2828
      %v2929 = vadd.f32 %v2543, %v2833
      %v2930 = vadd.f32 %v2544, %v2836
      %v2931 = vadd.f32 %v2545, %v2841
      %v2932 = vadd.f32 %v2546, %v2844
      %v2933 = vadd.f32 %v2547, %v2849
      %v2934 = vadd.f32 %v2548, %v2852
      %v2935 = vadd.f32 %v2549, %v2857
      %v2936 = vadd.f32 %v2550, %v2860
      %v2937 = vadd.f32 %v2551, %v2865
      %v2938 = vadd.f32 %v2552, %v2868
      %v2939 = vadd.f32 %v2553, %v2873
      %v2940 = vadd.f32 %v2554, %v2876
      %v2941 = vadd.f32 %v2555, %v2881
      %v2942 = vadd.f32 %v2556, %v2884
      %v2943 = vadd.f32 %v2557, %v2889
      %v2944 = vadd.f32 %v2558, %v2892
      %v2945 = vadd.f32 %v2559, %v2897
      %v2946 = vadd.f32 %v2560, %v2900
      %v2947 = vadd.f32 %v2561, %v2905
      %v2948 = vadd.f32 %v2562, %v2908
      %v2949 = vadd.f32 %v2563, %v2913
      %v2950 = vadd.f32 %v2564, %v2916
      %v2951 = vld [vmem:[%s916] sm:$0xf]
      %v2952 = vld [vmem:[%s916 + $0x4] sm:$0xf]
      %v2953 = vld [vmem:[%s916 + $0x8] sm:$0x1]
      %v2954 = vld [vmem:[%s916 + $0xc] sm:$0xf]
      %v2955 = vld [vmem:[%s916 + $0x10] sm:$0xf]
      %v2956 = vld [vmem:[%s916 + $0x14] sm:$0x1]
      %v2957 = vld [vmem:[%s916 + $0x18] sm:$0xf]
      %v2958 = vld [vmem:[%s916 + $0x1c] sm:$0xf]
      %v2959 = vld [vmem:[%s916 + $0x20] sm:$0x1]
      %v2960 = vld [vmem:[%s916 + $0x24] sm:$0xf]
      %v2961 = vld [vmem:[%s916 + $0x28] sm:$0xf]
      %v2962 = vld [vmem:[%s916 + $0x2c] sm:$0x1]
      %v2963 = vld [vmem:[%s916 + $0x30] sm:$0xf]
      %v2964 = vld [vmem:[%s916 + $0x34] sm:$0xf]
      %v2965 = vld [vmem:[%s916 + $0x38] sm:$0x1]
      %v2966 = vld [vmem:[%s916 + $0x3c] sm:$0xf]
      %v2967 = vld [vmem:[%s916 + $0x40] sm:$0xf]
      %v2968 = vld [vmem:[%s916 + $0x44] sm:$0x1]
      %v2969 = vld [vmem:[%s916 + $0x48] sm:$0xf]
      %v2970 = vld [vmem:[%s916 + $0x4c] sm:$0xf]
      %v2971 = vld [vmem:[%s916 + $0x50] sm:$0x1]
      %v2972 = vld [vmem:[%s916 + $0x54] sm:$0xf]
      %v2973 = vld [vmem:[%s916 + $0x58] sm:$0xf]
      %v2974 = vld [vmem:[%s916 + $0x5c] sm:$0x1]
      %v2975 = vld [vmem:[%s916 + $0x60] sm:$0xf]
      %v2976 = vld [vmem:[%s916 + $0x64] sm:$0xf]
      %v2977 = vld [vmem:[%s916 + $0x68] sm:$0x1]
      %v2978 = vld [vmem:[%s916 + $0x6c] sm:$0xf]
      %v2979 = vld [vmem:[%s916 + $0x70] sm:$0xf]
      %v2980 = vld [vmem:[%s916 + $0x74] sm:$0x1]
      %v2981 = vld [vmem:[%s916 + $0x78] sm:$0xf]
      %v2982 = vld [vmem:[%s916 + $0x7c] sm:$0xf]
      %v2983 = vld [vmem:[%s916 + $0x80] sm:$0x1]
      %v2984 = vld [vmem:[%s916 + $0x84] sm:$0xf]
      %v2985 = vld [vmem:[%s916 + $0x88] sm:$0xf]
      %v2986 = vld [vmem:[%s916 + $0x8c] sm:$0x1]
      %v2987 = vld [vmem:[%s916 + $0x90] sm:$0xf]
      %v2988 = vld [vmem:[%s916 + $0x94] sm:$0xf]
      %v2989 = vld [vmem:[%s916 + $0x98] sm:$0x1]
      %v2990 = vld [vmem:[%s916 + $0x9c] sm:$0xf]
      %v2991 = vld [vmem:[%s916 + $0xa0] sm:$0xf]
      %v2992 = vld [vmem:[%s916 + $0xa4] sm:$0x1]
      %v2993 = vld [vmem:[%s916 + $0xa8] sm:$0xf]
      %v2994 = vld [vmem:[%s916 + $0xac] sm:$0xf]
      %v2995 = vld [vmem:[%s916 + $0xb0] sm:$0x1]
      %v2996 = vld [vmem:[%s916 + $0xb4] sm:$0xf]
      %v2997 = vld [vmem:[%s916 + $0xb8] sm:$0xf]
      %v2998 = vld [vmem:[%s916 + $0xbc] sm:$0x1]
      %v3000 = vshrl.u32 %v2951, 16
      %v3002 = vrot.slane %v3000, 4
      %v3003 = vshll.u32 %v2951, 16
      %v3005 = vrot.slane %v3003, 5
      %v3006 = vor.u32 %v3002, %v3005
      %v3007 = vrot.slane %v3006, 4
      %v3009 = vshll.u32 %v2952, 16
      %v3011 = vrot.slane %v3009, 5
      %v3012 = vsel %vm1100, %v3007, %v3011
      %v3013 = vshrl.u32 %v2952, 16
      %v3015 = vrot.slane %v3013, 4
      %v3016 = vor.u32 %v3015, %v3011
      %v3017 = vrot.slane %v3016, 4
      %v3019 = vshll.u32 %v2953, 16
      %v3021 = vrot.slane %v3019, 5
      %v3022 = vsel %vm1100, %v3017, %v3021
      %v3024 = vshrl.u32 %v2954, 16
      %v3026 = vrot.slane %v3024, 4
      %v3027 = vshll.u32 %v2954, 16
      %v3029 = vrot.slane %v3027, 5
      %v3030 = vor.u32 %v3026, %v3029
      %v3031 = vrot.slane %v3030, 4
      %v3033 = vshll.u32 %v2955, 16
      %v3035 = vrot.slane %v3033, 5
      %v3036 = vsel %vm1100, %v3031, %v3035
      %v3037 = vshrl.u32 %v2955, 16
      %v3039 = vrot.slane %v3037, 4
      %v3040 = vor.u32 %v3039, %v3035
      %v3041 = vrot.slane %v3040, 4
      %v3043 = vshll.u32 %v2956, 16
      %v3045 = vrot.slane %v3043, 5
      %v3046 = vsel %vm1100, %v3041, %v3045
      %v3048 = vshrl.u32 %v2957, 16
      %v3050 = vrot.slane %v3048, 4
      %v3051 = vshll.u32 %v2957, 16
      %v3053 = vrot.slane %v3051, 5
      %v3054 = vor.u32 %v3050, %v3053
      %v3055 = vrot.slane %v3054, 4
      %v3057 = vshll.u32 %v2958, 16
      %v3059 = vrot.slane %v3057, 5
      %v3060 = vsel %vm1100, %v3055, %v3059
      %v3061 = vshrl.u32 %v2958, 16
      %v3063 = vrot.slane %v3061, 4
      %v3064 = vor.u32 %v3063, %v3059
      %v3065 = vrot.slane %v3064, 4
      %v3067 = vshll.u32 %v2959, 16
      %v3069 = vrot.slane %v3067, 5
      %v3070 = vsel %vm1100, %v3065, %v3069
      %v3072 = vshrl.u32 %v2960, 16
      %v3074 = vrot.slane %v3072, 4
      %v3075 = vshll.u32 %v2960, 16
      %v3077 = vrot.slane %v3075, 5
      %v3078 = vor.u32 %v3074, %v3077
      %v3079 = vrot.slane %v3078, 4
      %v3081 = vshll.u32 %v2961, 16
      %v3083 = vrot.slane %v3081, 5
      %v3084 = vsel %vm1100, %v3079, %v3083
      %v3085 = vshrl.u32 %v2961, 16
      %v3087 = vrot.slane %v3085, 4
      %v3088 = vor.u32 %v3087, %v3083
      %v3089 = vrot.slane %v3088, 4
      %v3091 = vshll.u32 %v2962, 16
      %v3093 = vrot.slane %v3091, 5
      %v3094 = vsel %vm1100, %v3089, %v3093
      %v3096 = vshrl.u32 %v2963, 16
      %v3098 = vrot.slane %v3096, 4
      %v3099 = vshll.u32 %v2963, 16
      %v3101 = vrot.slane %v3099, 5
      %v3102 = vor.u32 %v3098, %v3101
      %v3103 = vrot.slane %v3102, 4
      %v3105 = vshll.u32 %v2964, 16
      %v3107 = vrot.slane %v3105, 5
      %v3108 = vsel %vm1100, %v3103, %v3107
      %v3109 = vshrl.u32 %v2964, 16
      %v3111 = vrot.slane %v3109, 4
      %v3112 = vor.u32 %v3111, %v3107
      %v3113 = vrot.slane %v3112, 4
      %v3115 = vshll.u32 %v2965, 16
      %v3117 = vrot.slane %v3115, 5
      %v3118 = vsel %vm1100, %v3113, %v3117
      %v3120 = vshrl.u32 %v2966, 16
      %v3122 = vrot.slane %v3120, 4
      %v3123 = vshll.u32 %v2966, 16
      %v3125 = vrot.slane %v3123, 5
      %v3126 = vor.u32 %v3122, %v3125
      %v3127 = vrot.slane %v3126, 4
      %v3129 = vshll.u32 %v2967, 16
      %v3131 = vrot.slane %v3129, 5
      %v3132 = vsel %vm1100, %v3127, %v3131
      %v3133 = vshrl.u32 %v2967, 16
      %v3135 = vrot.slane %v3133, 4
      %v3136 = vor.u32 %v3135, %v3131
      %v3137 = vrot.slane %v3136, 4
      %v3139 = vshll.u32 %v2968, 16
      %v3141 = vrot.slane %v3139, 5
      %v3142 = vsel %vm1100, %v3137, %v3141
      %v3144 = vshrl.u32 %v2969, 16
      %v3146 = vrot.slane %v3144, 4
      %v3147 = vshll.u32 %v2969, 16
      %v3149 = vrot.slane %v3147, 5
      %v3150 = vor.u32 %v3146, %v3149
      %v3151 = vrot.slane %v3150, 4
      %v3153 = vshll.u32 %v2970, 16
      %v3155 = vrot.slane %v3153, 5
      %v3156 = vsel %vm1100, %v3151, %v3155
      %v3157 = vshrl.u32 %v2970, 16
      %v3159 = vrot.slane %v3157, 4
      %v3160 = vor.u32 %v3159, %v3155
      %v3161 = vrot.slane %v3160, 4
      %v3163 = vshll.u32 %v2971, 16
      %v3165 = vrot.slane %v3163, 5
      %v3166 = vsel %vm1100, %v3161, %v3165
      %v3168 = vshrl.u32 %v2972, 16
      %v3170 = vrot.slane %v3168, 4
      %v3171 = vshll.u32 %v2972, 16
      %v3173 = vrot.slane %v3171, 5
      %v3174 = vor.u32 %v3170, %v3173
      %v3175 = vrot.slane %v3174, 4
      %v3177 = vshll.u32 %v2973, 16
      %v3179 = vrot.slane %v3177, 5
      %v3180 = vsel %vm1100, %v3175, %v3179
      %v3181 = vshrl.u32 %v2973, 16
      %v3183 = vrot.slane %v3181, 4
      %v3184 = vor.u32 %v3183, %v3179
      %v3185 = vrot.slane %v3184, 4
      %v3187 = vshll.u32 %v2974, 16
      %v3189 = vrot.slane %v3187, 5
      %v3190 = vsel %vm1100, %v3185, %v3189
      %v3192 = vshrl.u32 %v2975, 16
      %v3194 = vrot.slane %v3192, 4
      %v3195 = vshll.u32 %v2975, 16
      %v3197 = vrot.slane %v3195, 5
      %v3198 = vor.u32 %v3194, %v3197
      %v3199 = vrot.slane %v3198, 4
      %v3201 = vshll.u32 %v2976, 16
      %v3203 = vrot.slane %v3201, 5
      %v3204 = vsel %vm1100, %v3199, %v3203
      %v3205 = vshrl.u32 %v2976, 16
      %v3207 = vrot.slane %v3205, 4
      %v3208 = vor.u32 %v3207, %v3203
      %v3209 = vrot.slane %v3208, 4
      %v3211 = vshll.u32 %v2977, 16
      %v3213 = vrot.slane %v3211, 5
      %v3214 = vsel %vm1100, %v3209, %v3213
      %v3216 = vshrl.u32 %v2978, 16
      %v3218 = vrot.slane %v3216, 4
      %v3219 = vshll.u32 %v2978, 16
      %v3221 = vrot.slane %v3219, 5
      %v3222 = vor.u32 %v3218, %v3221
      %v3223 = vrot.slane %v3222, 4
      %v3225 = vshll.u32 %v2979, 16
      %v3227 = vrot.slane %v3225, 5
      %v3228 = vsel %vm1100, %v3223, %v3227
      %v3229 = vshrl.u32 %v2979, 16
      %v3231 = vrot.slane %v3229, 4
      %v3232 = vor.u32 %v3231, %v3227
      %v3233 = vrot.slane %v3232, 4
      %v3235 = vshll.u32 %v2980, 16
      %v3237 = vrot.slane %v3235, 5
      %v3238 = vsel %vm1100, %v3233, %v3237
      %v3240 = vshrl.u32 %v2981, 16
      %v3242 = vrot.slane %v3240, 4
      %v3243 = vshll.u32 %v2981, 16
      %v3245 = vrot.slane %v3243, 5
      %v3246 = vor.u32 %v3242, %v3245
      %v3247 = vrot.slane %v3246, 4
      %v3249 = vshll.u32 %v2982, 16
      %v3251 = vrot.slane %v3249, 5
      %v3252 = vsel %vm1100, %v3247, %v3251
      %v3253 = vshrl.u32 %v2982, 16
      %v3255 = vrot.slane %v3253, 4
      %v3256 = vor.u32 %v3255, %v3251
      %v3257 = vrot.slane %v3256, 4
      %v3259 = vshll.u32 %v2983, 16
      %v3261 = vrot.slane %v3259, 5
      %v3262 = vsel %vm1100, %v3257, %v3261
      %v3264 = vshrl.u32 %v2984, 16
      %v3266 = vrot.slane %v3264, 4
      %v3267 = vshll.u32 %v2984, 16
      %v3269 = vrot.slane %v3267, 5
      %v3270 = vor.u32 %v3266, %v3269
      %v3271 = vrot.slane %v3270, 4
      %v3273 = vshll.u32 %v2985, 16
      %v3275 = vrot.slane %v3273, 5
      %v3276 = vsel %vm1100, %v3271, %v3275
      %v3277 = vshrl.u32 %v2985, 16
      %v3279 = vrot.slane %v3277, 4
      %v3280 = vor.u32 %v3279, %v3275
      %v3281 = vrot.slane %v3280, 4
      %v3283 = vshll.u32 %v2986, 16
      %v3285 = vrot.slane %v3283, 5
      %v3286 = vsel %vm1100, %v3281, %v3285
      %v3288 = vshrl.u32 %v2987, 16
      %v3290 = vrot.slane %v3288, 4
      %v3291 = vshll.u32 %v2987, 16
      %v3293 = vrot.slane %v3291, 5
      %v3294 = vor.u32 %v3290, %v3293
      %v3295 = vrot.slane %v3294, 4
      %v3297 = vshll.u32 %v2988, 16
      %v3299 = vrot.slane %v3297, 5
      %v3300 = vsel %vm1100, %v3295, %v3299
      %v3301 = vshrl.u32 %v2988, 16
      %v3303 = vrot.slane %v3301, 4
      %v3304 = vor.u32 %v3303, %v3299
      %v3305 = vrot.slane %v3304, 4
      %v3307 = vshll.u32 %v2989, 16
      %v3309 = vrot.slane %v3307, 5
      %v3310 = vsel %vm1100, %v3305, %v3309
      %v3312 = vshrl.u32 %v2990, 16
      %v3314 = vrot.slane %v3312, 4
      %v3315 = vshll.u32 %v2990, 16
      %v3317 = vrot.slane %v3315, 5
      %v3318 = vor.u32 %v3314, %v3317
      %v3319 = vrot.slane %v3318, 4
      %v3321 = vshll.u32 %v2991, 16
      %v3323 = vrot.slane %v3321, 5
      %v3324 = vsel %vm1100, %v3319, %v3323
      %v3325 = vshrl.u32 %v2991, 16
      %v3327 = vrot.slane %v3325, 4
      %v3328 = vor.u32 %v3327, %v3323
      %v3329 = vrot.slane %v3328, 4
      %v3331 = vshll.u32 %v2992, 16
      %v3333 = vrot.slane %v3331, 5
      %v3334 = vsel %vm1100, %v3329, %v3333
      %v3336 = vshrl.u32 %v2993, 16
      %v3338 = vrot.slane %v3336, 4
      %v3339 = vshll.u32 %v2993, 16
      %v3341 = vrot.slane %v3339, 5
      %v3342 = vor.u32 %v3338, %v3341
      %v3343 = vrot.slane %v3342, 4
      %v3345 = vshll.u32 %v2994, 16
      %v3347 = vrot.slane %v3345, 5
      %v3348 = vsel %vm1100, %v3343, %v3347
      %v3349 = vshrl.u32 %v2994, 16
      %v3351 = vrot.slane %v3349, 4
      %v3352 = vor.u32 %v3351, %v3347
      %v3353 = vrot.slane %v3352, 4
      %v3355 = vshll.u32 %v2995, 16
      %v3357 = vrot.slane %v3355, 5
      %v3358 = vsel %vm1100, %v3353, %v3357
      %v3360 = vshrl.u32 %v2996, 16
      %v3362 = vrot.slane %v3360, 4
      %v3363 = vshll.u32 %v2996, 16
      %v3365 = vrot.slane %v3363, 5
      %v3366 = vor.u32 %v3362, %v3365
      %v3367 = vrot.slane %v3366, 4
      %v3369 = vshll.u32 %v2997, 16
      %v3371 = vrot.slane %v3369, 5
      %v3372 = vsel %vm1100, %v3367, %v3371
      %v3373 = vshrl.u32 %v2997, 16
      %v3375 = vrot.slane %v3373, 4
      %v3376 = vor.u32 %v3375, %v3371
      %v3377 = vrot.slane %v3376, 4
      %v3379 = vshll.u32 %v2998, 16
      %v3381 = vrot.slane %v3379, 5
      %v3382 = vsel %vm1100, %v3377, %v3381
      %s3383 = scalar_lea.vmem %s3, 256
      %v3384 = vld [vmem:[%s3383] sm:$0xf]
      %v3385 = vld [vmem:[%s3383 + $0x4] sm:$0xf]
      %v3386 = vld [vmem:[%s3383 + $0x8] sm:$0xf]
      %v3387 = vld [vmem:[%s3383 + $0xc] sm:$0xf]
      %v3388 = vld [vmem:[%s3383 + $0x10] sm:$0xf]
      %v3389 = vld [vmem:[%s3383 + $0x14] sm:$0xf]
      %v3390 = vld [vmem:[%s3383 + $0x18] sm:$0xf]
      %v3391 = vld [vmem:[%s3383 + $0x1c] sm:$0xf]
      %v3392 = vld [vmem:[%s3383 + $0x20] sm:$0xf]
      %v3393 = vld [vmem:[%s3383 + $0x24] sm:$0xf]
      %v3394 = vld [vmem:[%s3383 + $0x28] sm:$0xf]
      %v3395 = vld [vmem:[%s3383 + $0x2c] sm:$0xf]
      %v3396 = vld [vmem:[%s3383 + $0x30] sm:$0xf]
      %v3397 = vld [vmem:[%s3383 + $0x34] sm:$0xf]
      %v3398 = vld [vmem:[%s3383 + $0x38] sm:$0xf]
      %v3399 = vld [vmem:[%s3383 + $0x3c] sm:$0xf]
      %v3400 = vunpack.c.l.b16 %v3012
      %v3401 = vunpack.c.l.b16 %v3022
      %v3402 = vunpack.c.l.b16 %v3036
      %v3403 = vunpack.c.l.b16 %v3046
      %v3404 = vunpack.c.l.b16 %v3060
      %v3405 = vunpack.c.l.b16 %v3070
      %v3406 = vunpack.c.l.b16 %v3084
      %v3407 = vunpack.c.l.b16 %v3094
      %v3408 = vunpack.c.l.b16 %v3108
      %v3409 = vunpack.c.l.b16 %v3118
      %v3410 = vunpack.c.l.b16 %v3132
      %v3411 = vunpack.c.l.b16 %v3142
      %v3412 = vunpack.c.l.b16 %v3156
      %v3413 = vunpack.c.l.b16 %v3166
      %v3414 = vunpack.c.l.b16 %v3180
      %v3415 = vunpack.c.l.b16 %v3190
      %v3416 = vunpack.c.l.b16 %v3204
      %v3417 = vunpack.c.l.b16 %v3214
      %v3418 = vunpack.c.l.b16 %v3228
      %v3419 = vunpack.c.l.b16 %v3238
      %v3420 = vunpack.c.l.b16 %v3252
      %v3421 = vunpack.c.l.b16 %v3262
      %v3422 = vunpack.c.l.b16 %v3276
      %v3423 = vunpack.c.l.b16 %v3286
      %v3424 = vunpack.c.l.b16 %v3300
      %v3425 = vunpack.c.l.b16 %v3310
      %v3426 = vunpack.c.l.b16 %v3324
      %v3427 = vunpack.c.l.b16 %v3334
      %v3428 = vunpack.c.l.b16 %v3348
      %v3429 = vunpack.c.l.b16 %v3358
      %v3430 = vunpack.c.l.b16 %v3372
      %v3431 = vunpack.c.l.b16 %v3382
      %v3432 = vpack.c.b16 %v3401, %v3400
      %v3433 = vpack.c.b16 %v3403, %v3402
      %v3434 = vpack.c.b16 %v3405, %v3404
      %v3435 = vpack.c.b16 %v3407, %v3406
      %v3436 = vpack.c.b16 %v3409, %v3408
      %v3437 = vpack.c.b16 %v3411, %v3410
      %v3438 = vpack.c.b16 %v3413, %v3412
      %v3439 = vpack.c.b16 %v3415, %v3414
      %v3440 = vpack.c.b16 %v3417, %v3416
      %v3441 = vpack.c.b16 %v3419, %v3418
      %v3442 = vpack.c.b16 %v3421, %v3420
      %v3443 = vpack.c.b16 %v3423, %v3422
      %v3444 = vpack.c.b16 %v3425, %v3424
      %v3445 = vpack.c.b16 %v3427, %v3426
      %v3446 = vpack.c.b16 %v3429, %v3428
      %v3447 = vpack.c.b16 %v3431, %v3430
      %v3480 = vunpack.c.l.b16 %v3384
      %v3481 = vunpack.c.l.b16 %v3385
      %v3482 = vunpack.c.l.b16 %v3386
      %v3483 = vunpack.c.l.b16 %v3387
      %v3484 = vunpack.c.l.b16 %v3388
      %v3485 = vunpack.c.l.b16 %v3389
      %v3486 = vunpack.c.l.b16 %v3390
      %v3487 = vunpack.c.l.b16 %v3391
      %v3488 = vunpack.c.l.b16 %v3392
      %v3489 = vunpack.c.l.b16 %v3393
      %v3490 = vunpack.c.l.b16 %v3394
      %v3491 = vunpack.c.l.b16 %v3395
      %v3492 = vunpack.c.l.b16 %v3396
      %v3493 = vunpack.c.l.b16 %v3397
      %v3494 = vunpack.c.l.b16 %v3398
      %v3495 = vunpack.c.l.b16 %v3399
      %v3496 = vpack.c.b16 %v3481, %v3480
      %v3497 = vpack.c.b16 %v3483, %v3482
      %v3498 = vpack.c.b16 %v3485, %v3484
      %v3499 = vpack.c.b16 %v3487, %v3486
      %v3500 = vpack.c.b16 %v3489, %v3488
      %v3501 = vpack.c.b16 %v3491, %v3490
      %v3502 = vpack.c.b16 %v3493, %v3492
      %v3503 = vpack.c.b16 %v3495, %v3494
      %3512 = vmatprep.subr.bf16.mxu0 0
      %3513 = vmatpush1.bf16.msra.mxu0 %v3496
      %3514 = vmatprep.subr.bf16.mxu0 0
      %3515 = vmatpush1.bf16.msra.mxu0 %v3497
      %3516 = vmatprep.subr.bf16.mxu0 0
      %3517 = vmatpush1.bf16.msra.mxu0 %v3498
      %3518 = vmatprep.subr.bf16.mxu0 0
      %3519 = vmatpush1.bf16.msra.mxu0 %v3499
      %3520 = vmatprep.subr.bf16.mxu0 0
      %3521 = vmatpush1.bf16.msra.mxu0 %v3500
      %3522 = vmatprep.subr.bf16.mxu0 0
      %3523 = vmatpush1.bf16.msra.mxu0 %v3501
      %3524 = vmatprep.subr.bf16.mxu0 0
      %3525 = vmatpush1.bf16.msra.mxu0 %v3502
      %3526 = vmatprep.subr.bf16.mxu0 0
      %3527 = vmatpush1.bf16.msra.mxu0 %v3503
      %3528 = vmatprep.subr.bf16.mxu0 0
      %3529 = vmatpush1.bf16.msra.mxu0 0
      %3530 = vmatprep.subr.bf16.mxu0 0
      %3531 = vmatpush1.bf16.msra.mxu0 0
      %3532 = vmatprep.subr.bf16.mxu0 0
      %3533 = vmatpush1.bf16.msra.mxu0 0
      %3534 = vmatprep.subr.bf16.mxu0 0
      %3535 = vmatpush1.bf16.msra.mxu0 0
      %3536 = vmatprep.subr.bf16.mxu0 0
      %3537 = vmatpush1.bf16.msra.mxu0 0
      %3538 = vmatprep.subr.bf16.mxu0 0
      %3539 = vmatpush1.bf16.msra.mxu0 0
      %3540 = vmatprep.subr.bf16.mxu0 0
      %3541 = vmatpush1.bf16.msra.mxu0 0
      %3542 = vmatprep.subr.bf16.mxu0 0
      %3543 = vmatpush1.bf16.msra.mxu0 0
      %3544 = vmatprep.mubr.bf16.mxu0 0
      %3545 = vmatmul.mubr.bf16.gmra.mrb[0].mxu0 %v3432
      %v3546 = vpop.f32.mrb[0].mxu0
      %v3547 = vadd.f32 0.0, %v3546
      %v3548 = vpop.f32.mrb[0].mxu0
      %v3549 = vpop.f32.mrb[0].mxu0
      %v3550 = vadd.f32 0.0, %v3549
      %v3551 = vpop.f32.mrb[0].mxu0
      %3552 = vmatprep.mubr.bf16.mxu0 0
      %3553 = vmatmul.mubr.bf16.gmra.mrb[0].mxu0 %v3433
      %v3554 = vpop.f32.mrb[0].mxu0
      %v3555 = vadd.f32 0.0, %v3554
      %v3556 = vpop.f32.mrb[0].mxu0
      %v3557 = vpop.f32.mrb[0].mxu0
      %v3558 = vadd.f32 0.0, %v3557
      %v3559 = vpop.f32.mrb[0].mxu0
      %3560 = vmatprep.mubr.bf16.mxu0 0
      %3561 = vmatmul.mubr.bf16.gmra.mrb[0].mxu0 %v3434
      %v3562 = vpop.f32.mrb[0].mxu0
      %v3563 = vadd.f32 0.0, %v3562
      %v3564 = vpop.f32.mrb[0].mxu0
      %v3565 = vpop.f32.mrb[0].mxu0
      %v3566 = vadd.f32 0.0, %v3565
      %v3567 = vpop.f32.mrb[0].mxu0
      %3568 = vmatprep.mubr.bf16.mxu0 0
      %3569 = vmatmul.mubr.bf16.gmra.mrb[0].mxu0 %v3435
      %v3570 = vpop.f32.mrb[0].mxu0
      %v3571 = vadd.f32 0.0, %v3570
      %v3572 = vpop.f32.mrb[0].mxu0
      %v3573 = vpop.f32.mrb[0].mxu0
      %v3574 = vadd.f32 0.0, %v3573
      %v3575 = vpop.f32.mrb[0].mxu0
      %3576 = vmatprep.mubr.bf16.mxu0 0
      %3577 = vmatmul.mubr.bf16.gmra.mrb[0].mxu0 %v3436
      %v3578 = vpop.f32.mrb[0].mxu0
      %v3579 = vadd.f32 0.0, %v3578
      %v3580 = vpop.f32.mrb[0].mxu0
      %v3581 = vpop.f32.mrb[0].mxu0
      %v3582 = vadd.f32 0.0, %v3581
      %v3583 = vpop.f32.mrb[0].mxu0
      %3584 = vmatprep.mubr.bf16.mxu0 0
      %3585 = vmatmul.mubr.bf16.gmra.mrb[0].mxu0 %v3437
      %v3586 = vpop.f32.mrb[0].mxu0
      %v3587 = vadd.f32 0.0, %v3586
      %v3588 = vpop.f32.mrb[0].mxu0
      %v3589 = vpop.f32.mrb[0].mxu0
      %v3590 = vadd.f32 0.0, %v3589
      %v3591 = vpop.f32.mrb[0].mxu0
      %3592 = vmatprep.mubr.bf16.mxu0 0
      %3593 = vmatmul.mubr.bf16.gmra.mrb[0].mxu0 %v3438
      %v3594 = vpop.f32.mrb[0].mxu0
      %v3595 = vadd.f32 0.0, %v3594
      %v3596 = vpop.f32.mrb[0].mxu0
      %v3597 = vpop.f32.mrb[0].mxu0
      %v3598 = vadd.f32 0.0, %v3597
      %v3599 = vpop.f32.mrb[0].mxu0
      %3600 = vmatprep.mubr.bf16.mxu0 0
      %3601 = vmatmul.mubr.bf16.gmra.mrb[0].mxu0 %v3439
      %v3602 = vpop.f32.mrb[0].mxu0
      %v3603 = vadd.f32 0.0, %v3602
      %v3604 = vpop.f32.mrb[0].mxu0
      %v3605 = vpop.f32.mrb[0].mxu0
      %v3606 = vadd.f32 0.0, %v3605
      %v3607 = vpop.f32.mrb[0].mxu0
      %3608 = vmatprep.mubr.bf16.mxu0 0
      %3609 = vmatmul.mubr.bf16.gmra.mrb[0].mxu0 %v3440
      %v3610 = vpop.f32.mrb[0].mxu0
      %v3611 = vadd.f32 0.0, %v3610
      %v3612 = vpop.f32.mrb[0].mxu0
      %v3613 = vpop.f32.mrb[0].mxu0
      %v3614 = vadd.f32 0.0, %v3613
      %v3615 = vpop.f32.mrb[0].mxu0
      %3616 = vmatprep.mubr.bf16.mxu0 0
      %3617 = vmatmul.mubr.bf16.gmra.mrb[0].mxu0 %v3441
      %v3618 = vpop.f32.mrb[0].mxu0
      %v3619 = vadd.f32 0.0, %v3618
      %v3620 = vpop.f32.mrb[0].mxu0
      %v3621 = vpop.f32.mrb[0].mxu0
      %v3622 = vadd.f32 0.0, %v3621
      %v3623 = vpop.f32.mrb[0].mxu0
      %3624 = vmatprep.mubr.bf16.mxu0 0
      %3625 = vmatmul.mubr.bf16.gmra.mrb[0].mxu0 %v3442
      %v3626 = vpop.f32.mrb[0].mxu0
      %v3627 = vadd.f32 0.0, %v3626
      %v3628 = vpop.f32.mrb[0].mxu0
      %v3629 = vpop.f32.mrb[0].mxu0
      %v3630 = vadd.f32 0.0, %v3629
      %v3631 = vpop.f32.mrb[0].mxu0
      %3632 = vmatprep.mubr.bf16.mxu0 0
      %3633 = vmatmul.mubr.bf16.gmra.mrb[0].mxu0 %v3443
      %v3634 = vpop.f32.mrb[0].mxu0
      %v3635 = vadd.f32 0.0, %v3634
      %v3636 = vpop.f32.mrb[0].mxu0
      %v3637 = vpop.f32.mrb[0].mxu0
      %v3638 = vadd.f32 0.0, %v3637
      %v3639 = vpop.f32.mrb[0].mxu0
      %3640 = vmatprep.mubr.bf16.mxu0 0
      %3641 = vmatmul.mubr.bf16.gmra.mrb[0].mxu0 %v3444
      %v3642 = vpop.f32.mrb[0].mxu0
      %v3643 = vadd.f32 0.0, %v3642
      %v3644 = vpop.f32.mrb[0].mxu0
      %v3645 = vpop.f32.mrb[0].mxu0
      %v3646 = vadd.f32 0.0, %v3645
      %v3647 = vpop.f32.mrb[0].mxu0
      %3648 = vmatprep.mubr.bf16.mxu0 0
      %3649 = vmatmul.mubr.bf16.gmra.mrb[0].mxu0 %v3445
      %v3650 = vpop.f32.mrb[0].mxu0
      %v3651 = vadd.f32 0.0, %v3650
      %v3652 = vpop.f32.mrb[0].mxu0
      %v3653 = vpop.f32.mrb[0].mxu0
      %v3654 = vadd.f32 0.0, %v3653
      %v3655 = vpop.f32.mrb[0].mxu0
      %3656 = vmatprep.mubr.bf16.mxu0 0
      %3657 = vmatmul.mubr.bf16.gmra.mrb[0].mxu0 %v3446
      %v3658 = vpop.f32.mrb[0].mxu0
      %v3659 = vadd.f32 0.0, %v3658
      %v3660 = vpop.f32.mrb[0].mxu0
      %v3661 = vpop.f32.mrb[0].mxu0
      %v3662 = vadd.f32 0.0, %v3661
      %v3663 = vpop.f32.mrb[0].mxu0
      %3664 = vmatprep.mubr.bf16.mxu0 0
      %3665 = vmatmul.mubr.bf16.gmra.mrb[0].mxu0 %v3447
      %v3666 = vpop.f32.mrb[0].mxu0
      %v3667 = vadd.f32 0.0, %v3666
      %v3668 = vpop.f32.mrb[0].mxu0
      %v3669 = vpop.f32.mrb[0].mxu0
      %v3670 = vadd.f32 0.0, %v3669
      %v3671 = vpop.f32.mrb[0].mxu0
      %3672 = vdwg.mxu0
      %v3673 = vadd.f32 %v2919, %v3547
      %v3674 = vadd.f32 %v2920, %v3550
      %v3675 = vadd.f32 %v2921, %v3555
      %v3676 = vadd.f32 %v2922, %v3558
      %v3677 = vadd.f32 %v2923, %v3563
      %v3678 = vadd.f32 %v2924, %v3566
      %v3679 = vadd.f32 %v2925, %v3571
      %v3680 = vadd.f32 %v2926, %v3574
      %v3681 = vadd.f32 %v2927, %v3579
      %v3682 = vadd.f32 %v2928, %v3582
      %v3683 = vadd.f32 %v2929, %v3587
      %v3684 = vadd.f32 %v2930, %v3590
      %v3685 = vadd.f32 %v2931, %v3595
      %v3686 = vadd.f32 %v2932, %v3598
      %v3687 = vadd.f32 %v2933, %v3603
      %v3688 = vadd.f32 %v2934, %v3606
      %v3689 = vadd.f32 %v2935, %v3611
      %v3690 = vadd.f32 %v2936, %v3614
      %v3691 = vadd.f32 %v2937, %v3619
      %v3692 = vadd.f32 %v2938, %v3622
      %v3693 = vadd.f32 %v2939, %v3627
      %v3694 = vadd.f32 %v2940, %v3630
      %v3695 = vadd.f32 %v2941, %v3635
      %v3696 = vadd.f32 %v2942, %v3638
      %v3697 = vadd.f32 %v2943, %v3643
      %v3698 = vadd.f32 %v2944, %v3646
      %v3699 = vadd.f32 %v2945, %v3651
      %v3700 = vadd.f32 %v2946, %v3654
      %v3701 = vadd.f32 %v2947, %v3659
      %v3702 = vadd.f32 %v2948, %v3662
      %v3703 = vadd.f32 %v2949, %v3667
      %v3704 = vadd.f32 %v2950, %v3670
      %v3705 = vld [vmem:[%s916] sm:$0xe]
      %v3706 = vld [vmem:[%s916 + $0xc] sm:$0xe]
      %v3707 = vld [vmem:[%s916 + $0x18] sm:$0xe]
      %v3708 = vld [vmem:[%s916 + $0x24] sm:$0xe]
      %v3709 = vld [vmem:[%s916 + $0x30] sm:$0xe]
      %v3710 = vld [vmem:[%s916 + $0x3c] sm:$0xe]
      %v3711 = vld [vmem:[%s916 + $0x48] sm:$0xe]
      %v3712 = vld [vmem:[%s916 + $0x54] sm:$0xe]
      %v3713 = vld [vmem:[%s916 + $0x60] sm:$0xe]
      %v3714 = vld [vmem:[%s916 + $0x6c] sm:$0xe]
      %v3715 = vld [vmem:[%s916 + $0x78] sm:$0xe]
      %v3716 = vld [vmem:[%s916 + $0x84] sm:$0xe]
      %v3717 = vld [vmem:[%s916 + $0x90] sm:$0xe]
      %v3718 = vld [vmem:[%s916 + $0x9c] sm:$0xe]
      %v3719 = vld [vmem:[%s916 + $0xa8] sm:$0xe]
      %v3720 = vld [vmem:[%s916 + $0xb4] sm:$0xe]
      %v3769 = vrot.slane %v3705, 5
      %v3770 = vrot.slane %v3769, 4
      %v3771 = vrot.slane %v2952, 5
      %v3772 = vsel %vm2130, %v3770, %v3771
      %v3773 = vrot.slane %v3771, 4
      %v3774 = vrot.slane %v2953, 5
      %v3775 = vsel %vm2130, %v3773, %v3774
      %v3776 = vrot.slane %v3706, 5
      %v3777 = vrot.slane %v3776, 4
      %v3778 = vrot.slane %v2955, 5
      %v3779 = vsel %vm2130, %v3777, %v3778
      %v3780 = vrot.slane %v3778, 4
      %v3781 = vrot.slane %v2956, 5
      %v3782 = vsel %vm2130, %v3780, %v3781
      %v3783 = vrot.slane %v3707, 5
      %v3784 = vrot.slane %v3783, 4
      %v3785 = vrot.slane %v2958, 5
      %v3786 = vsel %vm2130, %v3784, %v3785
      %v3787 = vrot.slane %v3785, 4
      %v3788 = vrot.slane %v2959, 5
      %v3789 = vsel %vm2130, %v3787, %v3788
      %v3790 = vrot.slane %v3708, 5
      %v3791 = vrot.slane %v3790, 4
      %v3792 = vrot.slane %v2961, 5
      %v3793 = vsel %vm2130, %v3791, %v3792
      %v3794 = vrot.slane %v3792, 4
      %v3795 = vrot.slane %v2962, 5
      %v3796 = vsel %vm2130, %v3794, %v3795
      %v3797 = vrot.slane %v3709, 5
      %v3798 = vrot.slane %v3797, 4
      %v3799 = vrot.slane %v2964, 5
      %v3800 = vsel %vm2130, %v3798, %v3799
      %v3801 = vrot.slane %v3799, 4
      %v3802 = vrot.slane %v2965, 5
      %v3803 = vsel %vm2130, %v3801, %v3802
      %v3804 = vrot.slane %v3710, 5
      %v3805 = vrot.slane %v3804, 4
      %v3806 = vrot.slane %v2967, 5
      %v3807 = vsel %vm2130, %v3805, %v3806
      %v3808 = vrot.slane %v3806, 4
      %v3809 = vrot.slane %v2968, 5
      %v3810 = vsel %vm2130, %v3808, %v3809
      %v3811 = vrot.slane %v3711, 5
      %v3812 = vrot.slane %v3811, 4
      %v3813 = vrot.slane %v2970, 5
      %v3814 = vsel %vm2130, %v3812, %v3813
      %v3815 = vrot.slane %v3813, 4
      %v3816 = vrot.slane %v2971, 5
      %v3817 = vsel %vm2130, %v3815, %v3816
      %v3818 = vrot.slane %v3712, 5
      %v3819 = vrot.slane %v3818, 4
      %v3820 = vrot.slane %v2973, 5
      %v3821 = vsel %vm2130, %v3819, %v3820
      %v3822 = vrot.slane %v3820, 4
      %v3823 = vrot.slane %v2974, 5
      %v3824 = vsel %vm2130, %v3822, %v3823
      %v3825 = vrot.slane %v3713, 5
      %v3826 = vrot.slane %v3825, 4
      %v3827 = vrot.slane %v2976, 5
      %v3828 = vsel %vm2130, %v3826, %v3827
      %v3829 = vrot.slane %v3827, 4
      %v3830 = vrot.slane %v2977, 5
      %v3831 = vsel %vm2130, %v3829, %v3830
      %v3832 = vrot.slane %v3714, 5
      %v3833 = vrot.slane %v3832, 4
      %v3834 = vrot.slane %v2979, 5
      %v3835 = vsel %vm2130, %v3833, %v3834
      %v3836 = vrot.slane %v3834, 4
      %v3837 = vrot.slane %v2980, 5
      %v3838 = vsel %vm2130, %v3836, %v3837
      %v3839 = vrot.slane %v3715, 5
      %v3840 = vrot.slane %v3839, 4
      %v3841 = vrot.slane %v2982, 5
      %v3842 = vsel %vm2130, %v3840, %v3841
      %v3843 = vrot.slane %v3841, 4
      %v3844 = vrot.slane %v2983, 5
      %v3845 = vsel %vm2130, %v3843, %v3844
      %v3846 = vrot.slane %v3716, 5
      %v3847 = vrot.slane %v3846, 4
      %v3848 = vrot.slane %v2985, 5
      %v3849 = vsel %vm2130, %v3847, %v3848
      %v3850 = vrot.slane %v3848, 4
      %v3851 = vrot.slane %v2986, 5
      %v3852 = vsel %vm2130, %v3850, %v3851
      %v3853 = vrot.slane %v3717, 5
      %v3854 = vrot.slane %v3853, 4
      %v3855 = vrot.slane %v2988, 5
      %v3856 = vsel %vm2130, %v3854, %v3855
      %v3857 = vrot.slane %v3855, 4
      %v3858 = vrot.slane %v2989, 5
      %v3859 = vsel %vm2130, %v3857, %v3858
      %v3860 = vrot.slane %v3718, 5
      %v3861 = vrot.slane %v3860, 4
      %v3862 = vrot.slane %v2991, 5
      %v3863 = vsel %vm2130, %v3861, %v3862
      %v3864 = vrot.slane %v3862, 4
      %v3865 = vrot.slane %v2992, 5
      %v3866 = vsel %vm2130, %v3864, %v3865
      %v3867 = vrot.slane %v3719, 5
      %v3868 = vrot.slane %v3867, 4
      %v3869 = vrot.slane %v2994, 5
      %v3870 = vsel %vm2130, %v3868, %v3869
      %v3871 = vrot.slane %v3869, 4
      %v3872 = vrot.slane %v2995, 5
      %v3873 = vsel %vm2130, %v3871, %v3872
      %v3874 = vrot.slane %v3720, 5
      %v3875 = vrot.slane %v3874, 4
      %v3876 = vrot.slane %v2997, 5
      %v3877 = vsel %vm2130, %v3875, %v3876
      %v3878 = vrot.slane %v3876, 4
      %v3879 = vrot.slane %v2998, 5
      %v3880 = vsel %vm2130, %v3878, %v3879
      %s3881 = scalar_lea.vmem %s3, 320
      %v3882 = vld [vmem:[%s3881] sm:$0xf]
      %v3883 = vld [vmem:[%s3881 + $0x4] sm:$0xf]
      %v3884 = vld [vmem:[%s3881 + $0x8] sm:$0xf]
      %v3885 = vld [vmem:[%s3881 + $0xc] sm:$0xf]
      %v3886 = vld [vmem:[%s3881 + $0x10] sm:$0xf]
      %v3887 = vld [vmem:[%s3881 + $0x14] sm:$0xf]
      %v3888 = vld [vmem:[%s3881 + $0x18] sm:$0xf]
      %v3889 = vld [vmem:[%s3881 + $0x1c] sm:$0xf]
      %v3890 = vld [vmem:[%s3881 + $0x20] sm:$0xf]
      %v3891 = vld [vmem:[%s3881 + $0x24] sm:$0xf]
      %v3892 = vld [vmem:[%s3881 + $0x28] sm:$0xf]
      %v3893 = vld [vmem:[%s3881 + $0x2c] sm:$0xf]
      %v3894 = vld [vmem:[%s3881 + $0x30] sm:$0xf]
      %v3895 = vld [vmem:[%s3881 + $0x34] sm:$0xf]
      %v3896 = vld [vmem:[%s3881 + $0x38] sm:$0xf]
      %v3897 = vld [vmem:[%s3881 + $0x3c] sm:$0xf]
      %v3898 = vunpack.c.l.b16 %v3772
      %v3899 = vunpack.c.l.b16 %v3775
      %v3900 = vunpack.c.l.b16 %v3779
      %v3901 = vunpack.c.l.b16 %v3782
      %v3902 = vunpack.c.l.b16 %v3786
      %v3903 = vunpack.c.l.b16 %v3789
      %v3904 = vunpack.c.l.b16 %v3793
      %v3905 = vunpack.c.l.b16 %v3796
      %v3906 = vunpack.c.l.b16 %v3800
      %v3907 = vunpack.c.l.b16 %v3803
      %v3908 = vunpack.c.l.b16 %v3807
      %v3909 = vunpack.c.l.b16 %v3810
      %v3910 = vunpack.c.l.b16 %v3814
      %v3911 = vunpack.c.l.b16 %v3817
      %v3912 = vunpack.c.l.b16 %v3821
      %v3913 = vunpack.c.l.b16 %v3824
      %v3914 = vunpack.c.l.b16 %v3828
      %v3915 = vunpack.c.l.b16 %v3831
      %v3916 = vunpack.c.l.b16 %v3835
      %v3917 = vunpack.c.l.b16 %v3838
      %v3918 = vunpack.c.l.b16 %v3842
      %v3919 = vunpack.c.l.b16 %v3845
      %v3920 = vunpack.c.l.b16 %v3849
      %v3921 = vunpack.c.l.b16 %v3852
      %v3922 = vunpack.c.l.b16 %v3856
      %v3923 = vunpack.c.l.b16 %v3859
      %v3924 = vunpack.c.l.b16 %v3863
      %v3925 = vunpack.c.l.b16 %v3866
      %v3926 = vunpack.c.l.b16 %v3870
      %v3927 = vunpack.c.l.b16 %v3873
      %v3928 = vunpack.c.l.b16 %v3877
      %v3929 = vunpack.c.l.b16 %v3880
      %v3930 = vpack.c.b16 %v3899, %v3898
      %v3931 = vpack.c.b16 %v3901, %v3900
      %v3932 = vpack.c.b16 %v3903, %v3902
      %v3933 = vpack.c.b16 %v3905, %v3904
      %v3934 = vpack.c.b16 %v3907, %v3906
      %v3935 = vpack.c.b16 %v3909, %v3908
      %v3936 = vpack.c.b16 %v3911, %v3910
      %v3937 = vpack.c.b16 %v3913, %v3912
      %v3938 = vpack.c.b16 %v3915, %v3914
      %v3939 = vpack.c.b16 %v3917, %v3916
      %v3940 = vpack.c.b16 %v3919, %v3918
      %v3941 = vpack.c.b16 %v3921, %v3920
      %v3942 = vpack.c.b16 %v3923, %v3922
      %v3943 = vpack.c.b16 %v3925, %v3924
      %v3944 = vpack.c.b16 %v3927, %v3926
      %v3945 = vpack.c.b16 %v3929, %v3928
      %v3978 = vunpack.c.l.b16 %v3882
      %v3979 = vunpack.c.l.b16 %v3883
      %v3980 = vunpack.c.l.b16 %v3884
      %v3981 = vunpack.c.l.b16 %v3885
      %v3982 = vunpack.c.l.b16 %v3886
      %v3983 = vunpack.c.l.b16 %v3887
      %v3984 = vunpack.c.l.b16 %v3888
      %v3985 = vunpack.c.l.b16 %v3889
      %v3986 = vunpack.c.l.b16 %v3890
      %v3987 = vunpack.c.l.b16 %v3891
      %v3988 = vunpack.c.l.b16 %v3892
      %v3989 = vunpack.c.l.b16 %v3893
      %v3990 = vunpack.c.l.b16 %v3894
      %v3991 = vunpack.c.l.b16 %v3895
      %v3992 = vunpack.c.l.b16 %v3896
      %v3993 = vunpack.c.l.b16 %v3897
      %v3994 = vpack.c.b16 %v3979, %v3978
      %v3995 = vpack.c.b16 %v3981, %v3980
      %v3996 = vpack.c.b16 %v3983, %v3982
      %v3997 = vpack.c.b16 %v3985, %v3984
      %v3998 = vpack.c.b16 %v3987, %v3986
      %v3999 = vpack.c.b16 %v3989, %v3988
      %v4000 = vpack.c.b16 %v3991, %v3990
      %v4001 = vpack.c.b16 %v3993, %v3992
      %4010 = vmatprep.subr.bf16.mxu0 0
      %4011 = vmatpush1.bf16.msra.mxu0 %v3994
      %4012 = vmatprep.subr.bf16.mxu0 0
      %4013 = vmatpush1.bf16.msra.mxu0 %v3995
      %4014 = vmatprep.subr.bf16.mxu0 0
      %4015 = vmatpush1.bf16.msra.mxu0 %v3996
      %4016 = vmatprep.subr.bf16.mxu0 0
      %4017 = vmatpush1.bf16.msra.mxu0 %v3997
      %4018 = vmatprep.subr.bf16.mxu0 0
      %4019 = vmatpush1.bf16.msra.mxu0 %v3998
      %4020 = vmatprep.subr.bf16.mxu0 0
      %4021 = vmatpush1.bf16.msra.mxu0 %v3999
      %4022 = vmatprep.subr.bf16.mxu0 0
      %4023 = vmatpush1.bf16.msra.mxu0 %v4000
      %4024 = vmatprep.subr.bf16.mxu0 0
      %4025 = vmatpush1.bf16.msra.mxu0 %v4001
      %4026 = vmatprep.subr.bf16.mxu0 0
      %4027 = vmatpush1.bf16.msra.mxu0 0
      %4028 = vmatprep.subr.bf16.mxu0 0
      %4029 = vmatpush1.bf16.msra.mxu0 0
      %4030 = vmatprep.subr.bf16.mxu0 0
      %4031 = vmatpush1.bf16.msra.mxu0 0
      %4032 = vmatprep.subr.bf16.mxu0 0
      %4033 = vmatpush1.bf16.msra.mxu0 0
      %4034 = vmatprep.subr.bf16.mxu0 0
      %4035 = vmatpush1.bf16.msra.mxu0 0
      %4036 = vmatprep.subr.bf16.mxu0 0
      %4037 = vmatpush1.bf16.msra.mxu0 0
      %4038 = vmatprep.subr.bf16.mxu0 0
      %4039 = vmatpush1.bf16.msra.mxu0 0
      %4040 = vmatprep.subr.bf16.mxu0 0
      %4041 = vmatpush1.bf16.msra.mxu0 0
      %4042 = vmatprep.mubr.bf16.mxu0 0
      %4043 = vmatmul.mubr.bf16.gmra.mrb[0].mxu0 %v3930
      %v4044 = vpop.f32.mrb[0].mxu0
      %v4045 = vadd.f32 0.0, %v4044
      %v4046 = vpop.f32.mrb[0].mxu0
      %v4047 = vpop.f32.mrb[0].mxu0
      %v4048 = vadd.f32 0.0, %v4047
      %v4049 = vpop.f32.mrb[0].mxu0
      %4050 = vmatprep.mubr.bf16.mxu0 0
      %4051 = vmatmul.mubr.bf16.gmra.mrb[0].mxu0 %v3931
      %v4052 = vpop.f32.mrb[0].mxu0
      %v4053 = vadd.f32 0.0, %v4052
      %v4054 = vpop.f32.mrb[0].mxu0
      %v4055 = vpop.f32.mrb[0].mxu0
      %v4056 = vadd.f32 0.0, %v4055
      %v4057 = vpop.f32.mrb[0].mxu0
      %4058 = vmatprep.mubr.bf16.mxu0 0
      %4059 = vmatmul.mubr.bf16.gmra.mrb[0].mxu0 %v3932
      %v4060 = vpop.f32.mrb[0].mxu0
      %v4061 = vadd.f32 0.0, %v4060
      %v4062 = vpop.f32.mrb[0].mxu0
      %v4063 = vpop.f32.mrb[0].mxu0
      %v4064 = vadd.f32 0.0, %v4063
      %v4065 = vpop.f32.mrb[0].mxu0
      %4066 = vmatprep.mubr.bf16.mxu0 0
      %4067 = vmatmul.mubr.bf16.gmra.mrb[0].mxu0 %v3933
      %v4068 = vpop.f32.mrb[0].mxu0
      %v4069 = vadd.f32 0.0, %v4068
      %v4070 = vpop.f32.mrb[0].mxu0
      %v4071 = vpop.f32.mrb[0].mxu0
      %v4072 = vadd.f32 0.0, %v4071
      %v4073 = vpop.f32.mrb[0].mxu0
      %4074 = vmatprep.mubr.bf16.mxu0 0
      %4075 = vmatmul.mubr.bf16.gmra.mrb[0].mxu0 %v3934
      %v4076 = vpop.f32.mrb[0].mxu0
      %v4077 = vadd.f32 0.0, %v4076
      %v4078 = vpop.f32.mrb[0].mxu0
      %v4079 = vpop.f32.mrb[0].mxu0
      %v4080 = vadd.f32 0.0, %v4079
      %v4081 = vpop.f32.mrb[0].mxu0
      %4082 = vmatprep.mubr.bf16.mxu0 0
      %4083 = vmatmul.mubr.bf16.gmra.mrb[0].mxu0 %v3935
      %v4084 = vpop.f32.mrb[0].mxu0
      %v4085 = vadd.f32 0.0, %v4084
      %v4086 = vpop.f32.mrb[0].mxu0
      %v4087 = vpop.f32.mrb[0].mxu0
      %v4088 = vadd.f32 0.0, %v4087
      %v4089 = vpop.f32.mrb[0].mxu0
      %4090 = vmatprep.mubr.bf16.mxu0 0
      %4091 = vmatmul.mubr.bf16.gmra.mrb[0].mxu0 %v3936
      %v4092 = vpop.f32.mrb[0].mxu0
      %v4093 = vadd.f32 0.0, %v4092
      %v4094 = vpop.f32.mrb[0].mxu0
      %v4095 = vpop.f32.mrb[0].mxu0
      %v4096 = vadd.f32 0.0, %v4095
      %v4097 = vpop.f32.mrb[0].mxu0
      %4098 = vmatprep.mubr.bf16.mxu0 0
      %4099 = vmatmul.mubr.bf16.gmra.mrb[0].mxu0 %v3937
      %v4100 = vpop.f32.mrb[0].mxu0
      %v4101 = vadd.f32 0.0, %v4100
      %v4102 = vpop.f32.mrb[0].mxu0
      %v4103 = vpop.f32.mrb[0].mxu0
      %v4104 = vadd.f32 0.0, %v4103
      %v4105 = vpop.f32.mrb[0].mxu0
      %4106 = vmatprep.mubr.bf16.mxu0 0
      %4107 = vmatmul.mubr.bf16.gmra.mrb[0].mxu0 %v3938
      %v4108 = vpop.f32.mrb[0].mxu0
      %v4109 = vadd.f32 0.0, %v4108
      %v4110 = vpop.f32.mrb[0].mxu0
      %v4111 = vpop.f32.mrb[0].mxu0
      %v4112 = vadd.f32 0.0, %v4111
      %v4113 = vpop.f32.mrb[0].mxu0
      %4114 = vmatprep.mubr.bf16.mxu0 0
      %4115 = vmatmul.mubr.bf16.gmra.mrb[0].mxu0 %v3939
      %v4116 = vpop.f32.mrb[0].mxu0
      %v4117 = vadd.f32 0.0, %v4116
      %v4118 = vpop.f32.mrb[0].mxu0
      %v4119 = vpop.f32.mrb[0].mxu0
      %v4120 = vadd.f32 0.0, %v4119
      %v4121 = vpop.f32.mrb[0].mxu0
      %4122 = vmatprep.mubr.bf16.mxu0 0
      %4123 = vmatmul.mubr.bf16.gmra.mrb[0].mxu0 %v3940
      %v4124 = vpop.f32.mrb[0].mxu0
      %v4125 = vadd.f32 0.0, %v4124
      %v4126 = vpop.f32.mrb[0].mxu0
      %v4127 = vpop.f32.mrb[0].mxu0
      %v4128 = vadd.f32 0.0, %v4127
      %v4129 = vpop.f32.mrb[0].mxu0
      %4130 = vmatprep.mubr.bf16.mxu0 0
      %4131 = vmatmul.mubr.bf16.gmra.mrb[0].mxu0 %v3941
      %v4132 = vpop.f32.mrb[0].mxu0
      %v4133 = vadd.f32 0.0, %v4132
      %v4134 = vpop.f32.mrb[0].mxu0
      %v4135 = vpop.f32.mrb[0].mxu0
      %v4136 = vadd.f32 0.0, %v4135
      %v4137 = vpop.f32.mrb[0].mxu0
      %4138 = vmatprep.mubr.bf16.mxu0 0
      %4139 = vmatmul.mubr.bf16.gmra.mrb[0].mxu0 %v3942
      %v4140 = vpop.f32.mrb[0].mxu0
      %v4141 = vadd.f32 0.0, %v4140
      %v4142 = vpop.f32.mrb[0].mxu0
      %v4143 = vpop.f32.mrb[0].mxu0
      %v4144 = vadd.f32 0.0, %v4143
      %v4145 = vpop.f32.mrb[0].mxu0
      %4146 = vmatprep.mubr.bf16.mxu0 0
      %4147 = vmatmul.mubr.bf16.gmra.mrb[0].mxu0 %v3943
      %v4148 = vpop.f32.mrb[0].mxu0
      %v4149 = vadd.f32 0.0, %v4148
      %v4150 = vpop.f32.mrb[0].mxu0
      %v4151 = vpop.f32.mrb[0].mxu0
      %v4152 = vadd.f32 0.0, %v4151
      %v4153 = vpop.f32.mrb[0].mxu0
      %4154 = vmatprep.mubr.bf16.mxu0 0
      %4155 = vmatmul.mubr.bf16.gmra.mrb[0].mxu0 %v3944
      %v4156 = vpop.f32.mrb[0].mxu0
      %v4157 = vadd.f32 0.0, %v4156
      %v4158 = vpop.f32.mrb[0].mxu0
      %v4159 = vpop.f32.mrb[0].mxu0
      %v4160 = vadd.f32 0.0, %v4159
      %v4161 = vpop.f32.mrb[0].mxu0
      %4162 = vmatprep.mubr.bf16.mxu0 0
      %4163 = vmatmul.mubr.bf16.gmra.mrb[0].mxu0 %v3945
      %v4164 = vpop.f32.mrb[0].mxu0
      %v4165 = vadd.f32 0.0, %v4164
      %v4166 = vpop.f32.mrb[0].mxu0
      %v4167 = vpop.f32.mrb[0].mxu0
      %v4168 = vadd.f32 0.0, %v4167
      %v4169 = vpop.f32.mrb[0].mxu0
      %4170 = vdwg.mxu0
      %v4171 = vadd.f32 %v3673, %v4045
      %v4172 = vadd.f32 %v3674, %v4048
      %v4173 = vadd.f32 %v3675, %v4053
      %v4174 = vadd.f32 %v3676, %v4056
      %v4175 = vadd.f32 %v3677, %v4061
      %v4176 = vadd.f32 %v3678, %v4064
      %v4177 = vadd.f32 %v3679, %v4069
      %v4178 = vadd.f32 %v3680, %v4072
      %v4179 = vadd.f32 %v3681, %v4077
      %v4180 = vadd.f32 %v3682, %v4080
      %v4181 = vadd.f32 %v3683, %v4085
      %v4182 = vadd.f32 %v3684, %v4088
      %v4183 = vadd.f32 %v3685, %v4093
      %v4184 = vadd.f32 %v3686, %v4096
      %v4185 = vadd.f32 %v3687, %v4101
      %v4186 = vadd.f32 %v3688, %v4104
      %v4187 = vadd.f32 %v3689, %v4109
      %v4188 = vadd.f32 %v3690, %v4112
      %v4189 = vadd.f32 %v3691, %v4117
      %v4190 = vadd.f32 %v3692, %v4120
      %v4191 = vadd.f32 %v3693, %v4125
      %v4192 = vadd.f32 %v3694, %v4128
      %v4193 = vadd.f32 %v3695, %v4133
      %v4194 = vadd.f32 %v3696, %v4136
      %v4195 = vadd.f32 %v3697, %v4141
      %v4196 = vadd.f32 %v3698, %v4144
      %v4197 = vadd.f32 %v3699, %v4149
      %v4198 = vadd.f32 %v3700, %v4152
      %v4199 = vadd.f32 %v3701, %v4157
      %v4200 = vadd.f32 %v3702, %v4160
      %v4201 = vadd.f32 %v3703, %v4165
      %v4202 = vadd.f32 %v3704, %v4168
      %s4203 = scalar_lea.vmem [#allocation2], 24
      %v4204 = vld [vmem:[%s4203] sm:$0xf]
      %v4205 = vld [vmem:[%s4203 + $0x4] sm:$0xf]
      %v4206 = vld [vmem:[%s4203 + $0xc] sm:$0xf]
      %v4207 = vld [vmem:[%s4203 + $0x10] sm:$0xf]
      %v4208 = vld [vmem:[%s4203 + $0x18] sm:$0xf]
      %v4209 = vld [vmem:[%s4203 + $0x1c] sm:$0xf]
      %v4210 = vld [vmem:[%s4203 + $0x24] sm:$0xf]
      %v4211 = vld [vmem:[%s4203 + $0x28] sm:$0xf]
      %v4212 = vld [vmem:[%s4203 + $0x30] sm:$0xf]
      %v4213 = vld [vmem:[%s4203 + $0x34] sm:$0xf]
      %v4214 = vld [vmem:[%s4203 + $0x3c] sm:$0xf]
      %v4215 = vld [vmem:[%s4203 + $0x40] sm:$0xf]
      %v4216 = vld [vmem:[%s4203 + $0x48] sm:$0xf]
      %v4217 = vld [vmem:[%s4203 + $0x4c] sm:$0xf]
      %v4218 = vld [vmem:[%s4203 + $0x54] sm:$0xf]
      %v4219 = vld [vmem:[%s4203 + $0x58] sm:$0xf]
      %v4220 = vld [vmem:[%s4203 + $0x60] sm:$0xf]
      %v4221 = vld [vmem:[%s4203 + $0x64] sm:$0xf]
      %v4222 = vld [vmem:[%s4203 + $0x6c] sm:$0xf]
      %v4223 = vld [vmem:[%s4203 + $0x70] sm:$0xf]
      %v4224 = vld [vmem:[%s4203 + $0x78] sm:$0xf]
      %v4225 = vld [vmem:[%s4203 + $0x7c] sm:$0xf]
      %v4226 = vld [vmem:[%s4203 + $0x84] sm:$0xf]
      %v4227 = vld [vmem:[%s4203 + $0x88] sm:$0xf]
      %v4228 = vld [vmem:[%s4203 + $0x90] sm:$0xf]
      %v4229 = vld [vmem:[%s4203 + $0x94] sm:$0xf]
      %v4230 = vld [vmem:[%s4203 + $0x9c] sm:$0xf]
      %v4231 = vld [vmem:[%s4203 + $0xa0] sm:$0xf]
      %v4232 = vld [vmem:[%s4203 + $0xa8] sm:$0xf]
      %v4233 = vld [vmem:[%s4203 + $0xac] sm:$0xf]
      %v4234 = vld [vmem:[%s4203 + $0xb4] sm:$0xf]
      %v4235 = vld [vmem:[%s4203 + $0xb8] sm:$0xf]
      %s4236 = scalar_lea.vmem %s3, 384
      %v4237 = vld [vmem:[%s4236] sm:$0xf]
      %v4238 = vld [vmem:[%s4236 + $0x4] sm:$0xf]
      %v4239 = vld [vmem:[%s4236 + $0x8] sm:$0xf]
      %v4240 = vld [vmem:[%s4236 + $0xc] sm:$0xf]
      %v4241 = vld [vmem:[%s4236 + $0x10] sm:$0xf]
      %v4242 = vld [vmem:[%s4236 + $0x14] sm:$0xf]
      %v4243 = vld [vmem:[%s4236 + $0x18] sm:$0xf]
      %v4244 = vld [vmem:[%s4236 + $0x1c] sm:$0xf]
      %v4245 = vld [vmem:[%s4236 + $0x20] sm:$0xf]
      %v4246 = vld [vmem:[%s4236 + $0x24] sm:$0xf]
      %v4247 = vld [vmem:[%s4236 + $0x28] sm:$0xf]
      %v4248 = vld [vmem:[%s4236 + $0x2c] sm:$0xf]
      %v4249 = vld [vmem:[%s4236 + $0x30] sm:$0xf]
      %v4250 = vld [vmem:[%s4236 + $0x34] sm:$0xf]
      %v4251 = vld [vmem:[%s4236 + $0x38] sm:$0xf]
      %v4252 = vld [vmem:[%s4236 + $0x3c] sm:$0xf]
      %v4285 = vunpack.c.l.b16 %v4204
      %v4286 = vunpack.c.l.b16 %v4205
      %v4287 = vunpack.c.l.b16 %v4206
      %v4288 = vunpack.c.l.b16 %v4207
      %v4289 = vunpack.c.l.b16 %v4208
      %v4290 = vunpack.c.l.b16 %v4209
      %v4291 = vunpack.c.l.b16 %v4210
      %v4292 = vunpack.c.l.b16 %v4211
      %v4293 = vunpack.c.l.b16 %v4212
      %v4294 = vunpack.c.l.b16 %v4213
      %v4295 = vunpack.c.l.b16 %v4214
      %v4296 = vunpack.c.l.b16 %v4215
      %v4297 = vunpack.c.l.b16 %v4216
      %v4298 = vunpack.c.l.b16 %v4217
      %v4299 = vunpack.c.l.b16 %v4218
      %v4300 = vunpack.c.l.b16 %v4219
      %v4301 = vunpack.c.l.b16 %v4220
      %v4302 = vunpack.c.l.b16 %v4221
      %v4303 = vunpack.c.l.b16 %v4222
      %v4304 = vunpack.c.l.b16 %v4223
      %v4305 = vunpack.c.l.b16 %v4224
      %v4306 = vunpack.c.l.b16 %v4225
      %v4307 = vunpack.c.l.b16 %v4226
      %v4308 = vunpack.c.l.b16 %v4227
      %v4309 = vunpack.c.l.b16 %v4228
      %v4310 = vunpack.c.l.b16 %v4229
      %v4311 = vunpack.c.l.b16 %v4230
      %v4312 = vunpack.c.l.b16 %v4231
      %v4313 = vunpack.c.l.b16 %v4232
      %v4314 = vunpack.c.l.b16 %v4233
      %v4315 = vunpack.c.l.b16 %v4234
      %v4316 = vunpack.c.l.b16 %v4235
      %v4317 = vpack.c.b16 %v4286, %v4285
      %v4318 = vpack.c.b16 %v4288, %v4287
      %v4319 = vpack.c.b16 %v4290, %v4289
      %v4320 = vpack.c.b16 %v4292, %v4291
      %v4321 = vpack.c.b16 %v4294, %v4293
      %v4322 = vpack.c.b16 %v4296, %v4295
      %v4323 = vpack.c.b16 %v4298, %v4297
      %v4324 = vpack.c.b16 %v4300, %v4299
      %v4325 = vpack.c.b16 %v4302, %v4301
      %v4326 = vpack.c.b16 %v4304, %v4303
      %v4327 = vpack.c.b16 %v4306, %v4305
      %v4328 = vpack.c.b16 %v4308, %v4307
      %v4329 = vpack.c.b16 %v4310, %v4309
      %v4330 = vpack.c.b16 %v4312, %v4311
      %v4331 = vpack.c.b16 %v4314, %v4313
      %v4332 = vpack.c.b16 %v4316, %v4315
      %v4365 = vunpack.c.l.b16 %v4237
      %v4366 = vunpack.c.l.b16 %v4238
      %v4367 = vunpack.c.l.b16 %v4239
      %v4368 = vunpack.c.l.b16 %v4240
      %v4369 = vunpack.c.l.b16 %v4241
      %v4370 = vunpack.c.l.b16 %v4242
      %v4371 = vunpack.c.l.b16 %v4243
      %v4372 = vunpack.c.l.b16 %v4244
      %v4373 = vunpack.c.l.b16 %v4245
      %v4374 = vunpack.c.l.b16 %v4246
      %v4375 = vunpack.c.l.b16 %v4247
      %v4376 = vunpack.c.l.b16 %v4248
      %v4377 = vunpack.c.l.b16 %v4249
      %v4378 = vunpack.c.l.b16 %v4250
      %v4379 = vunpack.c.l.b16 %v4251
      %v4380 = vunpack.c.l.b16 %v4252
      %v4381 = vpack.c.b16 %v4366, %v4365
      %v4382 = vpack.c.b16 %v4368, %v4367
      %v4383 = vpack.c.b16 %v4370, %v4369
      %v4384 = vpack.c.b16 %v4372, %v4371
      %v4385 = vpack.c.b16 %v4374, %v4373
      %v4386 = vpack.c.b16 %v4376, %v4375
      %v4387 = vpack.c.b16 %v4378, %v4377
      %v4388 = vpack.c.b16 %v4380, %v4379
      %4397 = vmatprep.subr.bf16.mxu0 0
      %4398 = vmatpush1.bf16.msra.mxu0 %v4381
      %4399 = vmatprep.subr.bf16.mxu0 0
      %4400 = vmatpush1.bf16.msra.mxu0 %v4382
      %4401 = vmatprep.subr.bf16.mxu0 0
      %4402 = vmatpush1.bf16.msra.mxu0 %v4383
      %4403 = vmatprep.subr.bf16.mxu0 0
      %4404 = vmatpush1.bf16.msra.mxu0 %v4384
      %4405 = vmatprep.subr.bf16.mxu0 0
      %4406 = vmatpush1.bf16.msra.mxu0 %v4385
      %4407 = vmatprep.subr.bf16.mxu0 0
      %4408 = vmatpush1.bf16.msra.mxu0 %v4386
      %4409 = vmatprep.subr.bf16.mxu0 0
      %4410 = vmatpush1.bf16.msra.mxu0 %v4387
      %4411 = vmatprep.subr.bf16.mxu0 0
      %4412 = vmatpush1.bf16.msra.mxu0 %v4388
      %4413 = vmatprep.subr.bf16.mxu0 0
      %4414 = vmatpush1.bf16.msra.mxu0 0
      %4415 = vmatprep.subr.bf16.mxu0 0
      %4416 = vmatpush1.bf16.msra.mxu0 0
      %4417 = vmatprep.subr.bf16.mxu0 0
      %4418 = vmatpush1.bf16.msra.mxu0 0
      %4419 = vmatprep.subr.bf16.mxu0 0
      %4420 = vmatpush1.bf16.msra.mxu0 0
      %4421 = vmatprep.subr.bf16.mxu0 0
      %4422 = vmatpush1.bf16.msra.mxu0 0
      %4423 = vmatprep.subr.bf16.mxu0 0
      %4424 = vmatpush1.bf16.msra.mxu0 0
      %4425 = vmatprep.subr.bf16.mxu0 0
      %4426 = vmatpush1.bf16.msra.mxu0 0
      %4427 = vmatprep.subr.bf16.mxu0 0
      %4428 = vmatpush1.bf16.msra.mxu0 0
      %4429 = vmatprep.mubr.bf16.mxu0 0
      %4430 = vmatmul.mubr.bf16.gmra.mrb[0].mxu0 %v4317
      %v4431 = vpop.f32.mrb[0].mxu0
      %v4432 = vadd.f32 0.0, %v4431
      %v4433 = vpop.f32.mrb[0].mxu0
      %v4434 = vpop.f32.mrb[0].mxu0
      %v4435 = vadd.f32 0.0, %v4434
      %v4436 = vpop.f32.mrb[0].mxu0
      %4437 = vmatprep.mubr.bf16.mxu0 0
      %4438 = vmatmul.mubr.bf16.gmra.mrb[0].mxu0 %v4318
      %v4439 = vpop.f32.mrb[0].mxu0
      %v4440 = vadd.f32 0.0, %v4439
      %v4441 = vpop.f32.mrb[0].mxu0
      %v4442 = vpop.f32.mrb[0].mxu0
      %v4443 = vadd.f32 0.0, %v4442
      %v4444 = vpop.f32.mrb[0].mxu0
      %4445 = vmatprep.mubr.bf16.mxu0 0
      %4446 = vmatmul.mubr.bf16.gmra.mrb[0].mxu0 %v4319
      %v4447 = vpop.f32.mrb[0].mxu0
      %v4448 = vadd.f32 0.0, %v4447
      %v4449 = vpop.f32.mrb[0].mxu0
      %v4450 = vpop.f32.mrb[0].mxu0
      %v4451 = vadd.f32 0.0, %v4450
      %v4452 = vpop.f32.mrb[0].mxu0
      %4453 = vmatprep.mubr.bf16.mxu0 0
      %4454 = vmatmul.mubr.bf16.gmra.mrb[0].mxu0 %v4320
      %v4455 = vpop.f32.mrb[0].mxu0
      %v4456 = vadd.f32 0.0, %v4455
      %v4457 = vpop.f32.mrb[0].mxu0
      %v4458 = vpop.f32.mrb[0].mxu0
      %v4459 = vadd.f32 0.0, %v4458
      %v4460 = vpop.f32.mrb[0].mxu0
      %4461 = vmatprep.mubr.bf16.mxu0 0
      %4462 = vmatmul.mubr.bf16.gmra.mrb[0].mxu0 %v4321
      %v4463 = vpop.f32.mrb[0].mxu0
      %v4464 = vadd.f32 0.0, %v4463
      %v4465 = vpop.f32.mrb[0].mxu0
      %v4466 = vpop.f32.mrb[0].mxu0
      %v4467 = vadd.f32 0.0, %v4466
      %v4468 = vpop.f32.mrb[0].mxu0
      %4469 = vmatprep.mubr.bf16.mxu0 0
      %4470 = vmatmul.mubr.bf16.gmra.mrb[0].mxu0 %v4322
      %v4471 = vpop.f32.mrb[0].mxu0
      %v4472 = vadd.f32 0.0, %v4471
      %v4473 = vpop.f32.mrb[0].mxu0
      %v4474 = vpop.f32.mrb[0].mxu0
      %v4475 = vadd.f32 0.0, %v4474
      %v4476 = vpop.f32.mrb[0].mxu0
      %4477 = vmatprep.mubr.bf16.mxu0 0
      %4478 = vmatmul.mubr.bf16.gmra.mrb[0].mxu0 %v4323
      %v4479 = vpop.f32.mrb[0].mxu0
      %v4480 = vadd.f32 0.0, %v4479
      %v4481 = vpop.f32.mrb[0].mxu0
      %v4482 = vpop.f32.mrb[0].mxu0
      %v4483 = vadd.f32 0.0, %v4482
      %v4484 = vpop.f32.mrb[0].mxu0
      %4485 = vmatprep.mubr.bf16.mxu0 0
      %4486 = vmatmul.mubr.bf16.gmra.mrb[0].mxu0 %v4324
      %v4487 = vpop.f32.mrb[0].mxu0
      %v4488 = vadd.f32 0.0, %v4487
      %v4489 = vpop.f32.mrb[0].mxu0
      %v4490 = vpop.f32.mrb[0].mxu0
      %v4491 = vadd.f32 0.0, %v4490
      %v4492 = vpop.f32.mrb[0].mxu0
      %4493 = vmatprep.mubr.bf16.mxu0 0
      %4494 = vmatmul.mubr.bf16.gmra.mrb[0].mxu0 %v4325
      %v4495 = vpop.f32.mrb[0].mxu0
      %v4496 = vadd.f32 0.0, %v4495
      %v4497 = vpop.f32.mrb[0].mxu0
      %v4498 = vpop.f32.mrb[0].mxu0
      %v4499 = vadd.f32 0.0, %v4498
      %v4500 = vpop.f32.mrb[0].mxu0
      %4501 = vmatprep.mubr.bf16.mxu0 0
      %4502 = vmatmul.mubr.bf16.gmra.mrb[0].mxu0 %v4326
      %v4503 = vpop.f32.mrb[0].mxu0
      %v4504 = vadd.f32 0.0, %v4503
      %v4505 = vpop.f32.mrb[0].mxu0
      %v4506 = vpop.f32.mrb[0].mxu0
      %v4507 = vadd.f32 0.0, %v4506
      %v4508 = vpop.f32.mrb[0].mxu0
      %4509 = vmatprep.mubr.bf16.mxu0 0
      %4510 = vmatmul.mubr.bf16.gmra.mrb[0].mxu0 %v4327
      %v4511 = vpop.f32.mrb[0].mxu0
      %v4512 = vadd.f32 0.0, %v4511
      %v4513 = vpop.f32.mrb[0].mxu0
      %v4514 = vpop.f32.mrb[0].mxu0
      %v4515 = vadd.f32 0.0, %v4514
      %v4516 = vpop.f32.mrb[0].mxu0
      %4517 = vmatprep.mubr.bf16.mxu0 0
      %4518 = vmatmul.mubr.bf16.gmra.mrb[0].mxu0 %v4328
      %v4519 = vpop.f32.mrb[0].mxu0
      %v4520 = vadd.f32 0.0, %v4519
      %v4521 = vpop.f32.mrb[0].mxu0
      %v4522 = vpop.f32.mrb[0].mxu0
      %v4523 = vadd.f32 0.0, %v4522
      %v4524 = vpop.f32.mrb[0].mxu0
      %4525 = vmatprep.mubr.bf16.mxu0 0
      %4526 = vmatmul.mubr.bf16.gmra.mrb[0].mxu0 %v4329
      %v4527 = vpop.f32.mrb[0].mxu0
      %v4528 = vadd.f32 0.0, %v4527
      %v4529 = vpop.f32.mrb[0].mxu0
      %v4530 = vpop.f32.mrb[0].mxu0
      %v4531 = vadd.f32 0.0, %v4530
      %v4532 = vpop.f32.mrb[0].mxu0
      %4533 = vmatprep.mubr.bf16.mxu0 0
      %4534 = vmatmul.mubr.bf16.gmra.mrb[0].mxu0 %v4330
      %v4535 = vpop.f32.mrb[0].mxu0
      %v4536 = vadd.f32 0.0, %v4535
      %v4537 = vpop.f32.mrb[0].mxu0
      %v4538 = vpop.f32.mrb[0].mxu0
      %v4539 = vadd.f32 0.0, %v4538
      %v4540 = vpop.f32.mrb[0].mxu0
      %4541 = vmatprep.mubr.bf16.mxu0 0
      %4542 = vmatmul.mubr.bf16.gmra.mrb[0].mxu0 %v4331
      %v4543 = vpop.f32.mrb[0].mxu0
      %v4544 = vadd.f32 0.0, %v4543
      %v4545 = vpop.f32.mrb[0].mxu0
      %v4546 = vpop.f32.mrb[0].mxu0
      %v4547 = vadd.f32 0.0, %v4546
      %v4548 = vpop.f32.mrb[0].mxu0
      %4549 = vmatprep.mubr.bf16.mxu0 0
      %4550 = vmatmul.mubr.bf16.gmra.mrb[0].mxu0 %v4332
      %v4551 = vpop.f32.mrb[0].mxu0
      %v4552 = vadd.f32 0.0, %v4551
      %v4553 = vpop.f32.mrb[0].mxu0
      %v4554 = vpop.f32.mrb[0].mxu0
      %v4555 = vadd.f32 0.0, %v4554
      %v4556 = vpop.f32.mrb[0].mxu0
      %4557 = vdwg.mxu0
      %v4558 = vadd.f32 %v4171, %v4432
      %v4559 = vadd.f32 %v4172, %v4435
      %v4560 = vadd.f32 %v4173, %v4440
      %v4561 = vadd.f32 %v4174, %v4443
      %v4562 = vadd.f32 %v4175, %v4448
      %v4563 = vadd.f32 %v4176, %v4451
      %v4564 = vadd.f32 %v4177, %v4456
      %v4565 = vadd.f32 %v4178, %v4459
      %v4566 = vadd.f32 %v4179, %v4464
      %v4567 = vadd.f32 %v4180, %v4467
      %v4568 = vadd.f32 %v4181, %v4472
      %v4569 = vadd.f32 %v4182, %v4475
      %v4570 = vadd.f32 %v4183, %v4480
      %v4571 = vadd.f32 %v4184, %v4483
      %v4572 = vadd.f32 %v4185, %v4488
      %v4573 = vadd.f32 %v4186, %v4491
      %v4574 = vadd.f32 %v4187, %v4496
      %v4575 = vadd.f32 %v4188, %v4499
      %v4576 = vadd.f32 %v4189, %v4504
      %v4577 = vadd.f32 %v4190, %v4507
      %v4578 = vadd.f32 %v4191, %v4512
      %v4579 = vadd.f32 %v4192, %v4515
      %v4580 = vadd.f32 %v4193, %v4520
      %v4581 = vadd.f32 %v4194, %v4523
      %v4582 = vadd.f32 %v4195, %v4528
      %v4583 = vadd.f32 %v4196, %v4531
      %v4584 = vadd.f32 %v4197, %v4536
      %v4585 = vadd.f32 %v4198, %v4539
      %v4586 = vadd.f32 %v4199, %v4544
      %v4587 = vadd.f32 %v4200, %v4547
      %v4588 = vadd.f32 %v4201, %v4552
      %v4589 = vadd.f32 %v4202, %v4555
      %v4590 = vld [vmem:[%s4203] sm:$0xf]
      %v4591 = vld [vmem:[%s4203 + $0x4] sm:$0xf]
      %v4592 = vld [vmem:[%s4203 + $0x8] sm:$0x1]
      %v4593 = vld [vmem:[%s4203 + $0xc] sm:$0xf]
      %v4594 = vld [vmem:[%s4203 + $0x10] sm:$0xf]
      %v4595 = vld [vmem:[%s4203 + $0x14] sm:$0x1]
      %v4596 = vld [vmem:[%s4203 + $0x18] sm:$0xf]
      %v4597 = vld [vmem:[%s4203 + $0x1c] sm:$0xf]
      %v4598 = vld [vmem:[%s4203 + $0x20] sm:$0x1]
      %v4599 = vld [vmem:[%s4203 + $0x24] sm:$0xf]
      %v4600 = vld [vmem:[%s4203 + $0x28] sm:$0xf]
      %v4601 = vld [vmem:[%s4203 + $0x2c] sm:$0x1]
      %v4602 = vld [vmem:[%s4203 + $0x30] sm:$0xf]
      %v4603 = vld [vmem:[%s4203 + $0x34] sm:$0xf]
      %v4604 = vld [vmem:[%s4203 + $0x38] sm:$0x1]
      %v4605 = vld [vmem:[%s4203 + $0x3c] sm:$0xf]
      %v4606 = vld [vmem:[%s4203 + $0x40] sm:$0xf]
      %v4607 = vld [vmem:[%s4203 + $0x44] sm:$0x1]
      %v4608 = vld [vmem:[%s4203 + $0x48] sm:$0xf]
      %v4609 = vld [vmem:[%s4203 + $0x4c] sm:$0xf]
      %v4610 = vld [vmem:[%s4203 + $0x50] sm:$0x1]
      %v4611 = vld [vmem:[%s4203 + $0x54] sm:$0xf]
      %v4612 = vld [vmem:[%s4203 + $0x58] sm:$0xf]
      %v4613 = vld [vmem:[%s4203 + $0x5c] sm:$0x1]
      %v4614 = vld [vmem:[%s4203 + $0x60] sm:$0xf]
      %v4615 = vld [vmem:[%s4203 + $0x64] sm:$0xf]
      %v4616 = vld [vmem:[%s4203 + $0x68] sm:$0x1]
      %v4617 = vld [vmem:[%s4203 + $0x6c] sm:$0xf]
      %v4618 = vld [vmem:[%s4203 + $0x70] sm:$0xf]
      %v4619 = vld [vmem:[%s4203 + $0x74] sm:$0x1]
      %v4620 = vld [vmem:[%s4203 + $0x78] sm:$0xf]
      %v4621 = vld [vmem:[%s4203 + $0x7c] sm:$0xf]
      %v4622 = vld [vmem:[%s4203 + $0x80] sm:$0x1]
      %v4623 = vld [vmem:[%s4203 + $0x84] sm:$0xf]
      %v4624 = vld [vmem:[%s4203 + $0x88] sm:$0xf]
      %v4625 = vld [vmem:[%s4203 + $0x8c] sm:$0x1]
      %v4626 = vld [vmem:[%s4203 + $0x90] sm:$0xf]
      %v4627 = vld [vmem:[%s4203 + $0x94] sm:$0xf]
      %v4628 = vld [vmem:[%s4203 + $0x98] sm:$0x1]
      %v4629 = vld [vmem:[%s4203 + $0x9c] sm:$0xf]
      %v4630 = vld [vmem:[%s4203 + $0xa0] sm:$0xf]
      %v4631 = vld [vmem:[%s4203 + $0xa4] sm:$0x1]
      %v4632 = vld [vmem:[%s4203 + $0xa8] sm:$0xf]
      %v4633 = vld [vmem:[%s4203 + $0xac] sm:$0xf]
      %v4634 = vld [vmem:[%s4203 + $0xb0] sm:$0x1]
      %v4635 = vld [vmem:[%s4203 + $0xb4] sm:$0xf]
      %v4636 = vld [vmem:[%s4203 + $0xb8] sm:$0xf]
      %v4637 = vld [vmem:[%s4203 + $0xbc] sm:$0x1]
      %v4639 = vshrl.u32 %v4590, 16
      %v4641 = vrot.slane %v4639, 4
      %v4642 = vshll.u32 %v4590, 16
      %v4644 = vrot.slane %v4642, 5
      %v4645 = vor.u32 %v4641, %v4644
      %v4646 = vrot.slane %v4645, 4
      %v4648 = vshll.u32 %v4591, 16
      %v4650 = vrot.slane %v4648, 5
      %v4651 = vsel %vm1100, %v4646, %v4650
      %v4652 = vshrl.u32 %v4591, 16
      %v4654 = vrot.slane %v4652, 4
      %v4655 = vor.u32 %v4654, %v4650
      %v4656 = vrot.slane %v4655, 4
      %v4658 = vshll.u32 %v4592, 16
      %v4660 = vrot.slane %v4658, 5
      %v4661 = vsel %vm1100, %v4656, %v4660
      %v4663 = vshrl.u32 %v4593, 16
      %v4665 = vrot.slane %v4663, 4
      %v4666 = vshll.u32 %v4593, 16
      %v4668 = vrot.slane %v4666, 5
      %v4669 = vor.u32 %v4665, %v4668
      %v4670 = vrot.slane %v4669, 4
      %v4672 = vshll.u32 %v4594, 16
      %v4674 = vrot.slane %v4672, 5
      %v4675 = vsel %vm1100, %v4670, %v4674
      %v4676 = vshrl.u32 %v4594, 16
      %v4678 = vrot.slane %v4676, 4
      %v4679 = vor.u32 %v4678, %v4674
      %v4680 = vrot.slane %v4679, 4
      %v4682 = vshll.u32 %v4595, 16
      %v4684 = vrot.slane %v4682, 5
      %v4685 = vsel %vm1100, %v4680, %v4684
      %v4687 = vshrl.u32 %v4596, 16
      %v4689 = vrot.slane %v4687, 4
      %v4690 = vshll.u32 %v4596, 16
      %v4692 = vrot.slane %v4690, 5
      %v4693 = vor.u32 %v4689, %v4692
      %v4694 = vrot.slane %v4693, 4
      %v4696 = vshll.u32 %v4597, 16
      %v4698 = vrot.slane %v4696, 5
      %v4699 = vsel %vm1100, %v4694, %v4698
      %v4700 = vshrl.u32 %v4597, 16
      %v4702 = vrot.slane %v4700, 4
      %v4703 = vor.u32 %v4702, %v4698
      %v4704 = vrot.slane %v4703, 4
      %v4706 = vshll.u32 %v4598, 16
      %v4708 = vrot.slane %v4706, 5
      %v4709 = vsel %vm1100, %v4704, %v4708
      %v4711 = vshrl.u32 %v4599, 16
      %v4713 = vrot.slane %v4711, 4
      %v4714 = vshll.u32 %v4599, 16
      %v4716 = vrot.slane %v4714, 5
      %v4717 = vor.u32 %v4713, %v4716
      %v4718 = vrot.slane %v4717, 4
      %v4720 = vshll.u32 %v4600, 16
      %v4722 = vrot.slane %v4720, 5
      %v4723 = vsel %vm1100, %v4718, %v4722
      %v4724 = vshrl.u32 %v4600, 16
      %v4726 = vrot.slane %v4724, 4
      %v4727 = vor.u32 %v4726, %v4722
      %v4728 = vrot.slane %v4727, 4
      %v4730 = vshll.u32 %v4601, 16
      %v4732 = vrot.slane %v4730, 5
      %v4733 = vsel %vm1100, %v4728, %v4732
      %v4735 = vshrl.u32 %v4602, 16
      %v4737 = vrot.slane %v4735, 4
      %v4738 = vshll.u32 %v4602, 16
      %v4740 = vrot.slane %v4738, 5
      %v4741 = vor.u32 %v4737, %v4740
      %v4742 = vrot.slane %v4741, 4
      %v4744 = vshll.u32 %v4603, 16
      %v4746 = vrot.slane %v4744, 5
      %v4747 = vsel %vm1100, %v4742, %v4746
      %v4748 = vshrl.u32 %v4603, 16
      %v4750 = vrot.slane %v4748, 4
      %v4751 = vor.u32 %v4750, %v4746
      %v4752 = vrot.slane %v4751, 4
      %v4754 = vshll.u32 %v4604, 16
      %v4756 = vrot.slane %v4754, 5
      %v4757 = vsel %vm1100, %v4752, %v4756
      %v4759 = vshrl.u32 %v4605, 16
      %v4761 = vrot.slane %v4759, 4
      %v4762 = vshll.u32 %v4605, 16
      %v4764 = vrot.slane %v4762, 5
      %v4765 = vor.u32 %v4761, %v4764
      %v4766 = vrot.slane %v4765, 4
      %v4768 = vshll.u32 %v4606, 16
      %v4770 = vrot.slane %v4768, 5
      %v4771 = vsel %vm1100, %v4766, %v4770
      %v4772 = vshrl.u32 %v4606, 16
      %v4774 = vrot.slane %v4772, 4
      %v4775 = vor.u32 %v4774, %v4770
      %v4776 = vrot.slane %v4775, 4
      %v4778 = vshll.u32 %v4607, 16
      %v4780 = vrot.slane %v4778, 5
      %v4781 = vsel %vm1100, %v4776, %v4780
      %v4783 = vshrl.u32 %v4608, 16
      %v4785 = vrot.slane %v4783, 4
      %v4786 = vshll.u32 %v4608, 16
      %v4788 = vrot.slane %v4786, 5
      %v4789 = vor.u32 %v4785, %v4788
      %v4790 = vrot.slane %v4789, 4
      %v4792 = vshll.u32 %v4609, 16
      %v4794 = vrot.slane %v4792, 5
      %v4795 = vsel %vm1100, %v4790, %v4794
      %v4796 = vshrl.u32 %v4609, 16
      %v4798 = vrot.slane %v4796, 4
      %v4799 = vor.u32 %v4798, %v4794
      %v4800 = vrot.slane %v4799, 4
      %v4802 = vshll.u32 %v4610, 16
      %v4804 = vrot.slane %v4802, 5
      %v4805 = vsel %vm1100, %v4800, %v4804
      %v4807 = vshrl.u32 %v4611, 16
      %v4809 = vrot.slane %v4807, 4
      %v4810 = vshll.u32 %v4611, 16
      %v4812 = vrot.slane %v4810, 5
      %v4813 = vor.u32 %v4809, %v4812
      %v4814 = vrot.slane %v4813, 4
      %v4816 = vshll.u32 %v4612, 16
      %v4818 = vrot.slane %v4816, 5
      %v4819 = vsel %vm1100, %v4814, %v4818
      %v4820 = vshrl.u32 %v4612, 16
      %v4822 = vrot.slane %v4820, 4
      %v4823 = vor.u32 %v4822, %v4818
      %v4824 = vrot.slane %v4823, 4
      %v4826 = vshll.u32 %v4613, 16
      %v4828 = vrot.slane %v4826, 5
      %v4829 = vsel %vm1100, %v4824, %v4828
      %v4831 = vshrl.u32 %v4614, 16
      %v4833 = vrot.slane %v4831, 4
      %v4834 = vshll.u32 %v4614, 16
      %v4836 = vrot.slane %v4834, 5
      %v4837 = vor.u32 %v4833, %v4836
      %v4838 = vrot.slane %v4837, 4
      %v4840 = vshll.u32 %v4615, 16
      %v4842 = vrot.slane %v4840, 5
      %v4843 = vsel %vm1100, %v4838, %v4842
      %v4844 = vshrl.u32 %v4615, 16
      %v4846 = vrot.slane %v4844, 4
      %v4847 = vor.u32 %v4846, %v4842
      %v4848 = vrot.slane %v4847, 4
      %v4850 = vshll.u32 %v4616, 16
      %v4852 = vrot.slane %v4850, 5
      %v4853 = vsel %vm1100, %v4848, %v4852
      %v4855 = vshrl.u32 %v4617, 16
      %v4857 = vrot.slane %v4855, 4
      %v4858 = vshll.u32 %v4617, 16
      %v4860 = vrot.slane %v4858, 5
      %v4861 = vor.u32 %v4857, %v4860
      %v4862 = vrot.slane %v4861, 4
      %v4864 = vshll.u32 %v4618, 16
      %v4866 = vrot.slane %v4864, 5
      %v4867 = vsel %vm1100, %v4862, %v4866
      %v4868 = vshrl.u32 %v4618, 16
      %v4870 = vrot.slane %v4868, 4
      %v4871 = vor.u32 %v4870, %v4866
      %v4872 = vrot.slane %v4871, 4
      %v4874 = vshll.u32 %v4619, 16
      %v4876 = vrot.slane %v4874, 5
      %v4877 = vsel %vm1100, %v4872, %v4876
      %v4879 = vshrl.u32 %v4620, 16
      %v4881 = vrot.slane %v4879, 4
      %v4882 = vshll.u32 %v4620, 16
      %v4884 = vrot.slane %v4882, 5
      %v4885 = vor.u32 %v4881, %v4884
      %v4886 = vrot.slane %v4885, 4
      %v4888 = vshll.u32 %v4621, 16
      %v4890 = vrot.slane %v4888, 5
      %v4891 = vsel %vm1100, %v4886, %v4890
      %v4892 = vshrl.u32 %v4621, 16
      %v4894 = vrot.slane %v4892, 4
      %v4895 = vor.u32 %v4894, %v4890
      %v4896 = vrot.slane %v4895, 4
      %v4898 = vshll.u32 %v4622, 16
      %v4900 = vrot.slane %v4898, 5
      %v4901 = vsel %vm1100, %v4896, %v4900
      %v4903 = vshrl.u32 %v4623, 16
      %v4905 = vrot.slane %v4903, 4
      %v4906 = vshll.u32 %v4623, 16
      %v4908 = vrot.slane %v4906, 5
      %v4909 = vor.u32 %v4905, %v4908
      %v4910 = vrot.slane %v4909, 4
      %v4912 = vshll.u32 %v4624, 16
      %v4914 = vrot.slane %v4912, 5
      %v4915 = vsel %vm1100, %v4910, %v4914
      %v4916 = vshrl.u32 %v4624, 16
      %v4918 = vrot.slane %v4916, 4
      %v4919 = vor.u32 %v4918, %v4914
      %v4920 = vrot.slane %v4919, 4
      %v4922 = vshll.u32 %v4625, 16
      %v4924 = vrot.slane %v4922, 5
      %v4925 = vsel %vm1100, %v4920, %v4924
      %v4927 = vshrl.u32 %v4626, 16
      %v4929 = vrot.slane %v4927, 4
      %v4930 = vshll.u32 %v4626, 16
      %v4932 = vrot.slane %v4930, 5
      %v4933 = vor.u32 %v4929, %v4932
      %v4934 = vrot.slane %v4933, 4
      %v4936 = vshll.u32 %v4627, 16
      %v4938 = vrot.slane %v4936, 5
      %v4939 = vsel %vm1100, %v4934, %v4938
      %v4940 = vshrl.u32 %v4627, 16
      %v4942 = vrot.slane %v4940, 4
      %v4943 = vor.u32 %v4942, %v4938
      %v4944 = vrot.slane %v4943, 4
      %v4946 = vshll.u32 %v4628, 16
      %v4948 = vrot.slane %v4946, 5
      %v4949 = vsel %vm1100, %v4944, %v4948
      %v4951 = vshrl.u32 %v4629, 16
      %v4953 = vrot.slane %v4951, 4
      %v4954 = vshll.u32 %v4629, 16
      %v4956 = vrot.slane %v4954, 5
      %v4957 = vor.u32 %v4953, %v4956
      %v4958 = vrot.slane %v4957, 4
      %v4960 = vshll.u32 %v4630, 16
      %v4962 = vrot.slane %v4960, 5
      %v4963 = vsel %vm1100, %v4958, %v4962
      %v4964 = vshrl.u32 %v4630, 16
      %v4966 = vrot.slane %v4964, 4
      %v4967 = vor.u32 %v4966, %v4962
      %v4968 = vrot.slane %v4967, 4
      %v4970 = vshll.u32 %v4631, 16
      %v4972 = vrot.slane %v4970, 5
      %v4973 = vsel %vm1100, %v4968, %v4972
      %v4975 = vshrl.u32 %v4632, 16
      %v4977 = vrot.slane %v4975, 4
      %v4978 = vshll.u32 %v4632, 16
      %v4980 = vrot.slane %v4978, 5
      %v4981 = vor.u32 %v4977, %v4980
      %v4982 = vrot.slane %v4981, 4
      %v4984 = vshll.u32 %v4633, 16
      %v4986 = vrot.slane %v4984, 5
      %v4987 = vsel %vm1100, %v4982, %v4986
      %v4988 = vshrl.u32 %v4633, 16
      %v4990 = vrot.slane %v4988, 4
      %v4991 = vor.u32 %v4990, %v4986
      %v4992 = vrot.slane %v4991, 4
      %v4994 = vshll.u32 %v4634, 16
      %v4996 = vrot.slane %v4994, 5
      %v4997 = vsel %vm1100, %v4992, %v4996
      %v4999 = vshrl.u32 %v4635, 16
      %v5001 = vrot.slane %v4999, 4
      %v5002 = vshll.u32 %v4635, 16
      %v5004 = vrot.slane %v5002, 5
      %v5005 = vor.u32 %v5001, %v5004
      %v5006 = vrot.slane %v5005, 4
      %v5008 = vshll.u32 %v4636, 16
      %v5010 = vrot.slane %v5008, 5
      %v5011 = vsel %vm1100, %v5006, %v5010
      %v5012 = vshrl.u32 %v4636, 16
      %v5014 = vrot.slane %v5012, 4
      %v5015 = vor.u32 %v5014, %v5010
      %v5016 = vrot.slane %v5015, 4
      %v5018 = vshll.u32 %v4637, 16
      %v5020 = vrot.slane %v5018, 5
      %v5021 = vsel %vm1100, %v5016, %v5020
      %s5022 = scalar_lea.vmem %s3, 448
      %v5023 = vld [vmem:[%s5022] sm:$0xf]
      %v5024 = vld [vmem:[%s5022 + $0x4] sm:$0xf]
      %v5025 = vld [vmem:[%s5022 + $0x8] sm:$0xf]
      %v5026 = vld [vmem:[%s5022 + $0xc] sm:$0xf]
      %v5027 = vld [vmem:[%s5022 + $0x10] sm:$0xf]
      %v5028 = vld [vmem:[%s5022 + $0x14] sm:$0xf]
      %v5029 = vld [vmem:[%s5022 + $0x18] sm:$0xf]
      %v5030 = vld [vmem:[%s5022 + $0x1c] sm:$0xf]
      %v5031 = vld [vmem:[%s5022 + $0x20] sm:$0xf]
      %v5032 = vld [vmem:[%s5022 + $0x24] sm:$0xf]
      %v5033 = vld [vmem:[%s5022 + $0x28] sm:$0xf]
      %v5034 = vld [vmem:[%s5022 + $0x2c] sm:$0xf]
      %v5035 = vld [vmem:[%s5022 + $0x30] sm:$0xf]
      %v5036 = vld [vmem:[%s5022 + $0x34] sm:$0xf]
      %v5037 = vld [vmem:[%s5022 + $0x38] sm:$0xf]
      %v5038 = vld [vmem:[%s5022 + $0x3c] sm:$0xf]
      %v5039 = vunpack.c.l.b16 %v4651
      %v5040 = vunpack.c.l.b16 %v4661
      %v5041 = vunpack.c.l.b16 %v4675
      %v5042 = vunpack.c.l.b16 %v4685
      %v5043 = vunpack.c.l.b16 %v4699
      %v5044 = vunpack.c.l.b16 %v4709
      %v5045 = vunpack.c.l.b16 %v4723
      %v5046 = vunpack.c.l.b16 %v4733
      %v5047 = vunpack.c.l.b16 %v4747
      %v5048 = vunpack.c.l.b16 %v4757
      %v5049 = vunpack.c.l.b16 %v4771
      %v5050 = vunpack.c.l.b16 %v4781
      %v5051 = vunpack.c.l.b16 %v4795
      %v5052 = vunpack.c.l.b16 %v4805
      %v5053 = vunpack.c.l.b16 %v4819
      %v5054 = vunpack.c.l.b16 %v4829
      %v5055 = vunpack.c.l.b16 %v4843
      %v5056 = vunpack.c.l.b16 %v4853
      %v5057 = vunpack.c.l.b16 %v4867
      %v5058 = vunpack.c.l.b16 %v4877
      %v5059 = vunpack.c.l.b16 %v4891
      %v5060 = vunpack.c.l.b16 %v4901
      %v5061 = vunpack.c.l.b16 %v4915
      %v5062 = vunpack.c.l.b16 %v4925
      %v5063 = vunpack.c.l.b16 %v4939
      %v5064 = vunpack.c.l.b16 %v4949
      %v5065 = vunpack.c.l.b16 %v4963
      %v5066 = vunpack.c.l.b16 %v4973
      %v5067 = vunpack.c.l.b16 %v4987
      %v5068 = vunpack.c.l.b16 %v4997
      %v5069 = vunpack.c.l.b16 %v5011
      %v5070 = vunpack.c.l.b16 %v5021
      %v5071 = vpack.c.b16 %v5040, %v5039
      %v5072 = vpack.c.b16 %v5042, %v5041
      %v5073 = vpack.c.b16 %v5044, %v5043
      %v5074 = vpack.c.b16 %v5046, %v5045
      %v5075 = vpack.c.b16 %v5048, %v5047
      %v5076 = vpack.c.b16 %v5050, %v5049
      %v5077 = vpack.c.b16 %v5052, %v5051
      %v5078 = vpack.c.b16 %v5054, %v5053
      %v5079 = vpack.c.b16 %v5056, %v5055
      %v5080 = vpack.c.b16 %v5058, %v5057
      %v5081 = vpack.c.b16 %v5060, %v5059
      %v5082 = vpack.c.b16 %v5062, %v5061
      %v5083 = vpack.c.b16 %v5064, %v5063
      %v5084 = vpack.c.b16 %v5066, %v5065
      %v5085 = vpack.c.b16 %v5068, %v5067
      %v5086 = vpack.c.b16 %v5070, %v5069
      %v5119 = vunpack.c.l.b16 %v5023
      %v5120 = vunpack.c.l.b16 %v5024
      %v5121 = vunpack.c.l.b16 %v5025
      %v5122 = vunpack.c.l.b16 %v5026
      %v5123 = vunpack.c.l.b16 %v5027
      %v5124 = vunpack.c.l.b16 %v5028
      %v5125 = vunpack.c.l.b16 %v5029
      %v5126 = vunpack.c.l.b16 %v5030
      %v5127 = vunpack.c.l.b16 %v5031
      %v5128 = vunpack.c.l.b16 %v5032
      %v5129 = vunpack.c.l.b16 %v5033
      %v5130 = vunpack.c.l.b16 %v5034
      %v5131 = vunpack.c.l.b16 %v5035
      %v5132 = vunpack.c.l.b16 %v5036
      %v5133 = vunpack.c.l.b16 %v5037
      %v5134 = vunpack.c.l.b16 %v5038
      %v5135 = vpack.c.b16 %v5120, %v5119
      %v5136 = vpack.c.b16 %v5122, %v5121
      %v5137 = vpack.c.b16 %v5124, %v5123
      %v5138 = vpack.c.b16 %v5126, %v5125
      %v5139 = vpack.c.b16 %v5128, %v5127
      %v5140 = vpack.c.b16 %v5130, %v5129
      %v5141 = vpack.c.b16 %v5132, %v5131
      %v5142 = vpack.c.b16 %v5134, %v5133
      %5151 = vmatprep.subr.bf16.mxu0 0
      %5152 = vmatpush1.bf16.msra.mxu0 %v5135
      %5153 = vmatprep.subr.bf16.mxu0 0
      %5154 = vmatpush1.bf16.msra.mxu0 %v5136
      %5155 = vmatprep.subr.bf16.mxu0 0
      %5156 = vmatpush1.bf16.msra.mxu0 %v5137
      %5157 = vmatprep.subr.bf16.mxu0 0
      %5158 = vmatpush1.bf16.msra.mxu0 %v5138
      %5159 = vmatprep.subr.bf16.mxu0 0
      %5160 = vmatpush1.bf16.msra.mxu0 %v5139
      %5161 = vmatprep.subr.bf16.mxu0 0
      %5162 = vmatpush1.bf16.msra.mxu0 %v5140
      %5163 = vmatprep.subr.bf16.mxu0 0
      %5164 = vmatpush1.bf16.msra.mxu0 %v5141
      %5165 = vmatprep.subr.bf16.mxu0 0
      %5166 = vmatpush1.bf16.msra.mxu0 %v5142
      %5167 = vmatprep.subr.bf16.mxu0 0
      %5168 = vmatpush1.bf16.msra.mxu0 0
      %5169 = vmatprep.subr.bf16.mxu0 0
      %5170 = vmatpush1.bf16.msra.mxu0 0
      %5171 = vmatprep.subr.bf16.mxu0 0
      %5172 = vmatpush1.bf16.msra.mxu0 0
      %5173 = vmatprep.subr.bf16.mxu0 0
      %5174 = vmatpush1.bf16.msra.mxu0 0
      %5175 = vmatprep.subr.bf16.mxu0 0
      %5176 = vmatpush1.bf16.msra.mxu0 0
      %5177 = vmatprep.subr.bf16.mxu0 0
      %5178 = vmatpush1.bf16.msra.mxu0 0
      %5179 = vmatprep.subr.bf16.mxu0 0
      %5180 = vmatpush1.bf16.msra.mxu0 0
      %5181 = vmatprep.subr.bf16.mxu0 0
      %5182 = vmatpush1.bf16.msra.mxu0 0
      %5183 = vmatprep.mubr.bf16.mxu0 0
      %5184 = vmatmul.mubr.bf16.gmra.mrb[0].mxu0 %v5071
      %v5185 = vpop.f32.mrb[0].mxu0
      %v5186 = vadd.f32 0.0, %v5185
      %v5187 = vpop.f32.mrb[0].mxu0
      %v5188 = vpop.f32.mrb[0].mxu0
      %v5189 = vadd.f32 0.0, %v5188
      %v5190 = vpop.f32.mrb[0].mxu0
      %5191 = vmatprep.mubr.bf16.mxu0 0
      %5192 = vmatmul.mubr.bf16.gmra.mrb[0].mxu0 %v5072
      %v5193 = vpop.f32.mrb[0].mxu0
      %v5194 = vadd.f32 0.0, %v5193
      %v5195 = vpop.f32.mrb[0].mxu0
      %v5196 = vpop.f32.mrb[0].mxu0
      %v5197 = vadd.f32 0.0, %v5196
      %v5198 = vpop.f32.mrb[0].mxu0
      %5199 = vmatprep.mubr.bf16.mxu0 0
      %5200 = vmatmul.mubr.bf16.gmra.mrb[0].mxu0 %v5073
      %v5201 = vpop.f32.mrb[0].mxu0
      %v5202 = vadd.f32 0.0, %v5201
      %v5203 = vpop.f32.mrb[0].mxu0
      %v5204 = vpop.f32.mrb[0].mxu0
      %v5205 = vadd.f32 0.0, %v5204
      %v5206 = vpop.f32.mrb[0].mxu0
      %5207 = vmatprep.mubr.bf16.mxu0 0
      %5208 = vmatmul.mubr.bf16.gmra.mrb[0].mxu0 %v5074
      %v5209 = vpop.f32.mrb[0].mxu0
      %v5210 = vadd.f32 0.0, %v5209
      %v5211 = vpop.f32.mrb[0].mxu0
      %v5212 = vpop.f32.mrb[0].mxu0
      %v5213 = vadd.f32 0.0, %v5212
      %v5214 = vpop.f32.mrb[0].mxu0
      %5215 = vmatprep.mubr.bf16.mxu0 0
      %5216 = vmatmul.mubr.bf16.gmra.mrb[0].mxu0 %v5075
      %v5217 = vpop.f32.mrb[0].mxu0
      %v5218 = vadd.f32 0.0, %v5217
      %v5219 = vpop.f32.mrb[0].mxu0
      %v5220 = vpop.f32.mrb[0].mxu0
      %v5221 = vadd.f32 0.0, %v5220
      %v5222 = vpop.f32.mrb[0].mxu0
      %5223 = vmatprep.mubr.bf16.mxu0 0
      %5224 = vmatmul.mubr.bf16.gmra.mrb[0].mxu0 %v5076
      %v5225 = vpop.f32.mrb[0].mxu0
      %v5226 = vadd.f32 0.0, %v5225
      %v5227 = vpop.f32.mrb[0].mxu0
      %v5228 = vpop.f32.mrb[0].mxu0
      %v5229 = vadd.f32 0.0, %v5228
      %v5230 = vpop.f32.mrb[0].mxu0
      %5231 = vmatprep.mubr.bf16.mxu0 0
      %5232 = vmatmul.mubr.bf16.gmra.mrb[0].mxu0 %v5077
      %v5233 = vpop.f32.mrb[0].mxu0
      %v5234 = vadd.f32 0.0, %v5233
      %v5235 = vpop.f32.mrb[0].mxu0
      %v5236 = vpop.f32.mrb[0].mxu0
      %v5237 = vadd.f32 0.0, %v5236
      %v5238 = vpop.f32.mrb[0].mxu0
      %5239 = vmatprep.mubr.bf16.mxu0 0
      %5240 = vmatmul.mubr.bf16.gmra.mrb[0].mxu0 %v5078
      %v5241 = vpop.f32.mrb[0].mxu0
      %v5242 = vadd.f32 0.0, %v5241
      %v5243 = vpop.f32.mrb[0].mxu0
      %v5244 = vpop.f32.mrb[0].mxu0
      %v5245 = vadd.f32 0.0, %v5244
      %v5246 = vpop.f32.mrb[0].mxu0
      %5247 = vmatprep.mubr.bf16.mxu0 0
      %5248 = vmatmul.mubr.bf16.gmra.mrb[0].mxu0 %v5079
      %v5249 = vpop.f32.mrb[0].mxu0
      %v5250 = vadd.f32 0.0, %v5249
      %v5251 = vpop.f32.mrb[0].mxu0
      %v5252 = vpop.f32.mrb[0].mxu0
      %v5253 = vadd.f32 0.0, %v5252
      %v5254 = vpop.f32.mrb[0].mxu0
      %5255 = vmatprep.mubr.bf16.mxu0 0
      %5256 = vmatmul.mubr.bf16.gmra.mrb[0].mxu0 %v5080
      %v5257 = vpop.f32.mrb[0].mxu0
      %v5258 = vadd.f32 0.0, %v5257
      %v5259 = vpop.f32.mrb[0].mxu0
      %v5260 = vpop.f32.mrb[0].mxu0
      %v5261 = vadd.f32 0.0, %v5260
      %v5262 = vpop.f32.mrb[0].mxu0
      %5263 = vmatprep.mubr.bf16.mxu0 0
      %5264 = vmatmul.mubr.bf16.gmra.mrb[0].mxu0 %v5081
      %v5265 = vpop.f32.mrb[0].mxu0
      %v5266 = vadd.f32 0.0, %v5265
      %v5267 = vpop.f32.mrb[0].mxu0
      %v5268 = vpop.f32.mrb[0].mxu0
      %v5269 = vadd.f32 0.0, %v5268
      %v5270 = vpop.f32.mrb[0].mxu0
      %5271 = vmatprep.mubr.bf16.mxu0 0
      %5272 = vmatmul.mubr.bf16.gmra.mrb[0].mxu0 %v5082
      %v5273 = vpop.f32.mrb[0].mxu0
      %v5274 = vadd.f32 0.0, %v5273
      %v5275 = vpop.f32.mrb[0].mxu0
      %v5276 = vpop.f32.mrb[0].mxu0
      %v5277 = vadd.f32 0.0, %v5276
      %v5278 = vpop.f32.mrb[0].mxu0
      %5279 = vmatprep.mubr.bf16.mxu0 0
      %5280 = vmatmul.mubr.bf16.gmra.mrb[0].mxu0 %v5083
      %v5281 = vpop.f32.mrb[0].mxu0
      %v5282 = vadd.f32 0.0, %v5281
      %v5283 = vpop.f32.mrb[0].mxu0
      %v5284 = vpop.f32.mrb[0].mxu0
      %v5285 = vadd.f32 0.0, %v5284
      %v5286 = vpop.f32.mrb[0].mxu0
      %5287 = vmatprep.mubr.bf16.mxu0 0
      %5288 = vmatmul.mubr.bf16.gmra.mrb[0].mxu0 %v5084
      %v5289 = vpop.f32.mrb[0].mxu0
      %v5290 = vadd.f32 0.0, %v5289
      %v5291 = vpop.f32.mrb[0].mxu0
      %v5292 = vpop.f32.mrb[0].mxu0
      %v5293 = vadd.f32 0.0, %v5292
      %v5294 = vpop.f32.mrb[0].mxu0
      %5295 = vmatprep.mubr.bf16.mxu0 0
      %5296 = vmatmul.mubr.bf16.gmra.mrb[0].mxu0 %v5085
      %v5297 = vpop.f32.mrb[0].mxu0
      %v5298 = vadd.f32 0.0, %v5297
      %v5299 = vpop.f32.mrb[0].mxu0
      %v5300 = vpop.f32.mrb[0].mxu0
      %v5301 = vadd.f32 0.0, %v5300
      %v5302 = vpop.f32.mrb[0].mxu0
      %5303 = vmatprep.mubr.bf16.mxu0 0
      %5304 = vmatmul.mubr.bf16.gmra.mrb[0].mxu0 %v5086
      %v5305 = vpop.f32.mrb[0].mxu0
      %v5306 = vadd.f32 0.0, %v5305
      %v5307 = vpop.f32.mrb[0].mxu0
      %v5308 = vpop.f32.mrb[0].mxu0
      %v5309 = vadd.f32 0.0, %v5308
      %v5310 = vpop.f32.mrb[0].mxu0
      %5311 = vdwg.mxu0
      %v5312 = vadd.f32 %v4558, %v5186
      %v5313 = vadd.f32 %v4559, %v5189
      %v5314 = vadd.f32 %v4560, %v5194
      %v5315 = vadd.f32 %v4561, %v5197
      %v5316 = vadd.f32 %v4562, %v5202
      %v5317 = vadd.f32 %v4563, %v5205
      %v5318 = vadd.f32 %v4564, %v5210
      %v5319 = vadd.f32 %v4565, %v5213
      %v5320 = vadd.f32 %v4566, %v5218
      %v5321 = vadd.f32 %v4567, %v5221
      %v5322 = vadd.f32 %v4568, %v5226
      %v5323 = vadd.f32 %v4569, %v5229
      %v5324 = vadd.f32 %v4570, %v5234
      %v5325 = vadd.f32 %v4571, %v5237
      %v5326 = vadd.f32 %v4572, %v5242
      %v5327 = vadd.f32 %v4573, %v5245
      %v5328 = vadd.f32 %v4574, %v5250
      %v5329 = vadd.f32 %v4575, %v5253
      %v5330 = vadd.f32 %v4576, %v5258
      %v5331 = vadd.f32 %v4577, %v5261
      %v5332 = vadd.f32 %v4578, %v5266
      %v5333 = vadd.f32 %v4579, %v5269
      %v5334 = vadd.f32 %v4580, %v5274
      %v5335 = vadd.f32 %v4581, %v5277
      %v5336 = vadd.f32 %v4582, %v5282
      %v5337 = vadd.f32 %v4583, %v5285
      %v5338 = vadd.f32 %v4584, %v5290
      %v5339 = vadd.f32 %v4585, %v5293
      %v5340 = vadd.f32 %v4586, %v5298
      %v5341 = vadd.f32 %v4587, %v5301
      %v5342 = vadd.f32 %v4588, %v5306
      %v5343 = vadd.f32 %v4589, %v5309
      %v5344 = vld [vmem:[%s4203] sm:$0xe]
      %v5345 = vld [vmem:[%s4203 + $0xc] sm:$0xe]
      %v5346 = vld [vmem:[%s4203 + $0x18] sm:$0xe]
      %v5347 = vld [vmem:[%s4203 + $0x24] sm:$0xe]
      %v5348 = vld [vmem:[%s4203 + $0x30] sm:$0xe]
      %v5349 = vld [vmem:[%s4203 + $0x3c] sm:$0xe]
      %v5350 = vld [vmem:[%s4203 + $0x48] sm:$0xe]
      %v5351 = vld [vmem:[%s4203 + $0x54] sm:$0xe]
      %v5352 = vld [vmem:[%s4203 + $0x60] sm:$0xe]
      %v5353 = vld [vmem:[%s4203 + $0x6c] sm:$0xe]
      %v5354 = vld [vmem:[%s4203 + $0x78] sm:$0xe]
      %v5355 = vld [vmem:[%s4203 + $0x84] sm:$0xe]
      %v5356 = vld [vmem:[%s4203 + $0x90] sm:$0xe]
      %v5357 = vld [vmem:[%s4203 + $0x9c] sm:$0xe]
      %v5358 = vld [vmem:[%s4203 + $0xa8] sm:$0xe]
      %v5359 = vld [vmem:[%s4203 + $0xb4] sm:$0xe]
      %v5408 = vrot.slane %v5344, 5
      %v5409 = vrot.slane %v5408, 4
      %v5410 = vrot.slane %v4591, 5
      %v5411 = vsel %vm2130, %v5409, %v5410
      %v5412 = vrot.slane %v5410, 4
      %v5413 = vrot.slane %v4592, 5
      %v5414 = vsel %vm2130, %v5412, %v5413
      %v5415 = vrot.slane %v5345, 5
      %v5416 = vrot.slane %v5415, 4
      %v5417 = vrot.slane %v4594, 5
      %v5418 = vsel %vm2130, %v5416, %v5417
      %v5419 = vrot.slane %v5417, 4
      %v5420 = vrot.slane %v4595, 5
      %v5421 = vsel %vm2130, %v5419, %v5420
      %v5422 = vrot.slane %v5346, 5
      %v5423 = vrot.slane %v5422, 4
      %v5424 = vrot.slane %v4597, 5
      %v5425 = vsel %vm2130, %v5423, %v5424
      %v5426 = vrot.slane %v5424, 4
      %v5427 = vrot.slane %v4598, 5
      %v5428 = vsel %vm2130, %v5426, %v5427
      %v5429 = vrot.slane %v5347, 5
      %v5430 = vrot.slane %v5429, 4
      %v5431 = vrot.slane %v4600, 5
      %v5432 = vsel %vm2130, %v5430, %v5431
      %v5433 = vrot.slane %v5431, 4
      %v5434 = vrot.slane %v4601, 5
      %v5435 = vsel %vm2130, %v5433, %v5434
      %v5436 = vrot.slane %v5348, 5
      %v5437 = vrot.slane %v5436, 4
      %v5438 = vrot.slane %v4603, 5
      %v5439 = vsel %vm2130, %v5437, %v5438
      %v5440 = vrot.slane %v5438, 4
      %v5441 = vrot.slane %v4604, 5
      %v5442 = vsel %vm2130, %v5440, %v5441
      %v5443 = vrot.slane %v5349, 5
      %v5444 = vrot.slane %v5443, 4
      %v5445 = vrot.slane %v4606, 5
      %v5446 = vsel %vm2130, %v5444, %v5445
      %v5447 = vrot.slane %v5445, 4
      %v5448 = vrot.slane %v4607, 5
      %v5449 = vsel %vm2130, %v5447, %v5448
      %v5450 = vrot.slane %v5350, 5
      %v5451 = vrot.slane %v5450, 4
      %v5452 = vrot.slane %v4609, 5
      %v5453 = vsel %vm2130, %v5451, %v5452
      %v5454 = vrot.slane %v5452, 4
      %v5455 = vrot.slane %v4610, 5
      %v5456 = vsel %vm2130, %v5454, %v5455
      %v5457 = vrot.slane %v5351, 5
      %v5458 = vrot.slane %v5457, 4
      %v5459 = vrot.slane %v4612, 5
      %v5460 = vsel %vm2130, %v5458, %v5459
      %v5461 = vrot.slane %v5459, 4
      %v5462 = vrot.slane %v4613, 5
      %v5463 = vsel %vm2130, %v5461, %v5462
      %v5464 = vrot.slane %v5352, 5
      %v5465 = vrot.slane %v5464, 4
      %v5466 = vrot.slane %v4615, 5
      %v5467 = vsel %vm2130, %v5465, %v5466
      %v5468 = vrot.slane %v5466, 4
      %v5469 = vrot.slane %v4616, 5
      %v5470 = vsel %vm2130, %v5468, %v5469
      %v5471 = vrot.slane %v5353, 5
      %v5472 = vrot.slane %v5471, 4
      %v5473 = vrot.slane %v4618, 5
      %v5474 = vsel %vm2130, %v5472, %v5473
      %v5475 = vrot.slane %v5473, 4
      %v5476 = vrot.slane %v4619, 5
      %v5477 = vsel %vm2130, %v5475, %v5476
      %v5478 = vrot.slane %v5354, 5
      %v5479 = vrot.slane %v5478, 4
      %v5480 = vrot.slane %v4621, 5
      %v5481 = vsel %vm2130, %v5479, %v5480
      %v5482 = vrot.slane %v5480, 4
      %v5483 = vrot.slane %v4622, 5
      %v5484 = vsel %vm2130, %v5482, %v5483
      %v5485 = vrot.slane %v5355, 5
      %v5486 = vrot.slane %v5485, 4
      %v5487 = vrot.slane %v4624, 5
      %v5488 = vsel %vm2130, %v5486, %v5487
      %v5489 = vrot.slane %v5487, 4
      %v5490 = vrot.slane %v4625, 5
      %v5491 = vsel %vm2130, %v5489, %v5490
      %v5492 = vrot.slane %v5356, 5
      %v5493 = vrot.slane %v5492, 4
      %v5494 = vrot.slane %v4627, 5
      %v5495 = vsel %vm2130, %v5493, %v5494
      %v5496 = vrot.slane %v5494, 4
      %v5497 = vrot.slane %v4628, 5
      %v5498 = vsel %vm2130, %v5496, %v5497
      %v5499 = vrot.slane %v5357, 5
      %v5500 = vrot.slane %v5499, 4
      %v5501 = vrot.slane %v4630, 5
      %v5502 = vsel %vm2130, %v5500, %v5501
      %v5503 = vrot.slane %v5501, 4
      %v5504 = vrot.slane %v4631, 5
      %v5505 = vsel %vm2130, %v5503, %v5504
      %v5506 = vrot.slane %v5358, 5
      %v5507 = vrot.slane %v5506, 4
      %v5508 = vrot.slane %v4633, 5
      %v5509 = vsel %vm2130, %v5507, %v5508
      %v5510 = vrot.slane %v5508, 4
      %v5511 = vrot.slane %v4634, 5
      %v5512 = vsel %vm2130, %v5510, %v5511
      %v5513 = vrot.slane %v5359, 5
      %v5514 = vrot.slane %v5513, 4
      %v5515 = vrot.slane %v4636, 5
      %v5516 = vsel %vm2130, %v5514, %v5515
      %v5517 = vrot.slane %v5515, 4
      %v5518 = vrot.slane %v4637, 5
      %v5519 = vsel %vm2130, %v5517, %v5518
      %s5520 = scalar_lea.vmem %s3, 512
      %v5521 = vld [vmem:[%s5520] sm:$0xf]
      %v5522 = vld [vmem:[%s5520 + $0x4] sm:$0xf]
      %v5523 = vld [vmem:[%s5520 + $0x8] sm:$0xf]
      %v5524 = vld [vmem:[%s5520 + $0xc] sm:$0xf]
      %v5525 = vld [vmem:[%s5520 + $0x10] sm:$0xf]
      %v5526 = vld [vmem:[%s5520 + $0x14] sm:$0xf]
      %v5527 = vld [vmem:[%s5520 + $0x18] sm:$0xf]
      %v5528 = vld [vmem:[%s5520 + $0x1c] sm:$0xf]
      %v5529 = vld [vmem:[%s5520 + $0x20] sm:$0xf]
      %v5530 = vld [vmem:[%s5520 + $0x24] sm:$0xf]
      %v5531 = vld [vmem:[%s5520 + $0x28] sm:$0xf]
      %v5532 = vld [vmem:[%s5520 + $0x2c] sm:$0xf]
      %v5533 = vld [vmem:[%s5520 + $0x30] sm:$0xf]
      %v5534 = vld [vmem:[%s5520 + $0x34] sm:$0xf]
      %v5535 = vld [vmem:[%s5520 + $0x38] sm:$0xf]
      %v5536 = vld [vmem:[%s5520 + $0x3c] sm:$0xf]
      %v5537 = vunpack.c.l.b16 %v5411
      %v5538 = vunpack.c.l.b16 %v5414
      %v5539 = vunpack.c.l.b16 %v5418
      %v5540 = vunpack.c.l.b16 %v5421
      %v5541 = vunpack.c.l.b16 %v5425
      %v5542 = vunpack.c.l.b16 %v5428
      %v5543 = vunpack.c.l.b16 %v5432
      %v5544 = vunpack.c.l.b16 %v5435
      %v5545 = vunpack.c.l.b16 %v5439
      %v5546 = vunpack.c.l.b16 %v5442
      %v5547 = vunpack.c.l.b16 %v5446
      %v5548 = vunpack.c.l.b16 %v5449
      %v5549 = vunpack.c.l.b16 %v5453
      %v5550 = vunpack.c.l.b16 %v5456
      %v5551 = vunpack.c.l.b16 %v5460
      %v5552 = vunpack.c.l.b16 %v5463
      %v5553 = vunpack.c.l.b16 %v5467
      %v5554 = vunpack.c.l.b16 %v5470
      %v5555 = vunpack.c.l.b16 %v5474
      %v5556 = vunpack.c.l.b16 %v5477
      %v5557 = vunpack.c.l.b16 %v5481
      %v5558 = vunpack.c.l.b16 %v5484
      %v5559 = vunpack.c.l.b16 %v5488
      %v5560 = vunpack.c.l.b16 %v5491
      %v5561 = vunpack.c.l.b16 %v5495
      %v5562 = vunpack.c.l.b16 %v5498
      %v5563 = vunpack.c.l.b16 %v5502
      %v5564 = vunpack.c.l.b16 %v5505
      %v5565 = vunpack.c.l.b16 %v5509
      %v5566 = vunpack.c.l.b16 %v5512
      %v5567 = vunpack.c.l.b16 %v5516
      %v5568 = vunpack.c.l.b16 %v5519
      %v5569 = vpack.c.b16 %v5538, %v5537
      %v5570 = vpack.c.b16 %v5540, %v5539
      %v5571 = vpack.c.b16 %v5542, %v5541
      %v5572 = vpack.c.b16 %v5544, %v5543
      %v5573 = vpack.c.b16 %v5546, %v5545
      %v5574 = vpack.c.b16 %v5548, %v5547
      %v5575 = vpack.c.b16 %v5550, %v5549
      %v5576 = vpack.c.b16 %v5552, %v5551
      %v5577 = vpack.c.b16 %v5554, %v5553
      %v5578 = vpack.c.b16 %v5556, %v5555
      %v5579 = vpack.c.b16 %v5558, %v5557
      %v5580 = vpack.c.b16 %v5560, %v5559
      %v5581 = vpack.c.b16 %v5562, %v5561
      %v5582 = vpack.c.b16 %v5564, %v5563
      %v5583 = vpack.c.b16 %v5566, %v5565
      %v5584 = vpack.c.b16 %v5568, %v5567
      %v5617 = vunpack.c.l.b16 %v5521
      %v5618 = vunpack.c.l.b16 %v5522
      %v5619 = vunpack.c.l.b16 %v5523
      %v5620 = vunpack.c.l.b16 %v5524
      %v5621 = vunpack.c.l.b16 %v5525
      %v5622 = vunpack.c.l.b16 %v5526
      %v5623 = vunpack.c.l.b16 %v5527
      %v5624 = vunpack.c.l.b16 %v5528
      %v5625 = vunpack.c.l.b16 %v5529
      %v5626 = vunpack.c.l.b16 %v5530
      %v5627 = vunpack.c.l.b16 %v5531
      %v5628 = vunpack.c.l.b16 %v5532
      %v5629 = vunpack.c.l.b16 %v5533
      %v5630 = vunpack.c.l.b16 %v5534
      %v5631 = vunpack.c.l.b16 %v5535
      %v5632 = vunpack.c.l.b16 %v5536
      %v5633 = vpack.c.b16 %v5618, %v5617
      %v5634 = vpack.c.b16 %v5620, %v5619
      %v5635 = vpack.c.b16 %v5622, %v5621
      %v5636 = vpack.c.b16 %v5624, %v5623
      %v5637 = vpack.c.b16 %v5626, %v5625
      %v5638 = vpack.c.b16 %v5628, %v5627
      %v5639 = vpack.c.b16 %v5630, %v5629
      %v5640 = vpack.c.b16 %v5632, %v5631
      %5649 = vmatprep.subr.bf16.mxu0 0
      %5650 = vmatpush1.bf16.msra.mxu0 %v5633
      %5651 = vmatprep.subr.bf16.mxu0 0
      %5652 = vmatpush1.bf16.msra.mxu0 %v5634
      %5653 = vmatprep.subr.bf16.mxu0 0
      %5654 = vmatpush1.bf16.msra.mxu0 %v5635
      %5655 = vmatprep.subr.bf16.mxu0 0
      %5656 = vmatpush1.bf16.msra.mxu0 %v5636
      %5657 = vmatprep.subr.bf16.mxu0 0
      %5658 = vmatpush1.bf16.msra.mxu0 %v5637
      %5659 = vmatprep.subr.bf16.mxu0 0
      %5660 = vmatpush1.bf16.msra.mxu0 %v5638
      %5661 = vmatprep.subr.bf16.mxu0 0
      %5662 = vmatpush1.bf16.msra.mxu0 %v5639
      %5663 = vmatprep.subr.bf16.mxu0 0
      %5664 = vmatpush1.bf16.msra.mxu0 %v5640
      %5665 = vmatprep.subr.bf16.mxu0 0
      %5666 = vmatpush1.bf16.msra.mxu0 0
      %5667 = vmatprep.subr.bf16.mxu0 0
      %5668 = vmatpush1.bf16.msra.mxu0 0
      %5669 = vmatprep.subr.bf16.mxu0 0
      %5670 = vmatpush1.bf16.msra.mxu0 0
      %5671 = vmatprep.subr.bf16.mxu0 0
      %5672 = vmatpush1.bf16.msra.mxu0 0
      %5673 = vmatprep.subr.bf16.mxu0 0
      %5674 = vmatpush1.bf16.msra.mxu0 0
      %5675 = vmatprep.subr.bf16.mxu0 0
      %5676 = vmatpush1.bf16.msra.mxu0 0
      %5677 = vmatprep.subr.bf16.mxu0 0
      %5678 = vmatpush1.bf16.msra.mxu0 0
      %5679 = vmatprep.subr.bf16.mxu0 0
      %5680 = vmatpush1.bf16.msra.mxu0 0
      %5681 = vmatprep.mubr.bf16.mxu0 0
      %5682 = vmatmul.mubr.bf16.gmra.mrb[0].mxu0 %v5569
      %v5683 = vpop.f32.mrb[0].mxu0
      %v5684 = vadd.f32 0.0, %v5683
      %v5685 = vpop.f32.mrb[0].mxu0
      %v5686 = vpop.f32.mrb[0].mxu0
      %v5687 = vadd.f32 0.0, %v5686
      %v5688 = vpop.f32.mrb[0].mxu0
      %5689 = vmatprep.mubr.bf16.mxu0 0
      %5690 = vmatmul.mubr.bf16.gmra.mrb[0].mxu0 %v5570
      %v5691 = vpop.f32.mrb[0].mxu0
      %v5692 = vadd.f32 0.0, %v5691
      %v5693 = vpop.f32.mrb[0].mxu0
      %v5694 = vpop.f32.mrb[0].mxu0
      %v5695 = vadd.f32 0.0, %v5694
      %v5696 = vpop.f32.mrb[0].mxu0
      %5697 = vmatprep.mubr.bf16.mxu0 0
      %5698 = vmatmul.mubr.bf16.gmra.mrb[0].mxu0 %v5571
      %v5699 = vpop.f32.mrb[0].mxu0
      %v5700 = vadd.f32 0.0, %v5699
      %v5701 = vpop.f32.mrb[0].mxu0
      %v5702 = vpop.f32.mrb[0].mxu0
      %v5703 = vadd.f32 0.0, %v5702
      %v5704 = vpop.f32.mrb[0].mxu0
      %5705 = vmatprep.mubr.bf16.mxu0 0
      %5706 = vmatmul.mubr.bf16.gmra.mrb[0].mxu0 %v5572
      %v5707 = vpop.f32.mrb[0].mxu0
      %v5708 = vadd.f32 0.0, %v5707
      %v5709 = vpop.f32.mrb[0].mxu0
      %v5710 = vpop.f32.mrb[0].mxu0
      %v5711 = vadd.f32 0.0, %v5710
      %v5712 = vpop.f32.mrb[0].mxu0
      %5713 = vmatprep.mubr.bf16.mxu0 0
      %5714 = vmatmul.mubr.bf16.gmra.mrb[0].mxu0 %v5573
      %v5715 = vpop.f32.mrb[0].mxu0
      %v5716 = vadd.f32 0.0, %v5715
      %v5717 = vpop.f32.mrb[0].mxu0
      %v5718 = vpop.f32.mrb[0].mxu0
      %v5719 = vadd.f32 0.0, %v5718
      %v5720 = vpop.f32.mrb[0].mxu0
      %5721 = vmatprep.mubr.bf16.mxu0 0
      %5722 = vmatmul.mubr.bf16.gmra.mrb[0].mxu0 %v5574
      %v5723 = vpop.f32.mrb[0].mxu0
      %v5724 = vadd.f32 0.0, %v5723
      %v5725 = vpop.f32.mrb[0].mxu0
      %v5726 = vpop.f32.mrb[0].mxu0
      %v5727 = vadd.f32 0.0, %v5726
      %v5728 = vpop.f32.mrb[0].mxu0
      %5729 = vmatprep.mubr.bf16.mxu0 0
      %5730 = vmatmul.mubr.bf16.gmra.mrb[0].mxu0 %v5575
      %v5731 = vpop.f32.mrb[0].mxu0
      %v5732 = vadd.f32 0.0, %v5731
      %v5733 = vpop.f32.mrb[0].mxu0
      %v5734 = vpop.f32.mrb[0].mxu0
      %v5735 = vadd.f32 0.0, %v5734
      %v5736 = vpop.f32.mrb[0].mxu0
      %5737 = vmatprep.mubr.bf16.mxu0 0
      %5738 = vmatmul.mubr.bf16.gmra.mrb[0].mxu0 %v5576
      %v5739 = vpop.f32.mrb[0].mxu0
      %v5740 = vadd.f32 0.0, %v5739
      %v5741 = vpop.f32.mrb[0].mxu0
      %v5742 = vpop.f32.mrb[0].mxu0
      %v5743 = vadd.f32 0.0, %v5742
      %v5744 = vpop.f32.mrb[0].mxu0
      %5745 = vmatprep.mubr.bf16.mxu0 0
      %5746 = vmatmul.mubr.bf16.gmra.mrb[0].mxu0 %v5577
      %v5747 = vpop.f32.mrb[0].mxu0
      %v5748 = vadd.f32 0.0, %v5747
      %v5749 = vpop.f32.mrb[0].mxu0
      %v5750 = vpop.f32.mrb[0].mxu0
      %v5751 = vadd.f32 0.0, %v5750
      %v5752 = vpop.f32.mrb[0].mxu0
      %5753 = vmatprep.mubr.bf16.mxu0 0
      %5754 = vmatmul.mubr.bf16.gmra.mrb[0].mxu0 %v5578
      %v5755 = vpop.f32.mrb[0].mxu0
      %v5756 = vadd.f32 0.0, %v5755
      %v5757 = vpop.f32.mrb[0].mxu0
      %v5758 = vpop.f32.mrb[0].mxu0
      %v5759 = vadd.f32 0.0, %v5758
      %v5760 = vpop.f32.mrb[0].mxu0
      %5761 = vmatprep.mubr.bf16.mxu0 0
      %5762 = vmatmul.mubr.bf16.gmra.mrb[0].mxu0 %v5579
      %v5763 = vpop.f32.mrb[0].mxu0
      %v5764 = vadd.f32 0.0, %v5763
      %v5765 = vpop.f32.mrb[0].mxu0
      %v5766 = vpop.f32.mrb[0].mxu0
      %v5767 = vadd.f32 0.0, %v5766
      %v5768 = vpop.f32.mrb[0].mxu0
      %5769 = vmatprep.mubr.bf16.mxu0 0
      %5770 = vmatmul.mubr.bf16.gmra.mrb[0].mxu0 %v5580
      %v5771 = vpop.f32.mrb[0].mxu0
      %v5772 = vadd.f32 0.0, %v5771
      %v5773 = vpop.f32.mrb[0].mxu0
      %v5774 = vpop.f32.mrb[0].mxu0
      %v5775 = vadd.f32 0.0, %v5774
      %v5776 = vpop.f32.mrb[0].mxu0
      %5777 = vmatprep.mubr.bf16.mxu0 0
      %5778 = vmatmul.mubr.bf16.gmra.mrb[0].mxu0 %v5581
      %v5779 = vpop.f32.mrb[0].mxu0
      %v5780 = vadd.f32 0.0, %v5779
      %v5781 = vpop.f32.mrb[0].mxu0
      %v5782 = vpop.f32.mrb[0].mxu0
      %v5783 = vadd.f32 0.0, %v5782
      %v5784 = vpop.f32.mrb[0].mxu0
      %5785 = vmatprep.mubr.bf16.mxu0 0
      %5786 = vmatmul.mubr.bf16.gmra.mrb[0].mxu0 %v5582
      %v5787 = vpop.f32.mrb[0].mxu0
      %v5788 = vadd.f32 0.0, %v5787
      %v5789 = vpop.f32.mrb[0].mxu0
      %v5790 = vpop.f32.mrb[0].mxu0
      %v5791 = vadd.f32 0.0, %v5790
      %v5792 = vpop.f32.mrb[0].mxu0
      %5793 = vmatprep.mubr.bf16.mxu0 0
      %5794 = vmatmul.mubr.bf16.gmra.mrb[0].mxu0 %v5583
      %v5795 = vpop.f32.mrb[0].mxu0
      %v5796 = vadd.f32 0.0, %v5795
      %v5797 = vpop.f32.mrb[0].mxu0
      %v5798 = vpop.f32.mrb[0].mxu0
      %v5799 = vadd.f32 0.0, %v5798
      %v5800 = vpop.f32.mrb[0].mxu0
      %5801 = vmatprep.mubr.bf16.mxu0 0
      %5802 = vmatmul.mubr.bf16.gmra.mrb[0].mxu0 %v5584
      %v5803 = vpop.f32.mrb[0].mxu0
      %v5804 = vadd.f32 0.0, %v5803
      %v5805 = vpop.f32.mrb[0].mxu0
      %v5806 = vpop.f32.mrb[0].mxu0
      %v5807 = vadd.f32 0.0, %v5806
      %v5808 = vpop.f32.mrb[0].mxu0
      %5809 = vdwg.mxu0
      %v5810 = vadd.f32 %v5312, %v5684
      %v5811 = vadd.f32 %v5313, %v5687
      %v5812 = vadd.f32 %v5314, %v5692
      %v5813 = vadd.f32 %v5315, %v5695
      %v5814 = vadd.f32 %v5316, %v5700
      %v5815 = vadd.f32 %v5317, %v5703
      %v5816 = vadd.f32 %v5318, %v5708
      %v5817 = vadd.f32 %v5319, %v5711
      %v5818 = vadd.f32 %v5320, %v5716
      %v5819 = vadd.f32 %v5321, %v5719
      %v5820 = vadd.f32 %v5322, %v5724
      %v5821 = vadd.f32 %v5323, %v5727
      %v5822 = vadd.f32 %v5324, %v5732
      %v5823 = vadd.f32 %v5325, %v5735
      %v5824 = vadd.f32 %v5326, %v5740
      %v5825 = vadd.f32 %v5327, %v5743
      %v5826 = vadd.f32 %v5328, %v5748
      %v5827 = vadd.f32 %v5329, %v5751
      %v5828 = vadd.f32 %v5330, %v5756
      %v5829 = vadd.f32 %v5331, %v5759
      %v5830 = vadd.f32 %v5332, %v5764
      %v5831 = vadd.f32 %v5333, %v5767
      %v5832 = vadd.f32 %v5334, %v5772
      %v5833 = vadd.f32 %v5335, %v5775
      %v5834 = vadd.f32 %v5336, %v5780
      %v5835 = vadd.f32 %v5337, %v5783
      %v5836 = vadd.f32 %v5338, %v5788
      %v5837 = vadd.f32 %v5339, %v5791
      %v5838 = vadd.f32 %v5340, %v5796
      %v5839 = vadd.f32 %v5341, %v5799
      %v5840 = vadd.f32 %v5342, %v5804
      %v5841 = vadd.f32 %v5343, %v5807
      %v5842 = vld [vmem:[%s262] sm:$0x1]
      %v5843 = vadd.f32 %v5810, %v5811
      %v5844 = vadd.f32 %v5843, %v5812
      %v5845 = vadd.f32 %v5844, %v5813
      %v5846 = vadd.f32 %v5845, %v5814
      %v5847 = vadd.f32 %v5846, %v5815
      %v5848 = vadd.f32 %v5847, %v5816
      %v5849 = vadd.f32 %v5848, %v5817
      %v5850 = vadd.f32 %v5849, %v5818
      %v5851 = vadd.f32 %v5850, %v5819
      %v5852 = vadd.f32 %v5851, %v5820
      %v5853 = vadd.f32 %v5852, %v5821
      %v5854 = vadd.f32 %v5853, %v5822
      %v5855 = vadd.f32 %v5854, %v5823
      %v5856 = vadd.f32 %v5855, %v5824
      %v5857 = vadd.f32 %v5856, %v5825
      %v5858 = vadd.f32 %v5857, %v5826
      %v5859 = vadd.f32 %v5858, %v5827
      %v5860 = vadd.f32 %v5859, %v5828
      %v5861 = vadd.f32 %v5860, %v5829
      %v5862 = vadd.f32 %v5861, %v5830
      %v5863 = vadd.f32 %v5862, %v5831
      %v5864 = vadd.f32 %v5863, %v5832
      %v5865 = vadd.f32 %v5864, %v5833
      %v5866 = vadd.f32 %v5865, %v5834
      %v5867 = vadd.f32 %v5866, %v5835
      %v5868 = vadd.f32 %v5867, %v5836
      %v5869 = vadd.f32 %v5868, %v5837
      %v5870 = vadd.f32 %v5869, %v5838
      %v5871 = vadd.f32 %v5870, %v5839
      %v5872 = vadd.f32 %v5871, %v5840
      %v5873 = vadd.f32 %v5872, %v5841
      %v5874 = vrot.slane %v5873, 4
      %v5875 = vadd.f32 %v5873, %v5874
      %v5876 = vrot.slane %v5875, 2
      %v5877 = vadd.f32 %v5875, %v5876
      %v5878 = vrot.slane %v5877, 1
      %v5879 = vadd.f32 %v5877, %v5878
      %v5880 = vadd.f32 %v5842, %v5879
      %5881 = vst [vmem:[%s262] sm:$0x1] %v5880
      %v5882 = vld [vmem:[%s262 + $0x1] sm:$0x1]
      %v5883 = vmul.f32 %v5810, %v5810
      %v5884 = vmul.f32 %v5811, %v5811
      %v5885 = vmul.f32 %v5812, %v5812
      %v5886 = vmul.f32 %v5813, %v5813
      %v5887 = vmul.f32 %v5814, %v5814
      %v5888 = vmul.f32 %v5815, %v5815
      %v5889 = vmul.f32 %v5816, %v5816
      %v5890 = vmul.f32 %v5817, %v5817
      %v5891 = vmul.f32 %v5818, %v5818
      %v5892 = vmul.f32 %v5819, %v5819
      %v5893 = vmul.f32 %v5820, %v5820
      %v5894 = vmul.f32 %v5821, %v5821
      %v5895 = vmul.f32 %v5822, %v5822
      %v5896 = vmul.f32 %v5823, %v5823
      %v5897 = vmul.f32 %v5824, %v5824
      %v5898 = vmul.f32 %v5825, %v5825
      %v5899 = vmul.f32 %v5826, %v5826
      %v5900 = vmul.f32 %v5827, %v5827
      %v5901 = vmul.f32 %v5828, %v5828
      %v5902 = vmul.f32 %v5829, %v5829
      %v5903 = vmul.f32 %v5830, %v5830
      %v5904 = vmul.f32 %v5831, %v5831
      %v5905 = vmul.f32 %v5832, %v5832
      %v5906 = vmul.f32 %v5833, %v5833
      %v5907 = vmul.f32 %v5834, %v5834
      %v5908 = vmul.f32 %v5835, %v5835
      %v5909 = vmul.f32 %v5836, %v5836
      %v5910 = vmul.f32 %v5837, %v5837
      %v5911 = vmul.f32 %v5838, %v5838
      %v5912 = vmul.f32 %v5839, %v5839
      %v5913 = vmul.f32 %v5840, %v5840
      %v5914 = vmul.f32 %v5841, %v5841
      %v5915 = vadd.f32 %v5883, %v5884
      %v5916 = vadd.f32 %v5915, %v5885
      %v5917 = vadd.f32 %v5916, %v5886
      %v5918 = vadd.f32 %v5917, %v5887
      %v5919 = vadd.f32 %v5918, %v5888
      %v5920 = vadd.f32 %v5919, %v5889
      %v5921 = vadd.f32 %v5920, %v5890
      %v5922 = vadd.f32 %v5921, %v5891
      %v5923 = vadd.f32 %v5922, %v5892
      %v5924 = vadd.f32 %v5923, %v5893
      %v5925 = vadd.f32 %v5924, %v5894
      %v5926 = vadd.f32 %v5925, %v5895
      %v5927 = vadd.f32 %v5926, %v5896
      %v5928 = vadd.f32 %v5927, %v5897
      %v5929 = vadd.f32 %v5928, %v5898
      %v5930 = vadd.f32 %v5929, %v5899
      %v5931 = vadd.f32 %v5930, %v5900
      %v5932 = vadd.f32 %v5931, %v5901
      %v5933 = vadd.f32 %v5932, %v5902
      %v5934 = vadd.f32 %v5933, %v5903
      %v5935 = vadd.f32 %v5934, %v5904
      %v5936 = vadd.f32 %v5935, %v5905
      %v5937 = vadd.f32 %v5936, %v5906
      %v5938 = vadd.f32 %v5937, %v5907
      %v5939 = vadd.f32 %v5938, %v5908
      %v5940 = vadd.f32 %v5939, %v5909
      %v5941 = vadd.f32 %v5940, %v5910
      %v5942 = vadd.f32 %v5941, %v5911
      %v5943 = vadd.f32 %v5942, %v5912
      %v5944 = vadd.f32 %v5943, %v5913
      %v5945 = vadd.f32 %v5944, %v5914
      %v5946 = vrot.slane %v5945, 4
      %v5947 = vadd.f32 %v5945, %v5946
      %v5948 = vrot.slane %v5947, 2
      %v5949 = vadd.f32 %v5947, %v5948
      %v5950 = vrot.slane %v5949, 1
      %v5951 = vadd.f32 %v5949, %v5950
      %v5952 = vadd.f32 %v5882, %v5951
      %5953 = vst [vmem:[%s262 + $0x1] sm:$0x1] %v5952
      %v5954 = vpack.c.bf16 %v5811, %v5810
      %v5955 = vpack.c.bf16 %v5813, %v5812
      %v5956 = vpack.c.bf16 %v5815, %v5814
      %v5957 = vpack.c.bf16 %v5817, %v5816
      %v5958 = vpack.c.bf16 %v5819, %v5818
      %v5959 = vpack.c.bf16 %v5821, %v5820
      %v5960 = vpack.c.bf16 %v5823, %v5822
      %v5961 = vpack.c.bf16 %v5825, %v5824
      %v5962 = vpack.c.bf16 %v5827, %v5826
      %v5963 = vpack.c.bf16 %v5829, %v5828
      %v5964 = vpack.c.bf16 %v5831, %v5830
      %v5965 = vpack.c.bf16 %v5833, %v5832
      %v5966 = vpack.c.bf16 %v5835, %v5834
      %v5967 = vpack.c.bf16 %v5837, %v5836
      %v5968 = vpack.c.bf16 %v5839, %v5838
      %v5969 = vpack.c.bf16 %v5841, %v5840
      %v5986 = vunpack.c.l.b16 %v5954
      %v5987 = vunpack.c.h.b16 %v5954
      %v5988 = vunpack.c.l.b16 %v5955
      %v5989 = vunpack.c.h.b16 %v5955
      %v5990 = vunpack.c.l.b16 %v5956
      %v5991 = vunpack.c.h.b16 %v5956
      %v5992 = vunpack.c.l.b16 %v5957
      %v5993 = vunpack.c.h.b16 %v5957
      %v5994 = vunpack.c.l.b16 %v5958
      %v5995 = vunpack.c.h.b16 %v5958
      %v5996 = vunpack.c.l.b16 %v5959
      %v5997 = vunpack.c.h.b16 %v5959
      %v5998 = vunpack.c.l.b16 %v5960
      %v5999 = vunpack.c.h.b16 %v5960
      %v6000 = vunpack.c.l.b16 %v5961
      %v6001 = vunpack.c.h.b16 %v5961
      %v6002 = vunpack.c.l.b16 %v5962
      %v6003 = vunpack.c.h.b16 %v5962
      %v6004 = vunpack.c.l.b16 %v5963
      %v6005 = vunpack.c.h.b16 %v5963
      %v6006 = vunpack.c.l.b16 %v5964
      %v6007 = vunpack.c.h.b16 %v5964
      %v6008 = vunpack.c.l.b16 %v5965
      %v6009 = vunpack.c.h.b16 %v5965
      %v6010 = vunpack.c.l.b16 %v5966
      %v6011 = vunpack.c.h.b16 %v5966
      %v6012 = vunpack.c.l.b16 %v5967
      %v6013 = vunpack.c.h.b16 %v5967
      %v6014 = vunpack.c.l.b16 %v5968
      %v6015 = vunpack.c.h.b16 %v5968
      %v6016 = vunpack.c.l.b16 %v5969
      %v6017 = vunpack.c.h.b16 %v5969
      %v6018 = vpack.c.b16 %v5986, %v5986
      %v6019 = vpack.c.b16 %v5987, %v5987
      %v6020 = vpack.c.b16 %v5988, %v5988
      %v6021 = vpack.c.b16 %v5989, %v5989
      %v6022 = vpack.c.b16 %v5990, %v5990
      %v6023 = vpack.c.b16 %v5991, %v5991
      %v6024 = vpack.c.b16 %v5992, %v5992
      %v6025 = vpack.c.b16 %v5993, %v5993
      %v6026 = vpack.c.b16 %v5994, %v5994
      %v6027 = vpack.c.b16 %v5995, %v5995
      %v6028 = vpack.c.b16 %v5996, %v5996
      %v6029 = vpack.c.b16 %v5997, %v5997
      %v6030 = vpack.c.b16 %v5998, %v5998
      %v6031 = vpack.c.b16 %v5999, %v5999
      %v6032 = vpack.c.b16 %v6000, %v6000
      %v6033 = vpack.c.b16 %v6001, %v6001
      %v6034 = vpack.c.b16 %v6002, %v6002
      %v6035 = vpack.c.b16 %v6003, %v6003
      %v6036 = vpack.c.b16 %v6004, %v6004
      %v6037 = vpack.c.b16 %v6005, %v6005
      %v6038 = vpack.c.b16 %v6006, %v6006
      %v6039 = vpack.c.b16 %v6007, %v6007
      %v6040 = vpack.c.b16 %v6008, %v6008
      %v6041 = vpack.c.b16 %v6009, %v6009
      %v6042 = vpack.c.b16 %v6010, %v6010
      %v6043 = vpack.c.b16 %v6011, %v6011
      %v6044 = vpack.c.b16 %v6012, %v6012
      %v6045 = vpack.c.b16 %v6013, %v6013
      %v6046 = vpack.c.b16 %v6014, %v6014
      %v6047 = vpack.c.b16 %v6015, %v6015
      %v6048 = vpack.c.b16 %v6016, %v6016
      %v6049 = vpack.c.b16 %v6017, %v6017
      %6082 = vst [vmem:[%s256] sm:$0xf] %v6018
      %6083 = vst [vmem:[%s256 + $0x4] sm:$0xf] %v6019
      %6084 = vst [vmem:[%s256 + $0x8] sm:$0xf] %v6020
      %6085 = vst [vmem:[%s256 + $0xc] sm:$0xf] %v6021
      %6086 = vst [vmem:[%s256 + $0x10] sm:$0xf] %v6022
      %6087 = vst [vmem:[%s256 + $0x14] sm:$0xf] %v6023
      %6088 = vst [vmem:[%s256 + $0x18] sm:$0xf] %v6024
      %6089 = vst [vmem:[%s256 + $0x1c] sm:$0xf] %v6025
      %6090 = vst [vmem:[%s256 + $0x20] sm:$0xf] %v6026
      %6091 = vst [vmem:[%s256 + $0x24] sm:$0xf] %v6027
      %6092 = vst [vmem:[%s256 + $0x28] sm:$0xf] %v6028
      %6093 = vst [vmem:[%s256 + $0x2c] sm:$0xf] %v6029
      %6094 = vst [vmem:[%s256 + $0x30] sm:$0xf] %v6030
      %6095 = vst [vmem:[%s256 + $0x34] sm:$0xf] %v6031
      %6096 = vst [vmem:[%s256 + $0x38] sm:$0xf] %v6032
      %6097 = vst [vmem:[%s256 + $0x3c] sm:$0xf] %v6033
      %6098 = vst [vmem:[%s256 + $0x40] sm:$0xf] %v6034
      %6099 = vst [vmem:[%s256 + $0x44] sm:$0xf] %v6035
      %6100 = vst [vmem:[%s256 + $0x48] sm:$0xf] %v6036
      %6101 = vst [vmem:[%s256 + $0x4c] sm:$0xf] %v6037
      %6102 = vst [vmem:[%s256 + $0x50] sm:$0xf] %v6038
      %6103 = vst [vmem:[%s256 + $0x54] sm:$0xf] %v6039
      %6104 = vst [vmem:[%s256 + $0x58] sm:$0xf] %v6040
      %6105 = vst [vmem:[%s256 + $0x5c] sm:$0xf] %v6041
      %6106 = vst [vmem:[%s256 + $0x60] sm:$0xf] %v6042
      %6107 = vst [vmem:[%s256 + $0x64] sm:$0xf] %v6043
      %6108 = vst [vmem:[%s256 + $0x68] sm:$0xf] %v6044
      %6109 = vst [vmem:[%s256 + $0x6c] sm:$0xf] %v6045
      %6110 = vst [vmem:[%s256 + $0x70] sm:$0xf] %v6046
      %6111 = vst [vmem:[%s256 + $0x74] sm:$0xf] %v6047
      %6112 = vst [vmem:[%s256 + $0x78] sm:$0xf] %v6048
      %6113 = vst [vmem:[%s256 + $0x7c] sm:$0xf] %v6049
      %s6114 = sadd.s32 %s21, %s22
      %s6115 = smul.u32 32, %s6114
      %p6116 = scmp.lt.s32.totalorder %s6115, 63
      %s6117 = scalar_select %p6116, %s6115, 63
      %s6118 = smul.addr %s6117, 4
      %s6119 = scalar_lea.vmem %s4, %s6118
      %p6120 = scmp.lt.s32.totalorder %s21, 1
      %s6121 = scalar_select %p6120, %s21, 1
      %s6122 = smul.addr %s6121, 8
      %s6123 = scalar_lea.vmem %s5, %s6122
      // Predicated region
      $region41: #{bottleneck_forward.5} parent=35 // pred_check
        %p6124 = pneg %p140
      $region42: #{bottleneck_forward.5} parent=35 // pred_check_branch
        %6126 = sbr.rel (%p6124) target = $region44
      $region43: #{bottleneck_forward.5} parent=35 // pred_region
        %s6127 = sadd.s32 %s21, %s22
        %s6128 = smul.u32 32, %s6127
      $region44: #{bottleneck_forward.5} parent=35 // pred_fallthru
        _
      // Predicated region
      $region45: #{bottleneck_forward.5} parent=35 // pred_check
        %p6129 = pneg %p166
      $region46: #{bottleneck_forward.5} parent=35 // pred_check_branch
        %6131 = sbr.rel (%p6129) target = $region48
      $region47: #{bottleneck_forward.5} parent=35 // pred_region
        _
      $region48: #{bottleneck_forward.5} parent=35 // pred_fallthru
        _
    $region36: #{bottleneck_forward.5} parent=5 // pred_fallthru
      _
    %p6132 = scmp.le.s32.totalorder 2, %s12
    // Predicated region
    $region49: #{bottleneck_forward.5} parent=5 // pred_check
      %p6133 = pneg %p6132
    $region50: #{bottleneck_forward.5} parent=5 // pred_check_branch
      %6135 = sbr.rel (%p6133) target = $region52
    $region51: #{bottleneck_forward.5} parent=5 // pred_region
      %s6136 = ssub.s32 %s12, 2
      // Predicated region
      $region53: #{bottleneck_forward.5} parent=51 // pred_check
        %p6137 = pneg %p146
      $region54: #{bottleneck_forward.5} parent=51 // pred_check_branch
        %6139 = sbr.rel (%p6137) target = $region56
      $region55: #{bottleneck_forward.5} parent=51 // pred_region
        %s6140 = sadd.s32 %s23, %s24
        %s6141 = smul.u32 32, %s6140
        %p6142 = scmp.lt.s32.totalorder %s6141, 63
        %s6143 = scalar_select %p6142, %s6141, 63
        %s6144 = smul.addr %s6143, 4
        %s6145 = scalar_lea.vmem %s4, %s6144
      $region56: #{bottleneck_forward.5} parent=51 // pred_fallthru
        _
      // Predicated region
      $region57: #{bottleneck_forward.5} parent=51 // pred_check
        %p6146 = pneg %p172
      $region58: #{bottleneck_forward.5} parent=51 // pred_check_branch
        %6148 = sbr.rel (%p6146) target = $region60
      $region59: #{bottleneck_forward.5} parent=51 // pred_region
        %p6149 = scmp.lt.s32.totalorder %s23, 1
        %s6150 = scalar_select %p6149, %s23, 1
        %s6151 = smul.addr %s6150, 8
        %s6152 = scalar_lea.vmem %s5, %s6151
      $region60: #{bottleneck_forward.5} parent=51 // pred_fallthru
        _
    $region52: #{bottleneck_forward.5} parent=5 // pred_fallthru
      _
  $region6: #{bottleneck_forward.5} parent=0 // loop_footer
    %s16 = sadd.s32 1, %s12
  $region7: #{bottleneck_forward.5} parent=0 // loop_footer_branch
    %11 = sbr.rel target = $region3
  $region8: #{bottleneck_forward.5} parent=0 // loop_exit
    _

</llo_original>
